<compile_context>
chip_gen: v7x
topology: tpu7x:2x2x1
jax: 0.10.0
libtpu: 0.0.40
codegen_flags: <defaults>
</compile_context>

<pallas_src>
import numpy as np

import jax
import jax.numpy as jnp
from jax.experimental import pallas as pl
from jax.experimental.pallas import tpu as pltpu


# ----------------------------------------------------------------------------
# Static layout helpers
# ----------------------------------------------------------------------------
def _round8(n):
    return (n + 7) // 8 * 8


def _padded_rows(H, W):
    # Rows of the zero-padded flat activation buffer for an HxW image: largest
    # conv-tap offset is 2*(W+2)+2 and each tap slab is H*(W+2) rows long.
    return _round8((H + 2) * (W + 2) + 2)


def _layer_dims(H, W):
    """Per conv layer: (H, W, Wp=W+2, slab_rows=H*Wp, padded_rows)."""
    dims = []
    h, w = H, W
    for _ in range(3):
        dims.append((h, w, w + 2, h * (w + 2), _padded_rows(h, w)))
        h, w = h // 2, w // 2
    return dims, (h, w)          # (h, w) = spatial size after the 3 pools


def _pool_selectors(H, W, n_dst_rows, pad_dst):
    """Four one-hot gather matrices (one per 2x2 window position).

    S[k] @ y picks, for every pool output position, the k-th window element of
    the conv output y (y rows indexed h*(W+2)+w).  Destination rows are either
    the next layer's zero-padded flat layout (pad_dst=True) or a dense
    ho*Wo+wo layout (pad_dst=False).  All-zero destination rows give the zero
    padding of the next layer's buffer for free."""
    Wp = W + 2
    Ho, Wo = H // 2, W // 2
    S = np.zeros((4, n_dst_rows, H * Wp), np.float32)
    for k, (a, b) in enumerate(((0, 0), (0, 1), (1, 0), (1, 1))):
        for ho in range(Ho):
            for wo in range(Wo):
                src = (2 * ho + a) * Wp + (2 * wo + b)
                dst = (ho + 1) * (Wo + 2) + (wo + 1) if pad_dst else ho * Wo + wo
                S[k, dst, src] = 1.0
    return S


# ----------------------------------------------------------------------------
# Fused Pallas kernel (whole network, one grid step per image)
# ----------------------------------------------------------------------------
def _make_kernel(H, W, Q):
    dims, _ = _layer_dims(H, W)
    (H1, _, Wp1, _, _), (H2, _, Wp2, _, _), (H3, _, Wp3, _, _) = dims

    def conv3x3_relu(src_ref, w_ref, b_ref, Hl, Wpl):
        # src_ref: zero-padded flat activation (rows, Cin); w_ref: (9, Cin, Cout)
        rows = Hl * Wpl
        acc = b_ref[...]                                   # (1, Cout) f32 (bias-init)
        for kh in range(3):
            for kw in range(3):
                off = kh * Wpl + kw
                lhs = src_ref[off:off + rows, :].astype(jnp.bfloat16)
                acc = acc + jnp.dot(lhs, w_ref[kh * 3 + kw],
                                    preferred_element_type=jnp.float32)
        return jnp.maximum(acc, 0.0)                       # (rows, Cout) f32

    def maxpool_into(y, s_ref, dst_ref):
        # 2x2/stride-2 max-pool via 4 one-hot gather matmuls; writes the next
        # layer's zero-padded flat buffer in one full-ref store.
        p = jnp.dot(s_ref[0], y, preferred_element_type=jnp.float32)
        for k in range(1, 4):
            p = jnp.maximum(
                p, jnp.dot(s_ref[k], y, preferred_element_type=jnp.float32))
        dst_ref[...] = p

    def kernel(x_ref, c1w, c1b, s1, c2w, c2b, s2, c3w, c3b, s3,
               f1w, f1b, f2w, f2b, o_ref, xp2_ref, xp3_ref):
        y1 = conv3x3_relu(x_ref, c1w, c1b, H1, Wp1)        # conv1 + relu
        maxpool_into(y1, s1, xp2_ref)                      # pool1 -> padded L2 input
        y2 = conv3x3_relu(xp2_ref, c2w, c2b, H2, Wp2)      # conv2 + relu
        maxpool_into(y2, s2, xp3_ref)                      # pool2 -> padded L3 input
        y3 = conv3x3_relu(xp3_ref, c3w, c3b, H3, Wp3)      # conv3 + relu

        # pool3 + flatten + fc1 fused; PyTorch's (C,H,W) view order is folded
        # into f1w's (q, cin, out) layout; fc1 bias folded into the accumulator.
        acc = f1b[...]                                     # (1, 64)
        for q in range(Q):
            pq = jnp.dot(s3[4 * q], y3, preferred_element_type=jnp.float32)
            for k in range(1, 4):
                pq = jnp.maximum(
                    pq, jnp.dot(s3[4 * q + k], y3,
                                preferred_element_type=jnp.float32))
            acc = acc + jnp.dot(pq.astype(jnp.bfloat16), f1w[q],
                                preferred_element_type=jnp.float32)
        hid = jnp.maximum(acc, 0.0)                        # (1, 64)
        logits = jnp.dot(hid.astype(jnp.bfloat16), f2w[...],
                         preferred_element_type=jnp.float32) + f2b[...]
        o_ref[...] = logits                                # (1, num_classes)

    return kernel


# ----------------------------------------------------------------------------
# Forward pass wrapper
# ----------------------------------------------------------------------------
@jax.jit
def convnet_forward(params, x_nchw):
    """x_nchw: (N, Cin, H, W) float32 -> logits (N, num_classes)."""
    N, Cin, H, W = x_nchw.shape
    assert H % 8 == 0 and W % 8 == 0, "three 2x2 pools need H, W % 8 == 0"
    dims, (Ho3, Wo3) = _layer_dims(H, W)
    (H1, W1, _, rows1, R1), (H2, W2, _, rows2, R2), (H3, W3, _, rows3, R3) = dims
    Q = Ho3 * Wo3
    num_classes = params["f2b"].shape[-1]

    # Layout plumbing on the raw (tiny) input only:
    # NCHW -> NHWC -> zero-padded flat rows (h*(W+2)+w), channels on lanes.
    x = jnp.transpose(x_nchw, (0, 2, 3, 1)).astype(jnp.float32)
    x = jnp.pad(x, ((0, 0), (1, 1), (1, 1), (0, 0)))
    x = x.reshape(N, (H + 2) * (W + 2), Cin)
    x = jnp.pad(x, ((0, 0), (0, R1 - (H + 2) * (W + 2)), (0, 0)))

    # Constant one-hot pool/gather matrices (host-side, trace time only).
    s1 = jnp.asarray(_pool_selectors(H1, W1, R2, pad_dst=True))
    s2 = jnp.asarray(_pool_selectors(H2, W2, R3, pad_dst=True))
    s3 = jnp.asarray(
        _pool_selectors(H3, W3, Q, pad_dst=False)
        .transpose(1, 0, 2).reshape(4 * Q, 1, rows3))

    kernel = _make_kernel(H, W, Q)

    def full(shape):
        nd = len(shape)
        return pl.BlockSpec(tuple(shape), lambda b, _nd=nd: (0,) * _nd)

    in_specs = [
        pl.BlockSpec((None, R1, Cin), lambda b: (b, 0, 0)),
        full(params["c1w"].shape), full(params["c1b"].shape), full(s1.shape),
        full(params["c2w"].shape), full(params["c2b"].shape), full(s2.shape),
        full(params["c3w"].shape), full(params["c3b"].shape), full(s3.shape),
        full(params["f1w"].shape), full(params["f1b"].shape),
        full(params["f2w"].shape), full(params["f2b"].shape),
    ]

    out = pl.pallas_call(
        kernel,
        out_shape=jax.ShapeDtypeStruct((N, 1, num_classes), jnp.float32),
        grid=(N,),
        in_specs=in_specs,
        out_specs=pl.BlockSpec((None, 1, num_classes), lambda b: (b, 0, 0)),
        scratch_shapes=[
            pltpu.VMEM((R2, params["c1w"].shape[-1]), jnp.float32),  # padded L2 input
            pltpu.VMEM((R3, params["c2w"].shape[-1]), jnp.float32),  # padded L3 input
        ],
        compiler_params=pltpu.CompilerParams(
            dimension_semantics=("parallel",)),
    )(x, params["c1w"], params["c1b"], s1,
      params["c2w"], params["c2b"], s2,
      params["c3w"], params["c3b"], s3,
      params["f1w"], params["f1b"], params["f2w"], params["f2b"])

    return out.reshape(N, num_classes)


# ----------------------------------------------------------------------------
# Parameter init (deterministic, synthetic), in kernel-friendly layouts
# ----------------------------------------------------------------------------
def init_params(key, input_shape, num_classes):
    c_in, hx, hy = input_shape
    assert hx % 8 == 0 and hy % 8 == 0
    Q = (hx // 8) * (hy // 8)
    keys = jax.random.split(key, 10)

    def conv_w(k, cin, cout):
        # Tap-major layout (9, cin, cout); a PyTorch Conv2d weight Wt of shape
        # (cout, cin, 3, 3) maps here as Wt.permute(2, 3, 1, 0).reshape(9, cin, cout).
        return (jax.random.normal(k, (9, cin, cout), jnp.float32) * 0.05
                ).astype(jnp.bfloat16)

    def bias(k, c):
        return jax.random.normal(k, (1, c), jnp.float32) * 0.05

    conv_out_size = 32 * Q
    # fc1 stored as (q, cin, out): from a PyTorch Linear weight W1 of shape
    # (64, conv_out_size) this is W1.T.reshape(32, Q, 64).transpose(1, 0, 2) --
    # i.e. the NCHW x.view(N, -1) flatten order is folded into the weight.
    f1w = (jax.random.normal(keys[6], (conv_out_size, 64), jnp.float32) * 0.05
           ).reshape(32, Q, 64).transpose(1, 0, 2).astype(jnp.bfloat16)
    # fc2 stored as (in, out) == PyTorch weight.T
    f2w = (jax.random.normal(keys[8], (64, num_classes), jnp.float32) * 0.05
           ).astype(jnp.bfloat16)

    return {
        "c1w": conv_w(keys[0], c_in, 16), "c1b": bias(keys[1], 16),
        "c2w": conv_w(keys[2], 16, 32),   "c2b": bias(keys[3], 32),
        "c3w": conv_w(keys[4], 32, 32),   "c3b": bias(keys[5], 32),
        "f1w": f1w,                       "f1b": bias(keys[7], 64),
        "f2w": f2w,                       "f2b": bias(keys[9], num_classes),
    }


if __name__ == "__main__":
    # Small shapes consistent with the module: input_shape=(4, 16, 16),
    # num_classes=10, batch=2.  Spatial 16 -> 8 -> 4 -> 2, flat = 32*2*2 = 128.
    input_shape = (4, 16, 16)
    num_classes = 10
    batch = 2

    key = jax.random.PRNGKey(0)
    k_x, k_p = jax.random.split(key)
    x = jax.random.normal(k_x, (batch,) + input_shape, jnp.float32)
    params = init_params(k_p, input_shape, num_classes)

    logits = convnet_forward(params, x)
    logits = jax.block_until_ready(logits)
    assert logits.shape == (batch, num_classes), logits.shape
    assert logits.dtype == jnp.float32
    assert bool(jnp.all(jnp.isfinite(logits)))
    print("KERNEL_OK")
</pallas_src>

<mosaic_0001>
module attributes {stable_mosaic.version = 11 : i64} {
  func.func @kernel(%arg0: i32, %arg1: memref<1x328x4xf32, #tpu.memory_space<vmem>>, %arg2: memref<9x4x16xbf16, #tpu.memory_space<vmem>>, %arg3: memref<1x16xf32, #tpu.memory_space<vmem>>, %arg4: memref<4x104x288xf32, #tpu.memory_space<vmem>>, %arg5: memref<9x16x32xbf16, #tpu.memory_space<vmem>>, %arg6: memref<1x32xf32, #tpu.memory_space<vmem>>, %arg7: memref<4x40x80xf32, #tpu.memory_space<vmem>>, %arg8: memref<9x32x32xbf16, #tpu.memory_space<vmem>>, %arg9: memref<1x32xf32, #tpu.memory_space<vmem>>, %arg10: memref<16x1x24xf32, #tpu.memory_space<vmem>>, %arg11: memref<4x32x64xbf16, #tpu.memory_space<vmem>>, %arg12: memref<1x64xf32, #tpu.memory_space<vmem>>, %arg13: memref<64x10xbf16, #tpu.memory_space<vmem>>, %arg14: memref<1x10xf32, #tpu.memory_space<vmem>>, %arg15: memref<1x1x10xf32, #tpu.memory_space<vmem>>, %arg16: memref<104x16xf32, #tpu.memory_space<vmem>>, %arg17: memref<40x32xf32, #tpu.memory_space<vmem>>) attributes {dimension_semantics = [#tpu.dimension_semantics<parallel>], iteration_bounds = array<i64: 2>, scalar_prefetch = 0 : i64, scratch_operands = 2 : i64, tpu.core_type = #tpu.core_type<tc>, window_params = [{transform_indices = @transform_0, window_bounds = array<i64: 1, 328, 4>}, {pipeline_mode = #tpu.pipeline_mode<synchronous>, transform_indices = @transform_1, window_bounds = array<i64: 9, 4, 16>}, {pipeline_mode = #tpu.pipeline_mode<synchronous>, transform_indices = @transform_2, window_bounds = array<i64: 1, 16>}, {pipeline_mode = #tpu.pipeline_mode<synchronous>, transform_indices = @transform_3, window_bounds = array<i64: 4, 104, 288>}, {pipeline_mode = #tpu.pipeline_mode<synchronous>, transform_indices = @transform_4, window_bounds = array<i64: 9, 16, 32>}, {pipeline_mode = #tpu.pipeline_mode<synchronous>, transform_indices = @transform_5, window_bounds = array<i64: 1, 32>}, {pipeline_mode = #tpu.pipeline_mode<synchronous>, transform_indices = @transform_6, window_bounds = array<i64: 4, 40, 80>}, {pipeline_mode = #tpu.pipeline_mode<synchronous>, transform_indices = @transform_7, window_bounds = array<i64: 9, 32, 32>}, {pipeline_mode = #tpu.pipeline_mode<synchronous>, transform_indices = @transform_8, window_bounds = array<i64: 1, 32>}, {pipeline_mode = #tpu.pipeline_mode<synchronous>, transform_indices = @transform_9, window_bounds = array<i64: 16, 1, 24>}, {pipeline_mode = #tpu.pipeline_mode<synchronous>, transform_indices = @transform_10, window_bounds = array<i64: 4, 32, 64>}, {pipeline_mode = #tpu.pipeline_mode<synchronous>, transform_indices = @transform_11, window_bounds = array<i64: 1, 64>}, {pipeline_mode = #tpu.pipeline_mode<synchronous>, transform_indices = @transform_12, window_bounds = array<i64: 64, 10>}, {pipeline_mode = #tpu.pipeline_mode<synchronous>, transform_indices = @transform_13, window_bounds = array<i64: 1, 10>}, {transform_indices = @transform_14, window_bounds = array<i64: 1, 1, 10>}]} {
    %c0 = arith.constant 0 : index
    %c0_0 = arith.constant 0 : index
    %0 = vector.load %arg3[%c0, %c0_0] : memref<1x16xf32, #tpu.memory_space<vmem>>, vector<1x16xf32>
    %c0_1 = arith.constant 0 : index
    %c0_2 = arith.constant 0 : index
    %c0_3 = arith.constant 0 : index
    %1 = vector.load %arg1[%c0_1, %c0_2, %c0_3] : memref<1x328x4xf32, #tpu.memory_space<vmem>>, vector<1x288x4xf32>
    %2 = vector.shape_cast %1 : vector<1x288x4xf32> to vector<288x4xf32>
    %3 = arith.truncf %2 : vector<288x4xf32> to vector<288x4xbf16>
    %c0_4 = arith.constant 0 : index
    %c0_5 = arith.constant 0 : index
    %c0_6 = arith.constant 0 : index
    %4 = vector.load %arg2[%c0_4, %c0_5, %c0_6] : memref<9x4x16xbf16, #tpu.memory_space<vmem>>, vector<1x4x16xbf16>
    %5 = vector.shape_cast %4 : vector<1x4x16xbf16> to vector<4x16xbf16>
    %cst = arith.constant dense<0.000000e+00> : vector<288x16xf32>
    %6 = tpu.matmul %3, %5, %cst {dimension_numbers = #tpu.dot_dimension_numbers<[1], [0], [0], [1], [0, 0, 1, 1], [], []>} : vector<288x4xbf16>, vector<4x16xbf16>, vector<288x16xf32> -> vector<288x16xf32>
    %7 = vector.broadcast %0 : vector<1x16xf32> to vector<288x16xf32>
    %8 = arith.addf %7, %6 : vector<288x16xf32>
    %c0_7 = arith.constant 0 : index
    %c1 = arith.constant 1 : index
    %c0_8 = arith.constant 0 : index
    %9 = vector.load %arg1[%c0_7, %c1, %c0_8] : memref<1x328x4xf32, #tpu.memory_space<vmem>>, vector<1x288x4xf32>
    %10 = vector.shape_cast %9 : vector<1x288x4xf32> to vector<288x4xf32>
    %11 = arith.truncf %10 : vector<288x4xf32> to vector<288x4xbf16>
    %c1_9 = arith.constant 1 : index
    %c0_10 = arith.constant 0 : index
    %c0_11 = arith.constant 0 : index
    %12 = vector.load %arg2[%c1_9, %c0_10, %c0_11] : memref<9x4x16xbf16, #tpu.memory_space<vmem>>, vector<1x4x16xbf16>
    %13 = vector.shape_cast %12 : vector<1x4x16xbf16> to vector<4x16xbf16>
    %cst_12 = arith.constant dense<0.000000e+00> : vector<288x16xf32>
    %14 = tpu.matmul %11, %13, %cst_12 {dimension_numbers = #tpu.dot_dimension_numbers<[1], [0], [0], [1], [0, 0, 1, 1], [], []>} : vector<288x4xbf16>, vector<4x16xbf16>, vector<288x16xf32> -> vector<288x16xf32>
    %15 = arith.addf %8, %14 : vector<288x16xf32>
    %c0_13 = arith.constant 0 : index
    %c2 = arith.constant 2 : index
    %c0_14 = arith.constant 0 : index
    %16 = vector.load %arg1[%c0_13, %c2, %c0_14] : memref<1x328x4xf32, #tpu.memory_space<vmem>>, vector<1x288x4xf32>
    %17 = vector.shape_cast %16 : vector<1x288x4xf32> to vector<288x4xf32>
    %18 = arith.truncf %17 : vector<288x4xf32> to vector<288x4xbf16>
    %c2_15 = arith.constant 2 : index
    %c0_16 = arith.constant 0 : index
    %c0_17 = arith.constant 0 : index
    %19 = vector.load %arg2[%c2_15, %c0_16, %c0_17] : memref<9x4x16xbf16, #tpu.memory_space<vmem>>, vector<1x4x16xbf16>
    %20 = vector.shape_cast %19 : vector<1x4x16xbf16> to vector<4x16xbf16>
    %cst_18 = arith.constant dense<0.000000e+00> : vector<288x16xf32>
    %21 = tpu.matmul %18, %20, %cst_18 {dimension_numbers = #tpu.dot_dimension_numbers<[1], [0], [0], [1], [0, 0, 1, 1], [], []>} : vector<288x4xbf16>, vector<4x16xbf16>, vector<288x16xf32> -> vector<288x16xf32>
    %22 = arith.addf %15, %21 : vector<288x16xf32>
    %c0_19 = arith.constant 0 : index
    %c18 = arith.constant 18 : index
    %c0_20 = arith.constant 0 : index
    %23 = vector.load %arg1[%c0_19, %c18, %c0_20] : memref<1x328x4xf32, #tpu.memory_space<vmem>>, vector<1x288x4xf32>
    %24 = vector.shape_cast %23 : vector<1x288x4xf32> to vector<288x4xf32>
    %25 = arith.truncf %24 : vector<288x4xf32> to vector<288x4xbf16>
    %c3 = arith.constant 3 : index
    %c0_21 = arith.constant 0 : index
    %c0_22 = arith.constant 0 : index
    %26 = vector.load %arg2[%c3, %c0_21, %c0_22] : memref<9x4x16xbf16, #tpu.memory_space<vmem>>, vector<1x4x16xbf16>
    %27 = vector.shape_cast %26 : vector<1x4x16xbf16> to vector<4x16xbf16>
    %cst_23 = arith.constant dense<0.000000e+00> : vector<288x16xf32>
    %28 = tpu.matmul %25, %27, %cst_23 {dimension_numbers = #tpu.dot_dimension_numbers<[1], [0], [0], [1], [0, 0, 1, 1], [], []>} : vector<288x4xbf16>, vector<4x16xbf16>, vector<288x16xf32> -> vector<288x16xf32>
    %29 = arith.addf %22, %28 : vector<288x16xf32>
    %c0_24 = arith.constant 0 : index
    %c19 = arith.constant 19 : index
    %c0_25 = arith.constant 0 : index
    %30 = vector.load %arg1[%c0_24, %c19, %c0_25] : memref<1x328x4xf32, #tpu.memory_space<vmem>>, vector<1x288x4xf32>
    %31 = vector.shape_cast %30 : vector<1x288x4xf32> to vector<288x4xf32>
    %32 = arith.truncf %31 : vector<288x4xf32> to vector<288x4xbf16>
    %c4 = arith.constant 4 : index
    %c0_26 = arith.constant 0 : index
    %c0_27 = arith.constant 0 : index
    %33 = vector.load %arg2[%c4, %c0_26, %c0_27] : memref<9x4x16xbf16, #tpu.memory_space<vmem>>, vector<1x4x16xbf16>
    %34 = vector.shape_cast %33 : vector<1x4x16xbf16> to vector<4x16xbf16>
    %cst_28 = arith.constant dense<0.000000e+00> : vector<288x16xf32>
    %35 = tpu.matmul %32, %34, %cst_28 {dimension_numbers = #tpu.dot_dimension_numbers<[1], [0], [0], [1], [0, 0, 1, 1], [], []>} : vector<288x4xbf16>, vector<4x16xbf16>, vector<288x16xf32> -> vector<288x16xf32>
    %36 = arith.addf %29, %35 : vector<288x16xf32>
    %c0_29 = arith.constant 0 : index
    %c20 = arith.constant 20 : index
    %c0_30 = arith.constant 0 : index
    %37 = vector.load %arg1[%c0_29, %c20, %c0_30] : memref<1x328x4xf32, #tpu.memory_space<vmem>>, vector<1x288x4xf32>
    %38 = vector.shape_cast %37 : vector<1x288x4xf32> to vector<288x4xf32>
    %39 = arith.truncf %38 : vector<288x4xf32> to vector<288x4xbf16>
    %c5 = arith.constant 5 : index
    %c0_31 = arith.constant 0 : index
    %c0_32 = arith.constant 0 : index
    %40 = vector.load %arg2[%c5, %c0_31, %c0_32] : memref<9x4x16xbf16, #tpu.memory_space<vmem>>, vector<1x4x16xbf16>
    %41 = vector.shape_cast %40 : vector<1x4x16xbf16> to vector<4x16xbf16>
    %cst_33 = arith.constant dense<0.000000e+00> : vector<288x16xf32>
    %42 = tpu.matmul %39, %41, %cst_33 {dimension_numbers = #tpu.dot_dimension_numbers<[1], [0], [0], [1], [0, 0, 1, 1], [], []>} : vector<288x4xbf16>, vector<4x16xbf16>, vector<288x16xf32> -> vector<288x16xf32>
    %43 = arith.addf %36, %42 : vector<288x16xf32>
    %c0_34 = arith.constant 0 : index
    %c36 = arith.constant 36 : index
    %c0_35 = arith.constant 0 : index
    %44 = vector.load %arg1[%c0_34, %c36, %c0_35] : memref<1x328x4xf32, #tpu.memory_space<vmem>>, vector<1x288x4xf32>
    %45 = vector.shape_cast %44 : vector<1x288x4xf32> to vector<288x4xf32>
    %46 = arith.truncf %45 : vector<288x4xf32> to vector<288x4xbf16>
    %c6 = arith.constant 6 : index
    %c0_36 = arith.constant 0 : index
    %c0_37 = arith.constant 0 : index
    %47 = vector.load %arg2[%c6, %c0_36, %c0_37] : memref<9x4x16xbf16, #tpu.memory_space<vmem>>, vector<1x4x16xbf16>
    %48 = vector.shape_cast %47 : vector<1x4x16xbf16> to vector<4x16xbf16>
    %cst_38 = arith.constant dense<0.000000e+00> : vector<288x16xf32>
    %49 = tpu.matmul %46, %48, %cst_38 {dimension_numbers = #tpu.dot_dimension_numbers<[1], [0], [0], [1], [0, 0, 1, 1], [], []>} : vector<288x4xbf16>, vector<4x16xbf16>, vector<288x16xf32> -> vector<288x16xf32>
    %50 = arith.addf %43, %49 : vector<288x16xf32>
    %c0_39 = arith.constant 0 : index
    %c37 = arith.constant 37 : index
    %c0_40 = arith.constant 0 : index
    %51 = vector.load %arg1[%c0_39, %c37, %c0_40] : memref<1x328x4xf32, #tpu.memory_space<vmem>>, vector<1x288x4xf32>
    %52 = vector.shape_cast %51 : vector<1x288x4xf32> to vector<288x4xf32>
    %53 = arith.truncf %52 : vector<288x4xf32> to vector<288x4xbf16>
    %c7 = arith.constant 7 : index
    %c0_41 = arith.constant 0 : index
    %c0_42 = arith.constant 0 : index
    %54 = vector.load %arg2[%c7, %c0_41, %c0_42] : memref<9x4x16xbf16, #tpu.memory_space<vmem>>, vector<1x4x16xbf16>
    %55 = vector.shape_cast %54 : vector<1x4x16xbf16> to vector<4x16xbf16>
    %cst_43 = arith.constant dense<0.000000e+00> : vector<288x16xf32>
    %56 = tpu.matmul %53, %55, %cst_43 {dimension_numbers = #tpu.dot_dimension_numbers<[1], [0], [0], [1], [0, 0, 1, 1], [], []>} : vector<288x4xbf16>, vector<4x16xbf16>, vector<288x16xf32> -> vector<288x16xf32>
    %57 = arith.addf %50, %56 : vector<288x16xf32>
    %c0_44 = arith.constant 0 : index
    %c38 = arith.constant 38 : index
    %c0_45 = arith.constant 0 : index
    %58 = vector.load %arg1[%c0_44, %c38, %c0_45] : memref<1x328x4xf32, #tpu.memory_space<vmem>>, vector<1x288x4xf32>
    %59 = vector.shape_cast %58 : vector<1x288x4xf32> to vector<288x4xf32>
    %60 = arith.truncf %59 : vector<288x4xf32> to vector<288x4xbf16>
    %c8 = arith.constant 8 : index
    %c0_46 = arith.constant 0 : index
    %c0_47 = arith.constant 0 : index
    %61 = vector.load %arg2[%c8, %c0_46, %c0_47] : memref<9x4x16xbf16, #tpu.memory_space<vmem>>, vector<1x4x16xbf16>
    %62 = vector.shape_cast %61 : vector<1x4x16xbf16> to vector<4x16xbf16>
    %cst_48 = arith.constant dense<0.000000e+00> : vector<288x16xf32>
    %63 = tpu.matmul %60, %62, %cst_48 {dimension_numbers = #tpu.dot_dimension_numbers<[1], [0], [0], [1], [0, 0, 1, 1], [], []>} : vector<288x4xbf16>, vector<4x16xbf16>, vector<288x16xf32> -> vector<288x16xf32>
    %64 = arith.addf %57, %63 : vector<288x16xf32>
    %cst_49 = arith.constant 0.000000e+00 : f32
    %65 = vector.broadcast %cst_49 : f32 to vector<288x16xf32>
    %66 = arith.maximumf %64, %65 : vector<288x16xf32>
    %c0_50 = arith.constant 0 : index
    %c0_51 = arith.constant 0 : index
    %c0_52 = arith.constant 0 : index
    %67 = vector.load %arg4[%c0_50, %c0_51, %c0_52] : memref<4x104x288xf32, #tpu.memory_space<vmem>>, vector<1x104x288xf32>
    %68 = vector.shape_cast %67 : vector<1x104x288xf32> to vector<104x288xf32>
    %cst_53 = arith.constant dense<0.000000e+00> : vector<104x16xf32>
    %69 = tpu.matmul %68, %66, %cst_53 {dimension_numbers = #tpu.dot_dimension_numbers<[1], [0], [0], [1], [0, 0, 1, 1], [], []>} : vector<104x288xf32>, vector<288x16xf32>, vector<104x16xf32> -> vector<104x16xf32>
    %c1_54 = arith.constant 1 : index
    %c0_55 = arith.constant 0 : index
    %c0_56 = arith.constant 0 : index
    %70 = vector.load %arg4[%c1_54, %c0_55, %c0_56] : memref<4x104x288xf32, #tpu.memory_space<vmem>>, vector<1x104x288xf32>
    %71 = vector.shape_cast %70 : vector<1x104x288xf32> to vector<104x288xf32>
    %cst_57 = arith.constant dense<0.000000e+00> : vector<104x16xf32>
    %72 = tpu.matmul %71, %66, %cst_57 {dimension_numbers = #tpu.dot_dimension_numbers<[1], [0], [0], [1], [0, 0, 1, 1], [], []>} : vector<104x288xf32>, vector<288x16xf32>, vector<104x16xf32> -> vector<104x16xf32>
    %73 = arith.maximumf %69, %72 : vector<104x16xf32>
    %c2_58 = arith.constant 2 : index
    %c0_59 = arith.constant 0 : index
    %c0_60 = arith.constant 0 : index
    %74 = vector.load %arg4[%c2_58, %c0_59, %c0_60] : memref<4x104x288xf32, #tpu.memory_space<vmem>>, vector<1x104x288xf32>
    %75 = vector.shape_cast %74 : vector<1x104x288xf32> to vector<104x288xf32>
    %cst_61 = arith.constant dense<0.000000e+00> : vector<104x16xf32>
    %76 = tpu.matmul %75, %66, %cst_61 {dimension_numbers = #tpu.dot_dimension_numbers<[1], [0], [0], [1], [0, 0, 1, 1], [], []>} : vector<104x288xf32>, vector<288x16xf32>, vector<104x16xf32> -> vector<104x16xf32>
    %77 = arith.maximumf %73, %76 : vector<104x16xf32>
    %c3_62 = arith.constant 3 : index
    %c0_63 = arith.constant 0 : index
    %c0_64 = arith.constant 0 : index
    %78 = vector.load %arg4[%c3_62, %c0_63, %c0_64] : memref<4x104x288xf32, #tpu.memory_space<vmem>>, vector<1x104x288xf32>
    %79 = vector.shape_cast %78 : vector<1x104x288xf32> to vector<104x288xf32>
    %cst_65 = arith.constant dense<0.000000e+00> : vector<104x16xf32>
    %80 = tpu.matmul %79, %66, %cst_65 {dimension_numbers = #tpu.dot_dimension_numbers<[1], [0], [0], [1], [0, 0, 1, 1], [], []>} : vector<104x288xf32>, vector<288x16xf32>, vector<104x16xf32> -> vector<104x16xf32>
    %81 = arith.maximumf %77, %80 : vector<104x16xf32>
    %c0_66 = arith.constant 0 : index
    %c0_67 = arith.constant 0 : index
    %82 = vector.load %arg16[%c0_66, %c0_67] : memref<104x16xf32, #tpu.memory_space<vmem>>, vector<104x16xf32>
    tpu.vector_store %arg16[%c0_66, %c0_67], %81 {strides = array<i32>} : memref<104x16xf32, #tpu.memory_space<vmem>>, vector<104x16xf32>,
    %c0_68 = arith.constant 0 : index
    %c0_69 = arith.constant 0 : index
    %83 = vector.load %arg6[%c0_68, %c0_69] : memref<1x32xf32, #tpu.memory_space<vmem>>, vector<1x32xf32>
    %c0_70 = arith.constant 0 : index
    %c0_71 = arith.constant 0 : index
    %84 = vector.load %arg16[%c0_70, %c0_71] : memref<104x16xf32, #tpu.memory_space<vmem>>, vector<80x16xf32>
    %85 = arith.truncf %84 : vector<80x16xf32> to vector<80x16xbf16>
    %c0_72 = arith.constant 0 : index
    %c0_73 = arith.constant 0 : index
    %c0_74 = arith.constant 0 : index
    %86 = vector.load %arg5[%c0_72, %c0_73, %c0_74] : memref<9x16x32xbf16, #tpu.memory_space<vmem>>, vector<1x16x32xbf16>
    %87 = vector.shape_cast %86 : vector<1x16x32xbf16> to vector<16x32xbf16>
    %cst_75 = arith.constant dense<0.000000e+00> : vector<80x32xf32>
    %88 = tpu.matmul %85, %87, %cst_75 {dimension_numbers = #tpu.dot_dimension_numbers<[1], [0], [0], [1], [0, 0, 1, 1], [], []>} : vector<80x16xbf16>, vector<16x32xbf16>, vector<80x32xf32> -> vector<80x32xf32>
    %89 = vector.broadcast %83 : vector<1x32xf32> to vector<80x32xf32>
    %90 = arith.addf %89, %88 : vector<80x32xf32>
    %c1_76 = arith.constant 1 : index
    %c0_77 = arith.constant 0 : index
    %91 = vector.load %arg16[%c1_76, %c0_77] : memref<104x16xf32, #tpu.memory_space<vmem>>, vector<80x16xf32>
    %92 = arith.truncf %91 : vector<80x16xf32> to vector<80x16xbf16>
    %c1_78 = arith.constant 1 : index
    %c0_79 = arith.constant 0 : index
    %c0_80 = arith.constant 0 : index
    %93 = vector.load %arg5[%c1_78, %c0_79, %c0_80] : memref<9x16x32xbf16, #tpu.memory_space<vmem>>, vector<1x16x32xbf16>
    %94 = vector.shape_cast %93 : vector<1x16x32xbf16> to vector<16x32xbf16>
    %cst_81 = arith.constant dense<0.000000e+00> : vector<80x32xf32>
    %95 = tpu.matmul %92, %94, %cst_81 {dimension_numbers = #tpu.dot_dimension_numbers<[1], [0], [0], [1], [0, 0, 1, 1], [], []>} : vector<80x16xbf16>, vector<16x32xbf16>, vector<80x32xf32> -> vector<80x32xf32>
    %96 = arith.addf %90, %95 : vector<80x32xf32>
    %c2_82 = arith.constant 2 : index
    %c0_83 = arith.constant 0 : index
    %97 = vector.load %arg16[%c2_82, %c0_83] : memref<104x16xf32, #tpu.memory_space<vmem>>, vector<80x16xf32>
    %98 = arith.truncf %97 : vector<80x16xf32> to vector<80x16xbf16>
    %c2_84 = arith.constant 2 : index
    %c0_85 = arith.constant 0 : index
    %c0_86 = arith.constant 0 : index
    %99 = vector.load %arg5[%c2_84, %c0_85, %c0_86] : memref<9x16x32xbf16, #tpu.memory_space<vmem>>, vector<1x16x32xbf16>
    %100 = vector.shape_cast %99 : vector<1x16x32xbf16> to vector<16x32xbf16>
    %cst_87 = arith.constant dense<0.000000e+00> : vector<80x32xf32>
    %101 = tpu.matmul %98, %100, %cst_87 {dimension_numbers = #tpu.dot_dimension_numbers<[1], [0], [0], [1], [0, 0, 1, 1], [], []>} : vector<80x16xbf16>, vector<16x32xbf16>, vector<80x32xf32> -> vector<80x32xf32>
    %102 = arith.addf %96, %101 : vector<80x32xf32>
    %c10 = arith.constant 10 : index
    %c0_88 = arith.constant 0 : index
    %103 = vector.load %arg16[%c10, %c0_88] : memref<104x16xf32, #tpu.memory_space<vmem>>, vector<80x16xf32>
    %104 = arith.truncf %103 : vector<80x16xf32> to vector<80x16xbf16>
    %c3_89 = arith.constant 3 : index
    %c0_90 = arith.constant 0 : index
    %c0_91 = arith.constant 0 : index
    %105 = vector.load %arg5[%c3_89, %c0_90, %c0_91] : memref<9x16x32xbf16, #tpu.memory_space<vmem>>, vector<1x16x32xbf16>
    %106 = vector.shape_cast %105 : vector<1x16x32xbf16> to vector<16x32xbf16>
    %cst_92 = arith.constant dense<0.000000e+00> : vector<80x32xf32>
    %107 = tpu.matmul %104, %106, %cst_92 {dimension_numbers = #tpu.dot_dimension_numbers<[1], [0], [0], [1], [0, 0, 1, 1], [], []>} : vector<80x16xbf16>, vector<16x32xbf16>, vector<80x32xf32> -> vector<80x32xf32>
    %108 = arith.addf %102, %107 : vector<80x32xf32>
    %c11 = arith.constant 11 : index
    %c0_93 = arith.constant 0 : index
    %109 = vector.load %arg16[%c11, %c0_93] : memref<104x16xf32, #tpu.memory_space<vmem>>, vector<80x16xf32>
    %110 = arith.truncf %109 : vector<80x16xf32> to vector<80x16xbf16>
    %c4_94 = arith.constant 4 : index
    %c0_95 = arith.constant 0 : index
    %c0_96 = arith.constant 0 : index
    %111 = vector.load %arg5[%c4_94, %c0_95, %c0_96] : memref<9x16x32xbf16, #tpu.memory_space<vmem>>, vector<1x16x32xbf16>
    %112 = vector.shape_cast %111 : vector<1x16x32xbf16> to vector<16x32xbf16>
    %cst_97 = arith.constant dense<0.000000e+00> : vector<80x32xf32>
    %113 = tpu.matmul %110, %112, %cst_97 {dimension_numbers = #tpu.dot_dimension_numbers<[1], [0], [0], [1], [0, 0, 1, 1], [], []>} : vector<80x16xbf16>, vector<16x32xbf16>, vector<80x32xf32> -> vector<80x32xf32>
    %114 = arith.addf %108, %113 : vector<80x32xf32>
    %c12 = arith.constant 12 : index
    %c0_98 = arith.constant 0 : index
    %115 = vector.load %arg16[%c12, %c0_98] : memref<104x16xf32, #tpu.memory_space<vmem>>, vector<80x16xf32>
    %116 = arith.truncf %115 : vector<80x16xf32> to vector<80x16xbf16>
    %c5_99 = arith.constant 5 : index
    %c0_100 = arith.constant 0 : index
    %c0_101 = arith.constant 0 : index
    %117 = vector.load %arg5[%c5_99, %c0_100, %c0_101] : memref<9x16x32xbf16, #tpu.memory_space<vmem>>, vector<1x16x32xbf16>
    %118 = vector.shape_cast %117 : vector<1x16x32xbf16> to vector<16x32xbf16>
    %cst_102 = arith.constant dense<0.000000e+00> : vector<80x32xf32>
    %119 = tpu.matmul %116, %118, %cst_102 {dimension_numbers = #tpu.dot_dimension_numbers<[1], [0], [0], [1], [0, 0, 1, 1], [], []>} : vector<80x16xbf16>, vector<16x32xbf16>, vector<80x32xf32> -> vector<80x32xf32>
    %120 = arith.addf %114, %119 : vector<80x32xf32>
    %c20_103 = arith.constant 20 : index
    %c0_104 = arith.constant 0 : index
    %121 = vector.load %arg16[%c20_103, %c0_104] : memref<104x16xf32, #tpu.memory_space<vmem>>, vector<80x16xf32>
    %122 = arith.truncf %121 : vector<80x16xf32> to vector<80x16xbf16>
    %c6_105 = arith.constant 6 : index
    %c0_106 = arith.constant 0 : index
    %c0_107 = arith.constant 0 : index
    %123 = vector.load %arg5[%c6_105, %c0_106, %c0_107] : memref<9x16x32xbf16, #tpu.memory_space<vmem>>, vector<1x16x32xbf16>
    %124 = vector.shape_cast %123 : vector<1x16x32xbf16> to vector<16x32xbf16>
    %cst_108 = arith.constant dense<0.000000e+00> : vector<80x32xf32>
    %125 = tpu.matmul %122, %124, %cst_108 {dimension_numbers = #tpu.dot_dimension_numbers<[1], [0], [0], [1], [0, 0, 1, 1], [], []>} : vector<80x16xbf16>, vector<16x32xbf16>, vector<80x32xf32> -> vector<80x32xf32>
    %126 = arith.addf %120, %125 : vector<80x32xf32>
    %c21 = arith.constant 21 : index
    %c0_109 = arith.constant 0 : index
    %127 = vector.load %arg16[%c21, %c0_109] : memref<104x16xf32, #tpu.memory_space<vmem>>, vector<80x16xf32>
    %128 = arith.truncf %127 : vector<80x16xf32> to vector<80x16xbf16>
    %c7_110 = arith.constant 7 : index
    %c0_111 = arith.constant 0 : index
    %c0_112 = arith.constant 0 : index
    %129 = vector.load %arg5[%c7_110, %c0_111, %c0_112] : memref<9x16x32xbf16, #tpu.memory_space<vmem>>, vector<1x16x32xbf16>
    %130 = vector.shape_cast %129 : vector<1x16x32xbf16> to vector<16x32xbf16>
    %cst_113 = arith.constant dense<0.000000e+00> : vector<80x32xf32>
    %131 = tpu.matmul %128, %130, %cst_113 {dimension_numbers = #tpu.dot_dimension_numbers<[1], [0], [0], [1], [0, 0, 1, 1], [], []>} : vector<80x16xbf16>, vector<16x32xbf16>, vector<80x32xf32> -> vector<80x32xf32>
    %132 = arith.addf %126, %131 : vector<80x32xf32>
    %c22 = arith.constant 22 : index
    %c0_114 = arith.constant 0 : index
    %133 = vector.load %arg16[%c22, %c0_114] : memref<104x16xf32, #tpu.memory_space<vmem>>, vector<80x16xf32>
    %134 = arith.truncf %133 : vector<80x16xf32> to vector<80x16xbf16>
    %c8_115 = arith.constant 8 : index
    %c0_116 = arith.constant 0 : index
    %c0_117 = arith.constant 0 : index
    %135 = vector.load %arg5[%c8_115, %c0_116, %c0_117] : memref<9x16x32xbf16, #tpu.memory_space<vmem>>, vector<1x16x32xbf16>
    %136 = vector.shape_cast %135 : vector<1x16x32xbf16> to vector<16x32xbf16>
    %cst_118 = arith.constant dense<0.000000e+00> : vector<80x32xf32>
    %137 = tpu.matmul %134, %136, %cst_118 {dimension_numbers = #tpu.dot_dimension_numbers<[1], [0], [0], [1], [0, 0, 1, 1], [], []>} : vector<80x16xbf16>, vector<16x32xbf16>, vector<80x32xf32> -> vector<80x32xf32>
    %138 = arith.addf %132, %137 : vector<80x32xf32>
    %cst_119 = arith.constant 0.000000e+00 : f32
    %139 = vector.broadcast %cst_119 : f32 to vector<80x32xf32>
    %140 = arith.maximumf %138, %139 : vector<80x32xf32>
    %c0_120 = arith.constant 0 : index
    %c0_121 = arith.constant 0 : index
    %c0_122 = arith.constant 0 : index
    %141 = vector.load %arg7[%c0_120, %c0_121, %c0_122] : memref<4x40x80xf32, #tpu.memory_space<vmem>>, vector<1x40x80xf32>
    %142 = vector.shape_cast %141 : vector<1x40x80xf32> to vector<40x80xf32>
    %cst_123 = arith.constant dense<0.000000e+00> : vector<40x32xf32>
    %143 = tpu.matmul %142, %140, %cst_123 {dimension_numbers = #tpu.dot_dimension_numbers<[1], [0], [0], [1], [0, 0, 1, 1], [], []>} : vector<40x80xf32>, vector<80x32xf32>, vector<40x32xf32> -> vector<40x32xf32>
    %c1_124 = arith.constant 1 : index
    %c0_125 = arith.constant 0 : index
    %c0_126 = arith.constant 0 : index
    %144 = vector.load %arg7[%c1_124, %c0_125, %c0_126] : memref<4x40x80xf32, #tpu.memory_space<vmem>>, vector<1x40x80xf32>
    %145 = vector.shape_cast %144 : vector<1x40x80xf32> to vector<40x80xf32>
    %cst_127 = arith.constant dense<0.000000e+00> : vector<40x32xf32>
    %146 = tpu.matmul %145, %140, %cst_127 {dimension_numbers = #tpu.dot_dimension_numbers<[1], [0], [0], [1], [0, 0, 1, 1], [], []>} : vector<40x80xf32>, vector<80x32xf32>, vector<40x32xf32> -> vector<40x32xf32>
    %147 = arith.maximumf %143, %146 : vector<40x32xf32>
    %c2_128 = arith.constant 2 : index
    %c0_129 = arith.constant 0 : index
    %c0_130 = arith.constant 0 : index
    %148 = vector.load %arg7[%c2_128, %c0_129, %c0_130] : memref<4x40x80xf32, #tpu.memory_space<vmem>>, vector<1x40x80xf32>
    %149 = vector.shape_cast %148 : vector<1x40x80xf32> to vector<40x80xf32>
    %cst_131 = arith.constant dense<0.000000e+00> : vector<40x32xf32>
    %150 = tpu.matmul %149, %140, %cst_131 {dimension_numbers = #tpu.dot_dimension_numbers<[1], [0], [0], [1], [0, 0, 1, 1], [], []>} : vector<40x80xf32>, vector<80x32xf32>, vector<40x32xf32> -> vector<40x32xf32>
    %151 = arith.maximumf %147, %150 : vector<40x32xf32>
    %c3_132 = arith.constant 3 : index
    %c0_133 = arith.constant 0 : index
    %c0_134 = arith.constant 0 : index
    %152 = vector.load %arg7[%c3_132, %c0_133, %c0_134] : memref<4x40x80xf32, #tpu.memory_space<vmem>>, vector<1x40x80xf32>
    %153 = vector.shape_cast %152 : vector<1x40x80xf32> to vector<40x80xf32>
    %cst_135 = arith.constant dense<0.000000e+00> : vector<40x32xf32>
    %154 = tpu.matmul %153, %140, %cst_135 {dimension_numbers = #tpu.dot_dimension_numbers<[1], [0], [0], [1], [0, 0, 1, 1], [], []>} : vector<40x80xf32>, vector<80x32xf32>, vector<40x32xf32> -> vector<40x32xf32>
    %155 = arith.maximumf %151, %154 : vector<40x32xf32>
    %c0_136 = arith.constant 0 : index
    %c0_137 = arith.constant 0 : index
    %156 = vector.load %arg17[%c0_136, %c0_137] : memref<40x32xf32, #tpu.memory_space<vmem>>, vector<40x32xf32>
    tpu.vector_store %arg17[%c0_136, %c0_137], %155 {strides = array<i32>} : memref<40x32xf32, #tpu.memory_space<vmem>>, vector<40x32xf32>,
    %c0_138 = arith.constant 0 : index
    %c0_139 = arith.constant 0 : index
    %157 = vector.load %arg9[%c0_138, %c0_139] : memref<1x32xf32, #tpu.memory_space<vmem>>, vector<1x32xf32>
    %c0_140 = arith.constant 0 : index
    %c0_141 = arith.constant 0 : index
    %158 = vector.load %arg17[%c0_140, %c0_141] : memref<40x32xf32, #tpu.memory_space<vmem>>, vector<24x32xf32>
    %159 = arith.truncf %158 : vector<24x32xf32> to vector<24x32xbf16>
    %c0_142 = arith.constant 0 : index
    %c0_143 = arith.constant 0 : index
    %c0_144 = arith.constant 0 : index
    %160 = vector.load %arg8[%c0_142, %c0_143, %c0_144] : memref<9x32x32xbf16, #tpu.memory_space<vmem>>, vector<1x32x32xbf16>
    %161 = vector.shape_cast %160 : vector<1x32x32xbf16> to vector<32x32xbf16>
    %cst_145 = arith.constant dense<0.000000e+00> : vector<24x32xf32>
    %162 = tpu.matmul %159, %161, %cst_145 {dimension_numbers = #tpu.dot_dimension_numbers<[1], [0], [0], [1], [0, 0, 1, 1], [], []>} : vector<24x32xbf16>, vector<32x32xbf16>, vector<24x32xf32> -> vector<24x32xf32>
    %163 = vector.broadcast %157 : vector<1x32xf32> to vector<24x32xf32>
    %164 = arith.addf %163, %162 : vector<24x32xf32>
    %c1_146 = arith.constant 1 : index
    %c0_147 = arith.constant 0 : index
    %165 = vector.load %arg17[%c1_146, %c0_147] : memref<40x32xf32, #tpu.memory_space<vmem>>, vector<24x32xf32>
    %166 = arith.truncf %165 : vector<24x32xf32> to vector<24x32xbf16>
    %c1_148 = arith.constant 1 : index
    %c0_149 = arith.constant 0 : index
    %c0_150 = arith.constant 0 : index
    %167 = vector.load %arg8[%c1_148, %c0_149, %c0_150] : memref<9x32x32xbf16, #tpu.memory_space<vmem>>, vector<1x32x32xbf16>
    %168 = vector.shape_cast %167 : vector<1x32x32xbf16> to vector<32x32xbf16>
    %cst_151 = arith.constant dense<0.000000e+00> : vector<24x32xf32>
    %169 = tpu.matmul %166, %168, %cst_151 {dimension_numbers = #tpu.dot_dimension_numbers<[1], [0], [0], [1], [0, 0, 1, 1], [], []>} : vector<24x32xbf16>, vector<32x32xbf16>, vector<24x32xf32> -> vector<24x32xf32>
    %170 = arith.addf %164, %169 : vector<24x32xf32>
    %c2_152 = arith.constant 2 : index
    %c0_153 = arith.constant 0 : index
    %171 = vector.load %arg17[%c2_152, %c0_153] : memref<40x32xf32, #tpu.memory_space<vmem>>, vector<24x32xf32>
    %172 = arith.truncf %171 : vector<24x32xf32> to vector<24x32xbf16>
    %c2_154 = arith.constant 2 : index
    %c0_155 = arith.constant 0 : index
    %c0_156 = arith.constant 0 : index
    %173 = vector.load %arg8[%c2_154, %c0_155, %c0_156] : memref<9x32x32xbf16, #tpu.memory_space<vmem>>, vector<1x32x32xbf16>
    %174 = vector.shape_cast %173 : vector<1x32x32xbf16> to vector<32x32xbf16>
    %cst_157 = arith.constant dense<0.000000e+00> : vector<24x32xf32>
    %175 = tpu.matmul %172, %174, %cst_157 {dimension_numbers = #tpu.dot_dimension_numbers<[1], [0], [0], [1], [0, 0, 1, 1], [], []>} : vector<24x32xbf16>, vector<32x32xbf16>, vector<24x32xf32> -> vector<24x32xf32>
    %176 = arith.addf %170, %175 : vector<24x32xf32>
    %c6_158 = arith.constant 6 : index
    %c0_159 = arith.constant 0 : index
    %177 = vector.load %arg17[%c6_158, %c0_159] : memref<40x32xf32, #tpu.memory_space<vmem>>, vector<24x32xf32>
    %178 = arith.truncf %177 : vector<24x32xf32> to vector<24x32xbf16>
    %c3_160 = arith.constant 3 : index
    %c0_161 = arith.constant 0 : index
    %c0_162 = arith.constant 0 : index
    %179 = vector.load %arg8[%c3_160, %c0_161, %c0_162] : memref<9x32x32xbf16, #tpu.memory_space<vmem>>, vector<1x32x32xbf16>
    %180 = vector.shape_cast %179 : vector<1x32x32xbf16> to vector<32x32xbf16>
    %cst_163 = arith.constant dense<0.000000e+00> : vector<24x32xf32>
    %181 = tpu.matmul %178, %180, %cst_163 {dimension_numbers = #tpu.dot_dimension_numbers<[1], [0], [0], [1], [0, 0, 1, 1], [], []>} : vector<24x32xbf16>, vector<32x32xbf16>, vector<24x32xf32> -> vector<24x32xf32>
    %182 = arith.addf %176, %181 : vector<24x32xf32>
    %c7_164 = arith.constant 7 : index
    %c0_165 = arith.constant 0 : index
    %183 = vector.load %arg17[%c7_164, %c0_165] : memref<40x32xf32, #tpu.memory_space<vmem>>, vector<24x32xf32>
    %184 = arith.truncf %183 : vector<24x32xf32> to vector<24x32xbf16>
    %c4_166 = arith.constant 4 : index
    %c0_167 = arith.constant 0 : index
    %c0_168 = arith.constant 0 : index
    %185 = vector.load %arg8[%c4_166, %c0_167, %c0_168] : memref<9x32x32xbf16, #tpu.memory_space<vmem>>, vector<1x32x32xbf16>
    %186 = vector.shape_cast %185 : vector<1x32x32xbf16> to vector<32x32xbf16>
    %cst_169 = arith.constant dense<0.000000e+00> : vector<24x32xf32>
    %187 = tpu.matmul %184, %186, %cst_169 {dimension_numbers = #tpu.dot_dimension_numbers<[1], [0], [0], [1], [0, 0, 1, 1], [], []>} : vector<24x32xbf16>, vector<32x32xbf16>, vector<24x32xf32> -> vector<24x32xf32>
    %188 = arith.addf %182, %187 : vector<24x32xf32>
    %c8_170 = arith.constant 8 : index
    %c0_171 = arith.constant 0 : index
    %189 = vector.load %arg17[%c8_170, %c0_171] : memref<40x32xf32, #tpu.memory_space<vmem>>, vector<24x32xf32>
    %190 = arith.truncf %189 : vector<24x32xf32> to vector<24x32xbf16>
    %c5_172 = arith.constant 5 : index
    %c0_173 = arith.constant 0 : index
    %c0_174 = arith.constant 0 : index
    %191 = vector.load %arg8[%c5_172, %c0_173, %c0_174] : memref<9x32x32xbf16, #tpu.memory_space<vmem>>, vector<1x32x32xbf16>
    %192 = vector.shape_cast %191 : vector<1x32x32xbf16> to vector<32x32xbf16>
    %cst_175 = arith.constant dense<0.000000e+00> : vector<24x32xf32>
    %193 = tpu.matmul %190, %192, %cst_175 {dimension_numbers = #tpu.dot_dimension_numbers<[1], [0], [0], [1], [0, 0, 1, 1], [], []>} : vector<24x32xbf16>, vector<32x32xbf16>, vector<24x32xf32> -> vector<24x32xf32>
    %194 = arith.addf %188, %193 : vector<24x32xf32>
    %c12_176 = arith.constant 12 : index
    %c0_177 = arith.constant 0 : index
    %195 = vector.load %arg17[%c12_176, %c0_177] : memref<40x32xf32, #tpu.memory_space<vmem>>, vector<24x32xf32>
    %196 = arith.truncf %195 : vector<24x32xf32> to vector<24x32xbf16>
    %c6_178 = arith.constant 6 : index
    %c0_179 = arith.constant 0 : index
    %c0_180 = arith.constant 0 : index
    %197 = vector.load %arg8[%c6_178, %c0_179, %c0_180] : memref<9x32x32xbf16, #tpu.memory_space<vmem>>, vector<1x32x32xbf16>
    %198 = vector.shape_cast %197 : vector<1x32x32xbf16> to vector<32x32xbf16>
    %cst_181 = arith.constant dense<0.000000e+00> : vector<24x32xf32>
    %199 = tpu.matmul %196, %198, %cst_181 {dimension_numbers = #tpu.dot_dimension_numbers<[1], [0], [0], [1], [0, 0, 1, 1], [], []>} : vector<24x32xbf16>, vector<32x32xbf16>, vector<24x32xf32> -> vector<24x32xf32>
    %200 = arith.addf %194, %199 : vector<24x32xf32>
    %c13 = arith.constant 13 : index
    %c0_182 = arith.constant 0 : index
    %201 = vector.load %arg17[%c13, %c0_182] : memref<40x32xf32, #tpu.memory_space<vmem>>, vector<24x32xf32>
    %202 = arith.truncf %201 : vector<24x32xf32> to vector<24x32xbf16>
    %c7_183 = arith.constant 7 : index
    %c0_184 = arith.constant 0 : index
    %c0_185 = arith.constant 0 : index
    %203 = vector.load %arg8[%c7_183, %c0_184, %c0_185] : memref<9x32x32xbf16, #tpu.memory_space<vmem>>, vector<1x32x32xbf16>
    %204 = vector.shape_cast %203 : vector<1x32x32xbf16> to vector<32x32xbf16>
    %cst_186 = arith.constant dense<0.000000e+00> : vector<24x32xf32>
    %205 = tpu.matmul %202, %204, %cst_186 {dimension_numbers = #tpu.dot_dimension_numbers<[1], [0], [0], [1], [0, 0, 1, 1], [], []>} : vector<24x32xbf16>, vector<32x32xbf16>, vector<24x32xf32> -> vector<24x32xf32>
    %206 = arith.addf %200, %205 : vector<24x32xf32>
    %c14 = arith.constant 14 : index
    %c0_187 = arith.constant 0 : index
    %207 = vector.load %arg17[%c14, %c0_187] : memref<40x32xf32, #tpu.memory_space<vmem>>, vector<24x32xf32>
    %208 = arith.truncf %207 : vector<24x32xf32> to vector<24x32xbf16>
    %c8_188 = arith.constant 8 : index
    %c0_189 = arith.constant 0 : index
    %c0_190 = arith.constant 0 : index
    %209 = vector.load %arg8[%c8_188, %c0_189, %c0_190] : memref<9x32x32xbf16, #tpu.memory_space<vmem>>, vector<1x32x32xbf16>
    %210 = vector.shape_cast %209 : vector<1x32x32xbf16> to vector<32x32xbf16>
    %cst_191 = arith.constant dense<0.000000e+00> : vector<24x32xf32>
    %211 = tpu.matmul %208, %210, %cst_191 {dimension_numbers = #tpu.dot_dimension_numbers<[1], [0], [0], [1], [0, 0, 1, 1], [], []>} : vector<24x32xbf16>, vector<32x32xbf16>, vector<24x32xf32> -> vector<24x32xf32>
    %212 = arith.addf %206, %211 : vector<24x32xf32>
    %cst_192 = arith.constant 0.000000e+00 : f32
    %213 = vector.broadcast %cst_192 : f32 to vector<24x32xf32>
    %214 = arith.maximumf %212, %213 : vector<24x32xf32>
    %c0_193 = arith.constant 0 : index
    %c0_194 = arith.constant 0 : index
    %215 = vector.load %arg12[%c0_193, %c0_194] : memref<1x64xf32, #tpu.memory_space<vmem>>, vector<1x64xf32>
    %c0_195 = arith.constant 0 : index
    %c0_196 = arith.constant 0 : index
    %c0_197 = arith.constant 0 : index
    %216 = vector.load %arg10[%c0_195, %c0_196, %c0_197] : memref<16x1x24xf32, #tpu.memory_space<vmem>>, vector<1x1x24xf32>
    %217 = vector.shape_cast %216 : vector<1x1x24xf32> to vector<1x24xf32>
    %cst_198 = arith.constant dense<0.000000e+00> : vector<1x32xf32>
    %218 = tpu.matmul %217, %214, %cst_198 {dimension_numbers = #tpu.dot_dimension_numbers<[1], [0], [0], [1], [0, 0, 1, 1], [], []>} : vector<1x24xf32>, vector<24x32xf32>, vector<1x32xf32> -> vector<1x32xf32>
    %c1_199 = arith.constant 1 : index
    %c0_200 = arith.constant 0 : index
    %c0_201 = arith.constant 0 : index
    %219 = vector.load %arg10[%c1_199, %c0_200, %c0_201] : memref<16x1x24xf32, #tpu.memory_space<vmem>>, vector<1x1x24xf32>
    %220 = vector.shape_cast %219 : vector<1x1x24xf32> to vector<1x24xf32>
    %cst_202 = arith.constant dense<0.000000e+00> : vector<1x32xf32>
    %221 = tpu.matmul %220, %214, %cst_202 {dimension_numbers = #tpu.dot_dimension_numbers<[1], [0], [0], [1], [0, 0, 1, 1], [], []>} : vector<1x24xf32>, vector<24x32xf32>, vector<1x32xf32> -> vector<1x32xf32>
    %222 = arith.maximumf %218, %221 : vector<1x32xf32>
    %c2_203 = arith.constant 2 : index
    %c0_204 = arith.constant 0 : index
    %c0_205 = arith.constant 0 : index
    %223 = vector.load %arg10[%c2_203, %c0_204, %c0_205] : memref<16x1x24xf32, #tpu.memory_space<vmem>>, vector<1x1x24xf32>
    %224 = vector.shape_cast %223 : vector<1x1x24xf32> to vector<1x24xf32>
    %cst_206 = arith.constant dense<0.000000e+00> : vector<1x32xf32>
    %225 = tpu.matmul %224, %214, %cst_206 {dimension_numbers = #tpu.dot_dimension_numbers<[1], [0], [0], [1], [0, 0, 1, 1], [], []>} : vector<1x24xf32>, vector<24x32xf32>, vector<1x32xf32> -> vector<1x32xf32>
    %226 = arith.maximumf %222, %225 : vector<1x32xf32>
    %c3_207 = arith.constant 3 : index
    %c0_208 = arith.constant 0 : index
    %c0_209 = arith.constant 0 : index
    %227 = vector.load %arg10[%c3_207, %c0_208, %c0_209] : memref<16x1x24xf32, #tpu.memory_space<vmem>>, vector<1x1x24xf32>
    %228 = vector.shape_cast %227 : vector<1x1x24xf32> to vector<1x24xf32>
    %cst_210 = arith.constant dense<0.000000e+00> : vector<1x32xf32>
    %229 = tpu.matmul %228, %214, %cst_210 {dimension_numbers = #tpu.dot_dimension_numbers<[1], [0], [0], [1], [0, 0, 1, 1], [], []>} : vector<1x24xf32>, vector<24x32xf32>, vector<1x32xf32> -> vector<1x32xf32>
    %230 = arith.maximumf %226, %229 : vector<1x32xf32>
    %231 = arith.truncf %230 : vector<1x32xf32> to vector<1x32xbf16>
    %c0_211 = arith.constant 0 : index
    %c0_212 = arith.constant 0 : index
    %c0_213 = arith.constant 0 : index
    %232 = vector.load %arg11[%c0_211, %c0_212, %c0_213] : memref<4x32x64xbf16, #tpu.memory_space<vmem>>, vector<1x32x64xbf16>
    %233 = vector.shape_cast %232 : vector<1x32x64xbf16> to vector<32x64xbf16>
    %cst_214 = arith.constant dense<0.000000e+00> : vector<1x64xf32>
    %234 = tpu.matmul %231, %233, %cst_214 {dimension_numbers = #tpu.dot_dimension_numbers<[1], [0], [0], [1], [0, 0, 1, 1], [], []>} : vector<1x32xbf16>, vector<32x64xbf16>, vector<1x64xf32> -> vector<1x64xf32>
    %235 = arith.addf %215, %234 : vector<1x64xf32>
    %c4_215 = arith.constant 4 : index
    %c0_216 = arith.constant 0 : index
    %c0_217 = arith.constant 0 : index
    %236 = vector.load %arg10[%c4_215, %c0_216, %c0_217] : memref<16x1x24xf32, #tpu.memory_space<vmem>>, vector<1x1x24xf32>
    %237 = vector.shape_cast %236 : vector<1x1x24xf32> to vector<1x24xf32>
    %cst_218 = arith.constant dense<0.000000e+00> : vector<1x32xf32>
    %238 = tpu.matmul %237, %214, %cst_218 {dimension_numbers = #tpu.dot_dimension_numbers<[1], [0], [0], [1], [0, 0, 1, 1], [], []>} : vector<1x24xf32>, vector<24x32xf32>, vector<1x32xf32> -> vector<1x32xf32>
    %c5_219 = arith.constant 5 : index
    %c0_220 = arith.constant 0 : index
    %c0_221 = arith.constant 0 : index
    %239 = vector.load %arg10[%c5_219, %c0_220, %c0_221] : memref<16x1x24xf32, #tpu.memory_space<vmem>>, vector<1x1x24xf32>
    %240 = vector.shape_cast %239 : vector<1x1x24xf32> to vector<1x24xf32>
    %cst_222 = arith.constant dense<0.000000e+00> : vector<1x32xf32>
    %241 = tpu.matmul %240, %214, %cst_222 {dimension_numbers = #tpu.dot_dimension_numbers<[1], [0], [0], [1], [0, 0, 1, 1], [], []>} : vector<1x24xf32>, vector<24x32xf32>, vector<1x32xf32> -> vector<1x32xf32>
    %242 = arith.maximumf %238, %241 : vector<1x32xf32>
    %c6_223 = arith.constant 6 : index
    %c0_224 = arith.constant 0 : index
    %c0_225 = arith.constant 0 : index
    %243 = vector.load %arg10[%c6_223, %c0_224, %c0_225] : memref<16x1x24xf32, #tpu.memory_space<vmem>>, vector<1x1x24xf32>
    %244 = vector.shape_cast %243 : vector<1x1x24xf32> to vector<1x24xf32>
    %cst_226 = arith.constant dense<0.000000e+00> : vector<1x32xf32>
    %245 = tpu.matmul %244, %214, %cst_226 {dimension_numbers = #tpu.dot_dimension_numbers<[1], [0], [0], [1], [0, 0, 1, 1], [], []>} : vector<1x24xf32>, vector<24x32xf32>, vector<1x32xf32> -> vector<1x32xf32>
    %246 = arith.maximumf %242, %245 : vector<1x32xf32>
    %c7_227 = arith.constant 7 : index
    %c0_228 = arith.constant 0 : index
    %c0_229 = arith.constant 0 : index
    %247 = vector.load %arg10[%c7_227, %c0_228, %c0_229] : memref<16x1x24xf32, #tpu.memory_space<vmem>>, vector<1x1x24xf32>
    %248 = vector.shape_cast %247 : vector<1x1x24xf32> to vector<1x24xf32>
    %cst_230 = arith.constant dense<0.000000e+00> : vector<1x32xf32>
    %249 = tpu.matmul %248, %214, %cst_230 {dimension_numbers = #tpu.dot_dimension_numbers<[1], [0], [0], [1], [0, 0, 1, 1], [], []>} : vector<1x24xf32>, vector<24x32xf32>, vector<1x32xf32> -> vector<1x32xf32>
    %250 = arith.maximumf %246, %249 : vector<1x32xf32>
    %251 = arith.truncf %250 : vector<1x32xf32> to vector<1x32xbf16>
    %c1_231 = arith.constant 1 : index
    %c0_232 = arith.constant 0 : index
    %c0_233 = arith.constant 0 : index
    %252 = vector.load %arg11[%c1_231, %c0_232, %c0_233] : memref<4x32x64xbf16, #tpu.memory_space<vmem>>, vector<1x32x64xbf16>
    %253 = vector.shape_cast %252 : vector<1x32x64xbf16> to vector<32x64xbf16>
    %cst_234 = arith.constant dense<0.000000e+00> : vector<1x64xf32>
    %254 = tpu.matmul %251, %253, %cst_234 {dimension_numbers = #tpu.dot_dimension_numbers<[1], [0], [0], [1], [0, 0, 1, 1], [], []>} : vector<1x32xbf16>, vector<32x64xbf16>, vector<1x64xf32> -> vector<1x64xf32>
    %255 = arith.addf %235, %254 : vector<1x64xf32>
    %c8_235 = arith.constant 8 : index
    %c0_236 = arith.constant 0 : index
    %c0_237 = arith.constant 0 : index
    %256 = vector.load %arg10[%c8_235, %c0_236, %c0_237] : memref<16x1x24xf32, #tpu.memory_space<vmem>>, vector<1x1x24xf32>
    %257 = vector.shape_cast %256 : vector<1x1x24xf32> to vector<1x24xf32>
    %cst_238 = arith.constant dense<0.000000e+00> : vector<1x32xf32>
    %258 = tpu.matmul %257, %214, %cst_238 {dimension_numbers = #tpu.dot_dimension_numbers<[1], [0], [0], [1], [0, 0, 1, 1], [], []>} : vector<1x24xf32>, vector<24x32xf32>, vector<1x32xf32> -> vector<1x32xf32>
    %c9 = arith.constant 9 : index
    %c0_239 = arith.constant 0 : index
    %c0_240 = arith.constant 0 : index
    %259 = vector.load %arg10[%c9, %c0_239, %c0_240] : memref<16x1x24xf32, #tpu.memory_space<vmem>>, vector<1x1x24xf32>
    %260 = vector.shape_cast %259 : vector<1x1x24xf32> to vector<1x24xf32>
    %cst_241 = arith.constant dense<0.000000e+00> : vector<1x32xf32>
    %261 = tpu.matmul %260, %214, %cst_241 {dimension_numbers = #tpu.dot_dimension_numbers<[1], [0], [0], [1], [0, 0, 1, 1], [], []>} : vector<1x24xf32>, vector<24x32xf32>, vector<1x32xf32> -> vector<1x32xf32>
    %262 = arith.maximumf %258, %261 : vector<1x32xf32>
    %c10_242 = arith.constant 10 : index
    %c0_243 = arith.constant 0 : index
    %c0_244 = arith.constant 0 : index
    %263 = vector.load %arg10[%c10_242, %c0_243, %c0_244] : memref<16x1x24xf32, #tpu.memory_space<vmem>>, vector<1x1x24xf32>
    %264 = vector.shape_cast %263 : vector<1x1x24xf32> to vector<1x24xf32>
    %cst_245 = arith.constant dense<0.000000e+00> : vector<1x32xf32>
    %265 = tpu.matmul %264, %214, %cst_245 {dimension_numbers = #tpu.dot_dimension_numbers<[1], [0], [0], [1], [0, 0, 1, 1], [], []>} : vector<1x24xf32>, vector<24x32xf32>, vector<1x32xf32> -> vector<1x32xf32>
    %266 = arith.maximumf %262, %265 : vector<1x32xf32>
    %c11_246 = arith.constant 11 : index
    %c0_247 = arith.constant 0 : index
    %c0_248 = arith.constant 0 : index
    %267 = vector.load %arg10[%c11_246, %c0_247, %c0_248] : memref<16x1x24xf32, #tpu.memory_space<vmem>>, vector<1x1x24xf32>
    %268 = vector.shape_cast %267 : vector<1x1x24xf32> to vector<1x24xf32>
    %cst_249 = arith.constant dense<0.000000e+00> : vector<1x32xf32>
    %269 = tpu.matmul %268, %214, %cst_249 {dimension_numbers = #tpu.dot_dimension_numbers<[1], [0], [0], [1], [0, 0, 1, 1], [], []>} : vector<1x24xf32>, vector<24x32xf32>, vector<1x32xf32> -> vector<1x32xf32>
    %270 = arith.maximumf %266, %269 : vector<1x32xf32>
    %271 = arith.truncf %270 : vector<1x32xf32> to vector<1x32xbf16>
    %c2_250 = arith.constant 2 : index
    %c0_251 = arith.constant 0 : index
    %c0_252 = arith.constant 0 : index
    %272 = vector.load %arg11[%c2_250, %c0_251, %c0_252] : memref<4x32x64xbf16, #tpu.memory_space<vmem>>, vector<1x32x64xbf16>
    %273 = vector.shape_cast %272 : vector<1x32x64xbf16> to vector<32x64xbf16>
    %cst_253 = arith.constant dense<0.000000e+00> : vector<1x64xf32>
    %274 = tpu.matmul %271, %273, %cst_253 {dimension_numbers = #tpu.dot_dimension_numbers<[1], [0], [0], [1], [0, 0, 1, 1], [], []>} : vector<1x32xbf16>, vector<32x64xbf16>, vector<1x64xf32> -> vector<1x64xf32>
    %275 = arith.addf %255, %274 : vector<1x64xf32>
    %c12_254 = arith.constant 12 : index
    %c0_255 = arith.constant 0 : index
    %c0_256 = arith.constant 0 : index
    %276 = vector.load %arg10[%c12_254, %c0_255, %c0_256] : memref<16x1x24xf32, #tpu.memory_space<vmem>>, vector<1x1x24xf32>
    %277 = vector.shape_cast %276 : vector<1x1x24xf32> to vector<1x24xf32>
    %cst_257 = arith.constant dense<0.000000e+00> : vector<1x32xf32>
    %278 = tpu.matmul %277, %214, %cst_257 {dimension_numbers = #tpu.dot_dimension_numbers<[1], [0], [0], [1], [0, 0, 1, 1], [], []>} : vector<1x24xf32>, vector<24x32xf32>, vector<1x32xf32> -> vector<1x32xf32>
    %c13_258 = arith.constant 13 : index
    %c0_259 = arith.constant 0 : index
    %c0_260 = arith.constant 0 : index
    %279 = vector.load %arg10[%c13_258, %c0_259, %c0_260] : memref<16x1x24xf32, #tpu.memory_space<vmem>>, vector<1x1x24xf32>
    %280 = vector.shape_cast %279 : vector<1x1x24xf32> to vector<1x24xf32>
    %cst_261 = arith.constant dense<0.000000e+00> : vector<1x32xf32>
    %281 = tpu.matmul %280, %214, %cst_261 {dimension_numbers = #tpu.dot_dimension_numbers<[1], [0], [0], [1], [0, 0, 1, 1], [], []>} : vector<1x24xf32>, vector<24x32xf32>, vector<1x32xf32> -> vector<1x32xf32>
    %282 = arith.maximumf %278, %281 : vector<1x32xf32>
    %c14_262 = arith.constant 14 : index
    %c0_263 = arith.constant 0 : index
    %c0_264 = arith.constant 0 : index
    %283 = vector.load %arg10[%c14_262, %c0_263, %c0_264] : memref<16x1x24xf32, #tpu.memory_space<vmem>>, vector<1x1x24xf32>
    %284 = vector.shape_cast %283 : vector<1x1x24xf32> to vector<1x24xf32>
    %cst_265 = arith.constant dense<0.000000e+00> : vector<1x32xf32>
    %285 = tpu.matmul %284, %214, %cst_265 {dimension_numbers = #tpu.dot_dimension_numbers<[1], [0], [0], [1], [0, 0, 1, 1], [], []>} : vector<1x24xf32>, vector<24x32xf32>, vector<1x32xf32> -> vector<1x32xf32>
    %286 = arith.maximumf %282, %285 : vector<1x32xf32>
    %c15 = arith.constant 15 : index
    %c0_266 = arith.constant 0 : index
    %c0_267 = arith.constant 0 : index
    %287 = vector.load %arg10[%c15, %c0_266, %c0_267] : memref<16x1x24xf32, #tpu.memory_space<vmem>>, vector<1x1x24xf32>
    %288 = vector.shape_cast %287 : vector<1x1x24xf32> to vector<1x24xf32>
    %cst_268 = arith.constant dense<0.000000e+00> : vector<1x32xf32>
    %289 = tpu.matmul %288, %214, %cst_268 {dimension_numbers = #tpu.dot_dimension_numbers<[1], [0], [0], [1], [0, 0, 1, 1], [], []>} : vector<1x24xf32>, vector<24x32xf32>, vector<1x32xf32> -> vector<1x32xf32>
    %290 = arith.maximumf %286, %289 : vector<1x32xf32>
    %291 = arith.truncf %290 : vector<1x32xf32> to vector<1x32xbf16>
    %c3_269 = arith.constant 3 : index
    %c0_270 = arith.constant 0 : index
    %c0_271 = arith.constant 0 : index
    %292 = vector.load %arg11[%c3_269, %c0_270, %c0_271] : memref<4x32x64xbf16, #tpu.memory_space<vmem>>, vector<1x32x64xbf16>
    %293 = vector.shape_cast %292 : vector<1x32x64xbf16> to vector<32x64xbf16>
    %cst_272 = arith.constant dense<0.000000e+00> : vector<1x64xf32>
    %294 = tpu.matmul %291, %293, %cst_272 {dimension_numbers = #tpu.dot_dimension_numbers<[1], [0], [0], [1], [0, 0, 1, 1], [], []>} : vector<1x32xbf16>, vector<32x64xbf16>, vector<1x64xf32> -> vector<1x64xf32>
    %295 = arith.addf %275, %294 : vector<1x64xf32>
    %cst_273 = arith.constant 0.000000e+00 : f32
    %296 = vector.broadcast %cst_273 : f32 to vector<1x64xf32>
    %297 = arith.maximumf %295, %296 : vector<1x64xf32>
    %298 = arith.truncf %297 : vector<1x64xf32> to vector<1x64xbf16>
    %c0_274 = arith.constant 0 : index
    %c0_275 = arith.constant 0 : index
    %299 = vector.load %arg13[%c0_274, %c0_275] : memref<64x10xbf16, #tpu.memory_space<vmem>>, vector<64x10xbf16>
    %cst_276 = arith.constant dense<0.000000e+00> : vector<1x10xf32>
    %300 = tpu.matmul %298, %299, %cst_276 {dimension_numbers = #tpu.dot_dimension_numbers<[1], [0], [0], [1], [0, 0, 1, 1], [], []>} : vector<1x64xbf16>, vector<64x10xbf16>, vector<1x10xf32> -> vector<1x10xf32>
    %c0_277 = arith.constant 0 : index
    %c0_278 = arith.constant 0 : index
    %301 = vector.load %arg14[%c0_277, %c0_278] : memref<1x10xf32, #tpu.memory_space<vmem>>, vector<1x10xf32>
    %302 = arith.addf %300, %301 : vector<1x10xf32>
    %c0_279 = arith.constant 0 : index
    %c0_280 = arith.constant 0 : index
    %c0_281 = arith.constant 0 : index
    %303 = vector.load %arg15[%c0_279, %c0_280, %c0_281] : memref<1x1x10xf32, #tpu.memory_space<vmem>>, vector<1x1x10xf32>
    %304 = vector.shape_cast %303 : vector<1x1x10xf32> to vector<1x10xf32>
    %305 = vector.shape_cast %302 : vector<1x10xf32> to vector<1x1x10xf32>
    tpu.vector_store %arg15[%c0_279, %c0_280, %c0_281], %305 {strides = array<i32>} : memref<1x1x10xf32, #tpu.memory_space<vmem>>, vector<1x1x10xf32>,
    return
  }
  func.func @transform_0(%arg0: i32) -> (i32, i32, i32) {
    %c0_i32 = arith.constant 0 : i32
    %c0_i32_0 = arith.constant 0 : i32
    %c0_i32_1 = arith.constant 0 : i32
    return %arg0, %c0_i32, %c0_i32_0 : i32, i32, i32
  }
  func.func @transform_1(%arg0: i32) -> (i32, i32, i32) {
    %c0_i32 = arith.constant 0 : i32
    %c0_i32_0 = arith.constant 0 : i32
    %c0_i32_1 = arith.constant 0 : i32
    %c0_i32_2 = arith.constant 0 : i32
    return %c0_i32, %c0_i32_0, %c0_i32_1 : i32, i32, i32
  }
  func.func @transform_2(%arg0: i32) -> (i32, i32) {
    %c0_i32 = arith.constant 0 : i32
    %c0_i32_0 = arith.constant 0 : i32
    %c0_i32_1 = arith.constant 0 : i32
    return %c0_i32, %c0_i32_0 : i32, i32
  }
  func.func @transform_3(%arg0: i32) -> (i32, i32, i32) {
    %c0_i32 = arith.constant 0 : i32
    %c0_i32_0 = arith.constant 0 : i32
    %c0_i32_1 = arith.constant 0 : i32
    %c0_i32_2 = arith.constant 0 : i32
    return %c0_i32, %c0_i32_0, %c0_i32_1 : i32, i32, i32
  }
  func.func @transform_4(%arg0: i32) -> (i32, i32, i32) {
    %c0_i32 = arith.constant 0 : i32
    %c0_i32_0 = arith.constant 0 : i32
    %c0_i32_1 = arith.constant 0 : i32
    %c0_i32_2 = arith.constant 0 : i32
    return %c0_i32, %c0_i32_0, %c0_i32_1 : i32, i32, i32
  }
  func.func @transform_5(%arg0: i32) -> (i32, i32) {
    %c0_i32 = arith.constant 0 : i32
    %c0_i32_0 = arith.constant 0 : i32
    %c0_i32_1 = arith.constant 0 : i32
    return %c0_i32, %c0_i32_0 : i32, i32
  }
  func.func @transform_6(%arg0: i32) -> (i32, i32, i32) {
    %c0_i32 = arith.constant 0 : i32
    %c0_i32_0 = arith.constant 0 : i32
    %c0_i32_1 = arith.constant 0 : i32
    %c0_i32_2 = arith.constant 0 : i32
    return %c0_i32, %c0_i32_0, %c0_i32_1 : i32, i32, i32
  }
  func.func @transform_7(%arg0: i32) -> (i32, i32, i32) {
    %c0_i32 = arith.constant 0 : i32
    %c0_i32_0 = arith.constant 0 : i32
    %c0_i32_1 = arith.constant 0 : i32
    %c0_i32_2 = arith.constant 0 : i32
    return %c0_i32, %c0_i32_0, %c0_i32_1 : i32, i32, i32
  }
  func.func @transform_8(%arg0: i32) -> (i32, i32) {
    %c0_i32 = arith.constant 0 : i32
    %c0_i32_0 = arith.constant 0 : i32
    %c0_i32_1 = arith.constant 0 : i32
    return %c0_i32, %c0_i32_0 : i32, i32
  }
  func.func @transform_9(%arg0: i32) -> (i32, i32, i32) {
    %c0_i32 = arith.constant 0 : i32
    %c0_i32_0 = arith.constant 0 : i32
    %c0_i32_1 = arith.constant 0 : i32
    %c0_i32_2 = arith.constant 0 : i32
    return %c0_i32, %c0_i32_0, %c0_i32_1 : i32, i32, i32
  }
  func.func @transform_10(%arg0: i32) -> (i32, i32, i32) {
    %c0_i32 = arith.constant 0 : i32
    %c0_i32_0 = arith.constant 0 : i32
    %c0_i32_1 = arith.constant 0 : i32
    %c0_i32_2 = arith.constant 0 : i32
    return %c0_i32, %c0_i32_0, %c0_i32_1 : i32, i32, i32
  }
  func.func @transform_11(%arg0: i32) -> (i32, i32) {
    %c0_i32 = arith.constant 0 : i32
    %c0_i32_0 = arith.constant 0 : i32
    %c0_i32_1 = arith.constant 0 : i32
    return %c0_i32, %c0_i32_0 : i32, i32
  }
  func.func @transform_12(%arg0: i32) -> (i32, i32) {
    %c0_i32 = arith.constant 0 : i32
    %c0_i32_0 = arith.constant 0 : i32
    %c0_i32_1 = arith.constant 0 : i32
    return %c0_i32, %c0_i32_0 : i32, i32
  }
  func.func @transform_13(%arg0: i32) -> (i32, i32) {
    %c0_i32 = arith.constant 0 : i32
    %c0_i32_0 = arith.constant 0 : i32
    %c0_i32_1 = arith.constant 0 : i32
    return %c0_i32, %c0_i32_0 : i32, i32
  }
  func.func @transform_14(%arg0: i32) -> (i32, i32, i32) {
    %c0_i32 = arith.constant 0 : i32
    %c0_i32_0 = arith.constant 0 : i32
    %c0_i32_1 = arith.constant 0 : i32
    return %arg0, %c0_i32, %c0_i32_0 : i32, i32, i32
  }
}

</mosaic_0001>

<llo_original>
// kernel: convnet_forward.1
$region0: #{convnet_forward.1}
  #allocation0 [shape = 'u32[]', space=smem, size = 0x4, offset = 0x4, fixed_abs, tag = 'smem constant byte address 0x4 - core index']
  #allocation1 [shape = 'u32[144,128]{1,0:T(1,128)}', space=vmem, size = 0x12000, scoped, tag = 'internal scratch']
  #allocation2 [shape = 'f32[104,16]{1,0:T(8,128)}', space=vmem, size = 0xd000, scoped, tag = 'scratch operand']
  #allocation3 [shape = 'f32[40,32]{1,0:T(8,128)}', space=vmem, size = 0x5000, scoped, tag = 'scratch operand']
  %s0 = inlined_call_operand.vmem [shape: f32[2,328,4], index: 0, kind: input, shape index: {}]
  %s1 = inlined_call_operand.vmem [shape: bf16[9,4,16], index: 1, kind: input, shape index: {}]
  %s2 = inlined_call_operand.vmem [shape: f32[1,16], index: 2, kind: input, shape index: {}]
  %s3 = inlined_call_operand.vmem [shape: f32[4,104,288], index: 3, kind: input, shape index: {}]
  %s4 = inlined_call_operand.vmem [shape: bf16[9,16,32], index: 4, kind: input, shape index: {}]
  %s5 = inlined_call_operand.vmem [shape: f32[1,32], index: 5, kind: input, shape index: {}]
  %s6 = inlined_call_operand.vmem [shape: f32[4,40,80], index: 6, kind: input, shape index: {}]
  %s7 = inlined_call_operand.vmem [shape: bf16[9,32,32], index: 7, kind: input, shape index: {}]
  %s8 = inlined_call_operand.vmem [shape: f32[1,32], index: 8, kind: input, shape index: {}]
  %s9 = inlined_call_operand.vmem [shape: f32[16,1,24], index: 9, kind: input, shape index: {}]
  %s10 = inlined_call_operand.vmem [shape: bf16[4,32,64], index: 10, kind: input, shape index: {}]
  %s11 = inlined_call_operand.vmem [shape: f32[1,64], index: 11, kind: input, shape index: {}]
  %s12 = inlined_call_operand.vmem [shape: bf16[64,10], index: 12, kind: input, shape index: {}]
  %s13 = inlined_call_operand.vmem [shape: f32[1,10], index: 13, kind: input, shape index: {}]
  %s14 = inlined_call_operand.hbm [shape: f32[2,1,10], index: 14, kind: output, shape index: {}]
  %s15 = sld [smem:[#allocation0]]
  $region89: #{convnet_forward.1} parent=0
    _
  %s17 = ssub.s32 1, %s15
  %s18 = scalar_select 0, %s17, %s15
  $region1: #{convnet_forward.1} parent=0
    #allocation4 [shape = 'u8[1024]{0}', space=vmem, size = 0x400, scoped, tag = 'output window, operand 0']
    #allocation5 [shape = 's32[2]{0}', space=sflag, size = 0x8, scoped, tag = 'scoped memory for convnet_forward.1']
    %19 = vsyncpa [#allocation5], 0
    %s20 = scalar_lea.sflag [#allocation5], 1
    %21 = vsyncpa %s20, 0
    loop: start=0, step=1, limit=4
    $region2: #{convnet_forward.1} parent=1 // loop_pre_header
      _
    $region3: #{convnet_forward.1} parent=1 // loop_header
      %s23 = sphi 0, %s27
      %p24 = scmp.ge.s32.totalorder %s23, 4
      %s33 = sphi 0, %s35
      %s36 = sphi 0, %s33
      %s37 = sphi 0, %s36
      %s53 = sphi 0, %s37
      %s57 = sphi 0, %s57
      %s59 = sphi 0, %s57
      %s60 = sphi 0, %s59
      %s74 = sphi 0, %s60
      %s78 = sphi 0, %s78
      %s80 = sphi 0, %s78
      %s81 = sphi 0, %s80
      %s95 = sphi 0, %s81
      %s99 = sphi 0, %s99
      %s101 = sphi 0, %s99
      %s102 = sphi 0, %s101
      %s116 = sphi 0, %s102
      %s120 = sphi 0, %s120
      %s122 = sphi 0, %s120
      %s123 = sphi 0, %s122
      %s137 = sphi 0, %s123
      %s141 = sphi 0, %s141
      %s143 = sphi 0, %s141
      %s144 = sphi 0, %s143
      %s158 = sphi 0, %s144
      %s162 = sphi 0, %s162
      %s164 = sphi 0, %s162
      %s165 = sphi 0, %s164
      %s179 = sphi 0, %s165
      %s183 = sphi 0, %s183
      %s185 = sphi 0, %s183
      %s186 = sphi 0, %s185
      %s200 = sphi 0, %s186
      %s204 = sphi 0, %s204
      %s206 = sphi 0, %s204
      %s207 = sphi 0, %s206
      %s221 = sphi 0, %s207
      %s225 = sphi 0, %s225
      %s227 = sphi 0, %s225
      %s228 = sphi 0, %s227
      %s242 = sphi 0, %s228
      %s246 = sphi 0, %s246
      %s248 = sphi 0, %s246
      %s249 = sphi 0, %s248
      %s263 = sphi 0, %s249
      %s267 = sphi 0, %s267
      %s269 = sphi 0, %s267
      %s270 = sphi 0, %s269
      %s284 = sphi 0, %s270
      %s288 = sphi 0, %s288
      %s290 = sphi 0, %s288
      %s291 = sphi 0, %s290
      %s305 = sphi 0, %s291
      %s309 = sphi 0, %s309
      %s311 = sphi 0, %s309
      %s312 = sphi 0, %s311
      %s326 = sphi 0, %s312
      %s332 = sphi 0, %s334
      %s335 = sphi 0, %s332
      %s336 = sphi 0, %s335
      %s352 = sphi 0, %s336
    $region4: #{convnet_forward.1} parent=1 // loop_header_branch
      %26 = sbr.rel (%p24) target = $region8
    $region5: #{convnet_forward.1} parent=1 // loop_body
      %s28 = ssub.s32 %s23, 1
      %s29 = ssub.s32 %s23, 2
      %s30 = sadd.s32 %s23, 1
      %s31 = ssub.s32 %s23, %s30
      %p32 = scmp.eq.s32.totalorder %s31, 0
      %s34 = sadd.s32 %s33, 1
      %s35 = scalar_select %p32, %s33, %s34
      %p38 = pneg %p32
      %p39 = scmp.eq.s32.totalorder %s23, 1
      %p40 = por %p38, %p39
      %p41 = scmp.ne.s32.totalorder %s33, %s36
      %p42 = scmp.eq.s32.totalorder %s23, 0
      %p43 = por %p41, %p42
      %p44 = scmp.ne.s32.totalorder %s33, %s36
      %p45 = scmp.eq.s32.totalorder %s28, 1
      %p46 = por %p44, %p45
      %p47 = scmp.ne.s32.totalorder %s36, %s37
      %p48 = scmp.eq.s32.totalorder %s28, 0
      %p49 = por %p47, %p48
      %p50 = scmp.ne.s32.totalorder %s36, %s37
      %p51 = scmp.eq.s32.totalorder %s29, 1
      %p52 = por %p50, %p51
      %p54 = scmp.ne.s32.totalorder %s37, %s53
      %p55 = scmp.eq.s32.totalorder %s29, 0
      %p56 = por %p54, %p55
      %s58 = sadd.s32 %s57, 1
      %p61 = scmp.eq.s32.totalorder %s23, 1
      %p62 = scmp.ne.s32.totalorder %s57, %s59
      %p63 = scmp.eq.s32.totalorder %s23, 0
      %p64 = por %p62, %p63
      %p65 = scmp.ne.s32.totalorder %s57, %s59
      %p66 = scmp.eq.s32.totalorder %s28, 1
      %p67 = por %p65, %p66
      %p68 = scmp.ne.s32.totalorder %s59, %s60
      %p69 = scmp.eq.s32.totalorder %s28, 0
      %p70 = por %p68, %p69
      %p71 = scmp.ne.s32.totalorder %s59, %s60
      %p72 = scmp.eq.s32.totalorder %s29, 1
      %p73 = por %p71, %p72
      %p75 = scmp.ne.s32.totalorder %s60, %s74
      %p76 = scmp.eq.s32.totalorder %s29, 0
      %p77 = por %p75, %p76
      %s79 = sadd.s32 %s78, 1
      %p82 = scmp.eq.s32.totalorder %s23, 1
      %p83 = scmp.ne.s32.totalorder %s78, %s80
      %p84 = scmp.eq.s32.totalorder %s23, 0
      %p85 = por %p83, %p84
      %p86 = scmp.ne.s32.totalorder %s78, %s80
      %p87 = scmp.eq.s32.totalorder %s28, 1
      %p88 = por %p86, %p87
      %p89 = scmp.ne.s32.totalorder %s80, %s81
      %p90 = scmp.eq.s32.totalorder %s28, 0
      %p91 = por %p89, %p90
      %p92 = scmp.ne.s32.totalorder %s80, %s81
      %p93 = scmp.eq.s32.totalorder %s29, 1
      %p94 = por %p92, %p93
      %p96 = scmp.ne.s32.totalorder %s81, %s95
      %p97 = scmp.eq.s32.totalorder %s29, 0
      %p98 = por %p96, %p97
      %s100 = sadd.s32 %s99, 1
      %p103 = scmp.eq.s32.totalorder %s23, 1
      %p104 = scmp.ne.s32.totalorder %s99, %s101
      %p105 = scmp.eq.s32.totalorder %s23, 0
      %p106 = por %p104, %p105
      %p107 = scmp.ne.s32.totalorder %s99, %s101
      %p108 = scmp.eq.s32.totalorder %s28, 1
      %p109 = por %p107, %p108
      %p110 = scmp.ne.s32.totalorder %s101, %s102
      %p111 = scmp.eq.s32.totalorder %s28, 0
      %p112 = por %p110, %p111
      %p113 = scmp.ne.s32.totalorder %s101, %s102
      %p114 = scmp.eq.s32.totalorder %s29, 1
      %p115 = por %p113, %p114
      %p117 = scmp.ne.s32.totalorder %s102, %s116
      %p118 = scmp.eq.s32.totalorder %s29, 0
      %p119 = por %p117, %p118
      %s121 = sadd.s32 %s120, 1
      %p124 = scmp.eq.s32.totalorder %s23, 1
      %p125 = scmp.ne.s32.totalorder %s120, %s122
      %p126 = scmp.eq.s32.totalorder %s23, 0
      %p127 = por %p125, %p126
      %p128 = scmp.ne.s32.totalorder %s120, %s122
      %p129 = scmp.eq.s32.totalorder %s28, 1
      %p130 = por %p128, %p129
      %p131 = scmp.ne.s32.totalorder %s122, %s123
      %p132 = scmp.eq.s32.totalorder %s28, 0
      %p133 = por %p131, %p132
      %p134 = scmp.ne.s32.totalorder %s122, %s123
      %p135 = scmp.eq.s32.totalorder %s29, 1
      %p136 = por %p134, %p135
      %p138 = scmp.ne.s32.totalorder %s123, %s137
      %p139 = scmp.eq.s32.totalorder %s29, 0
      %p140 = por %p138, %p139
      %s142 = sadd.s32 %s141, 1
      %p145 = scmp.eq.s32.totalorder %s23, 1
      %p146 = scmp.ne.s32.totalorder %s141, %s143
      %p147 = scmp.eq.s32.totalorder %s23, 0
      %p148 = por %p146, %p147
      %p149 = scmp.ne.s32.totalorder %s141, %s143
      %p150 = scmp.eq.s32.totalorder %s28, 1
      %p151 = por %p149, %p150
      %p152 = scmp.ne.s32.totalorder %s143, %s144
      %p153 = scmp.eq.s32.totalorder %s28, 0
      %p154 = por %p152, %p153
      %p155 = scmp.ne.s32.totalorder %s143, %s144
      %p156 = scmp.eq.s32.totalorder %s29, 1
      %p157 = por %p155, %p156
      %p159 = scmp.ne.s32.totalorder %s144, %s158
      %p160 = scmp.eq.s32.totalorder %s29, 0
      %p161 = por %p159, %p160
      %s163 = sadd.s32 %s162, 1
      %p166 = scmp.eq.s32.totalorder %s23, 1
      %p167 = scmp.ne.s32.totalorder %s162, %s164
      %p168 = scmp.eq.s32.totalorder %s23, 0
      %p169 = por %p167, %p168
      %p170 = scmp.ne.s32.totalorder %s162, %s164
      %p171 = scmp.eq.s32.totalorder %s28, 1
      %p172 = por %p170, %p171
      %p173 = scmp.ne.s32.totalorder %s164, %s165
      %p174 = scmp.eq.s32.totalorder %s28, 0
      %p175 = por %p173, %p174
      %p176 = scmp.ne.s32.totalorder %s164, %s165
      %p177 = scmp.eq.s32.totalorder %s29, 1
      %p178 = por %p176, %p177
      %p180 = scmp.ne.s32.totalorder %s165, %s179
      %p181 = scmp.eq.s32.totalorder %s29, 0
      %p182 = por %p180, %p181
      %s184 = sadd.s32 %s183, 1
      %p187 = scmp.eq.s32.totalorder %s23, 1
      %p188 = scmp.ne.s32.totalorder %s183, %s185
      %p189 = scmp.eq.s32.totalorder %s23, 0
      %p190 = por %p188, %p189
      %p191 = scmp.ne.s32.totalorder %s183, %s185
      %p192 = scmp.eq.s32.totalorder %s28, 1
      %p193 = por %p191, %p192
      %p194 = scmp.ne.s32.totalorder %s185, %s186
      %p195 = scmp.eq.s32.totalorder %s28, 0
      %p196 = por %p194, %p195
      %p197 = scmp.ne.s32.totalorder %s185, %s186
      %p198 = scmp.eq.s32.totalorder %s29, 1
      %p199 = por %p197, %p198
      %p201 = scmp.ne.s32.totalorder %s186, %s200
      %p202 = scmp.eq.s32.totalorder %s29, 0
      %p203 = por %p201, %p202
      %s205 = sadd.s32 %s204, 1
      %p208 = scmp.eq.s32.totalorder %s23, 1
      %p209 = scmp.ne.s32.totalorder %s204, %s206
      %p210 = scmp.eq.s32.totalorder %s23, 0
      %p211 = por %p209, %p210
      %p212 = scmp.ne.s32.totalorder %s204, %s206
      %p213 = scmp.eq.s32.totalorder %s28, 1
      %p214 = por %p212, %p213
      %p215 = scmp.ne.s32.totalorder %s206, %s207
      %p216 = scmp.eq.s32.totalorder %s28, 0
      %p217 = por %p215, %p216
      %p218 = scmp.ne.s32.totalorder %s206, %s207
      %p219 = scmp.eq.s32.totalorder %s29, 1
      %p220 = por %p218, %p219
      %p222 = scmp.ne.s32.totalorder %s207, %s221
      %p223 = scmp.eq.s32.totalorder %s29, 0
      %p224 = por %p222, %p223
      %s226 = sadd.s32 %s225, 1
      %p229 = scmp.eq.s32.totalorder %s23, 1
      %p230 = scmp.ne.s32.totalorder %s225, %s227
      %p231 = scmp.eq.s32.totalorder %s23, 0
      %p232 = por %p230, %p231
      %p233 = scmp.ne.s32.totalorder %s225, %s227
      %p234 = scmp.eq.s32.totalorder %s28, 1
      %p235 = por %p233, %p234
      %p236 = scmp.ne.s32.totalorder %s227, %s228
      %p237 = scmp.eq.s32.totalorder %s28, 0
      %p238 = por %p236, %p237
      %p239 = scmp.ne.s32.totalorder %s227, %s228
      %p240 = scmp.eq.s32.totalorder %s29, 1
      %p241 = por %p239, %p240
      %p243 = scmp.ne.s32.totalorder %s228, %s242
      %p244 = scmp.eq.s32.totalorder %s29, 0
      %p245 = por %p243, %p244
      %s247 = sadd.s32 %s246, 1
      %p250 = scmp.eq.s32.totalorder %s23, 1
      %p251 = scmp.ne.s32.totalorder %s246, %s248
      %p252 = scmp.eq.s32.totalorder %s23, 0
      %p253 = por %p251, %p252
      %p254 = scmp.ne.s32.totalorder %s246, %s248
      %p255 = scmp.eq.s32.totalorder %s28, 1
      %p256 = por %p254, %p255
      %p257 = scmp.ne.s32.totalorder %s248, %s249
      %p258 = scmp.eq.s32.totalorder %s28, 0
      %p259 = por %p257, %p258
      %p260 = scmp.ne.s32.totalorder %s248, %s249
      %p261 = scmp.eq.s32.totalorder %s29, 1
      %p262 = por %p260, %p261
      %p264 = scmp.ne.s32.totalorder %s249, %s263
      %p265 = scmp.eq.s32.totalorder %s29, 0
      %p266 = por %p264, %p265
      %s268 = sadd.s32 %s267, 1
      %p271 = scmp.eq.s32.totalorder %s23, 1
      %p272 = scmp.ne.s32.totalorder %s267, %s269
      %p273 = scmp.eq.s32.totalorder %s23, 0
      %p274 = por %p272, %p273
      %p275 = scmp.ne.s32.totalorder %s267, %s269
      %p276 = scmp.eq.s32.totalorder %s28, 1
      %p277 = por %p275, %p276
      %p278 = scmp.ne.s32.totalorder %s269, %s270
      %p279 = scmp.eq.s32.totalorder %s28, 0
      %p280 = por %p278, %p279
      %p281 = scmp.ne.s32.totalorder %s269, %s270
      %p282 = scmp.eq.s32.totalorder %s29, 1
      %p283 = por %p281, %p282
      %p285 = scmp.ne.s32.totalorder %s270, %s284
      %p286 = scmp.eq.s32.totalorder %s29, 0
      %p287 = por %p285, %p286
      %s289 = sadd.s32 %s288, 1
      %p292 = scmp.eq.s32.totalorder %s23, 1
      %p293 = scmp.ne.s32.totalorder %s288, %s290
      %p294 = scmp.eq.s32.totalorder %s23, 0
      %p295 = por %p293, %p294
      %p296 = scmp.ne.s32.totalorder %s288, %s290
      %p297 = scmp.eq.s32.totalorder %s28, 1
      %p298 = por %p296, %p297
      %p299 = scmp.ne.s32.totalorder %s290, %s291
      %p300 = scmp.eq.s32.totalorder %s28, 0
      %p301 = por %p299, %p300
      %p302 = scmp.ne.s32.totalorder %s290, %s291
      %p303 = scmp.eq.s32.totalorder %s29, 1
      %p304 = por %p302, %p303
      %p306 = scmp.ne.s32.totalorder %s291, %s305
      %p307 = scmp.eq.s32.totalorder %s29, 0
      %p308 = por %p306, %p307
      %s310 = sadd.s32 %s309, 1
      %p313 = scmp.eq.s32.totalorder %s23, 1
      %p314 = scmp.ne.s32.totalorder %s309, %s311
      %p315 = scmp.eq.s32.totalorder %s23, 0
      %p316 = por %p314, %p315
      %p317 = scmp.ne.s32.totalorder %s309, %s311
      %p318 = scmp.eq.s32.totalorder %s28, 1
      %p319 = por %p317, %p318
      %p320 = scmp.ne.s32.totalorder %s311, %s312
      %p321 = scmp.eq.s32.totalorder %s28, 0
      %p322 = por %p320, %p321
      %p323 = scmp.ne.s32.totalorder %s311, %s312
      %p324 = scmp.eq.s32.totalorder %s29, 1
      %p325 = por %p323, %p324
      %p327 = scmp.ne.s32.totalorder %s312, %s326
      %p328 = scmp.eq.s32.totalorder %s29, 0
      %p329 = por %p327, %p328
      %s330 = ssub.s32 %s23, %s30
      %p331 = scmp.eq.s32.totalorder %s330, 0
      %s333 = sadd.s32 %s332, 1
      %s334 = scalar_select %p331, %s332, %s333
      %p337 = pneg %p331
      %p338 = scmp.eq.s32.totalorder %s23, 1
      %p339 = por %p337, %p338
      %p340 = scmp.ne.s32.totalorder %s332, %s335
      %p341 = scmp.eq.s32.totalorder %s23, 0
      %p342 = por %p340, %p341
      %p343 = scmp.ne.s32.totalorder %s332, %s335
      %p344 = scmp.eq.s32.totalorder %s28, 1
      %p345 = por %p343, %p344
      %p346 = scmp.ne.s32.totalorder %s335, %s336
      %p347 = scmp.eq.s32.totalorder %s28, 0
      %p348 = por %p346, %p347
      %p349 = scmp.ne.s32.totalorder %s335, %s336
      %p350 = scmp.eq.s32.totalorder %s29, 1
      %p351 = por %p349, %p350
      %p353 = scmp.ne.s32.totalorder %s336, %s352
      %p354 = scmp.eq.s32.totalorder %s29, 0
      %p355 = por %p353, %p354
      %p356 = scmp.le.s32.totalorder 1, %s23
      %p357 = scmp.lt.s32.totalorder %s23, 3
      %p358 = pnand %p356, %p357
      %p359 = pneg %p358
      // Predicated region
      $region9: #{convnet_forward.1} parent=5 // pred_check
        _
      $region10: #{convnet_forward.1} parent=5 // pred_check_branch
        %361 = sbr.rel (%p358) target = $region12
      $region11: #{convnet_forward.1} parent=5 // pred_region
        %s362 = ssub.s32 %s23, 1
        // Predicated region
        $region13: #{convnet_forward.1} parent=11 // pred_check
          %p363 = pneg %p70
        $region14: #{convnet_forward.1} parent=11 // pred_check_branch
          %365 = sbr.rel (%p363) target = $region16
        $region15: #{convnet_forward.1} parent=11 // pred_region
          _
        $region16: #{convnet_forward.1} parent=11 // pred_fallthru
          _
        // Predicated region
        $region17: #{convnet_forward.1} parent=11 // pred_check
          %p366 = pneg %p91
        $region18: #{convnet_forward.1} parent=11 // pred_check_branch
          %368 = sbr.rel (%p366) target = $region20
        $region19: #{convnet_forward.1} parent=11 // pred_region
          _
        $region20: #{convnet_forward.1} parent=11 // pred_fallthru
          _
        // Predicated region
        $region21: #{convnet_forward.1} parent=11 // pred_check
          %p369 = pneg %p112
        $region22: #{convnet_forward.1} parent=11 // pred_check_branch
          %371 = sbr.rel (%p369) target = $region24
        $region23: #{convnet_forward.1} parent=11 // pred_region
          _
        $region24: #{convnet_forward.1} parent=11 // pred_fallthru
          _
        // Predicated region
        $region25: #{convnet_forward.1} parent=11 // pred_check
          %p372 = pneg %p133
        $region26: #{convnet_forward.1} parent=11 // pred_check_branch
          %374 = sbr.rel (%p372) target = $region28
        $region27: #{convnet_forward.1} parent=11 // pred_region
          _
        $region28: #{convnet_forward.1} parent=11 // pred_fallthru
          _
        // Predicated region
        $region29: #{convnet_forward.1} parent=11 // pred_check
          %p375 = pneg %p154
        $region30: #{convnet_forward.1} parent=11 // pred_check_branch
          %377 = sbr.rel (%p375) target = $region32
        $region31: #{convnet_forward.1} parent=11 // pred_region
          _
        $region32: #{convnet_forward.1} parent=11 // pred_fallthru
          _
        // Predicated region
        $region33: #{convnet_forward.1} parent=11 // pred_check
          %p378 = pneg %p175
        $region34: #{convnet_forward.1} parent=11 // pred_check_branch
          %380 = sbr.rel (%p378) target = $region36
        $region35: #{convnet_forward.1} parent=11 // pred_region
          _
        $region36: #{convnet_forward.1} parent=11 // pred_fallthru
          _
        // Predicated region
        $region37: #{convnet_forward.1} parent=11 // pred_check
          %p381 = pneg %p196
        $region38: #{convnet_forward.1} parent=11 // pred_check_branch
          %383 = sbr.rel (%p381) target = $region40
        $region39: #{convnet_forward.1} parent=11 // pred_region
          _
        $region40: #{convnet_forward.1} parent=11 // pred_fallthru
          _
        // Predicated region
        $region41: #{convnet_forward.1} parent=11 // pred_check
          %p384 = pneg %p217
        $region42: #{convnet_forward.1} parent=11 // pred_check_branch
          %386 = sbr.rel (%p384) target = $region44
        $region43: #{convnet_forward.1} parent=11 // pred_region
          _
        $region44: #{convnet_forward.1} parent=11 // pred_fallthru
          _
        // Predicated region
        $region45: #{convnet_forward.1} parent=11 // pred_check
          %p387 = pneg %p238
        $region46: #{convnet_forward.1} parent=11 // pred_check_branch
          %389 = sbr.rel (%p387) target = $region48
        $region47: #{convnet_forward.1} parent=11 // pred_region
          _
        $region48: #{convnet_forward.1} parent=11 // pred_fallthru
          _
        // Predicated region
        $region49: #{convnet_forward.1} parent=11 // pred_check
          %p390 = pneg %p259
        $region50: #{convnet_forward.1} parent=11 // pred_check_branch
          %392 = sbr.rel (%p390) target = $region52
        $region51: #{convnet_forward.1} parent=11 // pred_region
          _
        $region52: #{convnet_forward.1} parent=11 // pred_fallthru
          _
        // Predicated region
        $region53: #{convnet_forward.1} parent=11 // pred_check
          %p393 = pneg %p280
        $region54: #{convnet_forward.1} parent=11 // pred_check_branch
          %395 = sbr.rel (%p393) target = $region56
        $region55: #{convnet_forward.1} parent=11 // pred_region
          _
        $region56: #{convnet_forward.1} parent=11 // pred_fallthru
          _
        // Predicated region
        $region57: #{convnet_forward.1} parent=11 // pred_check
          %p396 = pneg %p301
        $region58: #{convnet_forward.1} parent=11 // pred_check_branch
          %398 = sbr.rel (%p396) target = $region60
        $region59: #{convnet_forward.1} parent=11 // pred_region
          _
        $region60: #{convnet_forward.1} parent=11 // pred_fallthru
          _
        // Predicated region
        $region61: #{convnet_forward.1} parent=11 // pred_check
          %p399 = pneg %p322
        $region62: #{convnet_forward.1} parent=11 // pred_check_branch
          %401 = sbr.rel (%p399) target = $region64
        $region63: #{convnet_forward.1} parent=11 // pred_region
          _
        $region64: #{convnet_forward.1} parent=11 // pred_fallthru
          _
      $region12: #{convnet_forward.1} parent=5 // pred_fallthru
        _
      %p402 = scmp.lt.s32.totalorder %s23, 2
      // Predicated region
      $region65: #{convnet_forward.1} parent=5 // pred_check
        %p403 = pneg %p402
      $region66: #{convnet_forward.1} parent=5 // pred_check_branch
        %405 = sbr.rel (%p403) target = $region68
      $region67: #{convnet_forward.1} parent=5 // pred_region
        // Predicated region
        $region69: #{convnet_forward.1} parent=67 // pred_check
          %p406 = pneg %p43
        $region70: #{convnet_forward.1} parent=67 // pred_check_branch
          %408 = sbr.rel (%p406) target = $region72
        $region71: #{convnet_forward.1} parent=67 // pred_region
          %p409 = scmp.lt.s32.totalorder %s23, 1
          %s410 = scalar_select %p409, %s23, 1
          %s411 = smul.addr %s410, 41
          %s412 = smul.addr %s411, 8
          %s413 = scalar_lea.vmem %s0, %s412
        $region72: #{convnet_forward.1} parent=67 // pred_fallthru
          _
      $region68: #{convnet_forward.1} parent=5 // pred_fallthru
        _
      %p414 = scmp.le.s32.totalorder 1, %s23
      %p415 = scmp.lt.s32.totalorder %s23, 3
      %p416 = pnand %p414, %p415
      %p417 = pneg %p416
      // Predicated region
      $region73: #{convnet_forward.1} parent=5 // pred_check
        _
      $region74: #{convnet_forward.1} parent=5 // pred_check_branch
        %419 = sbr.rel (%p416) target = $region76
      $region75: #{convnet_forward.1} parent=5 // pred_region
        %s420 = ssub.s32 %s23, 1
        %p421 = scmp.lt.s32.totalorder %s28, 1
        %s422 = scalar_select %p421, %s28, 1
        %s423 = smul.addr %s422, 41
        %s424 = smul.addr %s423, 8
        %s425 = scalar_lea.vmem %s0, %s424
        %p426 = pneg %p49
        %p427 = pneg %p46
        %p428 = pneg %p70
        %p429 = pneg %p67
        %p430 = pneg %p91
        %p431 = pneg %p88
        %p432 = pneg %p112
        %p433 = pneg %p109
        %p434 = pneg %p133
        %p435 = pneg %p130
        %p436 = pneg %p154
        %p437 = pneg %p151
        %p438 = pneg %p175
        %p439 = pneg %p172
        %p440 = pneg %p196
        %p441 = pneg %p193
        %p442 = pneg %p217
        %p443 = pneg %p214
        %p444 = pneg %p238
        %p445 = pneg %p235
        %p446 = pneg %p259
        %p447 = pneg %p256
        %p448 = pneg %p280
        %p449 = pneg %p277
        %p450 = pneg %p301
        %p451 = pneg %p298
        %p452 = pneg %p322
        %p453 = pneg %p319
        %p454 = pneg %p348
        %p455 = pneg %p345
        %s456 = sand.u32 %s335, 1
        %s457 = scalar_lea.sflag [#allocation5], %s456
        %s458 = sand.u32 %s335, 1
        %s459 = scalar_lea.vmem [#allocation4], %s458
        %p460 = scmp.lt.s32.totalorder %s28, 1
        %s461 = scalar_select %p460, %s28, 1
        %s462 = smul.addr %s461, 41
        %s463 = smul.addr %s462, 8
        %s464 = scalar_lea.vmem %s0, %s463
        %v466 = vld [vmem:[%s2] sm:$0x1]
        %v467 = vld [vmem:[%s464] sm:$0xff]
        %v468 = vld [vmem:[%s464 + $0x8] sm:$0xff]
        %v469 = vld [vmem:[%s464 + $0x10] sm:$0xff]
        %v470 = vld [vmem:[%s464 + $0x18] sm:$0xff]
        %v471 = vld [vmem:[%s464 + $0x20] sm:$0xff]
        %v472 = vld [vmem:[%s464 + $0x28] sm:$0xff]
        %v473 = vld [vmem:[%s464 + $0x30] sm:$0xff]
        %v474 = vld [vmem:[%s464 + $0x38] sm:$0xff]
        %v475 = vld [vmem:[%s464 + $0x40] sm:$0xff]
        %v476 = vld [vmem:[%s464 + $0x48] sm:$0xff]
        %v477 = vld [vmem:[%s464 + $0x50] sm:$0xff]
        %v478 = vld [vmem:[%s464 + $0x58] sm:$0xff]
        %v479 = vld [vmem:[%s464 + $0x60] sm:$0xff]
        %v480 = vld [vmem:[%s464 + $0x68] sm:$0xff]
        %v481 = vld [vmem:[%s464 + $0x70] sm:$0xff]
        %v482 = vld [vmem:[%s464 + $0x78] sm:$0xff]
        %v483 = vld [vmem:[%s464 + $0x80] sm:$0xff]
        %v484 = vld [vmem:[%s464 + $0x88] sm:$0xff]
        %v485 = vld [vmem:[%s464 + $0x90] sm:$0xff]
        %v486 = vld [vmem:[%s464 + $0x98] sm:$0xff]
        %v487 = vld [vmem:[%s464 + $0xa0] sm:$0xff]
        %v488 = vld [vmem:[%s464 + $0xa8] sm:$0xff]
        %v489 = vld [vmem:[%s464 + $0xb0] sm:$0xff]
        %v490 = vld [vmem:[%s464 + $0xb8] sm:$0xff]
        %v491 = vld [vmem:[%s464 + $0xc0] sm:$0xff]
        %v492 = vld [vmem:[%s464 + $0xc8] sm:$0xff]
        %v493 = vld [vmem:[%s464 + $0xd0] sm:$0xff]
        %v494 = vld [vmem:[%s464 + $0xd8] sm:$0xff]
        %v495 = vld [vmem:[%s464 + $0xe0] sm:$0xff]
        %v496 = vld [vmem:[%s464 + $0xe8] sm:$0xff]
        %v497 = vld [vmem:[%s464 + $0xf0] sm:$0xff]
        %v498 = vld [vmem:[%s464 + $0xf8] sm:$0xff]
        %v499 = vld [vmem:[%s464 + $0x100] sm:$0xff]
        %v500 = vld [vmem:[%s464 + $0x108] sm:$0xff]
        %v501 = vld [vmem:[%s464 + $0x110] sm:$0xff]
        %v502 = vld [vmem:[%s464 + $0x118] sm:$0xff]
        %v503 = vpack.c.bf16 %v468, %v467
        %v504 = vpack.c.bf16 %v470, %v469
        %v505 = vpack.c.bf16 %v472, %v471
        %v506 = vpack.c.bf16 %v474, %v473
        %v507 = vpack.c.bf16 %v476, %v475
        %v508 = vpack.c.bf16 %v478, %v477
        %v509 = vpack.c.bf16 %v480, %v479
        %v510 = vpack.c.bf16 %v482, %v481
        %v511 = vpack.c.bf16 %v484, %v483
        %v512 = vpack.c.bf16 %v486, %v485
        %v513 = vpack.c.bf16 %v488, %v487
        %v514 = vpack.c.bf16 %v490, %v489
        %v515 = vpack.c.bf16 %v492, %v491
        %v516 = vpack.c.bf16 %v494, %v493
        %v517 = vpack.c.bf16 %v496, %v495
        %v518 = vpack.c.bf16 %v498, %v497
        %v519 = vpack.c.bf16 %v500, %v499
        %v520 = vpack.c.bf16 %v502, %v501
        %v521 = vld [vmem:[%s1] sm:$0x3]
        %vm522 = vcmask 31744
        %v524 = vsel %vm522, %v503, 0
        %v527 = vsel %vm522, %v504, 0
        %v530 = vsel %vm522, %v505, 0
        %v533 = vsel %vm522, %v506, 0
        %v536 = vsel %vm522, %v507, 0
        %v539 = vsel %vm522, %v508, 0
        %v542 = vsel %vm522, %v509, 0
        %v545 = vsel %vm522, %v510, 0
        %v548 = vsel %vm522, %v511, 0
        %v551 = vsel %vm522, %v512, 0
        %v554 = vsel %vm522, %v513, 0
        %v557 = vsel %vm522, %v514, 0
        %v560 = vsel %vm522, %v515, 0
        %v563 = vsel %vm522, %v516, 0
        %v566 = vsel %vm522, %v517, 0
        %v569 = vsel %vm522, %v518, 0
        %v572 = vsel %vm522, %v519, 0
        %v575 = vsel %vm522, %v520, 0
        %vm577 = vcmask 1041408
        %v579 = vsel %vm577, %v521, 0
        %581 = vmatprep.subr.bf16.mxu0 0
        %582 = vmatpush1.bf16.msra.mxu0 %v579
        %583 = vmatprep.subr.bf16.mxu0 0
        %584 = vmatpush1.bf16.msra.mxu0 0
        %585 = vmatprep.subr.bf16.mxu0 0
        %586 = vmatpush1.bf16.msra.mxu0 0
        %587 = vmatprep.subr.bf16.mxu0 0
        %588 = vmatpush1.bf16.msra.mxu0 0
        %589 = vmatprep.subr.bf16.mxu0 0
        %590 = vmatpush1.bf16.msra.mxu0 0
        %591 = vmatprep.subr.bf16.mxu0 0
        %592 = vmatpush1.bf16.msra.mxu0 0
        %593 = vmatprep.subr.bf16.mxu0 0
        %594 = vmatpush1.bf16.msra.mxu0 0
        %595 = vmatprep.subr.bf16.mxu0 0
        %596 = vmatpush1.bf16.msra.mxu0 0
        %597 = vmatprep.subr.bf16.mxu0 0
        %598 = vmatpush1.bf16.msra.mxu0 0
        %599 = vmatprep.subr.bf16.mxu0 0
        %600 = vmatpush1.bf16.msra.mxu0 0
        %601 = vmatprep.subr.bf16.mxu0 0
        %602 = vmatpush1.bf16.msra.mxu0 0
        %603 = vmatprep.subr.bf16.mxu0 0
        %604 = vmatpush1.bf16.msra.mxu0 0
        %605 = vmatprep.subr.bf16.mxu0 0
        %606 = vmatpush1.bf16.msra.mxu0 0
        %607 = vmatprep.subr.bf16.mxu0 0
        %608 = vmatpush1.bf16.msra.mxu0 0
        %609 = vmatprep.subr.bf16.mxu0 0
        %610 = vmatpush1.bf16.msra.mxu0 0
        %611 = vmatprep.subr.bf16.mxu0 0
        %612 = vmatpush1.bf16.msra.mxu0 0
        %613 = vmatprep.mubr.bf16.mxu0 0
        %614 = vmatmul.mubr.bf16.gmra.mrb[0].mxu0 %v524
        %v615 = vpop.f32.mrb[0].mxu0
        %v616 = vadd.f32 0.0, %v615
        %v617 = vpop.f32.mrb[0].mxu0
        %v618 = vpop.f32.mrb[0].mxu0
        %v619 = vadd.f32 0.0, %v618
        %v620 = vpop.f32.mrb[0].mxu0
        %621 = vmatprep.mubr.bf16.mxu0 0
        %622 = vmatmul.mubr.bf16.gmra.mrb[0].mxu0 %v527
        %v623 = vpop.f32.mrb[0].mxu0
        %v624 = vadd.f32 0.0, %v623
        %v625 = vpop.f32.mrb[0].mxu0
        %v626 = vpop.f32.mrb[0].mxu0
        %v627 = vadd.f32 0.0, %v626
        %v628 = vpop.f32.mrb[0].mxu0
        %629 = vmatprep.mubr.bf16.mxu0 0
        %630 = vmatmul.mubr.bf16.gmra.mrb[0].mxu0 %v530
        %v631 = vpop.f32.mrb[0].mxu0
        %v632 = vadd.f32 0.0, %v631
        %v633 = vpop.f32.mrb[0].mxu0
        %v634 = vpop.f32.mrb[0].mxu0
        %v635 = vadd.f32 0.0, %v634
        %v636 = vpop.f32.mrb[0].mxu0
        %637 = vmatprep.mubr.bf16.mxu0 0
        %638 = vmatmul.mubr.bf16.gmra.mrb[0].mxu0 %v533
        %v639 = vpop.f32.mrb[0].mxu0
        %v640 = vadd.f32 0.0, %v639
        %v641 = vpop.f32.mrb[0].mxu0
        %v642 = vpop.f32.mrb[0].mxu0
        %v643 = vadd.f32 0.0, %v642
        %v644 = vpop.f32.mrb[0].mxu0
        %645 = vmatprep.mubr.bf16.mxu0 0
        %646 = vmatmul.mubr.bf16.gmra.mrb[0].mxu0 %v536
        %v647 = vpop.f32.mrb[0].mxu0
        %v648 = vadd.f32 0.0, %v647
        %v649 = vpop.f32.mrb[0].mxu0
        %v650 = vpop.f32.mrb[0].mxu0
        %v651 = vadd.f32 0.0, %v650
        %v652 = vpop.f32.mrb[0].mxu0
        %653 = vmatprep.mubr.bf16.mxu0 0
        %654 = vmatmul.mubr.bf16.gmra.mrb[0].mxu0 %v539
        %v655 = vpop.f32.mrb[0].mxu0
        %v656 = vadd.f32 0.0, %v655
        %v657 = vpop.f32.mrb[0].mxu0
        %v658 = vpop.f32.mrb[0].mxu0
        %v659 = vadd.f32 0.0, %v658
        %v660 = vpop.f32.mrb[0].mxu0
        %661 = vmatprep.mubr.bf16.mxu0 0
        %662 = vmatmul.mubr.bf16.gmra.mrb[0].mxu0 %v542
        %v663 = vpop.f32.mrb[0].mxu0
        %v664 = vadd.f32 0.0, %v663
        %v665 = vpop.f32.mrb[0].mxu0
        %v666 = vpop.f32.mrb[0].mxu0
        %v667 = vadd.f32 0.0, %v666
        %v668 = vpop.f32.mrb[0].mxu0
        %669 = vmatprep.mubr.bf16.mxu0 0
        %670 = vmatmul.mubr.bf16.gmra.mrb[0].mxu0 %v545
        %v671 = vpop.f32.mrb[0].mxu0
        %v672 = vadd.f32 0.0, %v671
        %v673 = vpop.f32.mrb[0].mxu0
        %v674 = vpop.f32.mrb[0].mxu0
        %v675 = vadd.f32 0.0, %v674
        %v676 = vpop.f32.mrb[0].mxu0
        %677 = vmatprep.mubr.bf16.mxu0 0
        %678 = vmatmul.mubr.bf16.gmra.mrb[0].mxu0 %v548
        %v679 = vpop.f32.mrb[0].mxu0
        %v680 = vadd.f32 0.0, %v679
        %v681 = vpop.f32.mrb[0].mxu0
        %v682 = vpop.f32.mrb[0].mxu0
        %v683 = vadd.f32 0.0, %v682
        %v684 = vpop.f32.mrb[0].mxu0
        %685 = vmatprep.mubr.bf16.mxu0 0
        %686 = vmatmul.mubr.bf16.gmra.mrb[0].mxu0 %v551
        %v687 = vpop.f32.mrb[0].mxu0
        %v688 = vadd.f32 0.0, %v687
        %v689 = vpop.f32.mrb[0].mxu0
        %v690 = vpop.f32.mrb[0].mxu0
        %v691 = vadd.f32 0.0, %v690
        %v692 = vpop.f32.mrb[0].mxu0
        %693 = vmatprep.mubr.bf16.mxu0 0
        %694 = vmatmul.mubr.bf16.gmra.mrb[0].mxu0 %v554
        %v695 = vpop.f32.mrb[0].mxu0
        %v696 = vadd.f32 0.0, %v695
        %v697 = vpop.f32.mrb[0].mxu0
        %v698 = vpop.f32.mrb[0].mxu0
        %v699 = vadd.f32 0.0, %v698
        %v700 = vpop.f32.mrb[0].mxu0
        %701 = vmatprep.mubr.bf16.mxu0 0
        %702 = vmatmul.mubr.bf16.gmra.mrb[0].mxu0 %v557
        %v703 = vpop.f32.mrb[0].mxu0
        %v704 = vadd.f32 0.0, %v703
        %v705 = vpop.f32.mrb[0].mxu0
        %v706 = vpop.f32.mrb[0].mxu0
        %v707 = vadd.f32 0.0, %v706
        %v708 = vpop.f32.mrb[0].mxu0
        %709 = vmatprep.mubr.bf16.mxu0 0
        %710 = vmatmul.mubr.bf16.gmra.mrb[0].mxu0 %v560
        %v711 = vpop.f32.mrb[0].mxu0
        %v712 = vadd.f32 0.0, %v711
        %v713 = vpop.f32.mrb[0].mxu0
        %v714 = vpop.f32.mrb[0].mxu0
        %v715 = vadd.f32 0.0, %v714
        %v716 = vpop.f32.mrb[0].mxu0
        %717 = vmatprep.mubr.bf16.mxu0 0
        %718 = vmatmul.mubr.bf16.gmra.mrb[0].mxu0 %v563
        %v719 = vpop.f32.mrb[0].mxu0
        %v720 = vadd.f32 0.0, %v719
        %v721 = vpop.f32.mrb[0].mxu0
        %v722 = vpop.f32.mrb[0].mxu0
        %v723 = vadd.f32 0.0, %v722
        %v724 = vpop.f32.mrb[0].mxu0
        %725 = vmatprep.mubr.bf16.mxu0 0
        %726 = vmatmul.mubr.bf16.gmra.mrb[0].mxu0 %v566
        %v727 = vpop.f32.mrb[0].mxu0
        %v728 = vadd.f32 0.0, %v727
        %v729 = vpop.f32.mrb[0].mxu0
        %v730 = vpop.f32.mrb[0].mxu0
        %v731 = vadd.f32 0.0, %v730
        %v732 = vpop.f32.mrb[0].mxu0
        %733 = vmatprep.mubr.bf16.mxu0 0
        %734 = vmatmul.mubr.bf16.gmra.mrb[0].mxu0 %v569
        %v735 = vpop.f32.mrb[0].mxu0
        %v736 = vadd.f32 0.0, %v735
        %v737 = vpop.f32.mrb[0].mxu0
        %v738 = vpop.f32.mrb[0].mxu0
        %v739 = vadd.f32 0.0, %v738
        %v740 = vpop.f32.mrb[0].mxu0
        %741 = vmatprep.mubr.bf16.mxu0 0
        %742 = vmatmul.mubr.bf16.gmra.mrb[0].mxu0 %v572
        %v743 = vpop.f32.mrb[0].mxu0
        %v744 = vadd.f32 0.0, %v743
        %v745 = vpop.f32.mrb[0].mxu0
        %v746 = vpop.f32.mrb[0].mxu0
        %v747 = vadd.f32 0.0, %v746
        %v748 = vpop.f32.mrb[0].mxu0
        %749 = vmatprep.mubr.bf16.mxu0 0
        %750 = vmatmul.mubr.bf16.gmra.mrb[0].mxu0 %v575
        %v751 = vpop.f32.mrb[0].mxu0
        %v752 = vadd.f32 0.0, %v751
        %v753 = vpop.f32.mrb[0].mxu0
        %v754 = vpop.f32.mrb[0].mxu0
        %v755 = vadd.f32 0.0, %v754
        %v756 = vpop.f32.mrb[0].mxu0
        %757 = vdwg.mxu0
        %v759 = vlaneseq
        %v760 = vshrl.u32 %v759, 7
        %v761 = vsub.s32 0, %v760
        %v762 = vrot.slane %v466, %v761
        %v764 = vadd.f32 %v762, %v616
        %v765 = vadd.f32 %v762, %v619
        %v766 = vadd.f32 %v762, %v624
        %v767 = vadd.f32 %v762, %v627
        %v768 = vadd.f32 %v762, %v632
        %v769 = vadd.f32 %v762, %v635
        %v770 = vadd.f32 %v762, %v640
        %v771 = vadd.f32 %v762, %v643
        %v772 = vadd.f32 %v762, %v648
        %v773 = vadd.f32 %v762, %v651
        %v774 = vadd.f32 %v762, %v656
        %v775 = vadd.f32 %v762, %v659
        %v776 = vadd.f32 %v762, %v664
        %v777 = vadd.f32 %v762, %v667
        %v778 = vadd.f32 %v762, %v672
        %v779 = vadd.f32 %v762, %v675
        %v780 = vadd.f32 %v762, %v680
        %v781 = vadd.f32 %v762, %v683
        %v782 = vadd.f32 %v762, %v688
        %v783 = vadd.f32 %v762, %v691
        %v784 = vadd.f32 %v762, %v696
        %v785 = vadd.f32 %v762, %v699
        %v786 = vadd.f32 %v762, %v704
        %v787 = vadd.f32 %v762, %v707
        %v788 = vadd.f32 %v762, %v712
        %v789 = vadd.f32 %v762, %v715
        %v790 = vadd.f32 %v762, %v720
        %v791 = vadd.f32 %v762, %v723
        %v792 = vadd.f32 %v762, %v728
        %v793 = vadd.f32 %v762, %v731
        %v794 = vadd.f32 %v762, %v736
        %v795 = vadd.f32 %v762, %v739
        %v796 = vadd.f32 %v762, %v744
        %v797 = vadd.f32 %v762, %v747
        %v798 = vadd.f32 %v762, %v752
        %v799 = vadd.f32 %v762, %v755
        %v800 = vld [vmem:[%s464 + $0x1] sm:$0xff]
        %v801 = vld [vmem:[%s464 + $0x9] sm:$0xff]
        %v802 = vld [vmem:[%s464 + $0x11] sm:$0xff]
        %v803 = vld [vmem:[%s464 + $0x19] sm:$0xff]
        %v804 = vld [vmem:[%s464 + $0x21] sm:$0xff]
        %v805 = vld [vmem:[%s464 + $0x29] sm:$0xff]
        %v806 = vld [vmem:[%s464 + $0x31] sm:$0xff]
        %v807 = vld [vmem:[%s464 + $0x39] sm:$0xff]
        %v808 = vld [vmem:[%s464 + $0x41] sm:$0xff]
        %v809 = vld [vmem:[%s464 + $0x49] sm:$0xff]
        %v810 = vld [vmem:[%s464 + $0x51] sm:$0xff]
        %v811 = vld [vmem:[%s464 + $0x59] sm:$0xff]
        %v812 = vld [vmem:[%s464 + $0x61] sm:$0xff]
        %v813 = vld [vmem:[%s464 + $0x69] sm:$0xff]
        %v814 = vld [vmem:[%s464 + $0x71] sm:$0xff]
        %v815 = vld [vmem:[%s464 + $0x79] sm:$0xff]
        %v816 = vld [vmem:[%s464 + $0x81] sm:$0xff]
        %v817 = vld [vmem:[%s464 + $0x89] sm:$0xff]
        %v818 = vld [vmem:[%s464 + $0x91] sm:$0xff]
        %v819 = vld [vmem:[%s464 + $0x99] sm:$0xff]
        %v820 = vld [vmem:[%s464 + $0xa1] sm:$0xff]
        %v821 = vld [vmem:[%s464 + $0xa9] sm:$0xff]
        %v822 = vld [vmem:[%s464 + $0xb1] sm:$0xff]
        %v823 = vld [vmem:[%s464 + $0xb9] sm:$0xff]
        %v824 = vld [vmem:[%s464 + $0xc1] sm:$0xff]
        %v825 = vld [vmem:[%s464 + $0xc9] sm:$0xff]
        %v826 = vld [vmem:[%s464 + $0xd1] sm:$0xff]
        %v827 = vld [vmem:[%s464 + $0xd9] sm:$0xff]
        %v828 = vld [vmem:[%s464 + $0xe1] sm:$0xff]
        %v829 = vld [vmem:[%s464 + $0xe9] sm:$0xff]
        %v830 = vld [vmem:[%s464 + $0xf1] sm:$0xff]
        %v831 = vld [vmem:[%s464 + $0xf9] sm:$0xff]
        %v832 = vld [vmem:[%s464 + $0x101] sm:$0xff]
        %v833 = vld [vmem:[%s464 + $0x109] sm:$0xff]
        %v834 = vld [vmem:[%s464 + $0x111] sm:$0xff]
        %v835 = vld [vmem:[%s464 + $0x119] sm:$0xff]
        %v836 = vpack.c.bf16 %v801, %v800
        %v837 = vpack.c.bf16 %v803, %v802
        %v838 = vpack.c.bf16 %v805, %v804
        %v839 = vpack.c.bf16 %v807, %v806
        %v840 = vpack.c.bf16 %v809, %v808
        %v841 = vpack.c.bf16 %v811, %v810
        %v842 = vpack.c.bf16 %v813, %v812
        %v843 = vpack.c.bf16 %v815, %v814
        %v844 = vpack.c.bf16 %v817, %v816
        %v845 = vpack.c.bf16 %v819, %v818
        %v846 = vpack.c.bf16 %v821, %v820
        %v847 = vpack.c.bf16 %v823, %v822
        %v848 = vpack.c.bf16 %v825, %v824
        %v849 = vpack.c.bf16 %v827, %v826
        %v850 = vpack.c.bf16 %v829, %v828
        %v851 = vpack.c.bf16 %v831, %v830
        %v852 = vpack.c.bf16 %v833, %v832
        %v853 = vpack.c.bf16 %v835, %v834
        %s854 = scalar_lea.vmem %s1, 2
        %v855 = vld [vmem:[%s854] sm:$0x3]
        %v857 = vsel %vm522, %v836, 0
        %v860 = vsel %vm522, %v837, 0
        %v863 = vsel %vm522, %v838, 0
        %v866 = vsel %vm522, %v839, 0
        %v869 = vsel %vm522, %v840, 0
        %v872 = vsel %vm522, %v841, 0
        %v875 = vsel %vm522, %v842, 0
        %v878 = vsel %vm522, %v843, 0
        %v881 = vsel %vm522, %v844, 0
        %v884 = vsel %vm522, %v845, 0
        %v887 = vsel %vm522, %v846, 0
        %v890 = vsel %vm522, %v847, 0
        %v893 = vsel %vm522, %v848, 0
        %v896 = vsel %vm522, %v849, 0
        %v899 = vsel %vm522, %v850, 0
        %v902 = vsel %vm522, %v851, 0
        %v905 = vsel %vm522, %v852, 0
        %v908 = vsel %vm522, %v853, 0
        %v911 = vsel %vm577, %v855, 0
        %913 = vmatprep.subr.bf16.mxu0 0
        %914 = vmatpush1.bf16.msra.mxu0 %v911
        %915 = vmatprep.subr.bf16.mxu0 0
        %916 = vmatpush1.bf16.msra.mxu0 0
        %917 = vmatprep.subr.bf16.mxu0 0
        %918 = vmatpush1.bf16.msra.mxu0 0
        %919 = vmatprep.subr.bf16.mxu0 0
        %920 = vmatpush1.bf16.msra.mxu0 0
        %921 = vmatprep.subr.bf16.mxu0 0
        %922 = vmatpush1.bf16.msra.mxu0 0
        %923 = vmatprep.subr.bf16.mxu0 0
        %924 = vmatpush1.bf16.msra.mxu0 0
        %925 = vmatprep.subr.bf16.mxu0 0
        %926 = vmatpush1.bf16.msra.mxu0 0
        %927 = vmatprep.subr.bf16.mxu0 0
        %928 = vmatpush1.bf16.msra.mxu0 0
        %929 = vmatprep.subr.bf16.mxu0 0
        %930 = vmatpush1.bf16.msra.mxu0 0
        %931 = vmatprep.subr.bf16.mxu0 0
        %932 = vmatpush1.bf16.msra.mxu0 0
        %933 = vmatprep.subr.bf16.mxu0 0
        %934 = vmatpush1.bf16.msra.mxu0 0
        %935 = vmatprep.subr.bf16.mxu0 0
        %936 = vmatpush1.bf16.msra.mxu0 0
        %937 = vmatprep.subr.bf16.mxu0 0
        %938 = vmatpush1.bf16.msra.mxu0 0
        %939 = vmatprep.subr.bf16.mxu0 0
        %940 = vmatpush1.bf16.msra.mxu0 0
        %941 = vmatprep.subr.bf16.mxu0 0
        %942 = vmatpush1.bf16.msra.mxu0 0
        %943 = vmatprep.subr.bf16.mxu0 0
        %944 = vmatpush1.bf16.msra.mxu0 0
        %945 = vmatprep.mubr.bf16.mxu0 0
        %946 = vmatmul.mubr.bf16.gmra.mrb[0].mxu0 %v857
        %v947 = vpop.f32.mrb[0].mxu0
        %v948 = vadd.f32 0.0, %v947
        %v949 = vpop.f32.mrb[0].mxu0
        %v950 = vpop.f32.mrb[0].mxu0
        %v951 = vadd.f32 0.0, %v950
        %v952 = vpop.f32.mrb[0].mxu0
        %953 = vmatprep.mubr.bf16.mxu0 0
        %954 = vmatmul.mubr.bf16.gmra.mrb[0].mxu0 %v860
        %v955 = vpop.f32.mrb[0].mxu0
        %v956 = vadd.f32 0.0, %v955
        %v957 = vpop.f32.mrb[0].mxu0
        %v958 = vpop.f32.mrb[0].mxu0
        %v959 = vadd.f32 0.0, %v958
        %v960 = vpop.f32.mrb[0].mxu0
        %961 = vmatprep.mubr.bf16.mxu0 0
        %962 = vmatmul.mubr.bf16.gmra.mrb[0].mxu0 %v863
        %v963 = vpop.f32.mrb[0].mxu0
        %v964 = vadd.f32 0.0, %v963
        %v965 = vpop.f32.mrb[0].mxu0
        %v966 = vpop.f32.mrb[0].mxu0
        %v967 = vadd.f32 0.0, %v966
        %v968 = vpop.f32.mrb[0].mxu0
        %969 = vmatprep.mubr.bf16.mxu0 0
        %970 = vmatmul.mubr.bf16.gmra.mrb[0].mxu0 %v866
        %v971 = vpop.f32.mrb[0].mxu0
        %v972 = vadd.f32 0.0, %v971
        %v973 = vpop.f32.mrb[0].mxu0
        %v974 = vpop.f32.mrb[0].mxu0
        %v975 = vadd.f32 0.0, %v974
        %v976 = vpop.f32.mrb[0].mxu0
        %977 = vmatprep.mubr.bf16.mxu0 0
        %978 = vmatmul.mubr.bf16.gmra.mrb[0].mxu0 %v869
        %v979 = vpop.f32.mrb[0].mxu0
        %v980 = vadd.f32 0.0, %v979
        %v981 = vpop.f32.mrb[0].mxu0
        %v982 = vpop.f32.mrb[0].mxu0
        %v983 = vadd.f32 0.0, %v982
        %v984 = vpop.f32.mrb[0].mxu0
        %985 = vmatprep.mubr.bf16.mxu0 0
        %986 = vmatmul.mubr.bf16.gmra.mrb[0].mxu0 %v872
        %v987 = vpop.f32.mrb[0].mxu0
        %v988 = vadd.f32 0.0, %v987
        %v989 = vpop.f32.mrb[0].mxu0
        %v990 = vpop.f32.mrb[0].mxu0
        %v991 = vadd.f32 0.0, %v990
        %v992 = vpop.f32.mrb[0].mxu0
        %993 = vmatprep.mubr.bf16.mxu0 0
        %994 = vmatmul.mubr.bf16.gmra.mrb[0].mxu0 %v875
        %v995 = vpop.f32.mrb[0].mxu0
        %v996 = vadd.f32 0.0, %v995
        %v997 = vpop.f32.mrb[0].mxu0
        %v998 = vpop.f32.mrb[0].mxu0
        %v999 = vadd.f32 0.0, %v998
        %v1000 = vpop.f32.mrb[0].mxu0
        %1001 = vmatprep.mubr.bf16.mxu0 0
        %1002 = vmatmul.mubr.bf16.gmra.mrb[0].mxu0 %v878
        %v1003 = vpop.f32.mrb[0].mxu0
        %v1004 = vadd.f32 0.0, %v1003
        %v1005 = vpop.f32.mrb[0].mxu0
        %v1006 = vpop.f32.mrb[0].mxu0
        %v1007 = vadd.f32 0.0, %v1006
        %v1008 = vpop.f32.mrb[0].mxu0
        %1009 = vmatprep.mubr.bf16.mxu0 0
        %1010 = vmatmul.mubr.bf16.gmra.mrb[0].mxu0 %v881
        %v1011 = vpop.f32.mrb[0].mxu0
        %v1012 = vadd.f32 0.0, %v1011
        %v1013 = vpop.f32.mrb[0].mxu0
        %v1014 = vpop.f32.mrb[0].mxu0
        %v1015 = vadd.f32 0.0, %v1014
        %v1016 = vpop.f32.mrb[0].mxu0
        %1017 = vmatprep.mubr.bf16.mxu0 0
        %1018 = vmatmul.mubr.bf16.gmra.mrb[0].mxu0 %v884
        %v1019 = vpop.f32.mrb[0].mxu0
        %v1020 = vadd.f32 0.0, %v1019
        %v1021 = vpop.f32.mrb[0].mxu0
        %v1022 = vpop.f32.mrb[0].mxu0
        %v1023 = vadd.f32 0.0, %v1022
        %v1024 = vpop.f32.mrb[0].mxu0
        %1025 = vmatprep.mubr.bf16.mxu0 0
        %1026 = vmatmul.mubr.bf16.gmra.mrb[0].mxu0 %v887
        %v1027 = vpop.f32.mrb[0].mxu0
        %v1028 = vadd.f32 0.0, %v1027
        %v1029 = vpop.f32.mrb[0].mxu0
        %v1030 = vpop.f32.mrb[0].mxu0
        %v1031 = vadd.f32 0.0, %v1030
        %v1032 = vpop.f32.mrb[0].mxu0
        %1033 = vmatprep.mubr.bf16.mxu0 0
        %1034 = vmatmul.mubr.bf16.gmra.mrb[0].mxu0 %v890
        %v1035 = vpop.f32.mrb[0].mxu0
        %v1036 = vadd.f32 0.0, %v1035
        %v1037 = vpop.f32.mrb[0].mxu0
        %v1038 = vpop.f32.mrb[0].mxu0
        %v1039 = vadd.f32 0.0, %v1038
        %v1040 = vpop.f32.mrb[0].mxu0
        %1041 = vmatprep.mubr.bf16.mxu0 0
        %1042 = vmatmul.mubr.bf16.gmra.mrb[0].mxu0 %v893
        %v1043 = vpop.f32.mrb[0].mxu0
        %v1044 = vadd.f32 0.0, %v1043
        %v1045 = vpop.f32.mrb[0].mxu0
        %v1046 = vpop.f32.mrb[0].mxu0
        %v1047 = vadd.f32 0.0, %v1046
        %v1048 = vpop.f32.mrb[0].mxu0
        %1049 = vmatprep.mubr.bf16.mxu0 0
        %1050 = vmatmul.mubr.bf16.gmra.mrb[0].mxu0 %v896
        %v1051 = vpop.f32.mrb[0].mxu0
        %v1052 = vadd.f32 0.0, %v1051
        %v1053 = vpop.f32.mrb[0].mxu0
        %v1054 = vpop.f32.mrb[0].mxu0
        %v1055 = vadd.f32 0.0, %v1054
        %v1056 = vpop.f32.mrb[0].mxu0
        %1057 = vmatprep.mubr.bf16.mxu0 0
        %1058 = vmatmul.mubr.bf16.gmra.mrb[0].mxu0 %v899
        %v1059 = vpop.f32.mrb[0].mxu0
        %v1060 = vadd.f32 0.0, %v1059
        %v1061 = vpop.f32.mrb[0].mxu0
        %v1062 = vpop.f32.mrb[0].mxu0
        %v1063 = vadd.f32 0.0, %v1062
        %v1064 = vpop.f32.mrb[0].mxu0
        %1065 = vmatprep.mubr.bf16.mxu0 0
        %1066 = vmatmul.mubr.bf16.gmra.mrb[0].mxu0 %v902
        %v1067 = vpop.f32.mrb[0].mxu0
        %v1068 = vadd.f32 0.0, %v1067
        %v1069 = vpop.f32.mrb[0].mxu0
        %v1070 = vpop.f32.mrb[0].mxu0
        %v1071 = vadd.f32 0.0, %v1070
        %v1072 = vpop.f32.mrb[0].mxu0
        %1073 = vmatprep.mubr.bf16.mxu0 0
        %1074 = vmatmul.mubr.bf16.gmra.mrb[0].mxu0 %v905
        %v1075 = vpop.f32.mrb[0].mxu0
        %v1076 = vadd.f32 0.0, %v1075
        %v1077 = vpop.f32.mrb[0].mxu0
        %v1078 = vpop.f32.mrb[0].mxu0
        %v1079 = vadd.f32 0.0, %v1078
        %v1080 = vpop.f32.mrb[0].mxu0
        %1081 = vmatprep.mubr.bf16.mxu0 0
        %1082 = vmatmul.mubr.bf16.gmra.mrb[0].mxu0 %v908
        %v1083 = vpop.f32.mrb[0].mxu0
        %v1084 = vadd.f32 0.0, %v1083
        %v1085 = vpop.f32.mrb[0].mxu0
        %v1086 = vpop.f32.mrb[0].mxu0
        %v1087 = vadd.f32 0.0, %v1086
        %v1088 = vpop.f32.mrb[0].mxu0
        %1089 = vdwg.mxu0
        %v1090 = vadd.f32 %v764, %v948
        %v1091 = vadd.f32 %v765, %v951
        %v1092 = vadd.f32 %v766, %v956
        %v1093 = vadd.f32 %v767, %v959
        %v1094 = vadd.f32 %v768, %v964
        %v1095 = vadd.f32 %v769, %v967
        %v1096 = vadd.f32 %v770, %v972
        %v1097 = vadd.f32 %v771, %v975
        %v1098 = vadd.f32 %v772, %v980
        %v1099 = vadd.f32 %v773, %v983
        %v1100 = vadd.f32 %v774, %v988
        %v1101 = vadd.f32 %v775, %v991
        %v1102 = vadd.f32 %v776, %v996
        %v1103 = vadd.f32 %v777, %v999
        %v1104 = vadd.f32 %v778, %v1004
        %v1105 = vadd.f32 %v779, %v1007
        %v1106 = vadd.f32 %v780, %v1012
        %v1107 = vadd.f32 %v781, %v1015
        %v1108 = vadd.f32 %v782, %v1020
        %v1109 = vadd.f32 %v783, %v1023
        %v1110 = vadd.f32 %v784, %v1028
        %v1111 = vadd.f32 %v785, %v1031
        %v1112 = vadd.f32 %v786, %v1036
        %v1113 = vadd.f32 %v787, %v1039
        %v1114 = vadd.f32 %v788, %v1044
        %v1115 = vadd.f32 %v789, %v1047
        %v1116 = vadd.f32 %v790, %v1052
        %v1117 = vadd.f32 %v791, %v1055
        %v1118 = vadd.f32 %v792, %v1060
        %v1119 = vadd.f32 %v793, %v1063
        %v1120 = vadd.f32 %v794, %v1068
        %v1121 = vadd.f32 %v795, %v1071
        %v1122 = vadd.f32 %v796, %v1076
        %v1123 = vadd.f32 %v797, %v1079
        %v1124 = vadd.f32 %v798, %v1084
        %v1125 = vadd.f32 %v799, %v1087
        %v1126 = vld [vmem:[%s464 + $0x2] sm:$0xff]
        %v1127 = vld [vmem:[%s464 + $0xa] sm:$0xff]
        %v1128 = vld [vmem:[%s464 + $0x12] sm:$0xff]
        %v1129 = vld [vmem:[%s464 + $0x1a] sm:$0xff]
        %v1130 = vld [vmem:[%s464 + $0x22] sm:$0xff]
        %v1131 = vld [vmem:[%s464 + $0x2a] sm:$0xff]
        %v1132 = vld [vmem:[%s464 + $0x32] sm:$0xff]
        %v1133 = vld [vmem:[%s464 + $0x3a] sm:$0xff]
        %v1134 = vld [vmem:[%s464 + $0x42] sm:$0xff]
        %v1135 = vld [vmem:[%s464 + $0x4a] sm:$0xff]
        %v1136 = vld [vmem:[%s464 + $0x52] sm:$0xff]
        %v1137 = vld [vmem:[%s464 + $0x5a] sm:$0xff]
        %v1138 = vld [vmem:[%s464 + $0x62] sm:$0xff]
        %v1139 = vld [vmem:[%s464 + $0x6a] sm:$0xff]
        %v1140 = vld [vmem:[%s464 + $0x72] sm:$0xff]
        %v1141 = vld [vmem:[%s464 + $0x7a] sm:$0xff]
        %v1142 = vld [vmem:[%s464 + $0x82] sm:$0xff]
        %v1143 = vld [vmem:[%s464 + $0x8a] sm:$0xff]
        %v1144 = vld [vmem:[%s464 + $0x92] sm:$0xff]
        %v1145 = vld [vmem:[%s464 + $0x9a] sm:$0xff]
        %v1146 = vld [vmem:[%s464 + $0xa2] sm:$0xff]
        %v1147 = vld [vmem:[%s464 + $0xaa] sm:$0xff]
        %v1148 = vld [vmem:[%s464 + $0xb2] sm:$0xff]
        %v1149 = vld [vmem:[%s464 + $0xba] sm:$0xff]
        %v1150 = vld [vmem:[%s464 + $0xc2] sm:$0xff]
        %v1151 = vld [vmem:[%s464 + $0xca] sm:$0xff]
        %v1152 = vld [vmem:[%s464 + $0xd2] sm:$0xff]
        %v1153 = vld [vmem:[%s464 + $0xda] sm:$0xff]
        %v1154 = vld [vmem:[%s464 + $0xe2] sm:$0xff]
        %v1155 = vld [vmem:[%s464 + $0xea] sm:$0xff]
        %v1156 = vld [vmem:[%s464 + $0xf2] sm:$0xff]
        %v1157 = vld [vmem:[%s464 + $0xfa] sm:$0xff]
        %v1158 = vld [vmem:[%s464 + $0x102] sm:$0xff]
        %v1159 = vld [vmem:[%s464 + $0x10a] sm:$0xff]
        %v1160 = vld [vmem:[%s464 + $0x112] sm:$0xff]
        %v1161 = vld [vmem:[%s464 + $0x11a] sm:$0xff]
        %v1162 = vpack.c.bf16 %v1127, %v1126
        %v1163 = vpack.c.bf16 %v1129, %v1128
        %v1164 = vpack.c.bf16 %v1131, %v1130
        %v1165 = vpack.c.bf16 %v1133, %v1132
        %v1166 = vpack.c.bf16 %v1135, %v1134
        %v1167 = vpack.c.bf16 %v1137, %v1136
        %v1168 = vpack.c.bf16 %v1139, %v1138
        %v1169 = vpack.c.bf16 %v1141, %v1140
        %v1170 = vpack.c.bf16 %v1143, %v1142
        %v1171 = vpack.c.bf16 %v1145, %v1144
        %v1172 = vpack.c.bf16 %v1147, %v1146
        %v1173 = vpack.c.bf16 %v1149, %v1148
        %v1174 = vpack.c.bf16 %v1151, %v1150
        %v1175 = vpack.c.bf16 %v1153, %v1152
        %v1176 = vpack.c.bf16 %v1155, %v1154
        %v1177 = vpack.c.bf16 %v1157, %v1156
        %v1178 = vpack.c.bf16 %v1159, %v1158
        %v1179 = vpack.c.bf16 %v1161, %v1160
        %s1180 = scalar_lea.vmem %s1, 4
        %v1181 = vld [vmem:[%s1180] sm:$0x3]
        %v1183 = vsel %vm522, %v1162, 0
        %v1186 = vsel %vm522, %v1163, 0
        %v1189 = vsel %vm522, %v1164, 0
        %v1192 = vsel %vm522, %v1165, 0
        %v1195 = vsel %vm522, %v1166, 0
        %v1198 = vsel %vm522, %v1167, 0
        %v1201 = vsel %vm522, %v1168, 0
        %v1204 = vsel %vm522, %v1169, 0
        %v1207 = vsel %vm522, %v1170, 0
        %v1210 = vsel %vm522, %v1171, 0
        %v1213 = vsel %vm522, %v1172, 0
        %v1216 = vsel %vm522, %v1173, 0
        %v1219 = vsel %vm522, %v1174, 0
        %v1222 = vsel %vm522, %v1175, 0
        %v1225 = vsel %vm522, %v1176, 0
        %v1228 = vsel %vm522, %v1177, 0
        %v1231 = vsel %vm522, %v1178, 0
        %v1234 = vsel %vm522, %v1179, 0
        %v1237 = vsel %vm577, %v1181, 0
        %1239 = vmatprep.subr.bf16.mxu0 0
        %1240 = vmatpush1.bf16.msra.mxu0 %v1237
        %1241 = vmatprep.subr.bf16.mxu0 0
        %1242 = vmatpush1.bf16.msra.mxu0 0
        %1243 = vmatprep.subr.bf16.mxu0 0
        %1244 = vmatpush1.bf16.msra.mxu0 0
        %1245 = vmatprep.subr.bf16.mxu0 0
        %1246 = vmatpush1.bf16.msra.mxu0 0
        %1247 = vmatprep.subr.bf16.mxu0 0
        %1248 = vmatpush1.bf16.msra.mxu0 0
        %1249 = vmatprep.subr.bf16.mxu0 0
        %1250 = vmatpush1.bf16.msra.mxu0 0
        %1251 = vmatprep.subr.bf16.mxu0 0
        %1252 = vmatpush1.bf16.msra.mxu0 0
        %1253 = vmatprep.subr.bf16.mxu0 0
        %1254 = vmatpush1.bf16.msra.mxu0 0
        %1255 = vmatprep.subr.bf16.mxu0 0
        %1256 = vmatpush1.bf16.msra.mxu0 0
        %1257 = vmatprep.subr.bf16.mxu0 0
        %1258 = vmatpush1.bf16.msra.mxu0 0
        %1259 = vmatprep.subr.bf16.mxu0 0
        %1260 = vmatpush1.bf16.msra.mxu0 0
        %1261 = vmatprep.subr.bf16.mxu0 0
        %1262 = vmatpush1.bf16.msra.mxu0 0
        %1263 = vmatprep.subr.bf16.mxu0 0
        %1264 = vmatpush1.bf16.msra.mxu0 0
        %1265 = vmatprep.subr.bf16.mxu0 0
        %1266 = vmatpush1.bf16.msra.mxu0 0
        %1267 = vmatprep.subr.bf16.mxu0 0
        %1268 = vmatpush1.bf16.msra.mxu0 0
        %1269 = vmatprep.subr.bf16.mxu0 0
        %1270 = vmatpush1.bf16.msra.mxu0 0
        %1271 = vmatprep.mubr.bf16.mxu0 0
        %1272 = vmatmul.mubr.bf16.gmra.mrb[0].mxu0 %v1183
        %v1273 = vpop.f32.mrb[0].mxu0
        %v1274 = vadd.f32 0.0, %v1273
        %v1275 = vpop.f32.mrb[0].mxu0
        %v1276 = vpop.f32.mrb[0].mxu0
        %v1277 = vadd.f32 0.0, %v1276
        %v1278 = vpop.f32.mrb[0].mxu0
        %1279 = vmatprep.mubr.bf16.mxu0 0
        %1280 = vmatmul.mubr.bf16.gmra.mrb[0].mxu0 %v1186
        %v1281 = vpop.f32.mrb[0].mxu0
        %v1282 = vadd.f32 0.0, %v1281
        %v1283 = vpop.f32.mrb[0].mxu0
        %v1284 = vpop.f32.mrb[0].mxu0
        %v1285 = vadd.f32 0.0, %v1284
        %v1286 = vpop.f32.mrb[0].mxu0
        %1287 = vmatprep.mubr.bf16.mxu0 0
        %1288 = vmatmul.mubr.bf16.gmra.mrb[0].mxu0 %v1189
        %v1289 = vpop.f32.mrb[0].mxu0
        %v1290 = vadd.f32 0.0, %v1289
        %v1291 = vpop.f32.mrb[0].mxu0
        %v1292 = vpop.f32.mrb[0].mxu0
        %v1293 = vadd.f32 0.0, %v1292
        %v1294 = vpop.f32.mrb[0].mxu0
        %1295 = vmatprep.mubr.bf16.mxu0 0
        %1296 = vmatmul.mubr.bf16.gmra.mrb[0].mxu0 %v1192
        %v1297 = vpop.f32.mrb[0].mxu0
        %v1298 = vadd.f32 0.0, %v1297
        %v1299 = vpop.f32.mrb[0].mxu0
        %v1300 = vpop.f32.mrb[0].mxu0
        %v1301 = vadd.f32 0.0, %v1300
        %v1302 = vpop.f32.mrb[0].mxu0
        %1303 = vmatprep.mubr.bf16.mxu0 0
        %1304 = vmatmul.mubr.bf16.gmra.mrb[0].mxu0 %v1195
        %v1305 = vpop.f32.mrb[0].mxu0
        %v1306 = vadd.f32 0.0, %v1305
        %v1307 = vpop.f32.mrb[0].mxu0
        %v1308 = vpop.f32.mrb[0].mxu0
        %v1309 = vadd.f32 0.0, %v1308
        %v1310 = vpop.f32.mrb[0].mxu0
        %1311 = vmatprep.mubr.bf16.mxu0 0
        %1312 = vmatmul.mubr.bf16.gmra.mrb[0].mxu0 %v1198
        %v1313 = vpop.f32.mrb[0].mxu0
        %v1314 = vadd.f32 0.0, %v1313
        %v1315 = vpop.f32.mrb[0].mxu0
        %v1316 = vpop.f32.mrb[0].mxu0
        %v1317 = vadd.f32 0.0, %v1316
        %v1318 = vpop.f32.mrb[0].mxu0
        %1319 = vmatprep.mubr.bf16.mxu0 0
        %1320 = vmatmul.mubr.bf16.gmra.mrb[0].mxu0 %v1201
        %v1321 = vpop.f32.mrb[0].mxu0
        %v1322 = vadd.f32 0.0, %v1321
        %v1323 = vpop.f32.mrb[0].mxu0
        %v1324 = vpop.f32.mrb[0].mxu0
        %v1325 = vadd.f32 0.0, %v1324
        %v1326 = vpop.f32.mrb[0].mxu0
        %1327 = vmatprep.mubr.bf16.mxu0 0
        %1328 = vmatmul.mubr.bf16.gmra.mrb[0].mxu0 %v1204
        %v1329 = vpop.f32.mrb[0].mxu0
        %v1330 = vadd.f32 0.0, %v1329
        %v1331 = vpop.f32.mrb[0].mxu0
        %v1332 = vpop.f32.mrb[0].mxu0
        %v1333 = vadd.f32 0.0, %v1332
        %v1334 = vpop.f32.mrb[0].mxu0
        %1335 = vmatprep.mubr.bf16.mxu0 0
        %1336 = vmatmul.mubr.bf16.gmra.mrb[0].mxu0 %v1207
        %v1337 = vpop.f32.mrb[0].mxu0
        %v1338 = vadd.f32 0.0, %v1337
        %v1339 = vpop.f32.mrb[0].mxu0
        %v1340 = vpop.f32.mrb[0].mxu0
        %v1341 = vadd.f32 0.0, %v1340
        %v1342 = vpop.f32.mrb[0].mxu0
        %1343 = vmatprep.mubr.bf16.mxu0 0
        %1344 = vmatmul.mubr.bf16.gmra.mrb[0].mxu0 %v1210
        %v1345 = vpop.f32.mrb[0].mxu0
        %v1346 = vadd.f32 0.0, %v1345
        %v1347 = vpop.f32.mrb[0].mxu0
        %v1348 = vpop.f32.mrb[0].mxu0
        %v1349 = vadd.f32 0.0, %v1348
        %v1350 = vpop.f32.mrb[0].mxu0
        %1351 = vmatprep.mubr.bf16.mxu0 0
        %1352 = vmatmul.mubr.bf16.gmra.mrb[0].mxu0 %v1213
        %v1353 = vpop.f32.mrb[0].mxu0
        %v1354 = vadd.f32 0.0, %v1353
        %v1355 = vpop.f32.mrb[0].mxu0
        %v1356 = vpop.f32.mrb[0].mxu0
        %v1357 = vadd.f32 0.0, %v1356
        %v1358 = vpop.f32.mrb[0].mxu0
        %1359 = vmatprep.mubr.bf16.mxu0 0
        %1360 = vmatmul.mubr.bf16.gmra.mrb[0].mxu0 %v1216
        %v1361 = vpop.f32.mrb[0].mxu0
        %v1362 = vadd.f32 0.0, %v1361
        %v1363 = vpop.f32.mrb[0].mxu0
        %v1364 = vpop.f32.mrb[0].mxu0
        %v1365 = vadd.f32 0.0, %v1364
        %v1366 = vpop.f32.mrb[0].mxu0
        %1367 = vmatprep.mubr.bf16.mxu0 0
        %1368 = vmatmul.mubr.bf16.gmra.mrb[0].mxu0 %v1219
        %v1369 = vpop.f32.mrb[0].mxu0
        %v1370 = vadd.f32 0.0, %v1369
        %v1371 = vpop.f32.mrb[0].mxu0
        %v1372 = vpop.f32.mrb[0].mxu0
        %v1373 = vadd.f32 0.0, %v1372
        %v1374 = vpop.f32.mrb[0].mxu0
        %1375 = vmatprep.mubr.bf16.mxu0 0
        %1376 = vmatmul.mubr.bf16.gmra.mrb[0].mxu0 %v1222
        %v1377 = vpop.f32.mrb[0].mxu0
        %v1378 = vadd.f32 0.0, %v1377
        %v1379 = vpop.f32.mrb[0].mxu0
        %v1380 = vpop.f32.mrb[0].mxu0
        %v1381 = vadd.f32 0.0, %v1380
        %v1382 = vpop.f32.mrb[0].mxu0
        %1383 = vmatprep.mubr.bf16.mxu0 0
        %1384 = vmatmul.mubr.bf16.gmra.mrb[0].mxu0 %v1225
        %v1385 = vpop.f32.mrb[0].mxu0
        %v1386 = vadd.f32 0.0, %v1385
        %v1387 = vpop.f32.mrb[0].mxu0
        %v1388 = vpop.f32.mrb[0].mxu0
        %v1389 = vadd.f32 0.0, %v1388
        %v1390 = vpop.f32.mrb[0].mxu0
        %1391 = vmatprep.mubr.bf16.mxu0 0
        %1392 = vmatmul.mubr.bf16.gmra.mrb[0].mxu0 %v1228
        %v1393 = vpop.f32.mrb[0].mxu0
        %v1394 = vadd.f32 0.0, %v1393
        %v1395 = vpop.f32.mrb[0].mxu0
        %v1396 = vpop.f32.mrb[0].mxu0
        %v1397 = vadd.f32 0.0, %v1396
        %v1398 = vpop.f32.mrb[0].mxu0
        %1399 = vmatprep.mubr.bf16.mxu0 0
        %1400 = vmatmul.mubr.bf16.gmra.mrb[0].mxu0 %v1231
        %v1401 = vpop.f32.mrb[0].mxu0
        %v1402 = vadd.f32 0.0, %v1401
        %v1403 = vpop.f32.mrb[0].mxu0
        %v1404 = vpop.f32.mrb[0].mxu0
        %v1405 = vadd.f32 0.0, %v1404
        %v1406 = vpop.f32.mrb[0].mxu0
        %1407 = vmatprep.mubr.bf16.mxu0 0
        %1408 = vmatmul.mubr.bf16.gmra.mrb[0].mxu0 %v1234
        %v1409 = vpop.f32.mrb[0].mxu0
        %v1410 = vadd.f32 0.0, %v1409
        %v1411 = vpop.f32.mrb[0].mxu0
        %v1412 = vpop.f32.mrb[0].mxu0
        %v1413 = vadd.f32 0.0, %v1412
        %v1414 = vpop.f32.mrb[0].mxu0
        %1415 = vdwg.mxu0
        %v1416 = vadd.f32 %v1090, %v1274
        %v1417 = vadd.f32 %v1091, %v1277
        %v1418 = vadd.f32 %v1092, %v1282
        %v1419 = vadd.f32 %v1093, %v1285
        %v1420 = vadd.f32 %v1094, %v1290
        %v1421 = vadd.f32 %v1095, %v1293
        %v1422 = vadd.f32 %v1096, %v1298
        %v1423 = vadd.f32 %v1097, %v1301
        %v1424 = vadd.f32 %v1098, %v1306
        %v1425 = vadd.f32 %v1099, %v1309
        %v1426 = vadd.f32 %v1100, %v1314
        %v1427 = vadd.f32 %v1101, %v1317
        %v1428 = vadd.f32 %v1102, %v1322
        %v1429 = vadd.f32 %v1103, %v1325
        %v1430 = vadd.f32 %v1104, %v1330
        %v1431 = vadd.f32 %v1105, %v1333
        %v1432 = vadd.f32 %v1106, %v1338
        %v1433 = vadd.f32 %v1107, %v1341
        %v1434 = vadd.f32 %v1108, %v1346
        %v1435 = vadd.f32 %v1109, %v1349
        %v1436 = vadd.f32 %v1110, %v1354
        %v1437 = vadd.f32 %v1111, %v1357
        %v1438 = vadd.f32 %v1112, %v1362
        %v1439 = vadd.f32 %v1113, %v1365
        %v1440 = vadd.f32 %v1114, %v1370
        %v1441 = vadd.f32 %v1115, %v1373
        %v1442 = vadd.f32 %v1116, %v1378
        %v1443 = vadd.f32 %v1117, %v1381
        %v1444 = vadd.f32 %v1118, %v1386
        %v1445 = vadd.f32 %v1119, %v1389
        %v1446 = vadd.f32 %v1120, %v1394
        %v1447 = vadd.f32 %v1121, %v1397
        %v1448 = vadd.f32 %v1122, %v1402
        %v1449 = vadd.f32 %v1123, %v1405
        %v1450 = vadd.f32 %v1124, %v1410
        %v1451 = vadd.f32 %v1125, %v1413
        %v1452 = vld [vmem:[%s464 + $0x12] sm:$0xff]
        %v1453 = vld [vmem:[%s464 + $0x1a] sm:$0xff]
        %v1454 = vld [vmem:[%s464 + $0x22] sm:$0xff]
        %v1455 = vld [vmem:[%s464 + $0x2a] sm:$0xff]
        %v1456 = vld [vmem:[%s464 + $0x32] sm:$0xff]
        %v1457 = vld [vmem:[%s464 + $0x3a] sm:$0xff]
        %v1458 = vld [vmem:[%s464 + $0x42] sm:$0xff]
        %v1459 = vld [vmem:[%s464 + $0x4a] sm:$0xff]
        %v1460 = vld [vmem:[%s464 + $0x52] sm:$0xff]
        %v1461 = vld [vmem:[%s464 + $0x5a] sm:$0xff]
        %v1462 = vld [vmem:[%s464 + $0x62] sm:$0xff]
        %v1463 = vld [vmem:[%s464 + $0x6a] sm:$0xff]
        %v1464 = vld [vmem:[%s464 + $0x72] sm:$0xff]
        %v1465 = vld [vmem:[%s464 + $0x7a] sm:$0xff]
        %v1466 = vld [vmem:[%s464 + $0x82] sm:$0xff]
        %v1467 = vld [vmem:[%s464 + $0x8a] sm:$0xff]
        %v1468 = vld [vmem:[%s464 + $0x92] sm:$0xff]
        %v1469 = vld [vmem:[%s464 + $0x9a] sm:$0xff]
        %v1470 = vld [vmem:[%s464 + $0xa2] sm:$0xff]
        %v1471 = vld [vmem:[%s464 + $0xaa] sm:$0xff]
        %v1472 = vld [vmem:[%s464 + $0xb2] sm:$0xff]
        %v1473 = vld [vmem:[%s464 + $0xba] sm:$0xff]
        %v1474 = vld [vmem:[%s464 + $0xc2] sm:$0xff]
        %v1475 = vld [vmem:[%s464 + $0xca] sm:$0xff]
        %v1476 = vld [vmem:[%s464 + $0xd2] sm:$0xff]
        %v1477 = vld [vmem:[%s464 + $0xda] sm:$0xff]
        %v1478 = vld [vmem:[%s464 + $0xe2] sm:$0xff]
        %v1479 = vld [vmem:[%s464 + $0xea] sm:$0xff]
        %v1480 = vld [vmem:[%s464 + $0xf2] sm:$0xff]
        %v1481 = vld [vmem:[%s464 + $0xfa] sm:$0xff]
        %v1482 = vld [vmem:[%s464 + $0x102] sm:$0xff]
        %v1483 = vld [vmem:[%s464 + $0x10a] sm:$0xff]
        %v1484 = vld [vmem:[%s464 + $0x112] sm:$0xff]
        %v1485 = vld [vmem:[%s464 + $0x11a] sm:$0xff]
        %v1486 = vld [vmem:[%s464 + $0x122] sm:$0xff]
        %v1487 = vld [vmem:[%s464 + $0x12a] sm:$0xff]
        %v1488 = vpack.c.bf16 %v1453, %v1452
        %v1489 = vpack.c.bf16 %v1455, %v1454
        %v1490 = vpack.c.bf16 %v1457, %v1456
        %v1491 = vpack.c.bf16 %v1459, %v1458
        %v1492 = vpack.c.bf16 %v1461, %v1460
        %v1493 = vpack.c.bf16 %v1463, %v1462
        %v1494 = vpack.c.bf16 %v1465, %v1464
        %v1495 = vpack.c.bf16 %v1467, %v1466
        %v1496 = vpack.c.bf16 %v1469, %v1468
        %v1497 = vpack.c.bf16 %v1471, %v1470
        %v1498 = vpack.c.bf16 %v1473, %v1472
        %v1499 = vpack.c.bf16 %v1475, %v1474
        %v1500 = vpack.c.bf16 %v1477, %v1476
        %v1501 = vpack.c.bf16 %v1479, %v1478
        %v1502 = vpack.c.bf16 %v1481, %v1480
        %v1503 = vpack.c.bf16 %v1483, %v1482
        %v1504 = vpack.c.bf16 %v1485, %v1484
        %v1505 = vpack.c.bf16 %v1487, %v1486
        %s1506 = scalar_lea.vmem %s1, 6
        %v1507 = vld [vmem:[%s1506] sm:$0x3]
        %v1509 = vsel %vm522, %v1488, 0
        %v1512 = vsel %vm522, %v1489, 0
        %v1515 = vsel %vm522, %v1490, 0
        %v1518 = vsel %vm522, %v1491, 0
        %v1521 = vsel %vm522, %v1492, 0
        %v1524 = vsel %vm522, %v1493, 0
        %v1527 = vsel %vm522, %v1494, 0
        %v1530 = vsel %vm522, %v1495, 0
        %v1533 = vsel %vm522, %v1496, 0
        %v1536 = vsel %vm522, %v1497, 0
        %v1539 = vsel %vm522, %v1498, 0
        %v1542 = vsel %vm522, %v1499, 0
        %v1545 = vsel %vm522, %v1500, 0
        %v1548 = vsel %vm522, %v1501, 0
        %v1551 = vsel %vm522, %v1502, 0
        %v1554 = vsel %vm522, %v1503, 0
        %v1557 = vsel %vm522, %v1504, 0
        %v1560 = vsel %vm522, %v1505, 0
        %v1563 = vsel %vm577, %v1507, 0
        %1565 = vmatprep.subr.bf16.mxu0 0
        %1566 = vmatpush1.bf16.msra.mxu0 %v1563
        %1567 = vmatprep.subr.bf16.mxu0 0
        %1568 = vmatpush1.bf16.msra.mxu0 0
        %1569 = vmatprep.subr.bf16.mxu0 0
        %1570 = vmatpush1.bf16.msra.mxu0 0
        %1571 = vmatprep.subr.bf16.mxu0 0
        %1572 = vmatpush1.bf16.msra.mxu0 0
        %1573 = vmatprep.subr.bf16.mxu0 0
        %1574 = vmatpush1.bf16.msra.mxu0 0
        %1575 = vmatprep.subr.bf16.mxu0 0
        %1576 = vmatpush1.bf16.msra.mxu0 0
        %1577 = vmatprep.subr.bf16.mxu0 0
        %1578 = vmatpush1.bf16.msra.mxu0 0
        %1579 = vmatprep.subr.bf16.mxu0 0
        %1580 = vmatpush1.bf16.msra.mxu0 0
        %1581 = vmatprep.subr.bf16.mxu0 0
        %1582 = vmatpush1.bf16.msra.mxu0 0
        %1583 = vmatprep.subr.bf16.mxu0 0
        %1584 = vmatpush1.bf16.msra.mxu0 0
        %1585 = vmatprep.subr.bf16.mxu0 0
        %1586 = vmatpush1.bf16.msra.mxu0 0
        %1587 = vmatprep.subr.bf16.mxu0 0
        %1588 = vmatpush1.bf16.msra.mxu0 0
        %1589 = vmatprep.subr.bf16.mxu0 0
        %1590 = vmatpush1.bf16.msra.mxu0 0
        %1591 = vmatprep.subr.bf16.mxu0 0
        %1592 = vmatpush1.bf16.msra.mxu0 0
        %1593 = vmatprep.subr.bf16.mxu0 0
        %1594 = vmatpush1.bf16.msra.mxu0 0
        %1595 = vmatprep.subr.bf16.mxu0 0
        %1596 = vmatpush1.bf16.msra.mxu0 0
        %1597 = vmatprep.mubr.bf16.mxu0 0
        %1598 = vmatmul.mubr.bf16.gmra.mrb[0].mxu0 %v1509
        %v1599 = vpop.f32.mrb[0].mxu0
        %v1600 = vadd.f32 0.0, %v1599
        %v1601 = vpop.f32.mrb[0].mxu0
        %v1602 = vpop.f32.mrb[0].mxu0
        %v1603 = vadd.f32 0.0, %v1602
        %v1604 = vpop.f32.mrb[0].mxu0
        %1605 = vmatprep.mubr.bf16.mxu0 0
        %1606 = vmatmul.mubr.bf16.gmra.mrb[0].mxu0 %v1512
        %v1607 = vpop.f32.mrb[0].mxu0
        %v1608 = vadd.f32 0.0, %v1607
        %v1609 = vpop.f32.mrb[0].mxu0
        %v1610 = vpop.f32.mrb[0].mxu0
        %v1611 = vadd.f32 0.0, %v1610
        %v1612 = vpop.f32.mrb[0].mxu0
        %1613 = vmatprep.mubr.bf16.mxu0 0
        %1614 = vmatmul.mubr.bf16.gmra.mrb[0].mxu0 %v1515
        %v1615 = vpop.f32.mrb[0].mxu0
        %v1616 = vadd.f32 0.0, %v1615
        %v1617 = vpop.f32.mrb[0].mxu0
        %v1618 = vpop.f32.mrb[0].mxu0
        %v1619 = vadd.f32 0.0, %v1618
        %v1620 = vpop.f32.mrb[0].mxu0
        %1621 = vmatprep.mubr.bf16.mxu0 0
        %1622 = vmatmul.mubr.bf16.gmra.mrb[0].mxu0 %v1518
        %v1623 = vpop.f32.mrb[0].mxu0
        %v1624 = vadd.f32 0.0, %v1623
        %v1625 = vpop.f32.mrb[0].mxu0
        %v1626 = vpop.f32.mrb[0].mxu0
        %v1627 = vadd.f32 0.0, %v1626
        %v1628 = vpop.f32.mrb[0].mxu0
        %1629 = vmatprep.mubr.bf16.mxu0 0
        %1630 = vmatmul.mubr.bf16.gmra.mrb[0].mxu0 %v1521
        %v1631 = vpop.f32.mrb[0].mxu0
        %v1632 = vadd.f32 0.0, %v1631
        %v1633 = vpop.f32.mrb[0].mxu0
        %v1634 = vpop.f32.mrb[0].mxu0
        %v1635 = vadd.f32 0.0, %v1634
        %v1636 = vpop.f32.mrb[0].mxu0
        %1637 = vmatprep.mubr.bf16.mxu0 0
        %1638 = vmatmul.mubr.bf16.gmra.mrb[0].mxu0 %v1524
        %v1639 = vpop.f32.mrb[0].mxu0
        %v1640 = vadd.f32 0.0, %v1639
        %v1641 = vpop.f32.mrb[0].mxu0
        %v1642 = vpop.f32.mrb[0].mxu0
        %v1643 = vadd.f32 0.0, %v1642
        %v1644 = vpop.f32.mrb[0].mxu0
        %1645 = vmatprep.mubr.bf16.mxu0 0
        %1646 = vmatmul.mubr.bf16.gmra.mrb[0].mxu0 %v1527
        %v1647 = vpop.f32.mrb[0].mxu0
        %v1648 = vadd.f32 0.0, %v1647
        %v1649 = vpop.f32.mrb[0].mxu0
        %v1650 = vpop.f32.mrb[0].mxu0
        %v1651 = vadd.f32 0.0, %v1650
        %v1652 = vpop.f32.mrb[0].mxu0
        %1653 = vmatprep.mubr.bf16.mxu0 0
        %1654 = vmatmul.mubr.bf16.gmra.mrb[0].mxu0 %v1530
        %v1655 = vpop.f32.mrb[0].mxu0
        %v1656 = vadd.f32 0.0, %v1655
        %v1657 = vpop.f32.mrb[0].mxu0
        %v1658 = vpop.f32.mrb[0].mxu0
        %v1659 = vadd.f32 0.0, %v1658
        %v1660 = vpop.f32.mrb[0].mxu0
        %1661 = vmatprep.mubr.bf16.mxu0 0
        %1662 = vmatmul.mubr.bf16.gmra.mrb[0].mxu0 %v1533
        %v1663 = vpop.f32.mrb[0].mxu0
        %v1664 = vadd.f32 0.0, %v1663
        %v1665 = vpop.f32.mrb[0].mxu0
        %v1666 = vpop.f32.mrb[0].mxu0
        %v1667 = vadd.f32 0.0, %v1666
        %v1668 = vpop.f32.mrb[0].mxu0
        %1669 = vmatprep.mubr.bf16.mxu0 0
        %1670 = vmatmul.mubr.bf16.gmra.mrb[0].mxu0 %v1536
        %v1671 = vpop.f32.mrb[0].mxu0
        %v1672 = vadd.f32 0.0, %v1671
        %v1673 = vpop.f32.mrb[0].mxu0
        %v1674 = vpop.f32.mrb[0].mxu0
        %v1675 = vadd.f32 0.0, %v1674
        %v1676 = vpop.f32.mrb[0].mxu0
        %1677 = vmatprep.mubr.bf16.mxu0 0
        %1678 = vmatmul.mubr.bf16.gmra.mrb[0].mxu0 %v1539
        %v1679 = vpop.f32.mrb[0].mxu0
        %v1680 = vadd.f32 0.0, %v1679
        %v1681 = vpop.f32.mrb[0].mxu0
        %v1682 = vpop.f32.mrb[0].mxu0
        %v1683 = vadd.f32 0.0, %v1682
        %v1684 = vpop.f32.mrb[0].mxu0
        %1685 = vmatprep.mubr.bf16.mxu0 0
        %1686 = vmatmul.mubr.bf16.gmra.mrb[0].mxu0 %v1542
        %v1687 = vpop.f32.mrb[0].mxu0
        %v1688 = vadd.f32 0.0, %v1687
        %v1689 = vpop.f32.mrb[0].mxu0
        %v1690 = vpop.f32.mrb[0].mxu0
        %v1691 = vadd.f32 0.0, %v1690
        %v1692 = vpop.f32.mrb[0].mxu0
        %1693 = vmatprep.mubr.bf16.mxu0 0
        %1694 = vmatmul.mubr.bf16.gmra.mrb[0].mxu0 %v1545
        %v1695 = vpop.f32.mrb[0].mxu0
        %v1696 = vadd.f32 0.0, %v1695
        %v1697 = vpop.f32.mrb[0].mxu0
        %v1698 = vpop.f32.mrb[0].mxu0
        %v1699 = vadd.f32 0.0, %v1698
        %v1700 = vpop.f32.mrb[0].mxu0
        %1701 = vmatprep.mubr.bf16.mxu0 0
        %1702 = vmatmul.mubr.bf16.gmra.mrb[0].mxu0 %v1548
        %v1703 = vpop.f32.mrb[0].mxu0
        %v1704 = vadd.f32 0.0, %v1703
        %v1705 = vpop.f32.mrb[0].mxu0
        %v1706 = vpop.f32.mrb[0].mxu0
        %v1707 = vadd.f32 0.0, %v1706
        %v1708 = vpop.f32.mrb[0].mxu0
        %1709 = vmatprep.mubr.bf16.mxu0 0
        %1710 = vmatmul.mubr.bf16.gmra.mrb[0].mxu0 %v1551
        %v1711 = vpop.f32.mrb[0].mxu0
        %v1712 = vadd.f32 0.0, %v1711
        %v1713 = vpop.f32.mrb[0].mxu0
        %v1714 = vpop.f32.mrb[0].mxu0
        %v1715 = vadd.f32 0.0, %v1714
        %v1716 = vpop.f32.mrb[0].mxu0
        %1717 = vmatprep.mubr.bf16.mxu0 0
        %1718 = vmatmul.mubr.bf16.gmra.mrb[0].mxu0 %v1554
        %v1719 = vpop.f32.mrb[0].mxu0
        %v1720 = vadd.f32 0.0, %v1719
        %v1721 = vpop.f32.mrb[0].mxu0
        %v1722 = vpop.f32.mrb[0].mxu0
        %v1723 = vadd.f32 0.0, %v1722
        %v1724 = vpop.f32.mrb[0].mxu0
        %1725 = vmatprep.mubr.bf16.mxu0 0
        %1726 = vmatmul.mubr.bf16.gmra.mrb[0].mxu0 %v1557
        %v1727 = vpop.f32.mrb[0].mxu0
        %v1728 = vadd.f32 0.0, %v1727
        %v1729 = vpop.f32.mrb[0].mxu0
        %v1730 = vpop.f32.mrb[0].mxu0
        %v1731 = vadd.f32 0.0, %v1730
        %v1732 = vpop.f32.mrb[0].mxu0
        %1733 = vmatprep.mubr.bf16.mxu0 0
        %1734 = vmatmul.mubr.bf16.gmra.mrb[0].mxu0 %v1560
        %v1735 = vpop.f32.mrb[0].mxu0
        %v1736 = vadd.f32 0.0, %v1735
        %v1737 = vpop.f32.mrb[0].mxu0
        %v1738 = vpop.f32.mrb[0].mxu0
        %v1739 = vadd.f32 0.0, %v1738
        %v1740 = vpop.f32.mrb[0].mxu0
        %1741 = vdwg.mxu0
        %v1742 = vadd.f32 %v1416, %v1600
        %v1743 = vadd.f32 %v1417, %v1603
        %v1744 = vadd.f32 %v1418, %v1608
        %v1745 = vadd.f32 %v1419, %v1611
        %v1746 = vadd.f32 %v1420, %v1616
        %v1747 = vadd.f32 %v1421, %v1619
        %v1748 = vadd.f32 %v1422, %v1624
        %v1749 = vadd.f32 %v1423, %v1627
        %v1750 = vadd.f32 %v1424, %v1632
        %v1751 = vadd.f32 %v1425, %v1635
        %v1752 = vadd.f32 %v1426, %v1640
        %v1753 = vadd.f32 %v1427, %v1643
        %v1754 = vadd.f32 %v1428, %v1648
        %v1755 = vadd.f32 %v1429, %v1651
        %v1756 = vadd.f32 %v1430, %v1656
        %v1757 = vadd.f32 %v1431, %v1659
        %v1758 = vadd.f32 %v1432, %v1664
        %v1759 = vadd.f32 %v1433, %v1667
        %v1760 = vadd.f32 %v1434, %v1672
        %v1761 = vadd.f32 %v1435, %v1675
        %v1762 = vadd.f32 %v1436, %v1680
        %v1763 = vadd.f32 %v1437, %v1683
        %v1764 = vadd.f32 %v1438, %v1688
        %v1765 = vadd.f32 %v1439, %v1691
        %v1766 = vadd.f32 %v1440, %v1696
        %v1767 = vadd.f32 %v1441, %v1699
        %v1768 = vadd.f32 %v1442, %v1704
        %v1769 = vadd.f32 %v1443, %v1707
        %v1770 = vadd.f32 %v1444, %v1712
        %v1771 = vadd.f32 %v1445, %v1715
        %v1772 = vadd.f32 %v1446, %v1720
        %v1773 = vadd.f32 %v1447, %v1723
        %v1774 = vadd.f32 %v1448, %v1728
        %v1775 = vadd.f32 %v1449, %v1731
        %v1776 = vadd.f32 %v1450, %v1736
        %v1777 = vadd.f32 %v1451, %v1739
        %v1778 = vld [vmem:[%s464 + $0x13] sm:$0xff]
        %v1779 = vld [vmem:[%s464 + $0x1b] sm:$0xff]
        %v1780 = vld [vmem:[%s464 + $0x23] sm:$0xff]
        %v1781 = vld [vmem:[%s464 + $0x2b] sm:$0xff]
        %v1782 = vld [vmem:[%s464 + $0x33] sm:$0xff]
        %v1783 = vld [vmem:[%s464 + $0x3b] sm:$0xff]
        %v1784 = vld [vmem:[%s464 + $0x43] sm:$0xff]
        %v1785 = vld [vmem:[%s464 + $0x4b] sm:$0xff]
        %v1786 = vld [vmem:[%s464 + $0x53] sm:$0xff]
        %v1787 = vld [vmem:[%s464 + $0x5b] sm:$0xff]
        %v1788 = vld [vmem:[%s464 + $0x63] sm:$0xff]
        %v1789 = vld [vmem:[%s464 + $0x6b] sm:$0xff]
        %v1790 = vld [vmem:[%s464 + $0x73] sm:$0xff]
        %v1791 = vld [vmem:[%s464 + $0x7b] sm:$0xff]
        %v1792 = vld [vmem:[%s464 + $0x83] sm:$0xff]
        %v1793 = vld [vmem:[%s464 + $0x8b] sm:$0xff]
        %v1794 = vld [vmem:[%s464 + $0x93] sm:$0xff]
        %v1795 = vld [vmem:[%s464 + $0x9b] sm:$0xff]
        %v1796 = vld [vmem:[%s464 + $0xa3] sm:$0xff]
        %v1797 = vld [vmem:[%s464 + $0xab] sm:$0xff]
        %v1798 = vld [vmem:[%s464 + $0xb3] sm:$0xff]
        %v1799 = vld [vmem:[%s464 + $0xbb] sm:$0xff]
        %v1800 = vld [vmem:[%s464 + $0xc3] sm:$0xff]
        %v1801 = vld [vmem:[%s464 + $0xcb] sm:$0xff]
        %v1802 = vld [vmem:[%s464 + $0xd3] sm:$0xff]
        %v1803 = vld [vmem:[%s464 + $0xdb] sm:$0xff]
        %v1804 = vld [vmem:[%s464 + $0xe3] sm:$0xff]
        %v1805 = vld [vmem:[%s464 + $0xeb] sm:$0xff]
        %v1806 = vld [vmem:[%s464 + $0xf3] sm:$0xff]
        %v1807 = vld [vmem:[%s464 + $0xfb] sm:$0xff]
        %v1808 = vld [vmem:[%s464 + $0x103] sm:$0xff]
        %v1809 = vld [vmem:[%s464 + $0x10b] sm:$0xff]
        %v1810 = vld [vmem:[%s464 + $0x113] sm:$0xff]
        %v1811 = vld [vmem:[%s464 + $0x11b] sm:$0xff]
        %v1812 = vld [vmem:[%s464 + $0x123] sm:$0xff]
        %v1813 = vld [vmem:[%s464 + $0x12b] sm:$0xff]
        %v1814 = vpack.c.bf16 %v1779, %v1778
        %v1815 = vpack.c.bf16 %v1781, %v1780
        %v1816 = vpack.c.bf16 %v1783, %v1782
        %v1817 = vpack.c.bf16 %v1785, %v1784
        %v1818 = vpack.c.bf16 %v1787, %v1786
        %v1819 = vpack.c.bf16 %v1789, %v1788
        %v1820 = vpack.c.bf16 %v1791, %v1790
        %v1821 = vpack.c.bf16 %v1793, %v1792
        %v1822 = vpack.c.bf16 %v1795, %v1794
        %v1823 = vpack.c.bf16 %v1797, %v1796
        %v1824 = vpack.c.bf16 %v1799, %v1798
        %v1825 = vpack.c.bf16 %v1801, %v1800
        %v1826 = vpack.c.bf16 %v1803, %v1802
        %v1827 = vpack.c.bf16 %v1805, %v1804
        %v1828 = vpack.c.bf16 %v1807, %v1806
        %v1829 = vpack.c.bf16 %v1809, %v1808
        %v1830 = vpack.c.bf16 %v1811, %v1810
        %v1831 = vpack.c.bf16 %v1813, %v1812
        %s1832 = scalar_lea.vmem %s1, 8
        %v1833 = vld [vmem:[%s1832] sm:$0x3]
        %v1835 = vsel %vm522, %v1814, 0
        %v1838 = vsel %vm522, %v1815, 0
        %v1841 = vsel %vm522, %v1816, 0
        %v1844 = vsel %vm522, %v1817, 0
        %v1847 = vsel %vm522, %v1818, 0
        %v1850 = vsel %vm522, %v1819, 0
        %v1853 = vsel %vm522, %v1820, 0
        %v1856 = vsel %vm522, %v1821, 0
        %v1859 = vsel %vm522, %v1822, 0
        %v1862 = vsel %vm522, %v1823, 0
        %v1865 = vsel %vm522, %v1824, 0
        %v1868 = vsel %vm522, %v1825, 0
        %v1871 = vsel %vm522, %v1826, 0
        %v1874 = vsel %vm522, %v1827, 0
        %v1877 = vsel %vm522, %v1828, 0
        %v1880 = vsel %vm522, %v1829, 0
        %v1883 = vsel %vm522, %v1830, 0
        %v1886 = vsel %vm522, %v1831, 0
        %v1889 = vsel %vm577, %v1833, 0
        %1891 = vmatprep.subr.bf16.mxu0 0
        %1892 = vmatpush1.bf16.msra.mxu0 %v1889
        %1893 = vmatprep.subr.bf16.mxu0 0
        %1894 = vmatpush1.bf16.msra.mxu0 0
        %1895 = vmatprep.subr.bf16.mxu0 0
        %1896 = vmatpush1.bf16.msra.mxu0 0
        %1897 = vmatprep.subr.bf16.mxu0 0
        %1898 = vmatpush1.bf16.msra.mxu0 0
        %1899 = vmatprep.subr.bf16.mxu0 0
        %1900 = vmatpush1.bf16.msra.mxu0 0
        %1901 = vmatprep.subr.bf16.mxu0 0
        %1902 = vmatpush1.bf16.msra.mxu0 0
        %1903 = vmatprep.subr.bf16.mxu0 0
        %1904 = vmatpush1.bf16.msra.mxu0 0
        %1905 = vmatprep.subr.bf16.mxu0 0
        %1906 = vmatpush1.bf16.msra.mxu0 0
        %1907 = vmatprep.subr.bf16.mxu0 0
        %1908 = vmatpush1.bf16.msra.mxu0 0
        %1909 = vmatprep.subr.bf16.mxu0 0
        %1910 = vmatpush1.bf16.msra.mxu0 0
        %1911 = vmatprep.subr.bf16.mxu0 0
        %1912 = vmatpush1.bf16.msra.mxu0 0
        %1913 = vmatprep.subr.bf16.mxu0 0
        %1914 = vmatpush1.bf16.msra.mxu0 0
        %1915 = vmatprep.subr.bf16.mxu0 0
        %1916 = vmatpush1.bf16.msra.mxu0 0
        %1917 = vmatprep.subr.bf16.mxu0 0
        %1918 = vmatpush1.bf16.msra.mxu0 0
        %1919 = vmatprep.subr.bf16.mxu0 0
        %1920 = vmatpush1.bf16.msra.mxu0 0
        %1921 = vmatprep.subr.bf16.mxu0 0
        %1922 = vmatpush1.bf16.msra.mxu0 0
        %1923 = vmatprep.mubr.bf16.mxu0 0
        %1924 = vmatmul.mubr.bf16.gmra.mrb[0].mxu0 %v1835
        %v1925 = vpop.f32.mrb[0].mxu0
        %v1926 = vadd.f32 0.0, %v1925
        %v1927 = vpop.f32.mrb[0].mxu0
        %v1928 = vpop.f32.mrb[0].mxu0
        %v1929 = vadd.f32 0.0, %v1928
        %v1930 = vpop.f32.mrb[0].mxu0
        %1931 = vmatprep.mubr.bf16.mxu0 0
        %1932 = vmatmul.mubr.bf16.gmra.mrb[0].mxu0 %v1838
        %v1933 = vpop.f32.mrb[0].mxu0
        %v1934 = vadd.f32 0.0, %v1933
        %v1935 = vpop.f32.mrb[0].mxu0
        %v1936 = vpop.f32.mrb[0].mxu0
        %v1937 = vadd.f32 0.0, %v1936
        %v1938 = vpop.f32.mrb[0].mxu0
        %1939 = vmatprep.mubr.bf16.mxu0 0
        %1940 = vmatmul.mubr.bf16.gmra.mrb[0].mxu0 %v1841
        %v1941 = vpop.f32.mrb[0].mxu0
        %v1942 = vadd.f32 0.0, %v1941
        %v1943 = vpop.f32.mrb[0].mxu0
        %v1944 = vpop.f32.mrb[0].mxu0
        %v1945 = vadd.f32 0.0, %v1944
        %v1946 = vpop.f32.mrb[0].mxu0
        %1947 = vmatprep.mubr.bf16.mxu0 0
        %1948 = vmatmul.mubr.bf16.gmra.mrb[0].mxu0 %v1844
        %v1949 = vpop.f32.mrb[0].mxu0
        %v1950 = vadd.f32 0.0, %v1949
        %v1951 = vpop.f32.mrb[0].mxu0
        %v1952 = vpop.f32.mrb[0].mxu0
        %v1953 = vadd.f32 0.0, %v1952
        %v1954 = vpop.f32.mrb[0].mxu0
        %1955 = vmatprep.mubr.bf16.mxu0 0
        %1956 = vmatmul.mubr.bf16.gmra.mrb[0].mxu0 %v1847
        %v1957 = vpop.f32.mrb[0].mxu0
        %v1958 = vadd.f32 0.0, %v1957
        %v1959 = vpop.f32.mrb[0].mxu0
        %v1960 = vpop.f32.mrb[0].mxu0
        %v1961 = vadd.f32 0.0, %v1960
        %v1962 = vpop.f32.mrb[0].mxu0
        %1963 = vmatprep.mubr.bf16.mxu0 0
        %1964 = vmatmul.mubr.bf16.gmra.mrb[0].mxu0 %v1850
        %v1965 = vpop.f32.mrb[0].mxu0
        %v1966 = vadd.f32 0.0, %v1965
        %v1967 = vpop.f32.mrb[0].mxu0
        %v1968 = vpop.f32.mrb[0].mxu0
        %v1969 = vadd.f32 0.0, %v1968
        %v1970 = vpop.f32.mrb[0].mxu0
        %1971 = vmatprep.mubr.bf16.mxu0 0
        %1972 = vmatmul.mubr.bf16.gmra.mrb[0].mxu0 %v1853
        %v1973 = vpop.f32.mrb[0].mxu0
        %v1974 = vadd.f32 0.0, %v1973
        %v1975 = vpop.f32.mrb[0].mxu0
        %v1976 = vpop.f32.mrb[0].mxu0
        %v1977 = vadd.f32 0.0, %v1976
        %v1978 = vpop.f32.mrb[0].mxu0
        %1979 = vmatprep.mubr.bf16.mxu0 0
        %1980 = vmatmul.mubr.bf16.gmra.mrb[0].mxu0 %v1856
        %v1981 = vpop.f32.mrb[0].mxu0
        %v1982 = vadd.f32 0.0, %v1981
        %v1983 = vpop.f32.mrb[0].mxu0
        %v1984 = vpop.f32.mrb[0].mxu0
        %v1985 = vadd.f32 0.0, %v1984
        %v1986 = vpop.f32.mrb[0].mxu0
        %1987 = vmatprep.mubr.bf16.mxu0 0
        %1988 = vmatmul.mubr.bf16.gmra.mrb[0].mxu0 %v1859
        %v1989 = vpop.f32.mrb[0].mxu0
        %v1990 = vadd.f32 0.0, %v1989
        %v1991 = vpop.f32.mrb[0].mxu0
        %v1992 = vpop.f32.mrb[0].mxu0
        %v1993 = vadd.f32 0.0, %v1992
        %v1994 = vpop.f32.mrb[0].mxu0
        %1995 = vmatprep.mubr.bf16.mxu0 0
        %1996 = vmatmul.mubr.bf16.gmra.mrb[0].mxu0 %v1862
        %v1997 = vpop.f32.mrb[0].mxu0
        %v1998 = vadd.f32 0.0, %v1997
        %v1999 = vpop.f32.mrb[0].mxu0
        %v2000 = vpop.f32.mrb[0].mxu0
        %v2001 = vadd.f32 0.0, %v2000
        %v2002 = vpop.f32.mrb[0].mxu0
        %2003 = vmatprep.mubr.bf16.mxu0 0
        %2004 = vmatmul.mubr.bf16.gmra.mrb[0].mxu0 %v1865
        %v2005 = vpop.f32.mrb[0].mxu0
        %v2006 = vadd.f32 0.0, %v2005
        %v2007 = vpop.f32.mrb[0].mxu0
        %v2008 = vpop.f32.mrb[0].mxu0
        %v2009 = vadd.f32 0.0, %v2008
        %v2010 = vpop.f32.mrb[0].mxu0
        %2011 = vmatprep.mubr.bf16.mxu0 0
        %2012 = vmatmul.mubr.bf16.gmra.mrb[0].mxu0 %v1868
        %v2013 = vpop.f32.mrb[0].mxu0
        %v2014 = vadd.f32 0.0, %v2013
        %v2015 = vpop.f32.mrb[0].mxu0
        %v2016 = vpop.f32.mrb[0].mxu0
        %v2017 = vadd.f32 0.0, %v2016
        %v2018 = vpop.f32.mrb[0].mxu0
        %2019 = vmatprep.mubr.bf16.mxu0 0
        %2020 = vmatmul.mubr.bf16.gmra.mrb[0].mxu0 %v1871
        %v2021 = vpop.f32.mrb[0].mxu0
        %v2022 = vadd.f32 0.0, %v2021
        %v2023 = vpop.f32.mrb[0].mxu0
        %v2024 = vpop.f32.mrb[0].mxu0
        %v2025 = vadd.f32 0.0, %v2024
        %v2026 = vpop.f32.mrb[0].mxu0
        %2027 = vmatprep.mubr.bf16.mxu0 0
        %2028 = vmatmul.mubr.bf16.gmra.mrb[0].mxu0 %v1874
        %v2029 = vpop.f32.mrb[0].mxu0
        %v2030 = vadd.f32 0.0, %v2029
        %v2031 = vpop.f32.mrb[0].mxu0
        %v2032 = vpop.f32.mrb[0].mxu0
        %v2033 = vadd.f32 0.0, %v2032
        %v2034 = vpop.f32.mrb[0].mxu0
        %2035 = vmatprep.mubr.bf16.mxu0 0
        %2036 = vmatmul.mubr.bf16.gmra.mrb[0].mxu0 %v1877
        %v2037 = vpop.f32.mrb[0].mxu0
        %v2038 = vadd.f32 0.0, %v2037
        %v2039 = vpop.f32.mrb[0].mxu0
        %v2040 = vpop.f32.mrb[0].mxu0
        %v2041 = vadd.f32 0.0, %v2040
        %v2042 = vpop.f32.mrb[0].mxu0
        %2043 = vmatprep.mubr.bf16.mxu0 0
        %2044 = vmatmul.mubr.bf16.gmra.mrb[0].mxu0 %v1880
        %v2045 = vpop.f32.mrb[0].mxu0
        %v2046 = vadd.f32 0.0, %v2045
        %v2047 = vpop.f32.mrb[0].mxu0
        %v2048 = vpop.f32.mrb[0].mxu0
        %v2049 = vadd.f32 0.0, %v2048
        %v2050 = vpop.f32.mrb[0].mxu0
        %2051 = vmatprep.mubr.bf16.mxu0 0
        %2052 = vmatmul.mubr.bf16.gmra.mrb[0].mxu0 %v1883
        %v2053 = vpop.f32.mrb[0].mxu0
        %v2054 = vadd.f32 0.0, %v2053
        %v2055 = vpop.f32.mrb[0].mxu0
        %v2056 = vpop.f32.mrb[0].mxu0
        %v2057 = vadd.f32 0.0, %v2056
        %v2058 = vpop.f32.mrb[0].mxu0
        %2059 = vmatprep.mubr.bf16.mxu0 0
        %2060 = vmatmul.mubr.bf16.gmra.mrb[0].mxu0 %v1886
        %v2061 = vpop.f32.mrb[0].mxu0
        %v2062 = vadd.f32 0.0, %v2061
        %v2063 = vpop.f32.mrb[0].mxu0
        %v2064 = vpop.f32.mrb[0].mxu0
        %v2065 = vadd.f32 0.0, %v2064
        %v2066 = vpop.f32.mrb[0].mxu0
        %2067 = vdwg.mxu0
        %v2068 = vadd.f32 %v1742, %v1926
        %v2069 = vadd.f32 %v1743, %v1929
        %v2070 = vadd.f32 %v1744, %v1934
        %v2071 = vadd.f32 %v1745, %v1937
        %v2072 = vadd.f32 %v1746, %v1942
        %v2073 = vadd.f32 %v1747, %v1945
        %v2074 = vadd.f32 %v1748, %v1950
        %v2075 = vadd.f32 %v1749, %v1953
        %v2076 = vadd.f32 %v1750, %v1958
        %v2077 = vadd.f32 %v1751, %v1961
        %v2078 = vadd.f32 %v1752, %v1966
        %v2079 = vadd.f32 %v1753, %v1969
        %v2080 = vadd.f32 %v1754, %v1974
        %v2081 = vadd.f32 %v1755, %v1977
        %v2082 = vadd.f32 %v1756, %v1982
        %v2083 = vadd.f32 %v1757, %v1985
        %v2084 = vadd.f32 %v1758, %v1990
        %v2085 = vadd.f32 %v1759, %v1993
        %v2086 = vadd.f32 %v1760, %v1998
        %v2087 = vadd.f32 %v1761, %v2001
        %v2088 = vadd.f32 %v1762, %v2006
        %v2089 = vadd.f32 %v1763, %v2009
        %v2090 = vadd.f32 %v1764, %v2014
        %v2091 = vadd.f32 %v1765, %v2017
        %v2092 = vadd.f32 %v1766, %v2022
        %v2093 = vadd.f32 %v1767, %v2025
        %v2094 = vadd.f32 %v1768, %v2030
        %v2095 = vadd.f32 %v1769, %v2033
        %v2096 = vadd.f32 %v1770, %v2038
        %v2097 = vadd.f32 %v1771, %v2041
        %v2098 = vadd.f32 %v1772, %v2046
        %v2099 = vadd.f32 %v1773, %v2049
        %v2100 = vadd.f32 %v1774, %v2054
        %v2101 = vadd.f32 %v1775, %v2057
        %v2102 = vadd.f32 %v1776, %v2062
        %v2103 = vadd.f32 %v1777, %v2065
        %v2104 = vld [vmem:[%s464 + $0x14] sm:$0xff]
        %v2105 = vld [vmem:[%s464 + $0x1c] sm:$0xff]
        %v2106 = vld [vmem:[%s464 + $0x24] sm:$0xff]
        %v2107 = vld [vmem:[%s464 + $0x2c] sm:$0xff]
        %v2108 = vld [vmem:[%s464 + $0x34] sm:$0xff]
        %v2109 = vld [vmem:[%s464 + $0x3c] sm:$0xff]
        %v2110 = vld [vmem:[%s464 + $0x44] sm:$0xff]
        %v2111 = vld [vmem:[%s464 + $0x4c] sm:$0xff]
        %v2112 = vld [vmem:[%s464 + $0x54] sm:$0xff]
        %v2113 = vld [vmem:[%s464 + $0x5c] sm:$0xff]
        %v2114 = vld [vmem:[%s464 + $0x64] sm:$0xff]
        %v2115 = vld [vmem:[%s464 + $0x6c] sm:$0xff]
        %v2116 = vld [vmem:[%s464 + $0x74] sm:$0xff]
        %v2117 = vld [vmem:[%s464 + $0x7c] sm:$0xff]
        %v2118 = vld [vmem:[%s464 + $0x84] sm:$0xff]
        %v2119 = vld [vmem:[%s464 + $0x8c] sm:$0xff]
        %v2120 = vld [vmem:[%s464 + $0x94] sm:$0xff]
        %v2121 = vld [vmem:[%s464 + $0x9c] sm:$0xff]
        %v2122 = vld [vmem:[%s464 + $0xa4] sm:$0xff]
        %v2123 = vld [vmem:[%s464 + $0xac] sm:$0xff]
        %v2124 = vld [vmem:[%s464 + $0xb4] sm:$0xff]
        %v2125 = vld [vmem:[%s464 + $0xbc] sm:$0xff]
        %v2126 = vld [vmem:[%s464 + $0xc4] sm:$0xff]
        %v2127 = vld [vmem:[%s464 + $0xcc] sm:$0xff]
        %v2128 = vld [vmem:[%s464 + $0xd4] sm:$0xff]
        %v2129 = vld [vmem:[%s464 + $0xdc] sm:$0xff]
        %v2130 = vld [vmem:[%s464 + $0xe4] sm:$0xff]
        %v2131 = vld [vmem:[%s464 + $0xec] sm:$0xff]
        %v2132 = vld [vmem:[%s464 + $0xf4] sm:$0xff]
        %v2133 = vld [vmem:[%s464 + $0xfc] sm:$0xff]
        %v2134 = vld [vmem:[%s464 + $0x104] sm:$0xff]
        %v2135 = vld [vmem:[%s464 + $0x10c] sm:$0xff]
        %v2136 = vld [vmem:[%s464 + $0x114] sm:$0xff]
        %v2137 = vld [vmem:[%s464 + $0x11c] sm:$0xff]
        %v2138 = vld [vmem:[%s464 + $0x124] sm:$0xff]
        %v2139 = vld [vmem:[%s464 + $0x12c] sm:$0xff]
        %v2140 = vpack.c.bf16 %v2105, %v2104
        %v2141 = vpack.c.bf16 %v2107, %v2106
        %v2142 = vpack.c.bf16 %v2109, %v2108
        %v2143 = vpack.c.bf16 %v2111, %v2110
        %v2144 = vpack.c.bf16 %v2113, %v2112
        %v2145 = vpack.c.bf16 %v2115, %v2114
        %v2146 = vpack.c.bf16 %v2117, %v2116
        %v2147 = vpack.c.bf16 %v2119, %v2118
        %v2148 = vpack.c.bf16 %v2121, %v2120
        %v2149 = vpack.c.bf16 %v2123, %v2122
        %v2150 = vpack.c.bf16 %v2125, %v2124
        %v2151 = vpack.c.bf16 %v2127, %v2126
        %v2152 = vpack.c.bf16 %v2129, %v2128
        %v2153 = vpack.c.bf16 %v2131, %v2130
        %v2154 = vpack.c.bf16 %v2133, %v2132
        %v2155 = vpack.c.bf16 %v2135, %v2134
        %v2156 = vpack.c.bf16 %v2137, %v2136
        %v2157 = vpack.c.bf16 %v2139, %v2138
        %s2158 = scalar_lea.vmem %s1, 10
        %v2159 = vld [vmem:[%s2158] sm:$0x3]
        %v2161 = vsel %vm522, %v2140, 0
        %v2164 = vsel %vm522, %v2141, 0
        %v2167 = vsel %vm522, %v2142, 0
        %v2170 = vsel %vm522, %v2143, 0
        %v2173 = vsel %vm522, %v2144, 0
        %v2176 = vsel %vm522, %v2145, 0
        %v2179 = vsel %vm522, %v2146, 0
        %v2182 = vsel %vm522, %v2147, 0
        %v2185 = vsel %vm522, %v2148, 0
        %v2188 = vsel %vm522, %v2149, 0
        %v2191 = vsel %vm522, %v2150, 0
        %v2194 = vsel %vm522, %v2151, 0
        %v2197 = vsel %vm522, %v2152, 0
        %v2200 = vsel %vm522, %v2153, 0
        %v2203 = vsel %vm522, %v2154, 0
        %v2206 = vsel %vm522, %v2155, 0
        %v2209 = vsel %vm522, %v2156, 0
        %v2212 = vsel %vm522, %v2157, 0
        %v2215 = vsel %vm577, %v2159, 0
        %2217 = vmatprep.subr.bf16.mxu0 0
        %2218 = vmatpush1.bf16.msra.mxu0 %v2215
        %2219 = vmatprep.subr.bf16.mxu0 0
        %2220 = vmatpush1.bf16.msra.mxu0 0
        %2221 = vmatprep.subr.bf16.mxu0 0
        %2222 = vmatpush1.bf16.msra.mxu0 0
        %2223 = vmatprep.subr.bf16.mxu0 0
        %2224 = vmatpush1.bf16.msra.mxu0 0
        %2225 = vmatprep.subr.bf16.mxu0 0
        %2226 = vmatpush1.bf16.msra.mxu0 0
        %2227 = vmatprep.subr.bf16.mxu0 0
        %2228 = vmatpush1.bf16.msra.mxu0 0
        %2229 = vmatprep.subr.bf16.mxu0 0
        %2230 = vmatpush1.bf16.msra.mxu0 0
        %2231 = vmatprep.subr.bf16.mxu0 0
        %2232 = vmatpush1.bf16.msra.mxu0 0
        %2233 = vmatprep.subr.bf16.mxu0 0
        %2234 = vmatpush1.bf16.msra.mxu0 0
        %2235 = vmatprep.subr.bf16.mxu0 0
        %2236 = vmatpush1.bf16.msra.mxu0 0
        %2237 = vmatprep.subr.bf16.mxu0 0
        %2238 = vmatpush1.bf16.msra.mxu0 0
        %2239 = vmatprep.subr.bf16.mxu0 0
        %2240 = vmatpush1.bf16.msra.mxu0 0
        %2241 = vmatprep.subr.bf16.mxu0 0
        %2242 = vmatpush1.bf16.msra.mxu0 0
        %2243 = vmatprep.subr.bf16.mxu0 0
        %2244 = vmatpush1.bf16.msra.mxu0 0
        %2245 = vmatprep.subr.bf16.mxu0 0
        %2246 = vmatpush1.bf16.msra.mxu0 0
        %2247 = vmatprep.subr.bf16.mxu0 0
        %2248 = vmatpush1.bf16.msra.mxu0 0
        %2249 = vmatprep.mubr.bf16.mxu0 0
        %2250 = vmatmul.mubr.bf16.gmra.mrb[0].mxu0 %v2161
        %v2251 = vpop.f32.mrb[0].mxu0
        %v2252 = vadd.f32 0.0, %v2251
        %v2253 = vpop.f32.mrb[0].mxu0
        %v2254 = vpop.f32.mrb[0].mxu0
        %v2255 = vadd.f32 0.0, %v2254
        %v2256 = vpop.f32.mrb[0].mxu0
        %2257 = vmatprep.mubr.bf16.mxu0 0
        %2258 = vmatmul.mubr.bf16.gmra.mrb[0].mxu0 %v2164
        %v2259 = vpop.f32.mrb[0].mxu0
        %v2260 = vadd.f32 0.0, %v2259
        %v2261 = vpop.f32.mrb[0].mxu0
        %v2262 = vpop.f32.mrb[0].mxu0
        %v2263 = vadd.f32 0.0, %v2262
        %v2264 = vpop.f32.mrb[0].mxu0
        %2265 = vmatprep.mubr.bf16.mxu0 0
        %2266 = vmatmul.mubr.bf16.gmra.mrb[0].mxu0 %v2167
        %v2267 = vpop.f32.mrb[0].mxu0
        %v2268 = vadd.f32 0.0, %v2267
        %v2269 = vpop.f32.mrb[0].mxu0
        %v2270 = vpop.f32.mrb[0].mxu0
        %v2271 = vadd.f32 0.0, %v2270
        %v2272 = vpop.f32.mrb[0].mxu0
        %2273 = vmatprep.mubr.bf16.mxu0 0
        %2274 = vmatmul.mubr.bf16.gmra.mrb[0].mxu0 %v2170
        %v2275 = vpop.f32.mrb[0].mxu0
        %v2276 = vadd.f32 0.0, %v2275
        %v2277 = vpop.f32.mrb[0].mxu0
        %v2278 = vpop.f32.mrb[0].mxu0
        %v2279 = vadd.f32 0.0, %v2278
        %v2280 = vpop.f32.mrb[0].mxu0
        %2281 = vmatprep.mubr.bf16.mxu0 0
        %2282 = vmatmul.mubr.bf16.gmra.mrb[0].mxu0 %v2173
        %v2283 = vpop.f32.mrb[0].mxu0
        %v2284 = vadd.f32 0.0, %v2283
        %v2285 = vpop.f32.mrb[0].mxu0
        %v2286 = vpop.f32.mrb[0].mxu0
        %v2287 = vadd.f32 0.0, %v2286
        %v2288 = vpop.f32.mrb[0].mxu0
        %2289 = vmatprep.mubr.bf16.mxu0 0
        %2290 = vmatmul.mubr.bf16.gmra.mrb[0].mxu0 %v2176
        %v2291 = vpop.f32.mrb[0].mxu0
        %v2292 = vadd.f32 0.0, %v2291
        %v2293 = vpop.f32.mrb[0].mxu0
        %v2294 = vpop.f32.mrb[0].mxu0
        %v2295 = vadd.f32 0.0, %v2294
        %v2296 = vpop.f32.mrb[0].mxu0
        %2297 = vmatprep.mubr.bf16.mxu0 0
        %2298 = vmatmul.mubr.bf16.gmra.mrb[0].mxu0 %v2179
        %v2299 = vpop.f32.mrb[0].mxu0
        %v2300 = vadd.f32 0.0, %v2299
        %v2301 = vpop.f32.mrb[0].mxu0
        %v2302 = vpop.f32.mrb[0].mxu0
        %v2303 = vadd.f32 0.0, %v2302
        %v2304 = vpop.f32.mrb[0].mxu0
        %2305 = vmatprep.mubr.bf16.mxu0 0
        %2306 = vmatmul.mubr.bf16.gmra.mrb[0].mxu0 %v2182
        %v2307 = vpop.f32.mrb[0].mxu0
        %v2308 = vadd.f32 0.0, %v2307
        %v2309 = vpop.f32.mrb[0].mxu0
        %v2310 = vpop.f32.mrb[0].mxu0
        %v2311 = vadd.f32 0.0, %v2310
        %v2312 = vpop.f32.mrb[0].mxu0
        %2313 = vmatprep.mubr.bf16.mxu0 0
        %2314 = vmatmul.mubr.bf16.gmra.mrb[0].mxu0 %v2185
        %v2315 = vpop.f32.mrb[0].mxu0
        %v2316 = vadd.f32 0.0, %v2315
        %v2317 = vpop.f32.mrb[0].mxu0
        %v2318 = vpop.f32.mrb[0].mxu0
        %v2319 = vadd.f32 0.0, %v2318
        %v2320 = vpop.f32.mrb[0].mxu0
        %2321 = vmatprep.mubr.bf16.mxu0 0
        %2322 = vmatmul.mubr.bf16.gmra.mrb[0].mxu0 %v2188
        %v2323 = vpop.f32.mrb[0].mxu0
        %v2324 = vadd.f32 0.0, %v2323
        %v2325 = vpop.f32.mrb[0].mxu0
        %v2326 = vpop.f32.mrb[0].mxu0
        %v2327 = vadd.f32 0.0, %v2326
        %v2328 = vpop.f32.mrb[0].mxu0
        %2329 = vmatprep.mubr.bf16.mxu0 0
        %2330 = vmatmul.mubr.bf16.gmra.mrb[0].mxu0 %v2191
        %v2331 = vpop.f32.mrb[0].mxu0
        %v2332 = vadd.f32 0.0, %v2331
        %v2333 = vpop.f32.mrb[0].mxu0
        %v2334 = vpop.f32.mrb[0].mxu0
        %v2335 = vadd.f32 0.0, %v2334
        %v2336 = vpop.f32.mrb[0].mxu0
        %2337 = vmatprep.mubr.bf16.mxu0 0
        %2338 = vmatmul.mubr.bf16.gmra.mrb[0].mxu0 %v2194
        %v2339 = vpop.f32.mrb[0].mxu0
        %v2340 = vadd.f32 0.0, %v2339
        %v2341 = vpop.f32.mrb[0].mxu0
        %v2342 = vpop.f32.mrb[0].mxu0
        %v2343 = vadd.f32 0.0, %v2342
        %v2344 = vpop.f32.mrb[0].mxu0
        %2345 = vmatprep.mubr.bf16.mxu0 0
        %2346 = vmatmul.mubr.bf16.gmra.mrb[0].mxu0 %v2197
        %v2347 = vpop.f32.mrb[0].mxu0
        %v2348 = vadd.f32 0.0, %v2347
        %v2349 = vpop.f32.mrb[0].mxu0
        %v2350 = vpop.f32.mrb[0].mxu0
        %v2351 = vadd.f32 0.0, %v2350
        %v2352 = vpop.f32.mrb[0].mxu0
        %2353 = vmatprep.mubr.bf16.mxu0 0
        %2354 = vmatmul.mubr.bf16.gmra.mrb[0].mxu0 %v2200
        %v2355 = vpop.f32.mrb[0].mxu0
        %v2356 = vadd.f32 0.0, %v2355
        %v2357 = vpop.f32.mrb[0].mxu0
        %v2358 = vpop.f32.mrb[0].mxu0
        %v2359 = vadd.f32 0.0, %v2358
        %v2360 = vpop.f32.mrb[0].mxu0
        %2361 = vmatprep.mubr.bf16.mxu0 0
        %2362 = vmatmul.mubr.bf16.gmra.mrb[0].mxu0 %v2203
        %v2363 = vpop.f32.mrb[0].mxu0
        %v2364 = vadd.f32 0.0, %v2363
        %v2365 = vpop.f32.mrb[0].mxu0
        %v2366 = vpop.f32.mrb[0].mxu0
        %v2367 = vadd.f32 0.0, %v2366
        %v2368 = vpop.f32.mrb[0].mxu0
        %2369 = vmatprep.mubr.bf16.mxu0 0
        %2370 = vmatmul.mubr.bf16.gmra.mrb[0].mxu0 %v2206
        %v2371 = vpop.f32.mrb[0].mxu0
        %v2372 = vadd.f32 0.0, %v2371
        %v2373 = vpop.f32.mrb[0].mxu0
        %v2374 = vpop.f32.mrb[0].mxu0
        %v2375 = vadd.f32 0.0, %v2374
        %v2376 = vpop.f32.mrb[0].mxu0
        %2377 = vmatprep.mubr.bf16.mxu0 0
        %2378 = vmatmul.mubr.bf16.gmra.mrb[0].mxu0 %v2209
        %v2379 = vpop.f32.mrb[0].mxu0
        %v2380 = vadd.f32 0.0, %v2379
        %v2381 = vpop.f32.mrb[0].mxu0
        %v2382 = vpop.f32.mrb[0].mxu0
        %v2383 = vadd.f32 0.0, %v2382
        %v2384 = vpop.f32.mrb[0].mxu0
        %2385 = vmatprep.mubr.bf16.mxu0 0
        %2386 = vmatmul.mubr.bf16.gmra.mrb[0].mxu0 %v2212
        %v2387 = vpop.f32.mrb[0].mxu0
        %v2388 = vadd.f32 0.0, %v2387
        %v2389 = vpop.f32.mrb[0].mxu0
        %v2390 = vpop.f32.mrb[0].mxu0
        %v2391 = vadd.f32 0.0, %v2390
        %v2392 = vpop.f32.mrb[0].mxu0
        %2393 = vdwg.mxu0
        %v2394 = vadd.f32 %v2068, %v2252
        %v2395 = vadd.f32 %v2069, %v2255
        %v2396 = vadd.f32 %v2070, %v2260
        %v2397 = vadd.f32 %v2071, %v2263
        %v2398 = vadd.f32 %v2072, %v2268
        %v2399 = vadd.f32 %v2073, %v2271
        %v2400 = vadd.f32 %v2074, %v2276
        %v2401 = vadd.f32 %v2075, %v2279
        %v2402 = vadd.f32 %v2076, %v2284
        %v2403 = vadd.f32 %v2077, %v2287
        %v2404 = vadd.f32 %v2078, %v2292
        %v2405 = vadd.f32 %v2079, %v2295
        %v2406 = vadd.f32 %v2080, %v2300
        %v2407 = vadd.f32 %v2081, %v2303
        %v2408 = vadd.f32 %v2082, %v2308
        %v2409 = vadd.f32 %v2083, %v2311
        %v2410 = vadd.f32 %v2084, %v2316
        %v2411 = vadd.f32 %v2085, %v2319
        %v2412 = vadd.f32 %v2086, %v2324
        %v2413 = vadd.f32 %v2087, %v2327
        %v2414 = vadd.f32 %v2088, %v2332
        %v2415 = vadd.f32 %v2089, %v2335
        %v2416 = vadd.f32 %v2090, %v2340
        %v2417 = vadd.f32 %v2091, %v2343
        %v2418 = vadd.f32 %v2092, %v2348
        %v2419 = vadd.f32 %v2093, %v2351
        %v2420 = vadd.f32 %v2094, %v2356
        %v2421 = vadd.f32 %v2095, %v2359
        %v2422 = vadd.f32 %v2096, %v2364
        %v2423 = vadd.f32 %v2097, %v2367
        %v2424 = vadd.f32 %v2098, %v2372
        %v2425 = vadd.f32 %v2099, %v2375
        %v2426 = vadd.f32 %v2100, %v2380
        %v2427 = vadd.f32 %v2101, %v2383
        %v2428 = vadd.f32 %v2102, %v2388
        %v2429 = vadd.f32 %v2103, %v2391
        %v2430 = vld [vmem:[%s464 + $0x24] sm:$0xff]
        %v2431 = vld [vmem:[%s464 + $0x2c] sm:$0xff]
        %v2432 = vld [vmem:[%s464 + $0x34] sm:$0xff]
        %v2433 = vld [vmem:[%s464 + $0x3c] sm:$0xff]
        %v2434 = vld [vmem:[%s464 + $0x44] sm:$0xff]
        %v2435 = vld [vmem:[%s464 + $0x4c] sm:$0xff]
        %v2436 = vld [vmem:[%s464 + $0x54] sm:$0xff]
        %v2437 = vld [vmem:[%s464 + $0x5c] sm:$0xff]
        %v2438 = vld [vmem:[%s464 + $0x64] sm:$0xff]
        %v2439 = vld [vmem:[%s464 + $0x6c] sm:$0xff]
        %v2440 = vld [vmem:[%s464 + $0x74] sm:$0xff]
        %v2441 = vld [vmem:[%s464 + $0x7c] sm:$0xff]
        %v2442 = vld [vmem:[%s464 + $0x84] sm:$0xff]
        %v2443 = vld [vmem:[%s464 + $0x8c] sm:$0xff]
        %v2444 = vld [vmem:[%s464 + $0x94] sm:$0xff]
        %v2445 = vld [vmem:[%s464 + $0x9c] sm:$0xff]
        %v2446 = vld [vmem:[%s464 + $0xa4] sm:$0xff]
        %v2447 = vld [vmem:[%s464 + $0xac] sm:$0xff]
        %v2448 = vld [vmem:[%s464 + $0xb4] sm:$0xff]
        %v2449 = vld [vmem:[%s464 + $0xbc] sm:$0xff]
        %v2450 = vld [vmem:[%s464 + $0xc4] sm:$0xff]
        %v2451 = vld [vmem:[%s464 + $0xcc] sm:$0xff]
        %v2452 = vld [vmem:[%s464 + $0xd4] sm:$0xff]
        %v2453 = vld [vmem:[%s464 + $0xdc] sm:$0xff]
        %v2454 = vld [vmem:[%s464 + $0xe4] sm:$0xff]
        %v2455 = vld [vmem:[%s464 + $0xec] sm:$0xff]
        %v2456 = vld [vmem:[%s464 + $0xf4] sm:$0xff]
        %v2457 = vld [vmem:[%s464 + $0xfc] sm:$0xff]
        %v2458 = vld [vmem:[%s464 + $0x104] sm:$0xff]
        %v2459 = vld [vmem:[%s464 + $0x10c] sm:$0xff]
        %v2460 = vld [vmem:[%s464 + $0x114] sm:$0xff]
        %v2461 = vld [vmem:[%s464 + $0x11c] sm:$0xff]
        %v2462 = vld [vmem:[%s464 + $0x124] sm:$0xff]
        %v2463 = vld [vmem:[%s464 + $0x12c] sm:$0xff]
        %v2464 = vld [vmem:[%s464 + $0x134] sm:$0xff]
        %v2465 = vld [vmem:[%s464 + $0x13c] sm:$0xff]
        %v2466 = vpack.c.bf16 %v2431, %v2430
        %v2467 = vpack.c.bf16 %v2433, %v2432
        %v2468 = vpack.c.bf16 %v2435, %v2434
        %v2469 = vpack.c.bf16 %v2437, %v2436
        %v2470 = vpack.c.bf16 %v2439, %v2438
        %v2471 = vpack.c.bf16 %v2441, %v2440
        %v2472 = vpack.c.bf16 %v2443, %v2442
        %v2473 = vpack.c.bf16 %v2445, %v2444
        %v2474 = vpack.c.bf16 %v2447, %v2446
        %v2475 = vpack.c.bf16 %v2449, %v2448
        %v2476 = vpack.c.bf16 %v2451, %v2450
        %v2477 = vpack.c.bf16 %v2453, %v2452
        %v2478 = vpack.c.bf16 %v2455, %v2454
        %v2479 = vpack.c.bf16 %v2457, %v2456
        %v2480 = vpack.c.bf16 %v2459, %v2458
        %v2481 = vpack.c.bf16 %v2461, %v2460
        %v2482 = vpack.c.bf16 %v2463, %v2462
        %v2483 = vpack.c.bf16 %v2465, %v2464
        %s2484 = scalar_lea.vmem %s1, 12
        %v2485 = vld [vmem:[%s2484] sm:$0x3]
        %v2487 = vsel %vm522, %v2466, 0
        %v2490 = vsel %vm522, %v2467, 0
        %v2493 = vsel %vm522, %v2468, 0
        %v2496 = vsel %vm522, %v2469, 0
        %v2499 = vsel %vm522, %v2470, 0
        %v2502 = vsel %vm522, %v2471, 0
        %v2505 = vsel %vm522, %v2472, 0
        %v2508 = vsel %vm522, %v2473, 0
        %v2511 = vsel %vm522, %v2474, 0
        %v2514 = vsel %vm522, %v2475, 0
        %v2517 = vsel %vm522, %v2476, 0
        %v2520 = vsel %vm522, %v2477, 0
        %v2523 = vsel %vm522, %v2478, 0
        %v2526 = vsel %vm522, %v2479, 0
        %v2529 = vsel %vm522, %v2480, 0
        %v2532 = vsel %vm522, %v2481, 0
        %v2535 = vsel %vm522, %v2482, 0
        %v2538 = vsel %vm522, %v2483, 0
        %v2541 = vsel %vm577, %v2485, 0
        %2543 = vmatprep.subr.bf16.mxu0 0
        %2544 = vmatpush1.bf16.msra.mxu0 %v2541
        %2545 = vmatprep.subr.bf16.mxu0 0
        %2546 = vmatpush1.bf16.msra.mxu0 0
        %2547 = vmatprep.subr.bf16.mxu0 0
        %2548 = vmatpush1.bf16.msra.mxu0 0
        %2549 = vmatprep.subr.bf16.mxu0 0
        %2550 = vmatpush1.bf16.msra.mxu0 0
        %2551 = vmatprep.subr.bf16.mxu0 0
        %2552 = vmatpush1.bf16.msra.mxu0 0
        %2553 = vmatprep.subr.bf16.mxu0 0
        %2554 = vmatpush1.bf16.msra.mxu0 0
        %2555 = vmatprep.subr.bf16.mxu0 0
        %2556 = vmatpush1.bf16.msra.mxu0 0
        %2557 = vmatprep.subr.bf16.mxu0 0
        %2558 = vmatpush1.bf16.msra.mxu0 0
        %2559 = vmatprep.subr.bf16.mxu0 0
        %2560 = vmatpush1.bf16.msra.mxu0 0
        %2561 = vmatprep.subr.bf16.mxu0 0
        %2562 = vmatpush1.bf16.msra.mxu0 0
        %2563 = vmatprep.subr.bf16.mxu0 0
        %2564 = vmatpush1.bf16.msra.mxu0 0
        %2565 = vmatprep.subr.bf16.mxu0 0
        %2566 = vmatpush1.bf16.msra.mxu0 0
        %2567 = vmatprep.subr.bf16.mxu0 0
        %2568 = vmatpush1.bf16.msra.mxu0 0
        %2569 = vmatprep.subr.bf16.mxu0 0
        %2570 = vmatpush1.bf16.msra.mxu0 0
        %2571 = vmatprep.subr.bf16.mxu0 0
        %2572 = vmatpush1.bf16.msra.mxu0 0
        %2573 = vmatprep.subr.bf16.mxu0 0
        %2574 = vmatpush1.bf16.msra.mxu0 0
        %2575 = vmatprep.mubr.bf16.mxu0 0
        %2576 = vmatmul.mubr.bf16.gmra.mrb[0].mxu0 %v2487
        %v2577 = vpop.f32.mrb[0].mxu0
        %v2578 = vadd.f32 0.0, %v2577
        %v2579 = vpop.f32.mrb[0].mxu0
        %v2580 = vpop.f32.mrb[0].mxu0
        %v2581 = vadd.f32 0.0, %v2580
        %v2582 = vpop.f32.mrb[0].mxu0
        %2583 = vmatprep.mubr.bf16.mxu0 0
        %2584 = vmatmul.mubr.bf16.gmra.mrb[0].mxu0 %v2490
        %v2585 = vpop.f32.mrb[0].mxu0
        %v2586 = vadd.f32 0.0, %v2585
        %v2587 = vpop.f32.mrb[0].mxu0
        %v2588 = vpop.f32.mrb[0].mxu0
        %v2589 = vadd.f32 0.0, %v2588
        %v2590 = vpop.f32.mrb[0].mxu0
        %2591 = vmatprep.mubr.bf16.mxu0 0
        %2592 = vmatmul.mubr.bf16.gmra.mrb[0].mxu0 %v2493
        %v2593 = vpop.f32.mrb[0].mxu0
        %v2594 = vadd.f32 0.0, %v2593
        %v2595 = vpop.f32.mrb[0].mxu0
        %v2596 = vpop.f32.mrb[0].mxu0
        %v2597 = vadd.f32 0.0, %v2596
        %v2598 = vpop.f32.mrb[0].mxu0
        %2599 = vmatprep.mubr.bf16.mxu0 0
        %2600 = vmatmul.mubr.bf16.gmra.mrb[0].mxu0 %v2496
        %v2601 = vpop.f32.mrb[0].mxu0
        %v2602 = vadd.f32 0.0, %v2601
        %v2603 = vpop.f32.mrb[0].mxu0
        %v2604 = vpop.f32.mrb[0].mxu0
        %v2605 = vadd.f32 0.0, %v2604
        %v2606 = vpop.f32.mrb[0].mxu0
        %2607 = vmatprep.mubr.bf16.mxu0 0
        %2608 = vmatmul.mubr.bf16.gmra.mrb[0].mxu0 %v2499
        %v2609 = vpop.f32.mrb[0].mxu0
        %v2610 = vadd.f32 0.0, %v2609
        %v2611 = vpop.f32.mrb[0].mxu0
        %v2612 = vpop.f32.mrb[0].mxu0
        %v2613 = vadd.f32 0.0, %v2612
        %v2614 = vpop.f32.mrb[0].mxu0
        %2615 = vmatprep.mubr.bf16.mxu0 0
        %2616 = vmatmul.mubr.bf16.gmra.mrb[0].mxu0 %v2502
        %v2617 = vpop.f32.mrb[0].mxu0
        %v2618 = vadd.f32 0.0, %v2617
        %v2619 = vpop.f32.mrb[0].mxu0
        %v2620 = vpop.f32.mrb[0].mxu0
        %v2621 = vadd.f32 0.0, %v2620
        %v2622 = vpop.f32.mrb[0].mxu0
        %2623 = vmatprep.mubr.bf16.mxu0 0
        %2624 = vmatmul.mubr.bf16.gmra.mrb[0].mxu0 %v2505
        %v2625 = vpop.f32.mrb[0].mxu0
        %v2626 = vadd.f32 0.0, %v2625
        %v2627 = vpop.f32.mrb[0].mxu0
        %v2628 = vpop.f32.mrb[0].mxu0
        %v2629 = vadd.f32 0.0, %v2628
        %v2630 = vpop.f32.mrb[0].mxu0
        %2631 = vmatprep.mubr.bf16.mxu0 0
        %2632 = vmatmul.mubr.bf16.gmra.mrb[0].mxu0 %v2508
        %v2633 = vpop.f32.mrb[0].mxu0
        %v2634 = vadd.f32 0.0, %v2633
        %v2635 = vpop.f32.mrb[0].mxu0
        %v2636 = vpop.f32.mrb[0].mxu0
        %v2637 = vadd.f32 0.0, %v2636
        %v2638 = vpop.f32.mrb[0].mxu0
        %2639 = vmatprep.mubr.bf16.mxu0 0
        %2640 = vmatmul.mubr.bf16.gmra.mrb[0].mxu0 %v2511
        %v2641 = vpop.f32.mrb[0].mxu0
        %v2642 = vadd.f32 0.0, %v2641
        %v2643 = vpop.f32.mrb[0].mxu0
        %v2644 = vpop.f32.mrb[0].mxu0
        %v2645 = vadd.f32 0.0, %v2644
        %v2646 = vpop.f32.mrb[0].mxu0
        %2647 = vmatprep.mubr.bf16.mxu0 0
        %2648 = vmatmul.mubr.bf16.gmra.mrb[0].mxu0 %v2514
        %v2649 = vpop.f32.mrb[0].mxu0
        %v2650 = vadd.f32 0.0, %v2649
        %v2651 = vpop.f32.mrb[0].mxu0
        %v2652 = vpop.f32.mrb[0].mxu0
        %v2653 = vadd.f32 0.0, %v2652
        %v2654 = vpop.f32.mrb[0].mxu0
        %2655 = vmatprep.mubr.bf16.mxu0 0
        %2656 = vmatmul.mubr.bf16.gmra.mrb[0].mxu0 %v2517
        %v2657 = vpop.f32.mrb[0].mxu0
        %v2658 = vadd.f32 0.0, %v2657
        %v2659 = vpop.f32.mrb[0].mxu0
        %v2660 = vpop.f32.mrb[0].mxu0
        %v2661 = vadd.f32 0.0, %v2660
        %v2662 = vpop.f32.mrb[0].mxu0
        %2663 = vmatprep.mubr.bf16.mxu0 0
        %2664 = vmatmul.mubr.bf16.gmra.mrb[0].mxu0 %v2520
        %v2665 = vpop.f32.mrb[0].mxu0
        %v2666 = vadd.f32 0.0, %v2665
        %v2667 = vpop.f32.mrb[0].mxu0
        %v2668 = vpop.f32.mrb[0].mxu0
        %v2669 = vadd.f32 0.0, %v2668
        %v2670 = vpop.f32.mrb[0].mxu0
        %2671 = vmatprep.mubr.bf16.mxu0 0
        %2672 = vmatmul.mubr.bf16.gmra.mrb[0].mxu0 %v2523
        %v2673 = vpop.f32.mrb[0].mxu0
        %v2674 = vadd.f32 0.0, %v2673
        %v2675 = vpop.f32.mrb[0].mxu0
        %v2676 = vpop.f32.mrb[0].mxu0
        %v2677 = vadd.f32 0.0, %v2676
        %v2678 = vpop.f32.mrb[0].mxu0
        %2679 = vmatprep.mubr.bf16.mxu0 0
        %2680 = vmatmul.mubr.bf16.gmra.mrb[0].mxu0 %v2526
        %v2681 = vpop.f32.mrb[0].mxu0
        %v2682 = vadd.f32 0.0, %v2681
        %v2683 = vpop.f32.mrb[0].mxu0
        %v2684 = vpop.f32.mrb[0].mxu0
        %v2685 = vadd.f32 0.0, %v2684
        %v2686 = vpop.f32.mrb[0].mxu0
        %2687 = vmatprep.mubr.bf16.mxu0 0
        %2688 = vmatmul.mubr.bf16.gmra.mrb[0].mxu0 %v2529
        %v2689 = vpop.f32.mrb[0].mxu0
        %v2690 = vadd.f32 0.0, %v2689
        %v2691 = vpop.f32.mrb[0].mxu0
        %v2692 = vpop.f32.mrb[0].mxu0
        %v2693 = vadd.f32 0.0, %v2692
        %v2694 = vpop.f32.mrb[0].mxu0
        %2695 = vmatprep.mubr.bf16.mxu0 0
        %2696 = vmatmul.mubr.bf16.gmra.mrb[0].mxu0 %v2532
        %v2697 = vpop.f32.mrb[0].mxu0
        %v2698 = vadd.f32 0.0, %v2697
        %v2699 = vpop.f32.mrb[0].mxu0
        %v2700 = vpop.f32.mrb[0].mxu0
        %v2701 = vadd.f32 0.0, %v2700
        %v2702 = vpop.f32.mrb[0].mxu0
        %2703 = vmatprep.mubr.bf16.mxu0 0
        %2704 = vmatmul.mubr.bf16.gmra.mrb[0].mxu0 %v2535
        %v2705 = vpop.f32.mrb[0].mxu0
        %v2706 = vadd.f32 0.0, %v2705
        %v2707 = vpop.f32.mrb[0].mxu0
        %v2708 = vpop.f32.mrb[0].mxu0
        %v2709 = vadd.f32 0.0, %v2708
        %v2710 = vpop.f32.mrb[0].mxu0
        %2711 = vmatprep.mubr.bf16.mxu0 0
        %2712 = vmatmul.mubr.bf16.gmra.mrb[0].mxu0 %v2538
        %v2713 = vpop.f32.mrb[0].mxu0
        %v2714 = vadd.f32 0.0, %v2713
        %v2715 = vpop.f32.mrb[0].mxu0
        %v2716 = vpop.f32.mrb[0].mxu0
        %v2717 = vadd.f32 0.0, %v2716
        %v2718 = vpop.f32.mrb[0].mxu0
        %2719 = vdwg.mxu0
        %v2720 = vadd.f32 %v2394, %v2578
        %v2721 = vadd.f32 %v2395, %v2581
        %v2722 = vadd.f32 %v2396, %v2586
        %v2723 = vadd.f32 %v2397, %v2589
        %v2724 = vadd.f32 %v2398, %v2594
        %v2725 = vadd.f32 %v2399, %v2597
        %v2726 = vadd.f32 %v2400, %v2602
        %v2727 = vadd.f32 %v2401, %v2605
        %v2728 = vadd.f32 %v2402, %v2610
        %v2729 = vadd.f32 %v2403, %v2613
        %v2730 = vadd.f32 %v2404, %v2618
        %v2731 = vadd.f32 %v2405, %v2621
        %v2732 = vadd.f32 %v2406, %v2626
        %v2733 = vadd.f32 %v2407, %v2629
        %v2734 = vadd.f32 %v2408, %v2634
        %v2735 = vadd.f32 %v2409, %v2637
        %v2736 = vadd.f32 %v2410, %v2642
        %v2737 = vadd.f32 %v2411, %v2645
        %v2738 = vadd.f32 %v2412, %v2650
        %v2739 = vadd.f32 %v2413, %v2653
        %v2740 = vadd.f32 %v2414, %v2658
        %v2741 = vadd.f32 %v2415, %v2661
        %v2742 = vadd.f32 %v2416, %v2666
        %v2743 = vadd.f32 %v2417, %v2669
        %v2744 = vadd.f32 %v2418, %v2674
        %v2745 = vadd.f32 %v2419, %v2677
        %v2746 = vadd.f32 %v2420, %v2682
        %v2747 = vadd.f32 %v2421, %v2685
        %v2748 = vadd.f32 %v2422, %v2690
        %v2749 = vadd.f32 %v2423, %v2693
        %v2750 = vadd.f32 %v2424, %v2698
        %v2751 = vadd.f32 %v2425, %v2701
        %v2752 = vadd.f32 %v2426, %v2706
        %v2753 = vadd.f32 %v2427, %v2709
        %v2754 = vadd.f32 %v2428, %v2714
        %v2755 = vadd.f32 %v2429, %v2717
        %v2756 = vld [vmem:[%s464 + $0x25] sm:$0xff]
        %v2757 = vld [vmem:[%s464 + $0x2d] sm:$0xff]
        %v2758 = vld [vmem:[%s464 + $0x35] sm:$0xff]
        %v2759 = vld [vmem:[%s464 + $0x3d] sm:$0xff]
        %v2760 = vld [vmem:[%s464 + $0x45] sm:$0xff]
        %v2761 = vld [vmem:[%s464 + $0x4d] sm:$0xff]
        %v2762 = vld [vmem:[%s464 + $0x55] sm:$0xff]
        %v2763 = vld [vmem:[%s464 + $0x5d] sm:$0xff]
        %v2764 = vld [vmem:[%s464 + $0x65] sm:$0xff]
        %v2765 = vld [vmem:[%s464 + $0x6d] sm:$0xff]
        %v2766 = vld [vmem:[%s464 + $0x75] sm:$0xff]
        %v2767 = vld [vmem:[%s464 + $0x7d] sm:$0xff]
        %v2768 = vld [vmem:[%s464 + $0x85] sm:$0xff]
        %v2769 = vld [vmem:[%s464 + $0x8d] sm:$0xff]
        %v2770 = vld [vmem:[%s464 + $0x95] sm:$0xff]
        %v2771 = vld [vmem:[%s464 + $0x9d] sm:$0xff]
        %v2772 = vld [vmem:[%s464 + $0xa5] sm:$0xff]
        %v2773 = vld [vmem:[%s464 + $0xad] sm:$0xff]
        %v2774 = vld [vmem:[%s464 + $0xb5] sm:$0xff]
        %v2775 = vld [vmem:[%s464 + $0xbd] sm:$0xff]
        %v2776 = vld [vmem:[%s464 + $0xc5] sm:$0xff]
        %v2777 = vld [vmem:[%s464 + $0xcd] sm:$0xff]
        %v2778 = vld [vmem:[%s464 + $0xd5] sm:$0xff]
        %v2779 = vld [vmem:[%s464 + $0xdd] sm:$0xff]
        %v2780 = vld [vmem:[%s464 + $0xe5] sm:$0xff]
        %v2781 = vld [vmem:[%s464 + $0xed] sm:$0xff]
        %v2782 = vld [vmem:[%s464 + $0xf5] sm:$0xff]
        %v2783 = vld [vmem:[%s464 + $0xfd] sm:$0xff]
        %v2784 = vld [vmem:[%s464 + $0x105] sm:$0xff]
        %v2785 = vld [vmem:[%s464 + $0x10d] sm:$0xff]
        %v2786 = vld [vmem:[%s464 + $0x115] sm:$0xff]
        %v2787 = vld [vmem:[%s464 + $0x11d] sm:$0xff]
        %v2788 = vld [vmem:[%s464 + $0x125] sm:$0xff]
        %v2789 = vld [vmem:[%s464 + $0x12d] sm:$0xff]
        %v2790 = vld [vmem:[%s464 + $0x135] sm:$0xff]
        %v2791 = vld [vmem:[%s464 + $0x13d] sm:$0xff]
        %v2792 = vpack.c.bf16 %v2757, %v2756
        %v2793 = vpack.c.bf16 %v2759, %v2758
        %v2794 = vpack.c.bf16 %v2761, %v2760
        %v2795 = vpack.c.bf16 %v2763, %v2762
        %v2796 = vpack.c.bf16 %v2765, %v2764
        %v2797 = vpack.c.bf16 %v2767, %v2766
        %v2798 = vpack.c.bf16 %v2769, %v2768
        %v2799 = vpack.c.bf16 %v2771, %v2770
        %v2800 = vpack.c.bf16 %v2773, %v2772
        %v2801 = vpack.c.bf16 %v2775, %v2774
        %v2802 = vpack.c.bf16 %v2777, %v2776
        %v2803 = vpack.c.bf16 %v2779, %v2778
        %v2804 = vpack.c.bf16 %v2781, %v2780
        %v2805 = vpack.c.bf16 %v2783, %v2782
        %v2806 = vpack.c.bf16 %v2785, %v2784
        %v2807 = vpack.c.bf16 %v2787, %v2786
        %v2808 = vpack.c.bf16 %v2789, %v2788
        %v2809 = vpack.c.bf16 %v2791, %v2790
        %s2810 = scalar_lea.vmem %s1, 14
        %v2811 = vld [vmem:[%s2810] sm:$0x3]
        %v2813 = vsel %vm522, %v2792, 0
        %v2816 = vsel %vm522, %v2793, 0
        %v2819 = vsel %vm522, %v2794, 0
        %v2822 = vsel %vm522, %v2795, 0
        %v2825 = vsel %vm522, %v2796, 0
        %v2828 = vsel %vm522, %v2797, 0
        %v2831 = vsel %vm522, %v2798, 0
        %v2834 = vsel %vm522, %v2799, 0
        %v2837 = vsel %vm522, %v2800, 0
        %v2840 = vsel %vm522, %v2801, 0
        %v2843 = vsel %vm522, %v2802, 0
        %v2846 = vsel %vm522, %v2803, 0
        %v2849 = vsel %vm522, %v2804, 0
        %v2852 = vsel %vm522, %v2805, 0
        %v2855 = vsel %vm522, %v2806, 0
        %v2858 = vsel %vm522, %v2807, 0
        %v2861 = vsel %vm522, %v2808, 0
        %v2864 = vsel %vm522, %v2809, 0
        %v2867 = vsel %vm577, %v2811, 0
        %2869 = vmatprep.subr.bf16.mxu0 0
        %2870 = vmatpush1.bf16.msra.mxu0 %v2867
        %2871 = vmatprep.subr.bf16.mxu0 0
        %2872 = vmatpush1.bf16.msra.mxu0 0
        %2873 = vmatprep.subr.bf16.mxu0 0
        %2874 = vmatpush1.bf16.msra.mxu0 0
        %2875 = vmatprep.subr.bf16.mxu0 0
        %2876 = vmatpush1.bf16.msra.mxu0 0
        %2877 = vmatprep.subr.bf16.mxu0 0
        %2878 = vmatpush1.bf16.msra.mxu0 0
        %2879 = vmatprep.subr.bf16.mxu0 0
        %2880 = vmatpush1.bf16.msra.mxu0 0
        %2881 = vmatprep.subr.bf16.mxu0 0
        %2882 = vmatpush1.bf16.msra.mxu0 0
        %2883 = vmatprep.subr.bf16.mxu0 0
        %2884 = vmatpush1.bf16.msra.mxu0 0
        %2885 = vmatprep.subr.bf16.mxu0 0
        %2886 = vmatpush1.bf16.msra.mxu0 0
        %2887 = vmatprep.subr.bf16.mxu0 0
        %2888 = vmatpush1.bf16.msra.mxu0 0
        %2889 = vmatprep.subr.bf16.mxu0 0
        %2890 = vmatpush1.bf16.msra.mxu0 0
        %2891 = vmatprep.subr.bf16.mxu0 0
        %2892 = vmatpush1.bf16.msra.mxu0 0
        %2893 = vmatprep.subr.bf16.mxu0 0
        %2894 = vmatpush1.bf16.msra.mxu0 0
        %2895 = vmatprep.subr.bf16.mxu0 0
        %2896 = vmatpush1.bf16.msra.mxu0 0
        %2897 = vmatprep.subr.bf16.mxu0 0
        %2898 = vmatpush1.bf16.msra.mxu0 0
        %2899 = vmatprep.subr.bf16.mxu0 0
        %2900 = vmatpush1.bf16.msra.mxu0 0
        %2901 = vmatprep.mubr.bf16.mxu0 0
        %2902 = vmatmul.mubr.bf16.gmra.mrb[0].mxu0 %v2813
        %v2903 = vpop.f32.mrb[0].mxu0
        %v2904 = vadd.f32 0.0, %v2903
        %v2905 = vpop.f32.mrb[0].mxu0
        %v2906 = vpop.f32.mrb[0].mxu0
        %v2907 = vadd.f32 0.0, %v2906
        %v2908 = vpop.f32.mrb[0].mxu0
        %2909 = vmatprep.mubr.bf16.mxu0 0
        %2910 = vmatmul.mubr.bf16.gmra.mrb[0].mxu0 %v2816
        %v2911 = vpop.f32.mrb[0].mxu0
        %v2912 = vadd.f32 0.0, %v2911
        %v2913 = vpop.f32.mrb[0].mxu0
        %v2914 = vpop.f32.mrb[0].mxu0
        %v2915 = vadd.f32 0.0, %v2914
        %v2916 = vpop.f32.mrb[0].mxu0
        %2917 = vmatprep.mubr.bf16.mxu0 0
        %2918 = vmatmul.mubr.bf16.gmra.mrb[0].mxu0 %v2819
        %v2919 = vpop.f32.mrb[0].mxu0
        %v2920 = vadd.f32 0.0, %v2919
        %v2921 = vpop.f32.mrb[0].mxu0
        %v2922 = vpop.f32.mrb[0].mxu0
        %v2923 = vadd.f32 0.0, %v2922
        %v2924 = vpop.f32.mrb[0].mxu0
        %2925 = vmatprep.mubr.bf16.mxu0 0
        %2926 = vmatmul.mubr.bf16.gmra.mrb[0].mxu0 %v2822
        %v2927 = vpop.f32.mrb[0].mxu0
        %v2928 = vadd.f32 0.0, %v2927
        %v2929 = vpop.f32.mrb[0].mxu0
        %v2930 = vpop.f32.mrb[0].mxu0
        %v2931 = vadd.f32 0.0, %v2930
        %v2932 = vpop.f32.mrb[0].mxu0
        %2933 = vmatprep.mubr.bf16.mxu0 0
        %2934 = vmatmul.mubr.bf16.gmra.mrb[0].mxu0 %v2825
        %v2935 = vpop.f32.mrb[0].mxu0
        %v2936 = vadd.f32 0.0, %v2935
        %v2937 = vpop.f32.mrb[0].mxu0
        %v2938 = vpop.f32.mrb[0].mxu0
        %v2939 = vadd.f32 0.0, %v2938
        %v2940 = vpop.f32.mrb[0].mxu0
        %2941 = vmatprep.mubr.bf16.mxu0 0
        %2942 = vmatmul.mubr.bf16.gmra.mrb[0].mxu0 %v2828
        %v2943 = vpop.f32.mrb[0].mxu0
        %v2944 = vadd.f32 0.0, %v2943
        %v2945 = vpop.f32.mrb[0].mxu0
        %v2946 = vpop.f32.mrb[0].mxu0
        %v2947 = vadd.f32 0.0, %v2946
        %v2948 = vpop.f32.mrb[0].mxu0
        %2949 = vmatprep.mubr.bf16.mxu0 0
        %2950 = vmatmul.mubr.bf16.gmra.mrb[0].mxu0 %v2831
        %v2951 = vpop.f32.mrb[0].mxu0
        %v2952 = vadd.f32 0.0, %v2951
        %v2953 = vpop.f32.mrb[0].mxu0
        %v2954 = vpop.f32.mrb[0].mxu0
        %v2955 = vadd.f32 0.0, %v2954
        %v2956 = vpop.f32.mrb[0].mxu0
        %2957 = vmatprep.mubr.bf16.mxu0 0
        %2958 = vmatmul.mubr.bf16.gmra.mrb[0].mxu0 %v2834
        %v2959 = vpop.f32.mrb[0].mxu0
        %v2960 = vadd.f32 0.0, %v2959
        %v2961 = vpop.f32.mrb[0].mxu0
        %v2962 = vpop.f32.mrb[0].mxu0
        %v2963 = vadd.f32 0.0, %v2962
        %v2964 = vpop.f32.mrb[0].mxu0
        %2965 = vmatprep.mubr.bf16.mxu0 0
        %2966 = vmatmul.mubr.bf16.gmra.mrb[0].mxu0 %v2837
        %v2967 = vpop.f32.mrb[0].mxu0
        %v2968 = vadd.f32 0.0, %v2967
        %v2969 = vpop.f32.mrb[0].mxu0
        %v2970 = vpop.f32.mrb[0].mxu0
        %v2971 = vadd.f32 0.0, %v2970
        %v2972 = vpop.f32.mrb[0].mxu0
        %2973 = vmatprep.mubr.bf16.mxu0 0
        %2974 = vmatmul.mubr.bf16.gmra.mrb[0].mxu0 %v2840
        %v2975 = vpop.f32.mrb[0].mxu0
        %v2976 = vadd.f32 0.0, %v2975
        %v2977 = vpop.f32.mrb[0].mxu0
        %v2978 = vpop.f32.mrb[0].mxu0
        %v2979 = vadd.f32 0.0, %v2978
        %v2980 = vpop.f32.mrb[0].mxu0
        %2981 = vmatprep.mubr.bf16.mxu0 0
        %2982 = vmatmul.mubr.bf16.gmra.mrb[0].mxu0 %v2843
        %v2983 = vpop.f32.mrb[0].mxu0
        %v2984 = vadd.f32 0.0, %v2983
        %v2985 = vpop.f32.mrb[0].mxu0
        %v2986 = vpop.f32.mrb[0].mxu0
        %v2987 = vadd.f32 0.0, %v2986
        %v2988 = vpop.f32.mrb[0].mxu0
        %2989 = vmatprep.mubr.bf16.mxu0 0
        %2990 = vmatmul.mubr.bf16.gmra.mrb[0].mxu0 %v2846
        %v2991 = vpop.f32.mrb[0].mxu0
        %v2992 = vadd.f32 0.0, %v2991
        %v2993 = vpop.f32.mrb[0].mxu0
        %v2994 = vpop.f32.mrb[0].mxu0
        %v2995 = vadd.f32 0.0, %v2994
        %v2996 = vpop.f32.mrb[0].mxu0
        %2997 = vmatprep.mubr.bf16.mxu0 0
        %2998 = vmatmul.mubr.bf16.gmra.mrb[0].mxu0 %v2849
        %v2999 = vpop.f32.mrb[0].mxu0
        %v3000 = vadd.f32 0.0, %v2999
        %v3001 = vpop.f32.mrb[0].mxu0
        %v3002 = vpop.f32.mrb[0].mxu0
        %v3003 = vadd.f32 0.0, %v3002
        %v3004 = vpop.f32.mrb[0].mxu0
        %3005 = vmatprep.mubr.bf16.mxu0 0
        %3006 = vmatmul.mubr.bf16.gmra.mrb[0].mxu0 %v2852
        %v3007 = vpop.f32.mrb[0].mxu0
        %v3008 = vadd.f32 0.0, %v3007
        %v3009 = vpop.f32.mrb[0].mxu0
        %v3010 = vpop.f32.mrb[0].mxu0
        %v3011 = vadd.f32 0.0, %v3010
        %v3012 = vpop.f32.mrb[0].mxu0
        %3013 = vmatprep.mubr.bf16.mxu0 0
        %3014 = vmatmul.mubr.bf16.gmra.mrb[0].mxu0 %v2855
        %v3015 = vpop.f32.mrb[0].mxu0
        %v3016 = vadd.f32 0.0, %v3015
        %v3017 = vpop.f32.mrb[0].mxu0
        %v3018 = vpop.f32.mrb[0].mxu0
        %v3019 = vadd.f32 0.0, %v3018
        %v3020 = vpop.f32.mrb[0].mxu0
        %3021 = vmatprep.mubr.bf16.mxu0 0
        %3022 = vmatmul.mubr.bf16.gmra.mrb[0].mxu0 %v2858
        %v3023 = vpop.f32.mrb[0].mxu0
        %v3024 = vadd.f32 0.0, %v3023
        %v3025 = vpop.f32.mrb[0].mxu0
        %v3026 = vpop.f32.mrb[0].mxu0
        %v3027 = vadd.f32 0.0, %v3026
        %v3028 = vpop.f32.mrb[0].mxu0
        %3029 = vmatprep.mubr.bf16.mxu0 0
        %3030 = vmatmul.mubr.bf16.gmra.mrb[0].mxu0 %v2861
        %v3031 = vpop.f32.mrb[0].mxu0
        %v3032 = vadd.f32 0.0, %v3031
        %v3033 = vpop.f32.mrb[0].mxu0
        %v3034 = vpop.f32.mrb[0].mxu0
        %v3035 = vadd.f32 0.0, %v3034
        %v3036 = vpop.f32.mrb[0].mxu0
        %3037 = vmatprep.mubr.bf16.mxu0 0
        %3038 = vmatmul.mubr.bf16.gmra.mrb[0].mxu0 %v2864
        %v3039 = vpop.f32.mrb[0].mxu0
        %v3040 = vadd.f32 0.0, %v3039
        %v3041 = vpop.f32.mrb[0].mxu0
        %v3042 = vpop.f32.mrb[0].mxu0
        %v3043 = vadd.f32 0.0, %v3042
        %v3044 = vpop.f32.mrb[0].mxu0
        %3045 = vdwg.mxu0
        %v3046 = vadd.f32 %v2720, %v2904
        %v3047 = vadd.f32 %v2721, %v2907
        %v3048 = vadd.f32 %v2722, %v2912
        %v3049 = vadd.f32 %v2723, %v2915
        %v3050 = vadd.f32 %v2724, %v2920
        %v3051 = vadd.f32 %v2725, %v2923
        %v3052 = vadd.f32 %v2726, %v2928
        %v3053 = vadd.f32 %v2727, %v2931
        %v3054 = vadd.f32 %v2728, %v2936
        %v3055 = vadd.f32 %v2729, %v2939
        %v3056 = vadd.f32 %v2730, %v2944
        %v3057 = vadd.f32 %v2731, %v2947
        %v3058 = vadd.f32 %v2732, %v2952
        %v3059 = vadd.f32 %v2733, %v2955
        %v3060 = vadd.f32 %v2734, %v2960
        %v3061 = vadd.f32 %v2735, %v2963
        %v3062 = vadd.f32 %v2736, %v2968
        %v3063 = vadd.f32 %v2737, %v2971
        %v3064 = vadd.f32 %v2738, %v2976
        %v3065 = vadd.f32 %v2739, %v2979
        %v3066 = vadd.f32 %v2740, %v2984
        %v3067 = vadd.f32 %v2741, %v2987
        %v3068 = vadd.f32 %v2742, %v2992
        %v3069 = vadd.f32 %v2743, %v2995
        %v3070 = vadd.f32 %v2744, %v3000
        %v3071 = vadd.f32 %v2745, %v3003
        %v3072 = vadd.f32 %v2746, %v3008
        %v3073 = vadd.f32 %v2747, %v3011
        %v3074 = vadd.f32 %v2748, %v3016
        %v3075 = vadd.f32 %v2749, %v3019
        %v3076 = vadd.f32 %v2750, %v3024
        %v3077 = vadd.f32 %v2751, %v3027
        %v3078 = vadd.f32 %v2752, %v3032
        %v3079 = vadd.f32 %v2753, %v3035
        %v3080 = vadd.f32 %v2754, %v3040
        %v3081 = vadd.f32 %v2755, %v3043
        %v3082 = vld [vmem:[%s464 + $0x26] sm:$0xff]
        %v3083 = vld [vmem:[%s464 + $0x2e] sm:$0xff]
        %v3084 = vld [vmem:[%s464 + $0x36] sm:$0xff]
        %v3085 = vld [vmem:[%s464 + $0x3e] sm:$0xff]
        %v3086 = vld [vmem:[%s464 + $0x46] sm:$0xff]
        %v3087 = vld [vmem:[%s464 + $0x4e] sm:$0xff]
        %v3088 = vld [vmem:[%s464 + $0x56] sm:$0xff]
        %v3089 = vld [vmem:[%s464 + $0x5e] sm:$0xff]
        %v3090 = vld [vmem:[%s464 + $0x66] sm:$0xff]
        %v3091 = vld [vmem:[%s464 + $0x6e] sm:$0xff]
        %v3092 = vld [vmem:[%s464 + $0x76] sm:$0xff]
        %v3093 = vld [vmem:[%s464 + $0x7e] sm:$0xff]
        %v3094 = vld [vmem:[%s464 + $0x86] sm:$0xff]
        %v3095 = vld [vmem:[%s464 + $0x8e] sm:$0xff]
        %v3096 = vld [vmem:[%s464 + $0x96] sm:$0xff]
        %v3097 = vld [vmem:[%s464 + $0x9e] sm:$0xff]
        %v3098 = vld [vmem:[%s464 + $0xa6] sm:$0xff]
        %v3099 = vld [vmem:[%s464 + $0xae] sm:$0xff]
        %v3100 = vld [vmem:[%s464 + $0xb6] sm:$0xff]
        %v3101 = vld [vmem:[%s464 + $0xbe] sm:$0xff]
        %v3102 = vld [vmem:[%s464 + $0xc6] sm:$0xff]
        %v3103 = vld [vmem:[%s464 + $0xce] sm:$0xff]
        %v3104 = vld [vmem:[%s464 + $0xd6] sm:$0xff]
        %v3105 = vld [vmem:[%s464 + $0xde] sm:$0xff]
        %v3106 = vld [vmem:[%s464 + $0xe6] sm:$0xff]
        %v3107 = vld [vmem:[%s464 + $0xee] sm:$0xff]
        %v3108 = vld [vmem:[%s464 + $0xf6] sm:$0xff]
        %v3109 = vld [vmem:[%s464 + $0xfe] sm:$0xff]
        %v3110 = vld [vmem:[%s464 + $0x106] sm:$0xff]
        %v3111 = vld [vmem:[%s464 + $0x10e] sm:$0xff]
        %v3112 = vld [vmem:[%s464 + $0x116] sm:$0xff]
        %v3113 = vld [vmem:[%s464 + $0x11e] sm:$0xff]
        %v3114 = vld [vmem:[%s464 + $0x126] sm:$0xff]
        %v3115 = vld [vmem:[%s464 + $0x12e] sm:$0xff]
        %v3116 = vld [vmem:[%s464 + $0x136] sm:$0xff]
        %v3117 = vld [vmem:[%s464 + $0x13e] sm:$0xff]
        %v3118 = vpack.c.bf16 %v3083, %v3082
        %v3119 = vpack.c.bf16 %v3085, %v3084
        %v3120 = vpack.c.bf16 %v3087, %v3086
        %v3121 = vpack.c.bf16 %v3089, %v3088
        %v3122 = vpack.c.bf16 %v3091, %v3090
        %v3123 = vpack.c.bf16 %v3093, %v3092
        %v3124 = vpack.c.bf16 %v3095, %v3094
        %v3125 = vpack.c.bf16 %v3097, %v3096
        %v3126 = vpack.c.bf16 %v3099, %v3098
        %v3127 = vpack.c.bf16 %v3101, %v3100
        %v3128 = vpack.c.bf16 %v3103, %v3102
        %v3129 = vpack.c.bf16 %v3105, %v3104
        %v3130 = vpack.c.bf16 %v3107, %v3106
        %v3131 = vpack.c.bf16 %v3109, %v3108
        %v3132 = vpack.c.bf16 %v3111, %v3110
        %v3133 = vpack.c.bf16 %v3113, %v3112
        %v3134 = vpack.c.bf16 %v3115, %v3114
        %v3135 = vpack.c.bf16 %v3117, %v3116
        %s3136 = scalar_lea.vmem %s1, 16
        %v3137 = vld [vmem:[%s3136] sm:$0x3]
        %v3139 = vsel %vm522, %v3118, 0
        %v3142 = vsel %vm522, %v3119, 0
        %v3145 = vsel %vm522, %v3120, 0
        %v3148 = vsel %vm522, %v3121, 0
        %v3151 = vsel %vm522, %v3122, 0
        %v3154 = vsel %vm522, %v3123, 0
        %v3157 = vsel %vm522, %v3124, 0
        %v3160 = vsel %vm522, %v3125, 0
        %v3163 = vsel %vm522, %v3126, 0
        %v3166 = vsel %vm522, %v3127, 0
        %v3169 = vsel %vm522, %v3128, 0
        %v3172 = vsel %vm522, %v3129, 0
        %v3175 = vsel %vm522, %v3130, 0
        %v3178 = vsel %vm522, %v3131, 0
        %v3181 = vsel %vm522, %v3132, 0
        %v3184 = vsel %vm522, %v3133, 0
        %v3187 = vsel %vm522, %v3134, 0
        %v3190 = vsel %vm522, %v3135, 0
        %v3193 = vsel %vm577, %v3137, 0
        %3195 = vmatprep.subr.bf16.mxu0 0
        %3196 = vmatpush1.bf16.msra.mxu0 %v3193
        %3197 = vmatprep.subr.bf16.mxu0 0
        %3198 = vmatpush1.bf16.msra.mxu0 0
        %3199 = vmatprep.subr.bf16.mxu0 0
        %3200 = vmatpush1.bf16.msra.mxu0 0
        %3201 = vmatprep.subr.bf16.mxu0 0
        %3202 = vmatpush1.bf16.msra.mxu0 0
        %3203 = vmatprep.subr.bf16.mxu0 0
        %3204 = vmatpush1.bf16.msra.mxu0 0
        %3205 = vmatprep.subr.bf16.mxu0 0
        %3206 = vmatpush1.bf16.msra.mxu0 0
        %3207 = vmatprep.subr.bf16.mxu0 0
        %3208 = vmatpush1.bf16.msra.mxu0 0
        %3209 = vmatprep.subr.bf16.mxu0 0
        %3210 = vmatpush1.bf16.msra.mxu0 0
        %3211 = vmatprep.subr.bf16.mxu0 0
        %3212 = vmatpush1.bf16.msra.mxu0 0
        %3213 = vmatprep.subr.bf16.mxu0 0
        %3214 = vmatpush1.bf16.msra.mxu0 0
        %3215 = vmatprep.subr.bf16.mxu0 0
        %3216 = vmatpush1.bf16.msra.mxu0 0
        %3217 = vmatprep.subr.bf16.mxu0 0
        %3218 = vmatpush1.bf16.msra.mxu0 0
        %3219 = vmatprep.subr.bf16.mxu0 0
        %3220 = vmatpush1.bf16.msra.mxu0 0
        %3221 = vmatprep.subr.bf16.mxu0 0
        %3222 = vmatpush1.bf16.msra.mxu0 0
        %3223 = vmatprep.subr.bf16.mxu0 0
        %3224 = vmatpush1.bf16.msra.mxu0 0
        %3225 = vmatprep.subr.bf16.mxu0 0
        %3226 = vmatpush1.bf16.msra.mxu0 0
        %3227 = vmatprep.mubr.bf16.mxu0 0
        %3228 = vmatmul.mubr.bf16.gmra.mrb[0].mxu0 %v3139
        %v3229 = vpop.f32.mrb[0].mxu0
        %v3230 = vadd.f32 0.0, %v3229
        %v3231 = vpop.f32.mrb[0].mxu0
        %v3232 = vpop.f32.mrb[0].mxu0
        %v3233 = vadd.f32 0.0, %v3232
        %v3234 = vpop.f32.mrb[0].mxu0
        %3235 = vmatprep.mubr.bf16.mxu0 0
        %3236 = vmatmul.mubr.bf16.gmra.mrb[0].mxu0 %v3142
        %v3237 = vpop.f32.mrb[0].mxu0
        %v3238 = vadd.f32 0.0, %v3237
        %v3239 = vpop.f32.mrb[0].mxu0
        %v3240 = vpop.f32.mrb[0].mxu0
        %v3241 = vadd.f32 0.0, %v3240
        %v3242 = vpop.f32.mrb[0].mxu0
        %3243 = vmatprep.mubr.bf16.mxu0 0
        %3244 = vmatmul.mubr.bf16.gmra.mrb[0].mxu0 %v3145
        %v3245 = vpop.f32.mrb[0].mxu0
        %v3246 = vadd.f32 0.0, %v3245
        %v3247 = vpop.f32.mrb[0].mxu0
        %v3248 = vpop.f32.mrb[0].mxu0
        %v3249 = vadd.f32 0.0, %v3248
        %v3250 = vpop.f32.mrb[0].mxu0
        %3251 = vmatprep.mubr.bf16.mxu0 0
        %3252 = vmatmul.mubr.bf16.gmra.mrb[0].mxu0 %v3148
        %v3253 = vpop.f32.mrb[0].mxu0
        %v3254 = vadd.f32 0.0, %v3253
        %v3255 = vpop.f32.mrb[0].mxu0
        %v3256 = vpop.f32.mrb[0].mxu0
        %v3257 = vadd.f32 0.0, %v3256
        %v3258 = vpop.f32.mrb[0].mxu0
        %3259 = vmatprep.mubr.bf16.mxu0 0
        %3260 = vmatmul.mubr.bf16.gmra.mrb[0].mxu0 %v3151
        %v3261 = vpop.f32.mrb[0].mxu0
        %v3262 = vadd.f32 0.0, %v3261
        %v3263 = vpop.f32.mrb[0].mxu0
        %v3264 = vpop.f32.mrb[0].mxu0
        %v3265 = vadd.f32 0.0, %v3264
        %v3266 = vpop.f32.mrb[0].mxu0
        %3267 = vmatprep.mubr.bf16.mxu0 0
        %3268 = vmatmul.mubr.bf16.gmra.mrb[0].mxu0 %v3154
        %v3269 = vpop.f32.mrb[0].mxu0
        %v3270 = vadd.f32 0.0, %v3269
        %v3271 = vpop.f32.mrb[0].mxu0
        %v3272 = vpop.f32.mrb[0].mxu0
        %v3273 = vadd.f32 0.0, %v3272
        %v3274 = vpop.f32.mrb[0].mxu0
        %3275 = vmatprep.mubr.bf16.mxu0 0
        %3276 = vmatmul.mubr.bf16.gmra.mrb[0].mxu0 %v3157
        %v3277 = vpop.f32.mrb[0].mxu0
        %v3278 = vadd.f32 0.0, %v3277
        %v3279 = vpop.f32.mrb[0].mxu0
        %v3280 = vpop.f32.mrb[0].mxu0
        %v3281 = vadd.f32 0.0, %v3280
        %v3282 = vpop.f32.mrb[0].mxu0
        %3283 = vmatprep.mubr.bf16.mxu0 0
        %3284 = vmatmul.mubr.bf16.gmra.mrb[0].mxu0 %v3160
        %v3285 = vpop.f32.mrb[0].mxu0
        %v3286 = vadd.f32 0.0, %v3285
        %v3287 = vpop.f32.mrb[0].mxu0
        %v3288 = vpop.f32.mrb[0].mxu0
        %v3289 = vadd.f32 0.0, %v3288
        %v3290 = vpop.f32.mrb[0].mxu0
        %3291 = vmatprep.mubr.bf16.mxu0 0
        %3292 = vmatmul.mubr.bf16.gmra.mrb[0].mxu0 %v3163
        %v3293 = vpop.f32.mrb[0].mxu0
        %v3294 = vadd.f32 0.0, %v3293
        %v3295 = vpop.f32.mrb[0].mxu0
        %v3296 = vpop.f32.mrb[0].mxu0
        %v3297 = vadd.f32 0.0, %v3296
        %v3298 = vpop.f32.mrb[0].mxu0
        %3299 = vmatprep.mubr.bf16.mxu0 0
        %3300 = vmatmul.mubr.bf16.gmra.mrb[0].mxu0 %v3166
        %v3301 = vpop.f32.mrb[0].mxu0
        %v3302 = vadd.f32 0.0, %v3301
        %v3303 = vpop.f32.mrb[0].mxu0
        %v3304 = vpop.f32.mrb[0].mxu0
        %v3305 = vadd.f32 0.0, %v3304
        %v3306 = vpop.f32.mrb[0].mxu0
        %3307 = vmatprep.mubr.bf16.mxu0 0
        %3308 = vmatmul.mubr.bf16.gmra.mrb[0].mxu0 %v3169
        %v3309 = vpop.f32.mrb[0].mxu0
        %v3310 = vadd.f32 0.0, %v3309
        %v3311 = vpop.f32.mrb[0].mxu0
        %v3312 = vpop.f32.mrb[0].mxu0
        %v3313 = vadd.f32 0.0, %v3312
        %v3314 = vpop.f32.mrb[0].mxu0
        %3315 = vmatprep.mubr.bf16.mxu0 0
        %3316 = vmatmul.mubr.bf16.gmra.mrb[0].mxu0 %v3172
        %v3317 = vpop.f32.mrb[0].mxu0
        %v3318 = vadd.f32 0.0, %v3317
        %v3319 = vpop.f32.mrb[0].mxu0
        %v3320 = vpop.f32.mrb[0].mxu0
        %v3321 = vadd.f32 0.0, %v3320
        %v3322 = vpop.f32.mrb[0].mxu0
        %3323 = vmatprep.mubr.bf16.mxu0 0
        %3324 = vmatmul.mubr.bf16.gmra.mrb[0].mxu0 %v3175
        %v3325 = vpop.f32.mrb[0].mxu0
        %v3326 = vadd.f32 0.0, %v3325
        %v3327 = vpop.f32.mrb[0].mxu0
        %v3328 = vpop.f32.mrb[0].mxu0
        %v3329 = vadd.f32 0.0, %v3328
        %v3330 = vpop.f32.mrb[0].mxu0
        %3331 = vmatprep.mubr.bf16.mxu0 0
        %3332 = vmatmul.mubr.bf16.gmra.mrb[0].mxu0 %v3178
        %v3333 = vpop.f32.mrb[0].mxu0
        %v3334 = vadd.f32 0.0, %v3333
        %v3335 = vpop.f32.mrb[0].mxu0
        %v3336 = vpop.f32.mrb[0].mxu0
        %v3337 = vadd.f32 0.0, %v3336
        %v3338 = vpop.f32.mrb[0].mxu0
        %3339 = vmatprep.mubr.bf16.mxu0 0
        %3340 = vmatmul.mubr.bf16.gmra.mrb[0].mxu0 %v3181
        %v3341 = vpop.f32.mrb[0].mxu0
        %v3342 = vadd.f32 0.0, %v3341
        %v3343 = vpop.f32.mrb[0].mxu0
        %v3344 = vpop.f32.mrb[0].mxu0
        %v3345 = vadd.f32 0.0, %v3344
        %v3346 = vpop.f32.mrb[0].mxu0
        %3347 = vmatprep.mubr.bf16.mxu0 0
        %3348 = vmatmul.mubr.bf16.gmra.mrb[0].mxu0 %v3184
        %v3349 = vpop.f32.mrb[0].mxu0
        %v3350 = vadd.f32 0.0, %v3349
        %v3351 = vpop.f32.mrb[0].mxu0
        %v3352 = vpop.f32.mrb[0].mxu0
        %v3353 = vadd.f32 0.0, %v3352
        %v3354 = vpop.f32.mrb[0].mxu0
        %3355 = vmatprep.mubr.bf16.mxu0 0
        %3356 = vmatmul.mubr.bf16.gmra.mrb[0].mxu0 %v3187
        %v3357 = vpop.f32.mrb[0].mxu0
        %v3358 = vadd.f32 0.0, %v3357
        %v3359 = vpop.f32.mrb[0].mxu0
        %v3360 = vpop.f32.mrb[0].mxu0
        %v3361 = vadd.f32 0.0, %v3360
        %v3362 = vpop.f32.mrb[0].mxu0
        %3363 = vmatprep.mubr.bf16.mxu0 0
        %3364 = vmatmul.mubr.bf16.gmra.mrb[0].mxu0 %v3190
        %v3365 = vpop.f32.mrb[0].mxu0
        %v3366 = vadd.f32 0.0, %v3365
        %v3367 = vpop.f32.mrb[0].mxu0
        %v3368 = vpop.f32.mrb[0].mxu0
        %v3369 = vadd.f32 0.0, %v3368
        %v3370 = vpop.f32.mrb[0].mxu0
        %3371 = vdwg.mxu0
        %v3372 = vadd.f32 %v3046, %v3230
        %v3373 = vadd.f32 %v3047, %v3233
        %v3374 = vadd.f32 %v3048, %v3238
        %v3375 = vadd.f32 %v3049, %v3241
        %v3376 = vadd.f32 %v3050, %v3246
        %v3377 = vadd.f32 %v3051, %v3249
        %v3378 = vadd.f32 %v3052, %v3254
        %v3379 = vadd.f32 %v3053, %v3257
        %v3380 = vadd.f32 %v3054, %v3262
        %v3381 = vadd.f32 %v3055, %v3265
        %v3382 = vadd.f32 %v3056, %v3270
        %v3383 = vadd.f32 %v3057, %v3273
        %v3384 = vadd.f32 %v3058, %v3278
        %v3385 = vadd.f32 %v3059, %v3281
        %v3386 = vadd.f32 %v3060, %v3286
        %v3387 = vadd.f32 %v3061, %v3289
        %v3388 = vadd.f32 %v3062, %v3294
        %v3389 = vadd.f32 %v3063, %v3297
        %v3390 = vadd.f32 %v3064, %v3302
        %v3391 = vadd.f32 %v3065, %v3305
        %v3392 = vadd.f32 %v3066, %v3310
        %v3393 = vadd.f32 %v3067, %v3313
        %v3394 = vadd.f32 %v3068, %v3318
        %v3395 = vadd.f32 %v3069, %v3321
        %v3396 = vadd.f32 %v3070, %v3326
        %v3397 = vadd.f32 %v3071, %v3329
        %v3398 = vadd.f32 %v3072, %v3334
        %v3399 = vadd.f32 %v3073, %v3337
        %v3400 = vadd.f32 %v3074, %v3342
        %v3401 = vadd.f32 %v3075, %v3345
        %v3402 = vadd.f32 %v3076, %v3350
        %v3403 = vadd.f32 %v3077, %v3353
        %v3404 = vadd.f32 %v3078, %v3358
        %v3405 = vadd.f32 %v3079, %v3361
        %v3406 = vadd.f32 %v3080, %v3366
        %v3407 = vadd.f32 %v3081, %v3369
        %v3408 = vmax.f32 %v3372, 0.0
        %v3409 = vmax.f32 %v3373, 0.0
        %v3410 = vmax.f32 %v3374, 0.0
        %v3411 = vmax.f32 %v3375, 0.0
        %v3412 = vmax.f32 %v3376, 0.0
        %v3413 = vmax.f32 %v3377, 0.0
        %v3414 = vmax.f32 %v3378, 0.0
        %v3415 = vmax.f32 %v3379, 0.0
        %v3416 = vmax.f32 %v3380, 0.0
        %v3417 = vmax.f32 %v3381, 0.0
        %v3418 = vmax.f32 %v3382, 0.0
        %v3419 = vmax.f32 %v3383, 0.0
        %v3420 = vmax.f32 %v3384, 0.0
        %v3421 = vmax.f32 %v3385, 0.0
        %v3422 = vmax.f32 %v3386, 0.0
        %v3423 = vmax.f32 %v3387, 0.0
        %v3424 = vmax.f32 %v3388, 0.0
        %v3425 = vmax.f32 %v3389, 0.0
        %v3426 = vmax.f32 %v3390, 0.0
        %v3427 = vmax.f32 %v3391, 0.0
        %v3428 = vmax.f32 %v3392, 0.0
        %v3429 = vmax.f32 %v3393, 0.0
        %v3430 = vmax.f32 %v3394, 0.0
        %v3431 = vmax.f32 %v3395, 0.0
        %v3432 = vmax.f32 %v3396, 0.0
        %v3433 = vmax.f32 %v3397, 0.0
        %v3434 = vmax.f32 %v3398, 0.0
        %v3435 = vmax.f32 %v3399, 0.0
        %v3436 = vmax.f32 %v3400, 0.0
        %v3437 = vmax.f32 %v3401, 0.0
        %v3438 = vmax.f32 %v3402, 0.0
        %v3439 = vmax.f32 %v3403, 0.0
        %v3440 = vmax.f32 %v3404, 0.0
        %v3441 = vmax.f32 %v3405, 0.0
        %v3442 = vmax.f32 %v3406, 0.0
        %v3443 = vmax.f32 %v3407, 0.0
        %v3444 = vld [vmem:[%s3] sm:$0xff]
        %v3445 = vld [vmem:[%s3 + $0x8] sm:$0xff]
        %v3446 = vld [vmem:[%s3 + $0x10] sm:$0xff]
        %v3447 = vld [vmem:[%s3 + $0x18] sm:$0xff]
        %v3448 = vld [vmem:[%s3 + $0x20] sm:$0xff]
        %v3449 = vld [vmem:[%s3 + $0x28] sm:$0xff]
        %v3450 = vld [vmem:[%s3 + $0x30] sm:$0xff]
        %v3451 = vld [vmem:[%s3 + $0x38] sm:$0xff]
        %v3452 = vld [vmem:[%s3 + $0x40] sm:$0xff]
        %v3453 = vld [vmem:[%s3 + $0x48] sm:$0xff]
        %v3454 = vld [vmem:[%s3 + $0x50] sm:$0xff]
        %v3455 = vld [vmem:[%s3 + $0x58] sm:$0xff]
        %v3456 = vld [vmem:[%s3 + $0x60] sm:$0xff]
        %v3457 = vld [vmem:[%s3 + $0x68] sm:$0xff]
        %v3458 = vld [vmem:[%s3 + $0x70] sm:$0xff]
        %v3459 = vld [vmem:[%s3 + $0x78] sm:$0xff]
        %v3460 = vld [vmem:[%s3 + $0x80] sm:$0xff]
        %v3461 = vld [vmem:[%s3 + $0x88] sm:$0xff]
        %v3462 = vld [vmem:[%s3 + $0x90] sm:$0xff]
        %v3463 = vld [vmem:[%s3 + $0x98] sm:$0xff]
        %v3464 = vld [vmem:[%s3 + $0xa0] sm:$0xff]
        %v3465 = vld [vmem:[%s3 + $0xa8] sm:$0xff]
        %v3466 = vld [vmem:[%s3 + $0xb0] sm:$0xff]
        %v3467 = vld [vmem:[%s3 + $0xb8] sm:$0xff]
        %v3468 = vld [vmem:[%s3 + $0xc0] sm:$0xff]
        %v3469 = vld [vmem:[%s3 + $0xc8] sm:$0xff]
        %v3470 = vld [vmem:[%s3 + $0xd0] sm:$0xff]
        %v3471 = vld [vmem:[%s3 + $0xd8] sm:$0xff]
        %v3472 = vld [vmem:[%s3 + $0xe0] sm:$0xff]
        %v3473 = vld [vmem:[%s3 + $0xe8] sm:$0xff]
        %v3474 = vld [vmem:[%s3 + $0xf0] sm:$0xff]
        %v3475 = vld [vmem:[%s3 + $0xf8] sm:$0xff]
        %v3476 = vld [vmem:[%s3 + $0x100] sm:$0xff]
        %v3477 = vld [vmem:[%s3 + $0x108] sm:$0xff]
        %v3478 = vld [vmem:[%s3 + $0x110] sm:$0xff]
        %v3479 = vld [vmem:[%s3 + $0x118] sm:$0xff]
        %v3480 = vld [vmem:[%s3 + $0x120] sm:$0xff]
        %v3481 = vld [vmem:[%s3 + $0x128] sm:$0xff]
        %v3482 = vld [vmem:[%s3 + $0x130] sm:$0xff]
        %vm3483 = vcmask 261120
        %v3485 = vsel %vm3483, %v3446, 0
        %v3488 = vsel %vm3483, %v3449, 0
        %v3491 = vsel %vm3483, %v3452, 0
        %v3494 = vsel %vm3483, %v3455, 0
        %v3497 = vsel %vm3483, %v3458, 0
        %v3500 = vsel %vm3483, %v3461, 0
        %v3503 = vsel %vm3483, %v3464, 0
        %v3506 = vsel %vm3483, %v3467, 0
        %v3509 = vsel %vm3483, %v3470, 0
        %v3512 = vsel %vm3483, %v3473, 0
        %v3515 = vsel %vm3483, %v3476, 0
        %v3518 = vsel %vm3483, %v3479, 0
        %v3521 = vsel %vm3483, %v3482, 0
        %3523 = vmatprep.subr.mxu0 0.0
        %3524 = vmatpush1.msra.mxu0 %v3408
        %3525 = vmatprep.subr.mxu0 0.0
        %3526 = vmatpush1.msra.mxu0 %v3409
        %3527 = vmatprep.subr.mxu0 0.0
        %3528 = vmatpush1.msra.mxu0 %v3410
        %3529 = vmatprep.subr.mxu0 0.0
        %3530 = vmatpush1.msra.mxu0 %v3411
        %3531 = vmatprep.subr.mxu0 0.0
        %3532 = vmatpush1.msra.mxu0 %v3412
        %3533 = vmatprep.subr.mxu0 0.0
        %3534 = vmatpush1.msra.mxu0 %v3413
        %3535 = vmatprep.subr.mxu0 0.0
        %3536 = vmatpush1.msra.mxu0 %v3414
        %3537 = vmatprep.subr.mxu0 0.0
        %3538 = vmatpush1.msra.mxu0 %v3415
        %3539 = vmatprep.subr.mxu0 0.0
        %3540 = vmatpush1.msra.mxu0 %v3416
        %3541 = vmatprep.subr.mxu0 0.0
        %3542 = vmatpush1.msra.mxu0 %v3417
        %3543 = vmatprep.subr.mxu0 0.0
        %3544 = vmatpush1.msra.mxu0 %v3418
        %3545 = vmatprep.subr.mxu0 0.0
        %3546 = vmatpush1.msra.mxu0 %v3419
        %3547 = vmatprep.subr.mxu0 0.0
        %3548 = vmatpush1.msra.mxu0 %v3420
        %3549 = vmatprep.subr.mxu0 0.0
        %3550 = vmatpush1.msra.mxu0 %v3421
        %3551 = vmatprep.subr.mxu0 0.0
        %3552 = vmatpush1.msra.mxu0 %v3422
        %3553 = vmatprep.subr.mxu0 0.0
        %3554 = vmatpush1.msra.mxu0 %v3423
        %3555 = vmatprep.subr.mxu0 0.0
        %3556 = vmatpush1.msra.mxu0 %v3424
        %3557 = vmatprep.subr.mxu0 0.0
        %3558 = vmatpush1.msra.mxu0 %v3425
        %3559 = vmatprep.subr.mxu0 0.0
        %3560 = vmatpush1.msra.mxu0 %v3426
        %3561 = vmatprep.subr.mxu0 0.0
        %3562 = vmatpush1.msra.mxu0 %v3427
        %3563 = vmatprep.subr.mxu0 0.0
        %3564 = vmatpush1.msra.mxu0 %v3428
        %3565 = vmatprep.subr.mxu0 0.0
        %3566 = vmatpush1.msra.mxu0 %v3429
        %3567 = vmatprep.subr.mxu0 0.0
        %3568 = vmatpush1.msra.mxu0 %v3430
        %3569 = vmatprep.subr.mxu0 0.0
        %3570 = vmatpush1.msra.mxu0 %v3431
        %3571 = vmatprep.subr.mxu0 0.0
        %3572 = vmatpush1.msra.mxu0 %v3432
        %3573 = vmatprep.subr.mxu0 0.0
        %3574 = vmatpush1.msra.mxu0 %v3433
        %3575 = vmatprep.subr.mxu0 0.0
        %3576 = vmatpush1.msra.mxu0 %v3434
        %3577 = vmatprep.subr.mxu0 0.0
        %3578 = vmatpush1.msra.mxu0 %v3435
        %3579 = vmatprep.subr.mxu0 0.0
        %3580 = vmatpush1.msra.mxu0 %v3436
        %3581 = vmatprep.subr.mxu0 0.0
        %3582 = vmatpush1.msra.mxu0 %v3437
        %3583 = vmatprep.subr.mxu0 0.0
        %3584 = vmatpush1.msra.mxu0 %v3438
        %3585 = vmatprep.subr.mxu0 0.0
        %3586 = vmatpush1.msra.mxu0 %v3439
        %3587 = vmatprep.mubr.f32.mxu0 %v3445
        %3588 = vmatmul.mubr.f32.gmra.mrb[0].mxu0 %v3444
        %v3589 = vpop.f32.mrb[0].mxu0
        %v3590 = vadd.f32 0.0, %v3589
        %v3591 = vpop.f32.mrb[0].mxu0
        %3592 = vmatprep.mubr.f32.mxu0 %v3448
        %3593 = vmatmul.mubr.f32.gmra.mrb[0].mxu0 %v3447
        %v3594 = vpop.f32.mrb[0].mxu0
        %v3595 = vadd.f32 0.0, %v3594
        %v3596 = vpop.f32.mrb[0].mxu0
        %3597 = vmatprep.mubr.f32.mxu0 %v3451
        %3598 = vmatmul.mubr.f32.gmra.mrb[0].mxu0 %v3450
        %v3599 = vpop.f32.mrb[0].mxu0
        %v3600 = vadd.f32 0.0, %v3599
        %v3601 = vpop.f32.mrb[0].mxu0
        %3602 = vmatprep.mubr.f32.mxu0 %v3454
        %3603 = vmatmul.mubr.f32.gmra.mrb[0].mxu0 %v3453
        %v3604 = vpop.f32.mrb[0].mxu0
        %v3605 = vadd.f32 0.0, %v3604
        %v3606 = vpop.f32.mrb[0].mxu0
        %3607 = vmatprep.mubr.f32.mxu0 %v3457
        %3608 = vmatmul.mubr.f32.gmra.mrb[0].mxu0 %v3456
        %v3609 = vpop.f32.mrb[0].mxu0
        %v3610 = vadd.f32 0.0, %v3609
        %v3611 = vpop.f32.mrb[0].mxu0
        %3612 = vmatprep.mubr.f32.mxu0 %v3460
        %3613 = vmatmul.mubr.f32.gmra.mrb[0].mxu0 %v3459
        %v3614 = vpop.f32.mrb[0].mxu0
        %v3615 = vadd.f32 0.0, %v3614
        %v3616 = vpop.f32.mrb[0].mxu0
        %3617 = vmatprep.mubr.f32.mxu0 %v3463
        %3618 = vmatmul.mubr.f32.gmra.mrb[0].mxu0 %v3462
        %v3619 = vpop.f32.mrb[0].mxu0
        %v3620 = vadd.f32 0.0, %v3619
        %v3621 = vpop.f32.mrb[0].mxu0
        %3622 = vmatprep.mubr.f32.mxu0 %v3466
        %3623 = vmatmul.mubr.f32.gmra.mrb[0].mxu0 %v3465
        %v3624 = vpop.f32.mrb[0].mxu0
        %v3625 = vadd.f32 0.0, %v3624
        %v3626 = vpop.f32.mrb[0].mxu0
        %3627 = vmatprep.mubr.f32.mxu0 %v3469
        %3628 = vmatmul.mubr.f32.gmra.mrb[0].mxu0 %v3468
        %v3629 = vpop.f32.mrb[0].mxu0
        %v3630 = vadd.f32 0.0, %v3629
        %v3631 = vpop.f32.mrb[0].mxu0
        %3632 = vmatprep.mubr.f32.mxu0 %v3472
        %3633 = vmatmul.mubr.f32.gmra.mrb[0].mxu0 %v3471
        %v3634 = vpop.f32.mrb[0].mxu0
        %v3635 = vadd.f32 0.0, %v3634
        %v3636 = vpop.f32.mrb[0].mxu0
        %3637 = vmatprep.mubr.f32.mxu0 %v3475
        %3638 = vmatmul.mubr.f32.gmra.mrb[0].mxu0 %v3474
        %v3639 = vpop.f32.mrb[0].mxu0
        %v3640 = vadd.f32 0.0, %v3639
        %v3641 = vpop.f32.mrb[0].mxu0
        %3642 = vmatprep.mubr.f32.mxu0 %v3478
        %3643 = vmatmul.mubr.f32.gmra.mrb[0].mxu0 %v3477
        %v3644 = vpop.f32.mrb[0].mxu0
        %v3645 = vadd.f32 0.0, %v3644
        %v3646 = vpop.f32.mrb[0].mxu0
        %3647 = vmatprep.mubr.f32.mxu0 %v3481
        %3648 = vmatmul.mubr.f32.gmra.mrb[0].mxu0 %v3480
        %v3649 = vpop.f32.mrb[0].mxu0
        %v3650 = vadd.f32 0.0, %v3649
        %v3651 = vpop.f32.mrb[0].mxu0
        %3652 = vdwg.mxu0
        %3653 = vmatprep.subr.mxu0 0.0
        %3654 = vmatpush1.msra.mxu0 %v3440
        %3655 = vmatprep.subr.mxu0 0.0
        %3656 = vmatpush1.msra.mxu0 %v3441
        %3657 = vmatprep.subr.mxu0 0.0
        %3658 = vmatpush1.msra.mxu0 %v3442
        %3659 = vmatprep.subr.mxu0 0.0
        %3660 = vmatpush1.msra.mxu0 %v3443
        %3661 = vmatprep.subr.mxu0 0.0
        %3662 = vmatpush1.msra.mxu0 0.0
        %3663 = vmatprep.subr.mxu0 0.0
        %3664 = vmatpush1.msra.mxu0 0.0
        %3665 = vmatprep.subr.mxu0 0.0
        %3666 = vmatpush1.msra.mxu0 0.0
        %3667 = vmatprep.subr.mxu0 0.0
        %3668 = vmatpush1.msra.mxu0 0.0
        %3669 = vmatprep.subr.mxu0 0.0
        %3670 = vmatpush1.msra.mxu0 0.0
        %3671 = vmatprep.subr.mxu0 0.0
        %3672 = vmatpush1.msra.mxu0 0.0
        %3673 = vmatprep.subr.mxu0 0.0
        %3674 = vmatpush1.msra.mxu0 0.0
        %3675 = vmatprep.subr.mxu0 0.0
        %3676 = vmatpush1.msra.mxu0 0.0
        %3677 = vmatprep.subr.mxu0 0.0
        %3678 = vmatpush1.msra.mxu0 0.0
        %3679 = vmatprep.subr.mxu0 0.0
        %3680 = vmatpush1.msra.mxu0 0.0
        %3681 = vmatprep.subr.mxu0 0.0
        %3682 = vmatpush1.msra.mxu0 0.0
        %3683 = vmatprep.subr.mxu0 0.0
        %3684 = vmatpush1.msra.mxu0 0.0
        %3685 = vmatprep.subr.mxu0 0.0
        %3686 = vmatpush1.msra.mxu0 0.0
        %3687 = vmatprep.subr.mxu0 0.0
        %3688 = vmatpush1.msra.mxu0 0.0
        %3689 = vmatprep.subr.mxu0 0.0
        %3690 = vmatpush1.msra.mxu0 0.0
        %3691 = vmatprep.subr.mxu0 0.0
        %3692 = vmatpush1.msra.mxu0 0.0
        %3693 = vmatprep.subr.mxu0 0.0
        %3694 = vmatpush1.msra.mxu0 0.0
        %3695 = vmatprep.subr.mxu0 0.0
        %3696 = vmatpush1.msra.mxu0 0.0
        %3697 = vmatprep.subr.mxu0 0.0
        %3698 = vmatpush1.msra.mxu0 0.0
        %3699 = vmatprep.subr.mxu0 0.0
        %3700 = vmatpush1.msra.mxu0 0.0
        %3701 = vmatprep.subr.mxu0 0.0
        %3702 = vmatpush1.msra.mxu0 0.0
        %3703 = vmatprep.subr.mxu0 0.0
        %3704 = vmatpush1.msra.mxu0 0.0
        %3705 = vmatprep.subr.mxu0 0.0
        %3706 = vmatpush1.msra.mxu0 0.0
        %3707 = vmatprep.subr.mxu0 0.0
        %3708 = vmatpush1.msra.mxu0 0.0
        %3709 = vmatprep.subr.mxu0 0.0
        %3710 = vmatpush1.msra.mxu0 0.0
        %3711 = vmatprep.subr.mxu0 0.0
        %3712 = vmatpush1.msra.mxu0 0.0
        %3713 = vmatprep.subr.mxu0 0.0
        %3714 = vmatpush1.msra.mxu0 0.0
        %3715 = vmatprep.subr.mxu0 0.0
        %3716 = vmatpush1.msra.mxu0 0.0
        %3717 = vmatprep.mubr.f32.mxu0 0.0
        %3718 = vmatmul.mubr.f32.gmra.mrb[0].mxu0 %v3485
        %v3719 = vpop.f32.mrb[0].mxu0
        %v3720 = vadd.f32 %v3590, %v3719
        %v3721 = vpop.f32.mrb[0].mxu0
        %3722 = vmatprep.mubr.f32.mxu0 0.0
        %3723 = vmatmul.mubr.f32.gmra.mrb[0].mxu0 %v3488
        %v3724 = vpop.f32.mrb[0].mxu0
        %v3725 = vadd.f32 %v3595, %v3724
        %v3726 = vpop.f32.mrb[0].mxu0
        %3727 = vmatprep.mubr.f32.mxu0 0.0
        %3728 = vmatmul.mubr.f32.gmra.mrb[0].mxu0 %v3491
        %v3729 = vpop.f32.mrb[0].mxu0
        %v3730 = vadd.f32 %v3600, %v3729
        %v3731 = vpop.f32.mrb[0].mxu0
        %3732 = vmatprep.mubr.f32.mxu0 0.0
        %3733 = vmatmul.mubr.f32.gmra.mrb[0].mxu0 %v3494
        %v3734 = vpop.f32.mrb[0].mxu0
        %v3735 = vadd.f32 %v3605, %v3734
        %v3736 = vpop.f32.mrb[0].mxu0
        %3737 = vmatprep.mubr.f32.mxu0 0.0
        %3738 = vmatmul.mubr.f32.gmra.mrb[0].mxu0 %v3497
        %v3739 = vpop.f32.mrb[0].mxu0
        %v3740 = vadd.f32 %v3610, %v3739
        %v3741 = vpop.f32.mrb[0].mxu0
        %3742 = vmatprep.mubr.f32.mxu0 0.0
        %3743 = vmatmul.mubr.f32.gmra.mrb[0].mxu0 %v3500
        %v3744 = vpop.f32.mrb[0].mxu0
        %v3745 = vadd.f32 %v3615, %v3744
        %v3746 = vpop.f32.mrb[0].mxu0
        %3747 = vmatprep.mubr.f32.mxu0 0.0
        %3748 = vmatmul.mubr.f32.gmra.mrb[0].mxu0 %v3503
        %v3749 = vpop.f32.mrb[0].mxu0
        %v3750 = vadd.f32 %v3620, %v3749
        %v3751 = vpop.f32.mrb[0].mxu0
        %3752 = vmatprep.mubr.f32.mxu0 0.0
        %3753 = vmatmul.mubr.f32.gmra.mrb[0].mxu0 %v3506
        %v3754 = vpop.f32.mrb[0].mxu0
        %v3755 = vadd.f32 %v3625, %v3754
        %v3756 = vpop.f32.mrb[0].mxu0
        %3757 = vmatprep.mubr.f32.mxu0 0.0
        %3758 = vmatmul.mubr.f32.gmra.mrb[0].mxu0 %v3509
        %v3759 = vpop.f32.mrb[0].mxu0
        %v3760 = vadd.f32 %v3630, %v3759
        %v3761 = vpop.f32.mrb[0].mxu0
        %3762 = vmatprep.mubr.f32.mxu0 0.0
        %3763 = vmatmul.mubr.f32.gmra.mrb[0].mxu0 %v3512
        %v3764 = vpop.f32.mrb[0].mxu0
        %v3765 = vadd.f32 %v3635, %v3764
        %v3766 = vpop.f32.mrb[0].mxu0
        %3767 = vmatprep.mubr.f32.mxu0 0.0
        %3768 = vmatmul.mubr.f32.gmra.mrb[0].mxu0 %v3515
        %v3769 = vpop.f32.mrb[0].mxu0
        %v3770 = vadd.f32 %v3640, %v3769
        %v3771 = vpop.f32.mrb[0].mxu0
        %3772 = vmatprep.mubr.f32.mxu0 0.0
        %3773 = vmatmul.mubr.f32.gmra.mrb[0].mxu0 %v3518
        %v3774 = vpop.f32.mrb[0].mxu0
        %v3775 = vadd.f32 %v3645, %v3774
        %v3776 = vpop.f32.mrb[0].mxu0
        %3777 = vmatprep.mubr.f32.mxu0 0.0
        %3778 = vmatmul.mubr.f32.gmra.mrb[0].mxu0 %v3521
        %v3779 = vpop.f32.mrb[0].mxu0
        %v3780 = vadd.f32 %v3650, %v3779
        %v3781 = vpop.f32.mrb[0].mxu0
        %3782 = vdwg.mxu0
        %s3783 = scalar_lea.vmem %s3, 312
        %v3784 = vld [vmem:[%s3783] sm:$0xff]
        %v3785 = vld [vmem:[%s3783 + $0x8] sm:$0xff]
        %v3786 = vld [vmem:[%s3783 + $0x10] sm:$0xff]
        %v3787 = vld [vmem:[%s3783 + $0x18] sm:$0xff]
        %v3788 = vld [vmem:[%s3783 + $0x20] sm:$0xff]
        %v3789 = vld [vmem:[%s3783 + $0x28] sm:$0xff]
        %v3790 = vld [vmem:[%s3783 + $0x30] sm:$0xff]
        %v3791 = vld [vmem:[%s3783 + $0x38] sm:$0xff]
        %v3792 = vld [vmem:[%s3783 + $0x40] sm:$0xff]
        %v3793 = vld [vmem:[%s3783 + $0x48] sm:$0xff]
        %v3794 = vld [vmem:[%s3783 + $0x50] sm:$0xff]
        %v3795 = vld [vmem:[%s3783 + $0x58] sm:$0xff]
        %v3796 = vld [vmem:[%s3783 + $0x60] sm:$0xff]
        %v3797 = vld [vmem:[%s3783 + $0x68] sm:$0xff]
        %v3798 = vld [vmem:[%s3783 + $0x70] sm:$0xff]
        %v3799 = vld [vmem:[%s3783 + $0x78] sm:$0xff]
        %v3800 = vld [vmem:[%s3783 + $0x80] sm:$0xff]
        %v3801 = vld [vmem:[%s3783 + $0x88] sm:$0xff]
        %v3802 = vld [vmem:[%s3783 + $0x90] sm:$0xff]
        %v3803 = vld [vmem:[%s3783 + $0x98] sm:$0xff]
        %v3804 = vld [vmem:[%s3783 + $0xa0] sm:$0xff]
        %v3805 = vld [vmem:[%s3783 + $0xa8] sm:$0xff]
        %v3806 = vld [vmem:[%s3783 + $0xb0] sm:$0xff]
        %v3807 = vld [vmem:[%s3783 + $0xb8] sm:$0xff]
        %v3808 = vld [vmem:[%s3783 + $0xc0] sm:$0xff]
        %v3809 = vld [vmem:[%s3783 + $0xc8] sm:$0xff]
        %v3810 = vld [vmem:[%s3783 + $0xd0] sm:$0xff]
        %v3811 = vld [vmem:[%s3783 + $0xd8] sm:$0xff]
        %v3812 = vld [vmem:[%s3783 + $0xe0] sm:$0xff]
        %v3813 = vld [vmem:[%s3783 + $0xe8] sm:$0xff]
        %v3814 = vld [vmem:[%s3783 + $0xf0] sm:$0xff]
        %v3815 = vld [vmem:[%s3783 + $0xf8] sm:$0xff]
        %v3816 = vld [vmem:[%s3783 + $0x100] sm:$0xff]
        %v3817 = vld [vmem:[%s3783 + $0x108] sm:$0xff]
        %v3818 = vld [vmem:[%s3783 + $0x110] sm:$0xff]
        %v3819 = vld [vmem:[%s3783 + $0x118] sm:$0xff]
        %v3820 = vld [vmem:[%s3783 + $0x120] sm:$0xff]
        %v3821 = vld [vmem:[%s3783 + $0x128] sm:$0xff]
        %v3822 = vld [vmem:[%s3783 + $0x130] sm:$0xff]
        %v3824 = vsel %vm3483, %v3786, 0
        %v3827 = vsel %vm3483, %v3789, 0
        %v3830 = vsel %vm3483, %v3792, 0
        %v3833 = vsel %vm3483, %v3795, 0
        %v3836 = vsel %vm3483, %v3798, 0
        %v3839 = vsel %vm3483, %v3801, 0
        %v3842 = vsel %vm3483, %v3804, 0
        %v3845 = vsel %vm3483, %v3807, 0
        %v3848 = vsel %vm3483, %v3810, 0
        %v3851 = vsel %vm3483, %v3813, 0
        %v3854 = vsel %vm3483, %v3816, 0
        %v3857 = vsel %vm3483, %v3819, 0
        %v3860 = vsel %vm3483, %v3822, 0
        %3862 = vmatprep.subr.mxu0 0.0
        %3863 = vmatpush1.msra.mxu0 %v3408
        %3864 = vmatprep.subr.mxu0 0.0
        %3865 = vmatpush1.msra.mxu0 %v3409
        %3866 = vmatprep.subr.mxu0 0.0
        %3867 = vmatpush1.msra.mxu0 %v3410
        %3868 = vmatprep.subr.mxu0 0.0
        %3869 = vmatpush1.msra.mxu0 %v3411
        %3870 = vmatprep.subr.mxu0 0.0
        %3871 = vmatpush1.msra.mxu0 %v3412
        %3872 = vmatprep.subr.mxu0 0.0
        %3873 = vmatpush1.msra.mxu0 %v3413
        %3874 = vmatprep.subr.mxu0 0.0
        %3875 = vmatpush1.msra.mxu0 %v3414
        %3876 = vmatprep.subr.mxu0 0.0
        %3877 = vmatpush1.msra.mxu0 %v3415
        %3878 = vmatprep.subr.mxu0 0.0
        %3879 = vmatpush1.msra.mxu0 %v3416
        %3880 = vmatprep.subr.mxu0 0.0
        %3881 = vmatpush1.msra.mxu0 %v3417
        %3882 = vmatprep.subr.mxu0 0.0
        %3883 = vmatpush1.msra.mxu0 %v3418
        %3884 = vmatprep.subr.mxu0 0.0
        %3885 = vmatpush1.msra.mxu0 %v3419
        %3886 = vmatprep.subr.mxu0 0.0
        %3887 = vmatpush1.msra.mxu0 %v3420
        %3888 = vmatprep.subr.mxu0 0.0
        %3889 = vmatpush1.msra.mxu0 %v3421
        %3890 = vmatprep.subr.mxu0 0.0
        %3891 = vmatpush1.msra.mxu0 %v3422
        %3892 = vmatprep.subr.mxu0 0.0
        %3893 = vmatpush1.msra.mxu0 %v3423
        %3894 = vmatprep.subr.mxu0 0.0
        %3895 = vmatpush1.msra.mxu0 %v3424
        %3896 = vmatprep.subr.mxu0 0.0
        %3897 = vmatpush1.msra.mxu0 %v3425
        %3898 = vmatprep.subr.mxu0 0.0
        %3899 = vmatpush1.msra.mxu0 %v3426
        %3900 = vmatprep.subr.mxu0 0.0
        %3901 = vmatpush1.msra.mxu0 %v3427
        %3902 = vmatprep.subr.mxu0 0.0
        %3903 = vmatpush1.msra.mxu0 %v3428
        %3904 = vmatprep.subr.mxu0 0.0
        %3905 = vmatpush1.msra.mxu0 %v3429
        %3906 = vmatprep.subr.mxu0 0.0
        %3907 = vmatpush1.msra.mxu0 %v3430
        %3908 = vmatprep.subr.mxu0 0.0
        %3909 = vmatpush1.msra.mxu0 %v3431
        %3910 = vmatprep.subr.mxu0 0.0
        %3911 = vmatpush1.msra.mxu0 %v3432
        %3912 = vmatprep.subr.mxu0 0.0
        %3913 = vmatpush1.msra.mxu0 %v3433
        %3914 = vmatprep.subr.mxu0 0.0
        %3915 = vmatpush1.msra.mxu0 %v3434
        %3916 = vmatprep.subr.mxu0 0.0
        %3917 = vmatpush1.msra.mxu0 %v3435
        %3918 = vmatprep.subr.mxu0 0.0
        %3919 = vmatpush1.msra.mxu0 %v3436
        %3920 = vmatprep.subr.mxu0 0.0
        %3921 = vmatpush1.msra.mxu0 %v3437
        %3922 = vmatprep.subr.mxu0 0.0
        %3923 = vmatpush1.msra.mxu0 %v3438
        %3924 = vmatprep.subr.mxu0 0.0
        %3925 = vmatpush1.msra.mxu0 %v3439
        %3926 = vmatprep.mubr.f32.mxu0 %v3785
        %3927 = vmatmul.mubr.f32.gmra.mrb[0].mxu0 %v3784
        %v3928 = vpop.f32.mrb[0].mxu0
        %v3929 = vadd.f32 0.0, %v3928
        %v3930 = vpop.f32.mrb[0].mxu0
        %3931 = vmatprep.mubr.f32.mxu0 %v3788
        %3932 = vmatmul.mubr.f32.gmra.mrb[0].mxu0 %v3787
        %v3933 = vpop.f32.mrb[0].mxu0
        %v3934 = vadd.f32 0.0, %v3933
        %v3935 = vpop.f32.mrb[0].mxu0
        %3936 = vmatprep.mubr.f32.mxu0 %v3791
        %3937 = vmatmul.mubr.f32.gmra.mrb[0].mxu0 %v3790
        %v3938 = vpop.f32.mrb[0].mxu0
        %v3939 = vadd.f32 0.0, %v3938
        %v3940 = vpop.f32.mrb[0].mxu0
        %3941 = vmatprep.mubr.f32.mxu0 %v3794
        %3942 = vmatmul.mubr.f32.gmra.mrb[0].mxu0 %v3793
        %v3943 = vpop.f32.mrb[0].mxu0
        %v3944 = vadd.f32 0.0, %v3943
        %v3945 = vpop.f32.mrb[0].mxu0
        %3946 = vmatprep.mubr.f32.mxu0 %v3797
        %3947 = vmatmul.mubr.f32.gmra.mrb[0].mxu0 %v3796
        %v3948 = vpop.f32.mrb[0].mxu0
        %v3949 = vadd.f32 0.0, %v3948
        %v3950 = vpop.f32.mrb[0].mxu0
        %3951 = vmatprep.mubr.f32.mxu0 %v3800
        %3952 = vmatmul.mubr.f32.gmra.mrb[0].mxu0 %v3799
        %v3953 = vpop.f32.mrb[0].mxu0
        %v3954 = vadd.f32 0.0, %v3953
        %v3955 = vpop.f32.mrb[0].mxu0
        %3956 = vmatprep.mubr.f32.mxu0 %v3803
        %3957 = vmatmul.mubr.f32.gmra.mrb[0].mxu0 %v3802
        %v3958 = vpop.f32.mrb[0].mxu0
        %v3959 = vadd.f32 0.0, %v3958
        %v3960 = vpop.f32.mrb[0].mxu0
        %3961 = vmatprep.mubr.f32.mxu0 %v3806
        %3962 = vmatmul.mubr.f32.gmra.mrb[0].mxu0 %v3805
        %v3963 = vpop.f32.mrb[0].mxu0
        %v3964 = vadd.f32 0.0, %v3963
        %v3965 = vpop.f32.mrb[0].mxu0
        %3966 = vmatprep.mubr.f32.mxu0 %v3809
        %3967 = vmatmul.mubr.f32.gmra.mrb[0].mxu0 %v3808
        %v3968 = vpop.f32.mrb[0].mxu0
        %v3969 = vadd.f32 0.0, %v3968
        %v3970 = vpop.f32.mrb[0].mxu0
        %3971 = vmatprep.mubr.f32.mxu0 %v3812
        %3972 = vmatmul.mubr.f32.gmra.mrb[0].mxu0 %v3811
        %v3973 = vpop.f32.mrb[0].mxu0
        %v3974 = vadd.f32 0.0, %v3973
        %v3975 = vpop.f32.mrb[0].mxu0
        %3976 = vmatprep.mubr.f32.mxu0 %v3815
        %3977 = vmatmul.mubr.f32.gmra.mrb[0].mxu0 %v3814
        %v3978 = vpop.f32.mrb[0].mxu0
        %v3979 = vadd.f32 0.0, %v3978
        %v3980 = vpop.f32.mrb[0].mxu0
        %3981 = vmatprep.mubr.f32.mxu0 %v3818
        %3982 = vmatmul.mubr.f32.gmra.mrb[0].mxu0 %v3817
        %v3983 = vpop.f32.mrb[0].mxu0
        %v3984 = vadd.f32 0.0, %v3983
        %v3985 = vpop.f32.mrb[0].mxu0
        %3986 = vmatprep.mubr.f32.mxu0 %v3821
        %3987 = vmatmul.mubr.f32.gmra.mrb[0].mxu0 %v3820
        %v3988 = vpop.f32.mrb[0].mxu0
        %v3989 = vadd.f32 0.0, %v3988
        %v3990 = vpop.f32.mrb[0].mxu0
        %3991 = vdwg.mxu0
        %3992 = vmatprep.subr.mxu0 0.0
        %3993 = vmatpush1.msra.mxu0 %v3440
        %3994 = vmatprep.subr.mxu0 0.0
        %3995 = vmatpush1.msra.mxu0 %v3441
        %3996 = vmatprep.subr.mxu0 0.0
        %3997 = vmatpush1.msra.mxu0 %v3442
        %3998 = vmatprep.subr.mxu0 0.0
        %3999 = vmatpush1.msra.mxu0 %v3443
        %4000 = vmatprep.subr.mxu0 0.0
        %4001 = vmatpush1.msra.mxu0 0.0
        %4002 = vmatprep.subr.mxu0 0.0
        %4003 = vmatpush1.msra.mxu0 0.0
        %4004 = vmatprep.subr.mxu0 0.0
        %4005 = vmatpush1.msra.mxu0 0.0
        %4006 = vmatprep.subr.mxu0 0.0
        %4007 = vmatpush1.msra.mxu0 0.0
        %4008 = vmatprep.subr.mxu0 0.0
        %4009 = vmatpush1.msra.mxu0 0.0
        %4010 = vmatprep.subr.mxu0 0.0
        %4011 = vmatpush1.msra.mxu0 0.0
        %4012 = vmatprep.subr.mxu0 0.0
        %4013 = vmatpush1.msra.mxu0 0.0
        %4014 = vmatprep.subr.mxu0 0.0
        %4015 = vmatpush1.msra.mxu0 0.0
        %4016 = vmatprep.subr.mxu0 0.0
        %4017 = vmatpush1.msra.mxu0 0.0
        %4018 = vmatprep.subr.mxu0 0.0
        %4019 = vmatpush1.msra.mxu0 0.0
        %4020 = vmatprep.subr.mxu0 0.0
        %4021 = vmatpush1.msra.mxu0 0.0
        %4022 = vmatprep.subr.mxu0 0.0
        %4023 = vmatpush1.msra.mxu0 0.0
        %4024 = vmatprep.subr.mxu0 0.0
        %4025 = vmatpush1.msra.mxu0 0.0
        %4026 = vmatprep.subr.mxu0 0.0
        %4027 = vmatpush1.msra.mxu0 0.0
        %4028 = vmatprep.subr.mxu0 0.0
        %4029 = vmatpush1.msra.mxu0 0.0
        %4030 = vmatprep.subr.mxu0 0.0
        %4031 = vmatpush1.msra.mxu0 0.0
        %4032 = vmatprep.subr.mxu0 0.0
        %4033 = vmatpush1.msra.mxu0 0.0
        %4034 = vmatprep.subr.mxu0 0.0
        %4035 = vmatpush1.msra.mxu0 0.0
        %4036 = vmatprep.subr.mxu0 0.0
        %4037 = vmatpush1.msra.mxu0 0.0
        %4038 = vmatprep.subr.mxu0 0.0
        %4039 = vmatpush1.msra.mxu0 0.0
        %4040 = vmatprep.subr.mxu0 0.0
        %4041 = vmatpush1.msra.mxu0 0.0
        %4042 = vmatprep.subr.mxu0 0.0
        %4043 = vmatpush1.msra.mxu0 0.0
        %4044 = vmatprep.subr.mxu0 0.0
        %4045 = vmatpush1.msra.mxu0 0.0
        %4046 = vmatprep.subr.mxu0 0.0
        %4047 = vmatpush1.msra.mxu0 0.0
        %4048 = vmatprep.subr.mxu0 0.0
        %4049 = vmatpush1.msra.mxu0 0.0
        %4050 = vmatprep.subr.mxu0 0.0
        %4051 = vmatpush1.msra.mxu0 0.0
        %4052 = vmatprep.subr.mxu0 0.0
        %4053 = vmatpush1.msra.mxu0 0.0
        %4054 = vmatprep.subr.mxu0 0.0
        %4055 = vmatpush1.msra.mxu0 0.0
        %4056 = vmatprep.mubr.f32.mxu0 0.0
        %4057 = vmatmul.mubr.f32.gmra.mrb[0].mxu0 %v3824
        %v4058 = vpop.f32.mrb[0].mxu0
        %v4059 = vadd.f32 %v3929, %v4058
        %v4060 = vpop.f32.mrb[0].mxu0
        %4061 = vmatprep.mubr.f32.mxu0 0.0
        %4062 = vmatmul.mubr.f32.gmra.mrb[0].mxu0 %v3827
        %v4063 = vpop.f32.mrb[0].mxu0
        %v4064 = vadd.f32 %v3934, %v4063
        %v4065 = vpop.f32.mrb[0].mxu0
        %4066 = vmatprep.mubr.f32.mxu0 0.0
        %4067 = vmatmul.mubr.f32.gmra.mrb[0].mxu0 %v3830
        %v4068 = vpop.f32.mrb[0].mxu0
        %v4069 = vadd.f32 %v3939, %v4068
        %v4070 = vpop.f32.mrb[0].mxu0
        %4071 = vmatprep.mubr.f32.mxu0 0.0
        %4072 = vmatmul.mubr.f32.gmra.mrb[0].mxu0 %v3833
        %v4073 = vpop.f32.mrb[0].mxu0
        %v4074 = vadd.f32 %v3944, %v4073
        %v4075 = vpop.f32.mrb[0].mxu0
        %4076 = vmatprep.mubr.f32.mxu0 0.0
        %4077 = vmatmul.mubr.f32.gmra.mrb[0].mxu0 %v3836
        %v4078 = vpop.f32.mrb[0].mxu0
        %v4079 = vadd.f32 %v3949, %v4078
        %v4080 = vpop.f32.mrb[0].mxu0
        %4081 = vmatprep.mubr.f32.mxu0 0.0
        %4082 = vmatmul.mubr.f32.gmra.mrb[0].mxu0 %v3839
        %v4083 = vpop.f32.mrb[0].mxu0
        %v4084 = vadd.f32 %v3954, %v4083
        %v4085 = vpop.f32.mrb[0].mxu0
        %4086 = vmatprep.mubr.f32.mxu0 0.0
        %4087 = vmatmul.mubr.f32.gmra.mrb[0].mxu0 %v3842
        %v4088 = vpop.f32.mrb[0].mxu0
        %v4089 = vadd.f32 %v3959, %v4088
        %v4090 = vpop.f32.mrb[0].mxu0
        %4091 = vmatprep.mubr.f32.mxu0 0.0
        %4092 = vmatmul.mubr.f32.gmra.mrb[0].mxu0 %v3845
        %v4093 = vpop.f32.mrb[0].mxu0
        %v4094 = vadd.f32 %v3964, %v4093
        %v4095 = vpop.f32.mrb[0].mxu0
        %4096 = vmatprep.mubr.f32.mxu0 0.0
        %4097 = vmatmul.mubr.f32.gmra.mrb[0].mxu0 %v3848
        %v4098 = vpop.f32.mrb[0].mxu0
        %v4099 = vadd.f32 %v3969, %v4098
        %v4100 = vpop.f32.mrb[0].mxu0
        %4101 = vmatprep.mubr.f32.mxu0 0.0
        %4102 = vmatmul.mubr.f32.gmra.mrb[0].mxu0 %v3851
        %v4103 = vpop.f32.mrb[0].mxu0
        %v4104 = vadd.f32 %v3974, %v4103
        %v4105 = vpop.f32.mrb[0].mxu0
        %4106 = vmatprep.mubr.f32.mxu0 0.0
        %4107 = vmatmul.mubr.f32.gmra.mrb[0].mxu0 %v3854
        %v4108 = vpop.f32.mrb[0].mxu0
        %v4109 = vadd.f32 %v3979, %v4108
        %v4110 = vpop.f32.mrb[0].mxu0
        %4111 = vmatprep.mubr.f32.mxu0 0.0
        %4112 = vmatmul.mubr.f32.gmra.mrb[0].mxu0 %v3857
        %v4113 = vpop.f32.mrb[0].mxu0
        %v4114 = vadd.f32 %v3984, %v4113
        %v4115 = vpop.f32.mrb[0].mxu0
        %4116 = vmatprep.mubr.f32.mxu0 0.0
        %4117 = vmatmul.mubr.f32.gmra.mrb[0].mxu0 %v3860
        %v4118 = vpop.f32.mrb[0].mxu0
        %v4119 = vadd.f32 %v3989, %v4118
        %v4120 = vpop.f32.mrb[0].mxu0
        %4121 = vdwg.mxu0
        %v4122 = vmax.f32 %v3720, %v4059
        %v4123 = vmax.f32 %v3725, %v4064
        %v4124 = vmax.f32 %v3730, %v4069
        %v4125 = vmax.f32 %v3735, %v4074
        %v4126 = vmax.f32 %v3740, %v4079
        %v4127 = vmax.f32 %v3745, %v4084
        %v4128 = vmax.f32 %v3750, %v4089
        %v4129 = vmax.f32 %v3755, %v4094
        %v4130 = vmax.f32 %v3760, %v4099
        %v4131 = vmax.f32 %v3765, %v4104
        %v4132 = vmax.f32 %v3770, %v4109
        %v4133 = vmax.f32 %v3775, %v4114
        %v4134 = vmax.f32 %v3780, %v4119
        %s4135 = scalar_lea.vmem %s3, 624
        %v4136 = vld [vmem:[%s4135] sm:$0xff]
        %v4137 = vld [vmem:[%s4135 + $0x8] sm:$0xff]
        %v4138 = vld [vmem:[%s4135 + $0x10] sm:$0xff]
        %v4139 = vld [vmem:[%s4135 + $0x18] sm:$0xff]
        %v4140 = vld [vmem:[%s4135 + $0x20] sm:$0xff]
        %v4141 = vld [vmem:[%s4135 + $0x28] sm:$0xff]
        %v4142 = vld [vmem:[%s4135 + $0x30] sm:$0xff]
        %v4143 = vld [vmem:[%s4135 + $0x38] sm:$0xff]
        %v4144 = vld [vmem:[%s4135 + $0x40] sm:$0xff]
        %v4145 = vld [vmem:[%s4135 + $0x48] sm:$0xff]
        %v4146 = vld [vmem:[%s4135 + $0x50] sm:$0xff]
        %v4147 = vld [vmem:[%s4135 + $0x58] sm:$0xff]
        %v4148 = vld [vmem:[%s4135 + $0x60] sm:$0xff]
        %v4149 = vld [vmem:[%s4135 + $0x68] sm:$0xff]
        %v4150 = vld [vmem:[%s4135 + $0x70] sm:$0xff]
        %v4151 = vld [vmem:[%s4135 + $0x78] sm:$0xff]
        %v4152 = vld [vmem:[%s4135 + $0x80] sm:$0xff]
        %v4153 = vld [vmem:[%s4135 + $0x88] sm:$0xff]
        %v4154 = vld [vmem:[%s4135 + $0x90] sm:$0xff]
        %v4155 = vld [vmem:[%s4135 + $0x98] sm:$0xff]
        %v4156 = vld [vmem:[%s4135 + $0xa0] sm:$0xff]
        %v4157 = vld [vmem:[%s4135 + $0xa8] sm:$0xff]
        %v4158 = vld [vmem:[%s4135 + $0xb0] sm:$0xff]
        %v4159 = vld [vmem:[%s4135 + $0xb8] sm:$0xff]
        %v4160 = vld [vmem:[%s4135 + $0xc0] sm:$0xff]
        %v4161 = vld [vmem:[%s4135 + $0xc8] sm:$0xff]
        %v4162 = vld [vmem:[%s4135 + $0xd0] sm:$0xff]
        %v4163 = vld [vmem:[%s4135 + $0xd8] sm:$0xff]
        %v4164 = vld [vmem:[%s4135 + $0xe0] sm:$0xff]
        %v4165 = vld [vmem:[%s4135 + $0xe8] sm:$0xff]
        %v4166 = vld [vmem:[%s4135 + $0xf0] sm:$0xff]
        %v4167 = vld [vmem:[%s4135 + $0xf8] sm:$0xff]
        %v4168 = vld [vmem:[%s4135 + $0x100] sm:$0xff]
        %v4169 = vld [vmem:[%s4135 + $0x108] sm:$0xff]
        %v4170 = vld [vmem:[%s4135 + $0x110] sm:$0xff]
        %v4171 = vld [vmem:[%s4135 + $0x118] sm:$0xff]
        %v4172 = vld [vmem:[%s4135 + $0x120] sm:$0xff]
        %v4173 = vld [vmem:[%s4135 + $0x128] sm:$0xff]
        %v4174 = vld [vmem:[%s4135 + $0x130] sm:$0xff]
        %v4176 = vsel %vm3483, %v4138, 0
        %v4179 = vsel %vm3483, %v4141, 0
        %v4182 = vsel %vm3483, %v4144, 0
        %v4185 = vsel %vm3483, %v4147, 0
        %v4188 = vsel %vm3483, %v4150, 0
        %v4191 = vsel %vm3483, %v4153, 0
        %v4194 = vsel %vm3483, %v4156, 0
        %v4197 = vsel %vm3483, %v4159, 0
        %v4200 = vsel %vm3483, %v4162, 0
        %v4203 = vsel %vm3483, %v4165, 0
        %v4206 = vsel %vm3483, %v4168, 0
        %v4209 = vsel %vm3483, %v4171, 0
        %v4212 = vsel %vm3483, %v4174, 0
        %4214 = vmatprep.subr.mxu0 0.0
        %4215 = vmatpush1.msra.mxu0 %v3408
        %4216 = vmatprep.subr.mxu0 0.0
        %4217 = vmatpush1.msra.mxu0 %v3409
        %4218 = vmatprep.subr.mxu0 0.0
        %4219 = vmatpush1.msra.mxu0 %v3410
        %4220 = vmatprep.subr.mxu0 0.0
        %4221 = vmatpush1.msra.mxu0 %v3411
        %4222 = vmatprep.subr.mxu0 0.0
        %4223 = vmatpush1.msra.mxu0 %v3412
        %4224 = vmatprep.subr.mxu0 0.0
        %4225 = vmatpush1.msra.mxu0 %v3413
        %4226 = vmatprep.subr.mxu0 0.0
        %4227 = vmatpush1.msra.mxu0 %v3414
        %4228 = vmatprep.subr.mxu0 0.0
        %4229 = vmatpush1.msra.mxu0 %v3415
        %4230 = vmatprep.subr.mxu0 0.0
        %4231 = vmatpush1.msra.mxu0 %v3416
        %4232 = vmatprep.subr.mxu0 0.0
        %4233 = vmatpush1.msra.mxu0 %v3417
        %4234 = vmatprep.subr.mxu0 0.0
        %4235 = vmatpush1.msra.mxu0 %v3418
        %4236 = vmatprep.subr.mxu0 0.0
        %4237 = vmatpush1.msra.mxu0 %v3419
        %4238 = vmatprep.subr.mxu0 0.0
        %4239 = vmatpush1.msra.mxu0 %v3420
        %4240 = vmatprep.subr.mxu0 0.0
        %4241 = vmatpush1.msra.mxu0 %v3421
        %4242 = vmatprep.subr.mxu0 0.0
        %4243 = vmatpush1.msra.mxu0 %v3422
        %4244 = vmatprep.subr.mxu0 0.0
        %4245 = vmatpush1.msra.mxu0 %v3423
        %4246 = vmatprep.subr.mxu0 0.0
        %4247 = vmatpush1.msra.mxu0 %v3424
        %4248 = vmatprep.subr.mxu0 0.0
        %4249 = vmatpush1.msra.mxu0 %v3425
        %4250 = vmatprep.subr.mxu0 0.0
        %4251 = vmatpush1.msra.mxu0 %v3426
        %4252 = vmatprep.subr.mxu0 0.0
        %4253 = vmatpush1.msra.mxu0 %v3427
        %4254 = vmatprep.subr.mxu0 0.0
        %4255 = vmatpush1.msra.mxu0 %v3428
        %4256 = vmatprep.subr.mxu0 0.0
        %4257 = vmatpush1.msra.mxu0 %v3429
        %4258 = vmatprep.subr.mxu0 0.0
        %4259 = vmatpush1.msra.mxu0 %v3430
        %4260 = vmatprep.subr.mxu0 0.0
        %4261 = vmatpush1.msra.mxu0 %v3431
        %4262 = vmatprep.subr.mxu0 0.0
        %4263 = vmatpush1.msra.mxu0 %v3432
        %4264 = vmatprep.subr.mxu0 0.0
        %4265 = vmatpush1.msra.mxu0 %v3433
        %4266 = vmatprep.subr.mxu0 0.0
        %4267 = vmatpush1.msra.mxu0 %v3434
        %4268 = vmatprep.subr.mxu0 0.0
        %4269 = vmatpush1.msra.mxu0 %v3435
        %4270 = vmatprep.subr.mxu0 0.0
        %4271 = vmatpush1.msra.mxu0 %v3436
        %4272 = vmatprep.subr.mxu0 0.0
        %4273 = vmatpush1.msra.mxu0 %v3437
        %4274 = vmatprep.subr.mxu0 0.0
        %4275 = vmatpush1.msra.mxu0 %v3438
        %4276 = vmatprep.subr.mxu0 0.0
        %4277 = vmatpush1.msra.mxu0 %v3439
        %4278 = vmatprep.mubr.f32.mxu0 %v4137
        %4279 = vmatmul.mubr.f32.gmra.mrb[0].mxu0 %v4136
        %v4280 = vpop.f32.mrb[0].mxu0
        %v4281 = vadd.f32 0.0, %v4280
        %v4282 = vpop.f32.mrb[0].mxu0
        %4283 = vmatprep.mubr.f32.mxu0 %v4140
        %4284 = vmatmul.mubr.f32.gmra.mrb[0].mxu0 %v4139
        %v4285 = vpop.f32.mrb[0].mxu0
        %v4286 = vadd.f32 0.0, %v4285
        %v4287 = vpop.f32.mrb[0].mxu0
        %4288 = vmatprep.mubr.f32.mxu0 %v4143
        %4289 = vmatmul.mubr.f32.gmra.mrb[0].mxu0 %v4142
        %v4290 = vpop.f32.mrb[0].mxu0
        %v4291 = vadd.f32 0.0, %v4290
        %v4292 = vpop.f32.mrb[0].mxu0
        %4293 = vmatprep.mubr.f32.mxu0 %v4146
        %4294 = vmatmul.mubr.f32.gmra.mrb[0].mxu0 %v4145
        %v4295 = vpop.f32.mrb[0].mxu0
        %v4296 = vadd.f32 0.0, %v4295
        %v4297 = vpop.f32.mrb[0].mxu0
        %4298 = vmatprep.mubr.f32.mxu0 %v4149
        %4299 = vmatmul.mubr.f32.gmra.mrb[0].mxu0 %v4148
        %v4300 = vpop.f32.mrb[0].mxu0
        %v4301 = vadd.f32 0.0, %v4300
        %v4302 = vpop.f32.mrb[0].mxu0
        %4303 = vmatprep.mubr.f32.mxu0 %v4152
        %4304 = vmatmul.mubr.f32.gmra.mrb[0].mxu0 %v4151
        %v4305 = vpop.f32.mrb[0].mxu0
        %v4306 = vadd.f32 0.0, %v4305
        %v4307 = vpop.f32.mrb[0].mxu0
        %4308 = vmatprep.mubr.f32.mxu0 %v4155
        %4309 = vmatmul.mubr.f32.gmra.mrb[0].mxu0 %v4154
        %v4310 = vpop.f32.mrb[0].mxu0
        %v4311 = vadd.f32 0.0, %v4310
        %v4312 = vpop.f32.mrb[0].mxu0
        %4313 = vmatprep.mubr.f32.mxu0 %v4158
        %4314 = vmatmul.mubr.f32.gmra.mrb[0].mxu0 %v4157
        %v4315 = vpop.f32.mrb[0].mxu0
        %v4316 = vadd.f32 0.0, %v4315
        %v4317 = vpop.f32.mrb[0].mxu0
        %4318 = vmatprep.mubr.f32.mxu0 %v4161
        %4319 = vmatmul.mubr.f32.gmra.mrb[0].mxu0 %v4160
        %v4320 = vpop.f32.mrb[0].mxu0
        %v4321 = vadd.f32 0.0, %v4320
        %v4322 = vpop.f32.mrb[0].mxu0
        %4323 = vmatprep.mubr.f32.mxu0 %v4164
        %4324 = vmatmul.mubr.f32.gmra.mrb[0].mxu0 %v4163
        %v4325 = vpop.f32.mrb[0].mxu0
        %v4326 = vadd.f32 0.0, %v4325
        %v4327 = vpop.f32.mrb[0].mxu0
        %4328 = vmatprep.mubr.f32.mxu0 %v4167
        %4329 = vmatmul.mubr.f32.gmra.mrb[0].mxu0 %v4166
        %v4330 = vpop.f32.mrb[0].mxu0
        %v4331 = vadd.f32 0.0, %v4330
        %v4332 = vpop.f32.mrb[0].mxu0
        %4333 = vmatprep.mubr.f32.mxu0 %v4170
        %4334 = vmatmul.mubr.f32.gmra.mrb[0].mxu0 %v4169
        %v4335 = vpop.f32.mrb[0].mxu0
        %v4336 = vadd.f32 0.0, %v4335
        %v4337 = vpop.f32.mrb[0].mxu0
        %4338 = vmatprep.mubr.f32.mxu0 %v4173
        %4339 = vmatmul.mubr.f32.gmra.mrb[0].mxu0 %v4172
        %v4340 = vpop.f32.mrb[0].mxu0
        %v4341 = vadd.f32 0.0, %v4340
        %v4342 = vpop.f32.mrb[0].mxu0
        %4343 = vdwg.mxu0
        %4344 = vmatprep.subr.mxu0 0.0
        %4345 = vmatpush1.msra.mxu0 %v3440
        %4346 = vmatprep.subr.mxu0 0.0
        %4347 = vmatpush1.msra.mxu0 %v3441
        %4348 = vmatprep.subr.mxu0 0.0
        %4349 = vmatpush1.msra.mxu0 %v3442
        %4350 = vmatprep.subr.mxu0 0.0
        %4351 = vmatpush1.msra.mxu0 %v3443
        %4352 = vmatprep.subr.mxu0 0.0
        %4353 = vmatpush1.msra.mxu0 0.0
        %4354 = vmatprep.subr.mxu0 0.0
        %4355 = vmatpush1.msra.mxu0 0.0
        %4356 = vmatprep.subr.mxu0 0.0
        %4357 = vmatpush1.msra.mxu0 0.0
        %4358 = vmatprep.subr.mxu0 0.0
        %4359 = vmatpush1.msra.mxu0 0.0
        %4360 = vmatprep.subr.mxu0 0.0
        %4361 = vmatpush1.msra.mxu0 0.0
        %4362 = vmatprep.subr.mxu0 0.0
        %4363 = vmatpush1.msra.mxu0 0.0
        %4364 = vmatprep.subr.mxu0 0.0
        %4365 = vmatpush1.msra.mxu0 0.0
        %4366 = vmatprep.subr.mxu0 0.0
        %4367 = vmatpush1.msra.mxu0 0.0
        %4368 = vmatprep.subr.mxu0 0.0
        %4369 = vmatpush1.msra.mxu0 0.0
        %4370 = vmatprep.subr.mxu0 0.0
        %4371 = vmatpush1.msra.mxu0 0.0
        %4372 = vmatprep.subr.mxu0 0.0
        %4373 = vmatpush1.msra.mxu0 0.0
        %4374 = vmatprep.subr.mxu0 0.0
        %4375 = vmatpush1.msra.mxu0 0.0
        %4376 = vmatprep.subr.mxu0 0.0
        %4377 = vmatpush1.msra.mxu0 0.0
        %4378 = vmatprep.subr.mxu0 0.0
        %4379 = vmatpush1.msra.mxu0 0.0
        %4380 = vmatprep.subr.mxu0 0.0
        %4381 = vmatpush1.msra.mxu0 0.0
        %4382 = vmatprep.subr.mxu0 0.0
        %4383 = vmatpush1.msra.mxu0 0.0
        %4384 = vmatprep.subr.mxu0 0.0
        %4385 = vmatpush1.msra.mxu0 0.0
        %4386 = vmatprep.subr.mxu0 0.0
        %4387 = vmatpush1.msra.mxu0 0.0
        %4388 = vmatprep.subr.mxu0 0.0
        %4389 = vmatpush1.msra.mxu0 0.0
        %4390 = vmatprep.subr.mxu0 0.0
        %4391 = vmatpush1.msra.mxu0 0.0
        %4392 = vmatprep.subr.mxu0 0.0
        %4393 = vmatpush1.msra.mxu0 0.0
        %4394 = vmatprep.subr.mxu0 0.0
        %4395 = vmatpush1.msra.mxu0 0.0
        %4396 = vmatprep.subr.mxu0 0.0
        %4397 = vmatpush1.msra.mxu0 0.0
        %4398 = vmatprep.subr.mxu0 0.0
        %4399 = vmatpush1.msra.mxu0 0.0
        %4400 = vmatprep.subr.mxu0 0.0
        %4401 = vmatpush1.msra.mxu0 0.0
        %4402 = vmatprep.subr.mxu0 0.0
        %4403 = vmatpush1.msra.mxu0 0.0
        %4404 = vmatprep.subr.mxu0 0.0
        %4405 = vmatpush1.msra.mxu0 0.0
        %4406 = vmatprep.subr.mxu0 0.0
        %4407 = vmatpush1.msra.mxu0 0.0
        %4408 = vmatprep.mubr.f32.mxu0 0.0
        %4409 = vmatmul.mubr.f32.gmra.mrb[0].mxu0 %v4176
        %v4410 = vpop.f32.mrb[0].mxu0
        %v4411 = vadd.f32 %v4281, %v4410
        %v4412 = vpop.f32.mrb[0].mxu0
        %4413 = vmatprep.mubr.f32.mxu0 0.0
        %4414 = vmatmul.mubr.f32.gmra.mrb[0].mxu0 %v4179
        %v4415 = vpop.f32.mrb[0].mxu0
        %v4416 = vadd.f32 %v4286, %v4415
        %v4417 = vpop.f32.mrb[0].mxu0
        %4418 = vmatprep.mubr.f32.mxu0 0.0
        %4419 = vmatmul.mubr.f32.gmra.mrb[0].mxu0 %v4182
        %v4420 = vpop.f32.mrb[0].mxu0
        %v4421 = vadd.f32 %v4291, %v4420
        %v4422 = vpop.f32.mrb[0].mxu0
        %4423 = vmatprep.mubr.f32.mxu0 0.0
        %4424 = vmatmul.mubr.f32.gmra.mrb[0].mxu0 %v4185
        %v4425 = vpop.f32.mrb[0].mxu0
        %v4426 = vadd.f32 %v4296, %v4425
        %v4427 = vpop.f32.mrb[0].mxu0
        %4428 = vmatprep.mubr.f32.mxu0 0.0
        %4429 = vmatmul.mubr.f32.gmra.mrb[0].mxu0 %v4188
        %v4430 = vpop.f32.mrb[0].mxu0
        %v4431 = vadd.f32 %v4301, %v4430
        %v4432 = vpop.f32.mrb[0].mxu0
        %4433 = vmatprep.mubr.f32.mxu0 0.0
        %4434 = vmatmul.mubr.f32.gmra.mrb[0].mxu0 %v4191
        %v4435 = vpop.f32.mrb[0].mxu0
        %v4436 = vadd.f32 %v4306, %v4435
        %v4437 = vpop.f32.mrb[0].mxu0
        %4438 = vmatprep.mubr.f32.mxu0 0.0
        %4439 = vmatmul.mubr.f32.gmra.mrb[0].mxu0 %v4194
        %v4440 = vpop.f32.mrb[0].mxu0
        %v4441 = vadd.f32 %v4311, %v4440
        %v4442 = vpop.f32.mrb[0].mxu0
        %4443 = vmatprep.mubr.f32.mxu0 0.0
        %4444 = vmatmul.mubr.f32.gmra.mrb[0].mxu0 %v4197
        %v4445 = vpop.f32.mrb[0].mxu0
        %v4446 = vadd.f32 %v4316, %v4445
        %v4447 = vpop.f32.mrb[0].mxu0
        %4448 = vmatprep.mubr.f32.mxu0 0.0
        %4449 = vmatmul.mubr.f32.gmra.mrb[0].mxu0 %v4200
        %v4450 = vpop.f32.mrb[0].mxu0
        %v4451 = vadd.f32 %v4321, %v4450
        %v4452 = vpop.f32.mrb[0].mxu0
        %4453 = vmatprep.mubr.f32.mxu0 0.0
        %4454 = vmatmul.mubr.f32.gmra.mrb[0].mxu0 %v4203
        %v4455 = vpop.f32.mrb[0].mxu0
        %v4456 = vadd.f32 %v4326, %v4455
        %v4457 = vpop.f32.mrb[0].mxu0
        %4458 = vmatprep.mubr.f32.mxu0 0.0
        %4459 = vmatmul.mubr.f32.gmra.mrb[0].mxu0 %v4206
        %v4460 = vpop.f32.mrb[0].mxu0
        %v4461 = vadd.f32 %v4331, %v4460
        %v4462 = vpop.f32.mrb[0].mxu0
        %4463 = vmatprep.mubr.f32.mxu0 0.0
        %4464 = vmatmul.mubr.f32.gmra.mrb[0].mxu0 %v4209
        %v4465 = vpop.f32.mrb[0].mxu0
        %v4466 = vadd.f32 %v4336, %v4465
        %v4467 = vpop.f32.mrb[0].mxu0
        %4468 = vmatprep.mubr.f32.mxu0 0.0
        %4469 = vmatmul.mubr.f32.gmra.mrb[0].mxu0 %v4212
        %v4470 = vpop.f32.mrb[0].mxu0
        %v4471 = vadd.f32 %v4341, %v4470
        %v4472 = vpop.f32.mrb[0].mxu0
        %4473 = vdwg.mxu0
        %v4474 = vmax.f32 %v4122, %v4411
        %v4475 = vmax.f32 %v4123, %v4416
        %v4476 = vmax.f32 %v4124, %v4421
        %v4477 = vmax.f32 %v4125, %v4426
        %v4478 = vmax.f32 %v4126, %v4431
        %v4479 = vmax.f32 %v4127, %v4436
        %v4480 = vmax.f32 %v4128, %v4441
        %v4481 = vmax.f32 %v4129, %v4446
        %v4482 = vmax.f32 %v4130, %v4451
        %v4483 = vmax.f32 %v4131, %v4456
        %v4484 = vmax.f32 %v4132, %v4461
        %v4485 = vmax.f32 %v4133, %v4466
        %v4486 = vmax.f32 %v4134, %v4471
        %s4487 = scalar_lea.vmem %s3, 936
        %v4488 = vld [vmem:[%s4487] sm:$0xff]
        %v4489 = vld [vmem:[%s4487 + $0x8] sm:$0xff]
        %v4490 = vld [vmem:[%s4487 + $0x10] sm:$0xff]
        %v4491 = vld [vmem:[%s4487 + $0x18] sm:$0xff]
        %v4492 = vld [vmem:[%s4487 + $0x20] sm:$0xff]
        %v4493 = vld [vmem:[%s4487 + $0x28] sm:$0xff]
        %v4494 = vld [vmem:[%s4487 + $0x30] sm:$0xff]
        %v4495 = vld [vmem:[%s4487 + $0x38] sm:$0xff]
        %v4496 = vld [vmem:[%s4487 + $0x40] sm:$0xff]
        %v4497 = vld [vmem:[%s4487 + $0x48] sm:$0xff]
        %v4498 = vld [vmem:[%s4487 + $0x50] sm:$0xff]
        %v4499 = vld [vmem:[%s4487 + $0x58] sm:$0xff]
        %v4500 = vld [vmem:[%s4487 + $0x60] sm:$0xff]
        %v4501 = vld [vmem:[%s4487 + $0x68] sm:$0xff]
        %v4502 = vld [vmem:[%s4487 + $0x70] sm:$0xff]
        %v4503 = vld [vmem:[%s4487 + $0x78] sm:$0xff]
        %v4504 = vld [vmem:[%s4487 + $0x80] sm:$0xff]
        %v4505 = vld [vmem:[%s4487 + $0x88] sm:$0xff]
        %v4506 = vld [vmem:[%s4487 + $0x90] sm:$0xff]
        %v4507 = vld [vmem:[%s4487 + $0x98] sm:$0xff]
        %v4508 = vld [vmem:[%s4487 + $0xa0] sm:$0xff]
        %v4509 = vld [vmem:[%s4487 + $0xa8] sm:$0xff]
        %v4510 = vld [vmem:[%s4487 + $0xb0] sm:$0xff]
        %v4511 = vld [vmem:[%s4487 + $0xb8] sm:$0xff]
        %v4512 = vld [vmem:[%s4487 + $0xc0] sm:$0xff]
        %v4513 = vld [vmem:[%s4487 + $0xc8] sm:$0xff]
        %v4514 = vld [vmem:[%s4487 + $0xd0] sm:$0xff]
        %v4515 = vld [vmem:[%s4487 + $0xd8] sm:$0xff]
        %v4516 = vld [vmem:[%s4487 + $0xe0] sm:$0xff]
        %v4517 = vld [vmem:[%s4487 + $0xe8] sm:$0xff]
        %v4518 = vld [vmem:[%s4487 + $0xf0] sm:$0xff]
        %v4519 = vld [vmem:[%s4487 + $0xf8] sm:$0xff]
        %v4520 = vld [vmem:[%s4487 + $0x100] sm:$0xff]
        %v4521 = vld [vmem:[%s4487 + $0x108] sm:$0xff]
        %v4522 = vld [vmem:[%s4487 + $0x110] sm:$0xff]
        %v4523 = vld [vmem:[%s4487 + $0x118] sm:$0xff]
        %v4524 = vld [vmem:[%s4487 + $0x120] sm:$0xff]
        %v4525 = vld [vmem:[%s4487 + $0x128] sm:$0xff]
        %v4526 = vld [vmem:[%s4487 + $0x130] sm:$0xff]
        %v4528 = vsel %vm3483, %v4490, 0
        %v4531 = vsel %vm3483, %v4493, 0
        %v4534 = vsel %vm3483, %v4496, 0
        %v4537 = vsel %vm3483, %v4499, 0
        %v4540 = vsel %vm3483, %v4502, 0
        %v4543 = vsel %vm3483, %v4505, 0
        %v4546 = vsel %vm3483, %v4508, 0
        %v4549 = vsel %vm3483, %v4511, 0
        %v4552 = vsel %vm3483, %v4514, 0
        %v4555 = vsel %vm3483, %v4517, 0
        %v4558 = vsel %vm3483, %v4520, 0
        %v4561 = vsel %vm3483, %v4523, 0
        %v4564 = vsel %vm3483, %v4526, 0
        %4566 = vmatprep.subr.mxu0 0.0
        %4567 = vmatpush1.msra.mxu0 %v3408
        %4568 = vmatprep.subr.mxu0 0.0
        %4569 = vmatpush1.msra.mxu0 %v3409
        %4570 = vmatprep.subr.mxu0 0.0
        %4571 = vmatpush1.msra.mxu0 %v3410
        %4572 = vmatprep.subr.mxu0 0.0
        %4573 = vmatpush1.msra.mxu0 %v3411
        %4574 = vmatprep.subr.mxu0 0.0
        %4575 = vmatpush1.msra.mxu0 %v3412
        %4576 = vmatprep.subr.mxu0 0.0
        %4577 = vmatpush1.msra.mxu0 %v3413
        %4578 = vmatprep.subr.mxu0 0.0
        %4579 = vmatpush1.msra.mxu0 %v3414
        %4580 = vmatprep.subr.mxu0 0.0
        %4581 = vmatpush1.msra.mxu0 %v3415
        %4582 = vmatprep.subr.mxu0 0.0
        %4583 = vmatpush1.msra.mxu0 %v3416
        %4584 = vmatprep.subr.mxu0 0.0
        %4585 = vmatpush1.msra.mxu0 %v3417
        %4586 = vmatprep.subr.mxu0 0.0
        %4587 = vmatpush1.msra.mxu0 %v3418
        %4588 = vmatprep.subr.mxu0 0.0
        %4589 = vmatpush1.msra.mxu0 %v3419
        %4590 = vmatprep.subr.mxu0 0.0
        %4591 = vmatpush1.msra.mxu0 %v3420
        %4592 = vmatprep.subr.mxu0 0.0
        %4593 = vmatpush1.msra.mxu0 %v3421
        %4594 = vmatprep.subr.mxu0 0.0
        %4595 = vmatpush1.msra.mxu0 %v3422
        %4596 = vmatprep.subr.mxu0 0.0
        %4597 = vmatpush1.msra.mxu0 %v3423
        %4598 = vmatprep.subr.mxu0 0.0
        %4599 = vmatpush1.msra.mxu0 %v3424
        %4600 = vmatprep.subr.mxu0 0.0
        %4601 = vmatpush1.msra.mxu0 %v3425
        %4602 = vmatprep.subr.mxu0 0.0
        %4603 = vmatpush1.msra.mxu0 %v3426
        %4604 = vmatprep.subr.mxu0 0.0
        %4605 = vmatpush1.msra.mxu0 %v3427
        %4606 = vmatprep.subr.mxu0 0.0
        %4607 = vmatpush1.msra.mxu0 %v3428
        %4608 = vmatprep.subr.mxu0 0.0
        %4609 = vmatpush1.msra.mxu0 %v3429
        %4610 = vmatprep.subr.mxu0 0.0
        %4611 = vmatpush1.msra.mxu0 %v3430
        %4612 = vmatprep.subr.mxu0 0.0
        %4613 = vmatpush1.msra.mxu0 %v3431
        %4614 = vmatprep.subr.mxu0 0.0
        %4615 = vmatpush1.msra.mxu0 %v3432
        %4616 = vmatprep.subr.mxu0 0.0
        %4617 = vmatpush1.msra.mxu0 %v3433
        %4618 = vmatprep.subr.mxu0 0.0
        %4619 = vmatpush1.msra.mxu0 %v3434
        %4620 = vmatprep.subr.mxu0 0.0
        %4621 = vmatpush1.msra.mxu0 %v3435
        %4622 = vmatprep.subr.mxu0 0.0
        %4623 = vmatpush1.msra.mxu0 %v3436
        %4624 = vmatprep.subr.mxu0 0.0
        %4625 = vmatpush1.msra.mxu0 %v3437
        %4626 = vmatprep.subr.mxu0 0.0
        %4627 = vmatpush1.msra.mxu0 %v3438
        %4628 = vmatprep.subr.mxu0 0.0
        %4629 = vmatpush1.msra.mxu0 %v3439
        %4630 = vmatprep.mubr.f32.mxu0 %v4489
        %4631 = vmatmul.mubr.f32.gmra.mrb[0].mxu0 %v4488
        %v4632 = vpop.f32.mrb[0].mxu0
        %v4633 = vadd.f32 0.0, %v4632
        %v4634 = vpop.f32.mrb[0].mxu0
        %4635 = vmatprep.mubr.f32.mxu0 %v4492
        %4636 = vmatmul.mubr.f32.gmra.mrb[0].mxu0 %v4491
        %v4637 = vpop.f32.mrb[0].mxu0
        %v4638 = vadd.f32 0.0, %v4637
        %v4639 = vpop.f32.mrb[0].mxu0
        %4640 = vmatprep.mubr.f32.mxu0 %v4495
        %4641 = vmatmul.mubr.f32.gmra.mrb[0].mxu0 %v4494
        %v4642 = vpop.f32.mrb[0].mxu0
        %v4643 = vadd.f32 0.0, %v4642
        %v4644 = vpop.f32.mrb[0].mxu0
        %4645 = vmatprep.mubr.f32.mxu0 %v4498
        %4646 = vmatmul.mubr.f32.gmra.mrb[0].mxu0 %v4497
        %v4647 = vpop.f32.mrb[0].mxu0
        %v4648 = vadd.f32 0.0, %v4647
        %v4649 = vpop.f32.mrb[0].mxu0
        %4650 = vmatprep.mubr.f32.mxu0 %v4501
        %4651 = vmatmul.mubr.f32.gmra.mrb[0].mxu0 %v4500
        %v4652 = vpop.f32.mrb[0].mxu0
        %v4653 = vadd.f32 0.0, %v4652
        %v4654 = vpop.f32.mrb[0].mxu0
        %4655 = vmatprep.mubr.f32.mxu0 %v4504
        %4656 = vmatmul.mubr.f32.gmra.mrb[0].mxu0 %v4503
        %v4657 = vpop.f32.mrb[0].mxu0
        %v4658 = vadd.f32 0.0, %v4657
        %v4659 = vpop.f32.mrb[0].mxu0
        %4660 = vmatprep.mubr.f32.mxu0 %v4507
        %4661 = vmatmul.mubr.f32.gmra.mrb[0].mxu0 %v4506
        %v4662 = vpop.f32.mrb[0].mxu0
        %v4663 = vadd.f32 0.0, %v4662
        %v4664 = vpop.f32.mrb[0].mxu0
        %4665 = vmatprep.mubr.f32.mxu0 %v4510
        %4666 = vmatmul.mubr.f32.gmra.mrb[0].mxu0 %v4509
        %v4667 = vpop.f32.mrb[0].mxu0
        %v4668 = vadd.f32 0.0, %v4667
        %v4669 = vpop.f32.mrb[0].mxu0
        %4670 = vmatprep.mubr.f32.mxu0 %v4513
        %4671 = vmatmul.mubr.f32.gmra.mrb[0].mxu0 %v4512
        %v4672 = vpop.f32.mrb[0].mxu0
        %v4673 = vadd.f32 0.0, %v4672
        %v4674 = vpop.f32.mrb[0].mxu0
        %4675 = vmatprep.mubr.f32.mxu0 %v4516
        %4676 = vmatmul.mubr.f32.gmra.mrb[0].mxu0 %v4515
        %v4677 = vpop.f32.mrb[0].mxu0
        %v4678 = vadd.f32 0.0, %v4677
        %v4679 = vpop.f32.mrb[0].mxu0
        %4680 = vmatprep.mubr.f32.mxu0 %v4519
        %4681 = vmatmul.mubr.f32.gmra.mrb[0].mxu0 %v4518
        %v4682 = vpop.f32.mrb[0].mxu0
        %v4683 = vadd.f32 0.0, %v4682
        %v4684 = vpop.f32.mrb[0].mxu0
        %4685 = vmatprep.mubr.f32.mxu0 %v4522
        %4686 = vmatmul.mubr.f32.gmra.mrb[0].mxu0 %v4521
        %v4687 = vpop.f32.mrb[0].mxu0
        %v4688 = vadd.f32 0.0, %v4687
        %v4689 = vpop.f32.mrb[0].mxu0
        %4690 = vmatprep.mubr.f32.mxu0 %v4525
        %4691 = vmatmul.mubr.f32.gmra.mrb[0].mxu0 %v4524
        %v4692 = vpop.f32.mrb[0].mxu0
        %v4693 = vadd.f32 0.0, %v4692
        %v4694 = vpop.f32.mrb[0].mxu0
        %4695 = vdwg.mxu0
        %4696 = vmatprep.subr.mxu0 0.0
        %4697 = vmatpush1.msra.mxu0 %v3440
        %4698 = vmatprep.subr.mxu0 0.0
        %4699 = vmatpush1.msra.mxu0 %v3441
        %4700 = vmatprep.subr.mxu0 0.0
        %4701 = vmatpush1.msra.mxu0 %v3442
        %4702 = vmatprep.subr.mxu0 0.0
        %4703 = vmatpush1.msra.mxu0 %v3443
        %4704 = vmatprep.subr.mxu0 0.0
        %4705 = vmatpush1.msra.mxu0 0.0
        %4706 = vmatprep.subr.mxu0 0.0
        %4707 = vmatpush1.msra.mxu0 0.0
        %4708 = vmatprep.subr.mxu0 0.0
        %4709 = vmatpush1.msra.mxu0 0.0
        %4710 = vmatprep.subr.mxu0 0.0
        %4711 = vmatpush1.msra.mxu0 0.0
        %4712 = vmatprep.subr.mxu0 0.0
        %4713 = vmatpush1.msra.mxu0 0.0
        %4714 = vmatprep.subr.mxu0 0.0
        %4715 = vmatpush1.msra.mxu0 0.0
        %4716 = vmatprep.subr.mxu0 0.0
        %4717 = vmatpush1.msra.mxu0 0.0
        %4718 = vmatprep.subr.mxu0 0.0
        %4719 = vmatpush1.msra.mxu0 0.0
        %4720 = vmatprep.subr.mxu0 0.0
        %4721 = vmatpush1.msra.mxu0 0.0
        %4722 = vmatprep.subr.mxu0 0.0
        %4723 = vmatpush1.msra.mxu0 0.0
        %4724 = vmatprep.subr.mxu0 0.0
        %4725 = vmatpush1.msra.mxu0 0.0
        %4726 = vmatprep.subr.mxu0 0.0
        %4727 = vmatpush1.msra.mxu0 0.0
        %4728 = vmatprep.subr.mxu0 0.0
        %4729 = vmatpush1.msra.mxu0 0.0
        %4730 = vmatprep.subr.mxu0 0.0
        %4731 = vmatpush1.msra.mxu0 0.0
        %4732 = vmatprep.subr.mxu0 0.0
        %4733 = vmatpush1.msra.mxu0 0.0
        %4734 = vmatprep.subr.mxu0 0.0
        %4735 = vmatpush1.msra.mxu0 0.0
        %4736 = vmatprep.subr.mxu0 0.0
        %4737 = vmatpush1.msra.mxu0 0.0
        %4738 = vmatprep.subr.mxu0 0.0
        %4739 = vmatpush1.msra.mxu0 0.0
        %4740 = vmatprep.subr.mxu0 0.0
        %4741 = vmatpush1.msra.mxu0 0.0
        %4742 = vmatprep.subr.mxu0 0.0
        %4743 = vmatpush1.msra.mxu0 0.0
        %4744 = vmatprep.subr.mxu0 0.0
        %4745 = vmatpush1.msra.mxu0 0.0
        %4746 = vmatprep.subr.mxu0 0.0
        %4747 = vmatpush1.msra.mxu0 0.0
        %4748 = vmatprep.subr.mxu0 0.0
        %4749 = vmatpush1.msra.mxu0 0.0
        %4750 = vmatprep.subr.mxu0 0.0
        %4751 = vmatpush1.msra.mxu0 0.0
        %4752 = vmatprep.subr.mxu0 0.0
        %4753 = vmatpush1.msra.mxu0 0.0
        %4754 = vmatprep.subr.mxu0 0.0
        %4755 = vmatpush1.msra.mxu0 0.0
        %4756 = vmatprep.subr.mxu0 0.0
        %4757 = vmatpush1.msra.mxu0 0.0
        %4758 = vmatprep.subr.mxu0 0.0
        %4759 = vmatpush1.msra.mxu0 0.0
        %4760 = vmatprep.mubr.f32.mxu0 0.0
        %4761 = vmatmul.mubr.f32.gmra.mrb[0].mxu0 %v4528
        %v4762 = vpop.f32.mrb[0].mxu0
        %v4763 = vadd.f32 %v4633, %v4762
        %v4764 = vpop.f32.mrb[0].mxu0
        %4765 = vmatprep.mubr.f32.mxu0 0.0
        %4766 = vmatmul.mubr.f32.gmra.mrb[0].mxu0 %v4531
        %v4767 = vpop.f32.mrb[0].mxu0
        %v4768 = vadd.f32 %v4638, %v4767
        %v4769 = vpop.f32.mrb[0].mxu0
        %4770 = vmatprep.mubr.f32.mxu0 0.0
        %4771 = vmatmul.mubr.f32.gmra.mrb[0].mxu0 %v4534
        %v4772 = vpop.f32.mrb[0].mxu0
        %v4773 = vadd.f32 %v4643, %v4772
        %v4774 = vpop.f32.mrb[0].mxu0
        %4775 = vmatprep.mubr.f32.mxu0 0.0
        %4776 = vmatmul.mubr.f32.gmra.mrb[0].mxu0 %v4537
        %v4777 = vpop.f32.mrb[0].mxu0
        %v4778 = vadd.f32 %v4648, %v4777
        %v4779 = vpop.f32.mrb[0].mxu0
        %4780 = vmatprep.mubr.f32.mxu0 0.0
        %4781 = vmatmul.mubr.f32.gmra.mrb[0].mxu0 %v4540
        %v4782 = vpop.f32.mrb[0].mxu0
        %v4783 = vadd.f32 %v4653, %v4782
        %v4784 = vpop.f32.mrb[0].mxu0
        %4785 = vmatprep.mubr.f32.mxu0 0.0
        %4786 = vmatmul.mubr.f32.gmra.mrb[0].mxu0 %v4543
        %v4787 = vpop.f32.mrb[0].mxu0
        %v4788 = vadd.f32 %v4658, %v4787
        %v4789 = vpop.f32.mrb[0].mxu0
        %4790 = vmatprep.mubr.f32.mxu0 0.0
        %4791 = vmatmul.mubr.f32.gmra.mrb[0].mxu0 %v4546
        %v4792 = vpop.f32.mrb[0].mxu0
        %v4793 = vadd.f32 %v4663, %v4792
        %v4794 = vpop.f32.mrb[0].mxu0
        %4795 = vmatprep.mubr.f32.mxu0 0.0
        %4796 = vmatmul.mubr.f32.gmra.mrb[0].mxu0 %v4549
        %v4797 = vpop.f32.mrb[0].mxu0
        %v4798 = vadd.f32 %v4668, %v4797
        %v4799 = vpop.f32.mrb[0].mxu0
        %4800 = vmatprep.mubr.f32.mxu0 0.0
        %4801 = vmatmul.mubr.f32.gmra.mrb[0].mxu0 %v4552
        %v4802 = vpop.f32.mrb[0].mxu0
        %v4803 = vadd.f32 %v4673, %v4802
        %v4804 = vpop.f32.mrb[0].mxu0
        %4805 = vmatprep.mubr.f32.mxu0 0.0
        %4806 = vmatmul.mubr.f32.gmra.mrb[0].mxu0 %v4555
        %v4807 = vpop.f32.mrb[0].mxu0
        %v4808 = vadd.f32 %v4678, %v4807
        %v4809 = vpop.f32.mrb[0].mxu0
        %4810 = vmatprep.mubr.f32.mxu0 0.0
        %4811 = vmatmul.mubr.f32.gmra.mrb[0].mxu0 %v4558
        %v4812 = vpop.f32.mrb[0].mxu0
        %v4813 = vadd.f32 %v4683, %v4812
        %v4814 = vpop.f32.mrb[0].mxu0
        %4815 = vmatprep.mubr.f32.mxu0 0.0
        %4816 = vmatmul.mubr.f32.gmra.mrb[0].mxu0 %v4561
        %v4817 = vpop.f32.mrb[0].mxu0
        %v4818 = vadd.f32 %v4688, %v4817
        %v4819 = vpop.f32.mrb[0].mxu0
        %4820 = vmatprep.mubr.f32.mxu0 0.0
        %4821 = vmatmul.mubr.f32.gmra.mrb[0].mxu0 %v4564
        %v4822 = vpop.f32.mrb[0].mxu0
        %v4823 = vadd.f32 %v4693, %v4822
        %v4824 = vpop.f32.mrb[0].mxu0
        %4825 = vdwg.mxu0
        %v4826 = vmax.f32 %v4474, %v4763
        %v4827 = vmax.f32 %v4475, %v4768
        %v4828 = vmax.f32 %v4476, %v4773
        %v4829 = vmax.f32 %v4477, %v4778
        %v4830 = vmax.f32 %v4478, %v4783
        %v4831 = vmax.f32 %v4479, %v4788
        %v4832 = vmax.f32 %v4480, %v4793
        %v4833 = vmax.f32 %v4481, %v4798
        %v4834 = vmax.f32 %v4482, %v4803
        %v4835 = vmax.f32 %v4483, %v4808
        %v4836 = vmax.f32 %v4484, %v4813
        %v4837 = vmax.f32 %v4485, %v4818
        %v4838 = vmax.f32 %v4486, %v4823
        %vm4839 = vcmask 130048
        %4840 = vst.msk [vmem:[#allocation2] sm:$0xff] %vm4839, %v4826
        %4841 = vst.msk [vmem:[#allocation2 + $0x8] sm:$0xff] %vm4839, %v4827
        %4842 = vst.msk [vmem:[#allocation2 + $0x10] sm:$0xff] %vm4839, %v4828
        %4843 = vst.msk [vmem:[#allocation2 + $0x18] sm:$0xff] %vm4839, %v4829
        %4844 = vst.msk [vmem:[#allocation2 + $0x20] sm:$0xff] %vm4839, %v4830
        %4845 = vst.msk [vmem:[#allocation2 + $0x28] sm:$0xff] %vm4839, %v4831
        %4846 = vst.msk [vmem:[#allocation2 + $0x30] sm:$0xff] %vm4839, %v4832
        %4847 = vst.msk [vmem:[#allocation2 + $0x38] sm:$0xff] %vm4839, %v4833
        %4848 = vst.msk [vmem:[#allocation2 + $0x40] sm:$0xff] %vm4839, %v4834
        %4849 = vst.msk [vmem:[#allocation2 + $0x48] sm:$0xff] %vm4839, %v4835
        %4850 = vst.msk [vmem:[#allocation2 + $0x50] sm:$0xff] %vm4839, %v4836
        %4851 = vst.msk [vmem:[#allocation2 + $0x58] sm:$0xff] %vm4839, %v4837
        %4852 = vst.msk [vmem:[#allocation2 + $0x60] sm:$0xff] %vm4839, %v4838
        %v4853 = vld [vmem:[%s5] sm:$0x1]
        %v4854 = vld [vmem:[#allocation2] sm:$0xff]
        %v4855 = vld [vmem:[#allocation2 + $0x8] sm:$0xff]
        %v4856 = vld [vmem:[#allocation2 + $0x10] sm:$0xff]
        %v4857 = vld [vmem:[#allocation2 + $0x18] sm:$0xff]
        %v4858 = vld [vmem:[#allocation2 + $0x20] sm:$0xff]
        %v4859 = vld [vmem:[#allocation2 + $0x28] sm:$0xff]
        %v4860 = vld [vmem:[#allocation2 + $0x30] sm:$0xff]
        %v4861 = vld [vmem:[#allocation2 + $0x38] sm:$0xff]
        %v4862 = vld [vmem:[#allocation2 + $0x40] sm:$0xff]
        %v4863 = vld [vmem:[#allocation2 + $0x48] sm:$0xff]
        %v4864 = vpack.c.bf16 %v4855, %v4854
        %v4865 = vpack.c.bf16 %v4857, %v4856
        %v4866 = vpack.c.bf16 %v4859, %v4858
        %v4867 = vpack.c.bf16 %v4861, %v4860
        %v4868 = vpack.c.bf16 %v4863, %v4862
        %v4869 = vld [vmem:[%s4] sm:$0xf]
        %v4870 = vld [vmem:[%s4 + $0x4] sm:$0xf]
        %v4873 = vunpack.c.l.b16 %v4869
        %v4874 = vunpack.c.l.b16 %v4870
        %v4875 = vpack.c.b16 %v4874, %v4873
        %v4878 = vsel %vm4839, %v4864, 0
        %v4881 = vsel %vm4839, %v4865, 0
        %v4884 = vsel %vm4839, %v4866, 0
        %v4887 = vsel %vm4839, %v4867, 0
        %v4890 = vsel %vm4839, %v4868, 0
        %4892 = vmatprep.subr.bf16.mxu0 0
        %4893 = vmatpush1.bf16.msra.mxu0 %v4875
        %4894 = vmatprep.subr.bf16.mxu0 0
        %4895 = vmatpush1.bf16.msra.mxu0 0
        %4896 = vmatprep.subr.bf16.mxu0 0
        %4897 = vmatpush1.bf16.msra.mxu0 0
        %4898 = vmatprep.subr.bf16.mxu0 0
        %4899 = vmatpush1.bf16.msra.mxu0 0
        %4900 = vmatprep.subr.bf16.mxu0 0
        %4901 = vmatpush1.bf16.msra.mxu0 0
        %4902 = vmatprep.subr.bf16.mxu0 0
        %4903 = vmatpush1.bf16.msra.mxu0 0
        %4904 = vmatprep.subr.bf16.mxu0 0
        %4905 = vmatpush1.bf16.msra.mxu0 0
        %4906 = vmatprep.subr.bf16.mxu0 0
        %4907 = vmatpush1.bf16.msra.mxu0 0
        %4908 = vmatprep.subr.bf16.mxu0 0
        %4909 = vmatpush1.bf16.msra.mxu0 0
        %4910 = vmatprep.subr.bf16.mxu0 0
        %4911 = vmatpush1.bf16.msra.mxu0 0
        %4912 = vmatprep.subr.bf16.mxu0 0
        %4913 = vmatpush1.bf16.msra.mxu0 0
        %4914 = vmatprep.subr.bf16.mxu0 0
        %4915 = vmatpush1.bf16.msra.mxu0 0
        %4916 = vmatprep.subr.bf16.mxu0 0
        %4917 = vmatpush1.bf16.msra.mxu0 0
        %4918 = vmatprep.subr.bf16.mxu0 0
        %4919 = vmatpush1.bf16.msra.mxu0 0
        %4920 = vmatprep.subr.bf16.mxu0 0
        %4921 = vmatpush1.bf16.msra.mxu0 0
        %4922 = vmatprep.subr.bf16.mxu0 0
        %4923 = vmatpush1.bf16.msra.mxu0 0
        %4924 = vmatprep.mubr.bf16.mxu0 0
        %4925 = vmatmul.mubr.bf16.gmra.mrb[0].mxu0 %v4878
        %v4926 = vpop.f32.mrb[0].mxu0
        %v4927 = vadd.f32 0.0, %v4926
        %v4928 = vpop.f32.mrb[0].mxu0
        %v4929 = vpop.f32.mrb[0].mxu0
        %v4930 = vadd.f32 0.0, %v4929
        %v4931 = vpop.f32.mrb[0].mxu0
        %4932 = vmatprep.mubr.bf16.mxu0 0
        %4933 = vmatmul.mubr.bf16.gmra.mrb[0].mxu0 %v4881
        %v4934 = vpop.f32.mrb[0].mxu0
        %v4935 = vadd.f32 0.0, %v4934
        %v4936 = vpop.f32.mrb[0].mxu0
        %v4937 = vpop.f32.mrb[0].mxu0
        %v4938 = vadd.f32 0.0, %v4937
        %v4939 = vpop.f32.mrb[0].mxu0
        %4940 = vmatprep.mubr.bf16.mxu0 0
        %4941 = vmatmul.mubr.bf16.gmra.mrb[0].mxu0 %v4884
        %v4942 = vpop.f32.mrb[0].mxu0
        %v4943 = vadd.f32 0.0, %v4942
        %v4944 = vpop.f32.mrb[0].mxu0
        %v4945 = vpop.f32.mrb[0].mxu0
        %v4946 = vadd.f32 0.0, %v4945
        %v4947 = vpop.f32.mrb[0].mxu0
        %4948 = vmatprep.mubr.bf16.mxu0 0
        %4949 = vmatmul.mubr.bf16.gmra.mrb[0].mxu0 %v4887
        %v4950 = vpop.f32.mrb[0].mxu0
        %v4951 = vadd.f32 0.0, %v4950
        %v4952 = vpop.f32.mrb[0].mxu0
        %v4953 = vpop.f32.mrb[0].mxu0
        %v4954 = vadd.f32 0.0, %v4953
        %v4955 = vpop.f32.mrb[0].mxu0
        %4956 = vmatprep.mubr.bf16.mxu0 0
        %4957 = vmatmul.mubr.bf16.gmra.mrb[0].mxu0 %v4890
        %v4958 = vpop.f32.mrb[0].mxu0
        %v4959 = vadd.f32 0.0, %v4958
        %v4960 = vpop.f32.mrb[0].mxu0
        %v4961 = vpop.f32.mrb[0].mxu0
        %v4962 = vadd.f32 0.0, %v4961
        %v4963 = vpop.f32.mrb[0].mxu0
        %4964 = vdwg.mxu0
        %v4966 = vlaneseq
        %v4967 = vshrl.u32 %v4966, 7
        %v4968 = vsub.s32 0, %v4967
        %v4969 = vrot.slane %v4853, %v4968
        %v4971 = vadd.f32 %v4969, %v4927
        %v4972 = vadd.f32 %v4969, %v4930
        %v4973 = vadd.f32 %v4969, %v4935
        %v4974 = vadd.f32 %v4969, %v4938
        %v4975 = vadd.f32 %v4969, %v4943
        %v4976 = vadd.f32 %v4969, %v4946
        %v4977 = vadd.f32 %v4969, %v4951
        %v4978 = vadd.f32 %v4969, %v4954
        %v4979 = vadd.f32 %v4969, %v4959
        %v4980 = vadd.f32 %v4969, %v4962
        %v4981 = vld [vmem:[#allocation2 + $0x1] sm:$0xff]
        %v4982 = vld [vmem:[#allocation2 + $0x9] sm:$0xff]
        %v4983 = vld [vmem:[#allocation2 + $0x11] sm:$0xff]
        %v4984 = vld [vmem:[#allocation2 + $0x19] sm:$0xff]
        %v4985 = vld [vmem:[#allocation2 + $0x21] sm:$0xff]
        %v4986 = vld [vmem:[#allocation2 + $0x29] sm:$0xff]
        %v4987 = vld [vmem:[#allocation2 + $0x31] sm:$0xff]
        %v4988 = vld [vmem:[#allocation2 + $0x39] sm:$0xff]
        %v4989 = vld [vmem:[#allocation2 + $0x41] sm:$0xff]
        %v4990 = vld [vmem:[#allocation2 + $0x49] sm:$0xff]
        %v4991 = vpack.c.bf16 %v4982, %v4981
        %v4992 = vpack.c.bf16 %v4984, %v4983
        %v4993 = vpack.c.bf16 %v4986, %v4985
        %v4994 = vpack.c.bf16 %v4988, %v4987
        %v4995 = vpack.c.bf16 %v4990, %v4989
        %s4996 = scalar_lea.vmem %s4, 8
        %v4997 = vld [vmem:[%s4996] sm:$0xf]
        %v4998 = vld [vmem:[%s4996 + $0x4] sm:$0xf]
        %v5001 = vunpack.c.l.b16 %v4997
        %v5002 = vunpack.c.l.b16 %v4998
        %v5003 = vpack.c.b16 %v5002, %v5001
        %v5006 = vsel %vm4839, %v4991, 0
        %v5009 = vsel %vm4839, %v4992, 0
        %v5012 = vsel %vm4839, %v4993, 0
        %v5015 = vsel %vm4839, %v4994, 0
        %v5018 = vsel %vm4839, %v4995, 0
        %5020 = vmatprep.subr.bf16.mxu0 0
        %5021 = vmatpush1.bf16.msra.mxu0 %v5003
        %5022 = vmatprep.subr.bf16.mxu0 0
        %5023 = vmatpush1.bf16.msra.mxu0 0
        %5024 = vmatprep.subr.bf16.mxu0 0
        %5025 = vmatpush1.bf16.msra.mxu0 0
        %5026 = vmatprep.subr.bf16.mxu0 0
        %5027 = vmatpush1.bf16.msra.mxu0 0
        %5028 = vmatprep.subr.bf16.mxu0 0
        %5029 = vmatpush1.bf16.msra.mxu0 0
        %5030 = vmatprep.subr.bf16.mxu0 0
        %5031 = vmatpush1.bf16.msra.mxu0 0
        %5032 = vmatprep.subr.bf16.mxu0 0
        %5033 = vmatpush1.bf16.msra.mxu0 0
        %5034 = vmatprep.subr.bf16.mxu0 0
        %5035 = vmatpush1.bf16.msra.mxu0 0
        %5036 = vmatprep.subr.bf16.mxu0 0
        %5037 = vmatpush1.bf16.msra.mxu0 0
        %5038 = vmatprep.subr.bf16.mxu0 0
        %5039 = vmatpush1.bf16.msra.mxu0 0
        %5040 = vmatprep.subr.bf16.mxu0 0
        %5041 = vmatpush1.bf16.msra.mxu0 0
        %5042 = vmatprep.subr.bf16.mxu0 0
        %5043 = vmatpush1.bf16.msra.mxu0 0
        %5044 = vmatprep.subr.bf16.mxu0 0
        %5045 = vmatpush1.bf16.msra.mxu0 0
        %5046 = vmatprep.subr.bf16.mxu0 0
        %5047 = vmatpush1.bf16.msra.mxu0 0
        %5048 = vmatprep.subr.bf16.mxu0 0
        %5049 = vmatpush1.bf16.msra.mxu0 0
        %5050 = vmatprep.subr.bf16.mxu0 0
        %5051 = vmatpush1.bf16.msra.mxu0 0
        %5052 = vmatprep.mubr.bf16.mxu0 0
        %5053 = vmatmul.mubr.bf16.gmra.mrb[0].mxu0 %v5006
        %v5054 = vpop.f32.mrb[0].mxu0
        %v5055 = vadd.f32 0.0, %v5054
        %v5056 = vpop.f32.mrb[0].mxu0
        %v5057 = vpop.f32.mrb[0].mxu0
        %v5058 = vadd.f32 0.0, %v5057
        %v5059 = vpop.f32.mrb[0].mxu0
        %5060 = vmatprep.mubr.bf16.mxu0 0
        %5061 = vmatmul.mubr.bf16.gmra.mrb[0].mxu0 %v5009
        %v5062 = vpop.f32.mrb[0].mxu0
        %v5063 = vadd.f32 0.0, %v5062
        %v5064 = vpop.f32.mrb[0].mxu0
        %v5065 = vpop.f32.mrb[0].mxu0
        %v5066 = vadd.f32 0.0, %v5065
        %v5067 = vpop.f32.mrb[0].mxu0
        %5068 = vmatprep.mubr.bf16.mxu0 0
        %5069 = vmatmul.mubr.bf16.gmra.mrb[0].mxu0 %v5012
        %v5070 = vpop.f32.mrb[0].mxu0
        %v5071 = vadd.f32 0.0, %v5070
        %v5072 = vpop.f32.mrb[0].mxu0
        %v5073 = vpop.f32.mrb[0].mxu0
        %v5074 = vadd.f32 0.0, %v5073
        %v5075 = vpop.f32.mrb[0].mxu0
        %5076 = vmatprep.mubr.bf16.mxu0 0
        %5077 = vmatmul.mubr.bf16.gmra.mrb[0].mxu0 %v5015
        %v5078 = vpop.f32.mrb[0].mxu0
        %v5079 = vadd.f32 0.0, %v5078
        %v5080 = vpop.f32.mrb[0].mxu0
        %v5081 = vpop.f32.mrb[0].mxu0
        %v5082 = vadd.f32 0.0, %v5081
        %v5083 = vpop.f32.mrb[0].mxu0
        %5084 = vmatprep.mubr.bf16.mxu0 0
        %5085 = vmatmul.mubr.bf16.gmra.mrb[0].mxu0 %v5018
        %v5086 = vpop.f32.mrb[0].mxu0
        %v5087 = vadd.f32 0.0, %v5086
        %v5088 = vpop.f32.mrb[0].mxu0
        %v5089 = vpop.f32.mrb[0].mxu0
        %v5090 = vadd.f32 0.0, %v5089
        %v5091 = vpop.f32.mrb[0].mxu0
        %5092 = vdwg.mxu0
        %v5093 = vadd.f32 %v4971, %v5055
        %v5094 = vadd.f32 %v4972, %v5058
        %v5095 = vadd.f32 %v4973, %v5063
        %v5096 = vadd.f32 %v4974, %v5066
        %v5097 = vadd.f32 %v4975, %v5071
        %v5098 = vadd.f32 %v4976, %v5074
        %v5099 = vadd.f32 %v4977, %v5079
        %v5100 = vadd.f32 %v4978, %v5082
        %v5101 = vadd.f32 %v4979, %v5087
        %v5102 = vadd.f32 %v4980, %v5090
        %v5103 = vld [vmem:[#allocation2 + $0x2] sm:$0xff]
        %v5104 = vld [vmem:[#allocation2 + $0xa] sm:$0xff]
        %v5105 = vld [vmem:[#allocation2 + $0x12] sm:$0xff]
        %v5106 = vld [vmem:[#allocation2 + $0x1a] sm:$0xff]
        %v5107 = vld [vmem:[#allocation2 + $0x22] sm:$0xff]
        %v5108 = vld [vmem:[#allocation2 + $0x2a] sm:$0xff]
        %v5109 = vld [vmem:[#allocation2 + $0x32] sm:$0xff]
        %v5110 = vld [vmem:[#allocation2 + $0x3a] sm:$0xff]
        %v5111 = vld [vmem:[#allocation2 + $0x42] sm:$0xff]
        %v5112 = vld [vmem:[#allocation2 + $0x4a] sm:$0xff]
        %v5113 = vpack.c.bf16 %v5104, %v5103
        %v5114 = vpack.c.bf16 %v5106, %v5105
        %v5115 = vpack.c.bf16 %v5108, %v5107
        %v5116 = vpack.c.bf16 %v5110, %v5109
        %v5117 = vpack.c.bf16 %v5112, %v5111
        %s5118 = scalar_lea.vmem %s4, 16
        %v5119 = vld [vmem:[%s5118] sm:$0xf]
        %v5120 = vld [vmem:[%s5118 + $0x4] sm:$0xf]
        %v5123 = vunpack.c.l.b16 %v5119
        %v5124 = vunpack.c.l.b16 %v5120
        %v5125 = vpack.c.b16 %v5124, %v5123
        %v5128 = vsel %vm4839, %v5113, 0
        %v5131 = vsel %vm4839, %v5114, 0
        %v5134 = vsel %vm4839, %v5115, 0
        %v5137 = vsel %vm4839, %v5116, 0
        %v5140 = vsel %vm4839, %v5117, 0
        %5142 = vmatprep.subr.bf16.mxu0 0
        %5143 = vmatpush1.bf16.msra.mxu0 %v5125
        %5144 = vmatprep.subr.bf16.mxu0 0
        %5145 = vmatpush1.bf16.msra.mxu0 0
        %5146 = vmatprep.subr.bf16.mxu0 0
        %5147 = vmatpush1.bf16.msra.mxu0 0
        %5148 = vmatprep.subr.bf16.mxu0 0
        %5149 = vmatpush1.bf16.msra.mxu0 0
        %5150 = vmatprep.subr.bf16.mxu0 0
        %5151 = vmatpush1.bf16.msra.mxu0 0
        %5152 = vmatprep.subr.bf16.mxu0 0
        %5153 = vmatpush1.bf16.msra.mxu0 0
        %5154 = vmatprep.subr.bf16.mxu0 0
        %5155 = vmatpush1.bf16.msra.mxu0 0
        %5156 = vmatprep.subr.bf16.mxu0 0
        %5157 = vmatpush1.bf16.msra.mxu0 0
        %5158 = vmatprep.subr.bf16.mxu0 0
        %5159 = vmatpush1.bf16.msra.mxu0 0
        %5160 = vmatprep.subr.bf16.mxu0 0
        %5161 = vmatpush1.bf16.msra.mxu0 0
        %5162 = vmatprep.subr.bf16.mxu0 0
        %5163 = vmatpush1.bf16.msra.mxu0 0
        %5164 = vmatprep.subr.bf16.mxu0 0
        %5165 = vmatpush1.bf16.msra.mxu0 0
        %5166 = vmatprep.subr.bf16.mxu0 0
        %5167 = vmatpush1.bf16.msra.mxu0 0
        %5168 = vmatprep.subr.bf16.mxu0 0
        %5169 = vmatpush1.bf16.msra.mxu0 0
        %5170 = vmatprep.subr.bf16.mxu0 0
        %5171 = vmatpush1.bf16.msra.mxu0 0
        %5172 = vmatprep.subr.bf16.mxu0 0
        %5173 = vmatpush1.bf16.msra.mxu0 0
        %5174 = vmatprep.mubr.bf16.mxu0 0
        %5175 = vmatmul.mubr.bf16.gmra.mrb[0].mxu0 %v5128
        %v5176 = vpop.f32.mrb[0].mxu0
        %v5177 = vadd.f32 0.0, %v5176
        %v5178 = vpop.f32.mrb[0].mxu0
        %v5179 = vpop.f32.mrb[0].mxu0
        %v5180 = vadd.f32 0.0, %v5179
        %v5181 = vpop.f32.mrb[0].mxu0
        %5182 = vmatprep.mubr.bf16.mxu0 0
        %5183 = vmatmul.mubr.bf16.gmra.mrb[0].mxu0 %v5131
        %v5184 = vpop.f32.mrb[0].mxu0
        %v5185 = vadd.f32 0.0, %v5184
        %v5186 = vpop.f32.mrb[0].mxu0
        %v5187 = vpop.f32.mrb[0].mxu0
        %v5188 = vadd.f32 0.0, %v5187
        %v5189 = vpop.f32.mrb[0].mxu0
        %5190 = vmatprep.mubr.bf16.mxu0 0
        %5191 = vmatmul.mubr.bf16.gmra.mrb[0].mxu0 %v5134
        %v5192 = vpop.f32.mrb[0].mxu0
        %v5193 = vadd.f32 0.0, %v5192
        %v5194 = vpop.f32.mrb[0].mxu0
        %v5195 = vpop.f32.mrb[0].mxu0
        %v5196 = vadd.f32 0.0, %v5195
        %v5197 = vpop.f32.mrb[0].mxu0
        %5198 = vmatprep.mubr.bf16.mxu0 0
        %5199 = vmatmul.mubr.bf16.gmra.mrb[0].mxu0 %v5137
        %v5200 = vpop.f32.mrb[0].mxu0
        %v5201 = vadd.f32 0.0, %v5200
        %v5202 = vpop.f32.mrb[0].mxu0
        %v5203 = vpop.f32.mrb[0].mxu0
        %v5204 = vadd.f32 0.0, %v5203
        %v5205 = vpop.f32.mrb[0].mxu0
        %5206 = vmatprep.mubr.bf16.mxu0 0
        %5207 = vmatmul.mubr.bf16.gmra.mrb[0].mxu0 %v5140
        %v5208 = vpop.f32.mrb[0].mxu0
        %v5209 = vadd.f32 0.0, %v5208
        %v5210 = vpop.f32.mrb[0].mxu0
        %v5211 = vpop.f32.mrb[0].mxu0
        %v5212 = vadd.f32 0.0, %v5211
        %v5213 = vpop.f32.mrb[0].mxu0
        %5214 = vdwg.mxu0
        %v5215 = vadd.f32 %v5093, %v5177
        %v5216 = vadd.f32 %v5094, %v5180
        %v5217 = vadd.f32 %v5095, %v5185
        %v5218 = vadd.f32 %v5096, %v5188
        %v5219 = vadd.f32 %v5097, %v5193
        %v5220 = vadd.f32 %v5098, %v5196
        %v5221 = vadd.f32 %v5099, %v5201
        %v5222 = vadd.f32 %v5100, %v5204
        %v5223 = vadd.f32 %v5101, %v5209
        %v5224 = vadd.f32 %v5102, %v5212
        %v5225 = vld [vmem:[#allocation2 + $0xa] sm:$0xff]
        %v5226 = vld [vmem:[#allocation2 + $0x12] sm:$0xff]
        %v5227 = vld [vmem:[#allocation2 + $0x1a] sm:$0xff]
        %v5228 = vld [vmem:[#allocation2 + $0x22] sm:$0xff]
        %v5229 = vld [vmem:[#allocation2 + $0x2a] sm:$0xff]
        %v5230 = vld [vmem:[#allocation2 + $0x32] sm:$0xff]
        %v5231 = vld [vmem:[#allocation2 + $0x3a] sm:$0xff]
        %v5232 = vld [vmem:[#allocation2 + $0x42] sm:$0xff]
        %v5233 = vld [vmem:[#allocation2 + $0x4a] sm:$0xff]
        %v5234 = vld [vmem:[#allocation2 + $0x52] sm:$0xff]
        %v5235 = vpack.c.bf16 %v5226, %v5225
        %v5236 = vpack.c.bf16 %v5228, %v5227
        %v5237 = vpack.c.bf16 %v5230, %v5229
        %v5238 = vpack.c.bf16 %v5232, %v5231
        %v5239 = vpack.c.bf16 %v5234, %v5233
        %s5240 = scalar_lea.vmem %s4, 24
        %v5241 = vld [vmem:[%s5240] sm:$0xf]
        %v5242 = vld [vmem:[%s5240 + $0x4] sm:$0xf]
        %v5245 = vunpack.c.l.b16 %v5241
        %v5246 = vunpack.c.l.b16 %v5242
        %v5247 = vpack.c.b16 %v5246, %v5245
        %v5250 = vsel %vm4839, %v5235, 0
        %v5253 = vsel %vm4839, %v5236, 0
        %v5256 = vsel %vm4839, %v5237, 0
        %v5259 = vsel %vm4839, %v5238, 0
        %v5262 = vsel %vm4839, %v5239, 0
        %5264 = vmatprep.subr.bf16.mxu0 0
        %5265 = vmatpush1.bf16.msra.mxu0 %v5247
        %5266 = vmatprep.subr.bf16.mxu0 0
        %5267 = vmatpush1.bf16.msra.mxu0 0
        %5268 = vmatprep.subr.bf16.mxu0 0
        %5269 = vmatpush1.bf16.msra.mxu0 0
        %5270 = vmatprep.subr.bf16.mxu0 0
        %5271 = vmatpush1.bf16.msra.mxu0 0
        %5272 = vmatprep.subr.bf16.mxu0 0
        %5273 = vmatpush1.bf16.msra.mxu0 0
        %5274 = vmatprep.subr.bf16.mxu0 0
        %5275 = vmatpush1.bf16.msra.mxu0 0
        %5276 = vmatprep.subr.bf16.mxu0 0
        %5277 = vmatpush1.bf16.msra.mxu0 0
        %5278 = vmatprep.subr.bf16.mxu0 0
        %5279 = vmatpush1.bf16.msra.mxu0 0
        %5280 = vmatprep.subr.bf16.mxu0 0
        %5281 = vmatpush1.bf16.msra.mxu0 0
        %5282 = vmatprep.subr.bf16.mxu0 0
        %5283 = vmatpush1.bf16.msra.mxu0 0
        %5284 = vmatprep.subr.bf16.mxu0 0
        %5285 = vmatpush1.bf16.msra.mxu0 0
        %5286 = vmatprep.subr.bf16.mxu0 0
        %5287 = vmatpush1.bf16.msra.mxu0 0
        %5288 = vmatprep.subr.bf16.mxu0 0
        %5289 = vmatpush1.bf16.msra.mxu0 0
        %5290 = vmatprep.subr.bf16.mxu0 0
        %5291 = vmatpush1.bf16.msra.mxu0 0
        %5292 = vmatprep.subr.bf16.mxu0 0
        %5293 = vmatpush1.bf16.msra.mxu0 0
        %5294 = vmatprep.subr.bf16.mxu0 0
        %5295 = vmatpush1.bf16.msra.mxu0 0
        %5296 = vmatprep.mubr.bf16.mxu0 0
        %5297 = vmatmul.mubr.bf16.gmra.mrb[0].mxu0 %v5250
        %v5298 = vpop.f32.mrb[0].mxu0
        %v5299 = vadd.f32 0.0, %v5298
        %v5300 = vpop.f32.mrb[0].mxu0
        %v5301 = vpop.f32.mrb[0].mxu0
        %v5302 = vadd.f32 0.0, %v5301
        %v5303 = vpop.f32.mrb[0].mxu0
        %5304 = vmatprep.mubr.bf16.mxu0 0
        %5305 = vmatmul.mubr.bf16.gmra.mrb[0].mxu0 %v5253
        %v5306 = vpop.f32.mrb[0].mxu0
        %v5307 = vadd.f32 0.0, %v5306
        %v5308 = vpop.f32.mrb[0].mxu0
        %v5309 = vpop.f32.mrb[0].mxu0
        %v5310 = vadd.f32 0.0, %v5309
        %v5311 = vpop.f32.mrb[0].mxu0
        %5312 = vmatprep.mubr.bf16.mxu0 0
        %5313 = vmatmul.mubr.bf16.gmra.mrb[0].mxu0 %v5256
        %v5314 = vpop.f32.mrb[0].mxu0
        %v5315 = vadd.f32 0.0, %v5314
        %v5316 = vpop.f32.mrb[0].mxu0
        %v5317 = vpop.f32.mrb[0].mxu0
        %v5318 = vadd.f32 0.0, %v5317
        %v5319 = vpop.f32.mrb[0].mxu0
        %5320 = vmatprep.mubr.bf16.mxu0 0
        %5321 = vmatmul.mubr.bf16.gmra.mrb[0].mxu0 %v5259
        %v5322 = vpop.f32.mrb[0].mxu0
        %v5323 = vadd.f32 0.0, %v5322
        %v5324 = vpop.f32.mrb[0].mxu0
        %v5325 = vpop.f32.mrb[0].mxu0
        %v5326 = vadd.f32 0.0, %v5325
        %v5327 = vpop.f32.mrb[0].mxu0
        %5328 = vmatprep.mubr.bf16.mxu0 0
        %5329 = vmatmul.mubr.bf16.gmra.mrb[0].mxu0 %v5262
        %v5330 = vpop.f32.mrb[0].mxu0
        %v5331 = vadd.f32 0.0, %v5330
        %v5332 = vpop.f32.mrb[0].mxu0
        %v5333 = vpop.f32.mrb[0].mxu0
        %v5334 = vadd.f32 0.0, %v5333
        %v5335 = vpop.f32.mrb[0].mxu0
        %5336 = vdwg.mxu0
        %v5337 = vadd.f32 %v5215, %v5299
        %v5338 = vadd.f32 %v5216, %v5302
        %v5339 = vadd.f32 %v5217, %v5307
        %v5340 = vadd.f32 %v5218, %v5310
        %v5341 = vadd.f32 %v5219, %v5315
        %v5342 = vadd.f32 %v5220, %v5318
        %v5343 = vadd.f32 %v5221, %v5323
        %v5344 = vadd.f32 %v5222, %v5326
        %v5345 = vadd.f32 %v5223, %v5331
        %v5346 = vadd.f32 %v5224, %v5334
        %v5347 = vld [vmem:[#allocation2 + $0xb] sm:$0xff]
        %v5348 = vld [vmem:[#allocation2 + $0x13] sm:$0xff]
        %v5349 = vld [vmem:[#allocation2 + $0x1b] sm:$0xff]
        %v5350 = vld [vmem:[#allocation2 + $0x23] sm:$0xff]
        %v5351 = vld [vmem:[#allocation2 + $0x2b] sm:$0xff]
        %v5352 = vld [vmem:[#allocation2 + $0x33] sm:$0xff]
        %v5353 = vld [vmem:[#allocation2 + $0x3b] sm:$0xff]
        %v5354 = vld [vmem:[#allocation2 + $0x43] sm:$0xff]
        %v5355 = vld [vmem:[#allocation2 + $0x4b] sm:$0xff]
        %v5356 = vld [vmem:[#allocation2 + $0x53] sm:$0xff]
        %v5357 = vpack.c.bf16 %v5348, %v5347
        %v5358 = vpack.c.bf16 %v5350, %v5349
        %v5359 = vpack.c.bf16 %v5352, %v5351
        %v5360 = vpack.c.bf16 %v5354, %v5353
        %v5361 = vpack.c.bf16 %v5356, %v5355
        %s5362 = scalar_lea.vmem %s4, 32
        %v5363 = vld [vmem:[%s5362] sm:$0xf]
        %v5364 = vld [vmem:[%s5362 + $0x4] sm:$0xf]
        %v5367 = vunpack.c.l.b16 %v5363
        %v5368 = vunpack.c.l.b16 %v5364
        %v5369 = vpack.c.b16 %v5368, %v5367
        %v5372 = vsel %vm4839, %v5357, 0
        %v5375 = vsel %vm4839, %v5358, 0
        %v5378 = vsel %vm4839, %v5359, 0
        %v5381 = vsel %vm4839, %v5360, 0
        %v5384 = vsel %vm4839, %v5361, 0
        %5386 = vmatprep.subr.bf16.mxu0 0
        %5387 = vmatpush1.bf16.msra.mxu0 %v5369
        %5388 = vmatprep.subr.bf16.mxu0 0
        %5389 = vmatpush1.bf16.msra.mxu0 0
        %5390 = vmatprep.subr.bf16.mxu0 0
        %5391 = vmatpush1.bf16.msra.mxu0 0
        %5392 = vmatprep.subr.bf16.mxu0 0
        %5393 = vmatpush1.bf16.msra.mxu0 0
        %5394 = vmatprep.subr.bf16.mxu0 0
        %5395 = vmatpush1.bf16.msra.mxu0 0
        %5396 = vmatprep.subr.bf16.mxu0 0
        %5397 = vmatpush1.bf16.msra.mxu0 0
        %5398 = vmatprep.subr.bf16.mxu0 0
        %5399 = vmatpush1.bf16.msra.mxu0 0
        %5400 = vmatprep.subr.bf16.mxu0 0
        %5401 = vmatpush1.bf16.msra.mxu0 0
        %5402 = vmatprep.subr.bf16.mxu0 0
        %5403 = vmatpush1.bf16.msra.mxu0 0
        %5404 = vmatprep.subr.bf16.mxu0 0
        %5405 = vmatpush1.bf16.msra.mxu0 0
        %5406 = vmatprep.subr.bf16.mxu0 0
        %5407 = vmatpush1.bf16.msra.mxu0 0
        %5408 = vmatprep.subr.bf16.mxu0 0
        %5409 = vmatpush1.bf16.msra.mxu0 0
        %5410 = vmatprep.subr.bf16.mxu0 0
        %5411 = vmatpush1.bf16.msra.mxu0 0
        %5412 = vmatprep.subr.bf16.mxu0 0
        %5413 = vmatpush1.bf16.msra.mxu0 0
        %5414 = vmatprep.subr.bf16.mxu0 0
        %5415 = vmatpush1.bf16.msra.mxu0 0
        %5416 = vmatprep.subr.bf16.mxu0 0
        %5417 = vmatpush1.bf16.msra.mxu0 0
        %5418 = vmatprep.mubr.bf16.mxu0 0
        %5419 = vmatmul.mubr.bf16.gmra.mrb[0].mxu0 %v5372
        %v5420 = vpop.f32.mrb[0].mxu0
        %v5421 = vadd.f32 0.0, %v5420
        %v5422 = vpop.f32.mrb[0].mxu0
        %v5423 = vpop.f32.mrb[0].mxu0
        %v5424 = vadd.f32 0.0, %v5423
        %v5425 = vpop.f32.mrb[0].mxu0
        %5426 = vmatprep.mubr.bf16.mxu0 0
        %5427 = vmatmul.mubr.bf16.gmra.mrb[0].mxu0 %v5375
        %v5428 = vpop.f32.mrb[0].mxu0
        %v5429 = vadd.f32 0.0, %v5428
        %v5430 = vpop.f32.mrb[0].mxu0
        %v5431 = vpop.f32.mrb[0].mxu0
        %v5432 = vadd.f32 0.0, %v5431
        %v5433 = vpop.f32.mrb[0].mxu0
        %5434 = vmatprep.mubr.bf16.mxu0 0
        %5435 = vmatmul.mubr.bf16.gmra.mrb[0].mxu0 %v5378
        %v5436 = vpop.f32.mrb[0].mxu0
        %v5437 = vadd.f32 0.0, %v5436
        %v5438 = vpop.f32.mrb[0].mxu0
        %v5439 = vpop.f32.mrb[0].mxu0
        %v5440 = vadd.f32 0.0, %v5439
        %v5441 = vpop.f32.mrb[0].mxu0
        %5442 = vmatprep.mubr.bf16.mxu0 0
        %5443 = vmatmul.mubr.bf16.gmra.mrb[0].mxu0 %v5381
        %v5444 = vpop.f32.mrb[0].mxu0
        %v5445 = vadd.f32 0.0, %v5444
        %v5446 = vpop.f32.mrb[0].mxu0
        %v5447 = vpop.f32.mrb[0].mxu0
        %v5448 = vadd.f32 0.0, %v5447
        %v5449 = vpop.f32.mrb[0].mxu0
        %5450 = vmatprep.mubr.bf16.mxu0 0
        %5451 = vmatmul.mubr.bf16.gmra.mrb[0].mxu0 %v5384
        %v5452 = vpop.f32.mrb[0].mxu0
        %v5453 = vadd.f32 0.0, %v5452
        %v5454 = vpop.f32.mrb[0].mxu0
        %v5455 = vpop.f32.mrb[0].mxu0
        %v5456 = vadd.f32 0.0, %v5455
        %v5457 = vpop.f32.mrb[0].mxu0
        %5458 = vdwg.mxu0
        %v5459 = vadd.f32 %v5337, %v5421
        %v5460 = vadd.f32 %v5338, %v5424
        %v5461 = vadd.f32 %v5339, %v5429
        %v5462 = vadd.f32 %v5340, %v5432
        %v5463 = vadd.f32 %v5341, %v5437
        %v5464 = vadd.f32 %v5342, %v5440
        %v5465 = vadd.f32 %v5343, %v5445
        %v5466 = vadd.f32 %v5344, %v5448
        %v5467 = vadd.f32 %v5345, %v5453
        %v5468 = vadd.f32 %v5346, %v5456
        %v5469 = vld [vmem:[#allocation2 + $0xc] sm:$0xff]
        %v5470 = vld [vmem:[#allocation2 + $0x14] sm:$0xff]
        %v5471 = vld [vmem:[#allocation2 + $0x1c] sm:$0xff]
        %v5472 = vld [vmem:[#allocation2 + $0x24] sm:$0xff]
        %v5473 = vld [vmem:[#allocation2 + $0x2c] sm:$0xff]
        %v5474 = vld [vmem:[#allocation2 + $0x34] sm:$0xff]
        %v5475 = vld [vmem:[#allocation2 + $0x3c] sm:$0xff]
        %v5476 = vld [vmem:[#allocation2 + $0x44] sm:$0xff]
        %v5477 = vld [vmem:[#allocation2 + $0x4c] sm:$0xff]
        %v5478 = vld [vmem:[#allocation2 + $0x54] sm:$0xff]
        %v5479 = vpack.c.bf16 %v5470, %v5469
        %v5480 = vpack.c.bf16 %v5472, %v5471
        %v5481 = vpack.c.bf16 %v5474, %v5473
        %v5482 = vpack.c.bf16 %v5476, %v5475
        %v5483 = vpack.c.bf16 %v5478, %v5477
        %s5484 = scalar_lea.vmem %s4, 40
        %v5485 = vld [vmem:[%s5484] sm:$0xf]
        %v5486 = vld [vmem:[%s5484 + $0x4] sm:$0xf]
        %v5489 = vunpack.c.l.b16 %v5485
        %v5490 = vunpack.c.l.b16 %v5486
        %v5491 = vpack.c.b16 %v5490, %v5489
        %v5494 = vsel %vm4839, %v5479, 0
        %v5497 = vsel %vm4839, %v5480, 0
        %v5500 = vsel %vm4839, %v5481, 0
        %v5503 = vsel %vm4839, %v5482, 0
        %v5506 = vsel %vm4839, %v5483, 0
        %5508 = vmatprep.subr.bf16.mxu0 0
        %5509 = vmatpush1.bf16.msra.mxu0 %v5491
        %5510 = vmatprep.subr.bf16.mxu0 0
        %5511 = vmatpush1.bf16.msra.mxu0 0
        %5512 = vmatprep.subr.bf16.mxu0 0
        %5513 = vmatpush1.bf16.msra.mxu0 0
        %5514 = vmatprep.subr.bf16.mxu0 0
        %5515 = vmatpush1.bf16.msra.mxu0 0
        %5516 = vmatprep.subr.bf16.mxu0 0
        %5517 = vmatpush1.bf16.msra.mxu0 0
        %5518 = vmatprep.subr.bf16.mxu0 0
        %5519 = vmatpush1.bf16.msra.mxu0 0
        %5520 = vmatprep.subr.bf16.mxu0 0
        %5521 = vmatpush1.bf16.msra.mxu0 0
        %5522 = vmatprep.subr.bf16.mxu0 0
        %5523 = vmatpush1.bf16.msra.mxu0 0
        %5524 = vmatprep.subr.bf16.mxu0 0
        %5525 = vmatpush1.bf16.msra.mxu0 0
        %5526 = vmatprep.subr.bf16.mxu0 0
        %5527 = vmatpush1.bf16.msra.mxu0 0
        %5528 = vmatprep.subr.bf16.mxu0 0
        %5529 = vmatpush1.bf16.msra.mxu0 0
        %5530 = vmatprep.subr.bf16.mxu0 0
        %5531 = vmatpush1.bf16.msra.mxu0 0
        %5532 = vmatprep.subr.bf16.mxu0 0
        %5533 = vmatpush1.bf16.msra.mxu0 0
        %5534 = vmatprep.subr.bf16.mxu0 0
        %5535 = vmatpush1.bf16.msra.mxu0 0
        %5536 = vmatprep.subr.bf16.mxu0 0
        %5537 = vmatpush1.bf16.msra.mxu0 0
        %5538 = vmatprep.subr.bf16.mxu0 0
        %5539 = vmatpush1.bf16.msra.mxu0 0
        %5540 = vmatprep.mubr.bf16.mxu0 0
        %5541 = vmatmul.mubr.bf16.gmra.mrb[0].mxu0 %v5494
        %v5542 = vpop.f32.mrb[0].mxu0
        %v5543 = vadd.f32 0.0, %v5542
        %v5544 = vpop.f32.mrb[0].mxu0
        %v5545 = vpop.f32.mrb[0].mxu0
        %v5546 = vadd.f32 0.0, %v5545
        %v5547 = vpop.f32.mrb[0].mxu0
        %5548 = vmatprep.mubr.bf16.mxu0 0
        %5549 = vmatmul.mubr.bf16.gmra.mrb[0].mxu0 %v5497
        %v5550 = vpop.f32.mrb[0].mxu0
        %v5551 = vadd.f32 0.0, %v5550
        %v5552 = vpop.f32.mrb[0].mxu0
        %v5553 = vpop.f32.mrb[0].mxu0
        %v5554 = vadd.f32 0.0, %v5553
        %v5555 = vpop.f32.mrb[0].mxu0
        %5556 = vmatprep.mubr.bf16.mxu0 0
        %5557 = vmatmul.mubr.bf16.gmra.mrb[0].mxu0 %v5500
        %v5558 = vpop.f32.mrb[0].mxu0
        %v5559 = vadd.f32 0.0, %v5558
        %v5560 = vpop.f32.mrb[0].mxu0
        %v5561 = vpop.f32.mrb[0].mxu0
        %v5562 = vadd.f32 0.0, %v5561
        %v5563 = vpop.f32.mrb[0].mxu0
        %5564 = vmatprep.mubr.bf16.mxu0 0
        %5565 = vmatmul.mubr.bf16.gmra.mrb[0].mxu0 %v5503
        %v5566 = vpop.f32.mrb[0].mxu0
        %v5567 = vadd.f32 0.0, %v5566
        %v5568 = vpop.f32.mrb[0].mxu0
        %v5569 = vpop.f32.mrb[0].mxu0
        %v5570 = vadd.f32 0.0, %v5569
        %v5571 = vpop.f32.mrb[0].mxu0
        %5572 = vmatprep.mubr.bf16.mxu0 0
        %5573 = vmatmul.mubr.bf16.gmra.mrb[0].mxu0 %v5506
        %v5574 = vpop.f32.mrb[0].mxu0
        %v5575 = vadd.f32 0.0, %v5574
        %v5576 = vpop.f32.mrb[0].mxu0
        %v5577 = vpop.f32.mrb[0].mxu0
        %v5578 = vadd.f32 0.0, %v5577
        %v5579 = vpop.f32.mrb[0].mxu0
        %5580 = vdwg.mxu0
        %v5581 = vadd.f32 %v5459, %v5543
        %v5582 = vadd.f32 %v5460, %v5546
        %v5583 = vadd.f32 %v5461, %v5551
        %v5584 = vadd.f32 %v5462, %v5554
        %v5585 = vadd.f32 %v5463, %v5559
        %v5586 = vadd.f32 %v5464, %v5562
        %v5587 = vadd.f32 %v5465, %v5567
        %v5588 = vadd.f32 %v5466, %v5570
        %v5589 = vadd.f32 %v5467, %v5575
        %v5590 = vadd.f32 %v5468, %v5578
        %v5591 = vld [vmem:[#allocation2 + $0x14] sm:$0xff]
        %v5592 = vld [vmem:[#allocation2 + $0x1c] sm:$0xff]
        %v5593 = vld [vmem:[#allocation2 + $0x24] sm:$0xff]
        %v5594 = vld [vmem:[#allocation2 + $0x2c] sm:$0xff]
        %v5595 = vld [vmem:[#allocation2 + $0x34] sm:$0xff]
        %v5596 = vld [vmem:[#allocation2 + $0x3c] sm:$0xff]
        %v5597 = vld [vmem:[#allocation2 + $0x44] sm:$0xff]
        %v5598 = vld [vmem:[#allocation2 + $0x4c] sm:$0xff]
        %v5599 = vld [vmem:[#allocation2 + $0x54] sm:$0xff]
        %v5600 = vld [vmem:[#allocation2 + $0x5c] sm:$0xff]
        %v5601 = vpack.c.bf16 %v5592, %v5591
        %v5602 = vpack.c.bf16 %v5594, %v5593
        %v5603 = vpack.c.bf16 %v5596, %v5595
        %v5604 = vpack.c.bf16 %v5598, %v5597
        %v5605 = vpack.c.bf16 %v5600, %v5599
        %s5606 = scalar_lea.vmem %s4, 48
        %v5607 = vld [vmem:[%s5606] sm:$0xf]
        %v5608 = vld [vmem:[%s5606 + $0x4] sm:$0xf]
        %v5611 = vunpack.c.l.b16 %v5607
        %v5612 = vunpack.c.l.b16 %v5608
        %v5613 = vpack.c.b16 %v5612, %v5611
        %v5616 = vsel %vm4839, %v5601, 0
        %v5619 = vsel %vm4839, %v5602, 0
        %v5622 = vsel %vm4839, %v5603, 0
        %v5625 = vsel %vm4839, %v5604, 0
        %v5628 = vsel %vm4839, %v5605, 0
        %5630 = vmatprep.subr.bf16.mxu0 0
        %5631 = vmatpush1.bf16.msra.mxu0 %v5613
        %5632 = vmatprep.subr.bf16.mxu0 0
        %5633 = vmatpush1.bf16.msra.mxu0 0
        %5634 = vmatprep.subr.bf16.mxu0 0
        %5635 = vmatpush1.bf16.msra.mxu0 0
        %5636 = vmatprep.subr.bf16.mxu0 0
        %5637 = vmatpush1.bf16.msra.mxu0 0
        %5638 = vmatprep.subr.bf16.mxu0 0
        %5639 = vmatpush1.bf16.msra.mxu0 0
        %5640 = vmatprep.subr.bf16.mxu0 0
        %5641 = vmatpush1.bf16.msra.mxu0 0
        %5642 = vmatprep.subr.bf16.mxu0 0
        %5643 = vmatpush1.bf16.msra.mxu0 0
        %5644 = vmatprep.subr.bf16.mxu0 0
        %5645 = vmatpush1.bf16.msra.mxu0 0
        %5646 = vmatprep.subr.bf16.mxu0 0
        %5647 = vmatpush1.bf16.msra.mxu0 0
        %5648 = vmatprep.subr.bf16.mxu0 0
        %5649 = vmatpush1.bf16.msra.mxu0 0
        %5650 = vmatprep.subr.bf16.mxu0 0
        %5651 = vmatpush1.bf16.msra.mxu0 0
        %5652 = vmatprep.subr.bf16.mxu0 0
        %5653 = vmatpush1.bf16.msra.mxu0 0
        %5654 = vmatprep.subr.bf16.mxu0 0
        %5655 = vmatpush1.bf16.msra.mxu0 0
        %5656 = vmatprep.subr.bf16.mxu0 0
        %5657 = vmatpush1.bf16.msra.mxu0 0
        %5658 = vmatprep.subr.bf16.mxu0 0
        %5659 = vmatpush1.bf16.msra.mxu0 0
        %5660 = vmatprep.subr.bf16.mxu0 0
        %5661 = vmatpush1.bf16.msra.mxu0 0
        %5662 = vmatprep.mubr.bf16.mxu0 0
        %5663 = vmatmul.mubr.bf16.gmra.mrb[0].mxu0 %v5616
        %v5664 = vpop.f32.mrb[0].mxu0
        %v5665 = vadd.f32 0.0, %v5664
        %v5666 = vpop.f32.mrb[0].mxu0
        %v5667 = vpop.f32.mrb[0].mxu0
        %v5668 = vadd.f32 0.0, %v5667
        %v5669 = vpop.f32.mrb[0].mxu0
        %5670 = vmatprep.mubr.bf16.mxu0 0
        %5671 = vmatmul.mubr.bf16.gmra.mrb[0].mxu0 %v5619
        %v5672 = vpop.f32.mrb[0].mxu0
        %v5673 = vadd.f32 0.0, %v5672
        %v5674 = vpop.f32.mrb[0].mxu0
        %v5675 = vpop.f32.mrb[0].mxu0
        %v5676 = vadd.f32 0.0, %v5675
        %v5677 = vpop.f32.mrb[0].mxu0
        %5678 = vmatprep.mubr.bf16.mxu0 0
        %5679 = vmatmul.mubr.bf16.gmra.mrb[0].mxu0 %v5622
        %v5680 = vpop.f32.mrb[0].mxu0
        %v5681 = vadd.f32 0.0, %v5680
        %v5682 = vpop.f32.mrb[0].mxu0
        %v5683 = vpop.f32.mrb[0].mxu0
        %v5684 = vadd.f32 0.0, %v5683
        %v5685 = vpop.f32.mrb[0].mxu0
        %5686 = vmatprep.mubr.bf16.mxu0 0
        %5687 = vmatmul.mubr.bf16.gmra.mrb[0].mxu0 %v5625
        %v5688 = vpop.f32.mrb[0].mxu0
        %v5689 = vadd.f32 0.0, %v5688
        %v5690 = vpop.f32.mrb[0].mxu0
        %v5691 = vpop.f32.mrb[0].mxu0
        %v5692 = vadd.f32 0.0, %v5691
        %v5693 = vpop.f32.mrb[0].mxu0
        %5694 = vmatprep.mubr.bf16.mxu0 0
        %5695 = vmatmul.mubr.bf16.gmra.mrb[0].mxu0 %v5628
        %v5696 = vpop.f32.mrb[0].mxu0
        %v5697 = vadd.f32 0.0, %v5696
        %v5698 = vpop.f32.mrb[0].mxu0
        %v5699 = vpop.f32.mrb[0].mxu0
        %v5700 = vadd.f32 0.0, %v5699
        %v5701 = vpop.f32.mrb[0].mxu0
        %5702 = vdwg.mxu0
        %v5703 = vadd.f32 %v5581, %v5665
        %v5704 = vadd.f32 %v5582, %v5668
        %v5705 = vadd.f32 %v5583, %v5673
        %v5706 = vadd.f32 %v5584, %v5676
        %v5707 = vadd.f32 %v5585, %v5681
        %v5708 = vadd.f32 %v5586, %v5684
        %v5709 = vadd.f32 %v5587, %v5689
        %v5710 = vadd.f32 %v5588, %v5692
        %v5711 = vadd.f32 %v5589, %v5697
        %v5712 = vadd.f32 %v5590, %v5700
        %v5713 = vld [vmem:[#allocation2 + $0x15] sm:$0xff]
        %v5714 = vld [vmem:[#allocation2 + $0x1d] sm:$0xff]
        %v5715 = vld [vmem:[#allocation2 + $0x25] sm:$0xff]
        %v5716 = vld [vmem:[#allocation2 + $0x2d] sm:$0xff]
        %v5717 = vld [vmem:[#allocation2 + $0x35] sm:$0xff]
        %v5718 = vld [vmem:[#allocation2 + $0x3d] sm:$0xff]
        %v5719 = vld [vmem:[#allocation2 + $0x45] sm:$0xff]
        %v5720 = vld [vmem:[#allocation2 + $0x4d] sm:$0xff]
        %v5721 = vld [vmem:[#allocation2 + $0x55] sm:$0xff]
        %v5722 = vld [vmem:[#allocation2 + $0x5d] sm:$0xff]
        %v5723 = vpack.c.bf16 %v5714, %v5713
        %v5724 = vpack.c.bf16 %v5716, %v5715
        %v5725 = vpack.c.bf16 %v5718, %v5717
        %v5726 = vpack.c.bf16 %v5720, %v5719
        %v5727 = vpack.c.bf16 %v5722, %v5721
        %s5728 = scalar_lea.vmem %s4, 56
        %v5729 = vld [vmem:[%s5728] sm:$0xf]
        %v5730 = vld [vmem:[%s5728 + $0x4] sm:$0xf]
        %v5733 = vunpack.c.l.b16 %v5729
        %v5734 = vunpack.c.l.b16 %v5730
        %v5735 = vpack.c.b16 %v5734, %v5733
        %v5738 = vsel %vm4839, %v5723, 0
        %v5741 = vsel %vm4839, %v5724, 0
        %v5744 = vsel %vm4839, %v5725, 0
        %v5747 = vsel %vm4839, %v5726, 0
        %v5750 = vsel %vm4839, %v5727, 0
        %5752 = vmatprep.subr.bf16.mxu0 0
        %5753 = vmatpush1.bf16.msra.mxu0 %v5735
        %5754 = vmatprep.subr.bf16.mxu0 0
        %5755 = vmatpush1.bf16.msra.mxu0 0
        %5756 = vmatprep.subr.bf16.mxu0 0
        %5757 = vmatpush1.bf16.msra.mxu0 0
        %5758 = vmatprep.subr.bf16.mxu0 0
        %5759 = vmatpush1.bf16.msra.mxu0 0
        %5760 = vmatprep.subr.bf16.mxu0 0
        %5761 = vmatpush1.bf16.msra.mxu0 0
        %5762 = vmatprep.subr.bf16.mxu0 0
        %5763 = vmatpush1.bf16.msra.mxu0 0
        %5764 = vmatprep.subr.bf16.mxu0 0
        %5765 = vmatpush1.bf16.msra.mxu0 0
        %5766 = vmatprep.subr.bf16.mxu0 0
        %5767 = vmatpush1.bf16.msra.mxu0 0
        %5768 = vmatprep.subr.bf16.mxu0 0
        %5769 = vmatpush1.bf16.msra.mxu0 0
        %5770 = vmatprep.subr.bf16.mxu0 0
        %5771 = vmatpush1.bf16.msra.mxu0 0
        %5772 = vmatprep.subr.bf16.mxu0 0
        %5773 = vmatpush1.bf16.msra.mxu0 0
        %5774 = vmatprep.subr.bf16.mxu0 0
        %5775 = vmatpush1.bf16.msra.mxu0 0
        %5776 = vmatprep.subr.bf16.mxu0 0
        %5777 = vmatpush1.bf16.msra.mxu0 0
        %5778 = vmatprep.subr.bf16.mxu0 0
        %5779 = vmatpush1.bf16.msra.mxu0 0
        %5780 = vmatprep.subr.bf16.mxu0 0
        %5781 = vmatpush1.bf16.msra.mxu0 0
        %5782 = vmatprep.subr.bf16.mxu0 0
        %5783 = vmatpush1.bf16.msra.mxu0 0
        %5784 = vmatprep.mubr.bf16.mxu0 0
        %5785 = vmatmul.mubr.bf16.gmra.mrb[0].mxu0 %v5738
        %v5786 = vpop.f32.mrb[0].mxu0
        %v5787 = vadd.f32 0.0, %v5786
        %v5788 = vpop.f32.mrb[0].mxu0
        %v5789 = vpop.f32.mrb[0].mxu0
        %v5790 = vadd.f32 0.0, %v5789
        %v5791 = vpop.f32.mrb[0].mxu0
        %5792 = vmatprep.mubr.bf16.mxu0 0
        %5793 = vmatmul.mubr.bf16.gmra.mrb[0].mxu0 %v5741
        %v5794 = vpop.f32.mrb[0].mxu0
        %v5795 = vadd.f32 0.0, %v5794
        %v5796 = vpop.f32.mrb[0].mxu0
        %v5797 = vpop.f32.mrb[0].mxu0
        %v5798 = vadd.f32 0.0, %v5797
        %v5799 = vpop.f32.mrb[0].mxu0
        %5800 = vmatprep.mubr.bf16.mxu0 0
        %5801 = vmatmul.mubr.bf16.gmra.mrb[0].mxu0 %v5744
        %v5802 = vpop.f32.mrb[0].mxu0
        %v5803 = vadd.f32 0.0, %v5802
        %v5804 = vpop.f32.mrb[0].mxu0
        %v5805 = vpop.f32.mrb[0].mxu0
        %v5806 = vadd.f32 0.0, %v5805
        %v5807 = vpop.f32.mrb[0].mxu0
        %5808 = vmatprep.mubr.bf16.mxu0 0
        %5809 = vmatmul.mubr.bf16.gmra.mrb[0].mxu0 %v5747
        %v5810 = vpop.f32.mrb[0].mxu0
        %v5811 = vadd.f32 0.0, %v5810
        %v5812 = vpop.f32.mrb[0].mxu0
        %v5813 = vpop.f32.mrb[0].mxu0
        %v5814 = vadd.f32 0.0, %v5813
        %v5815 = vpop.f32.mrb[0].mxu0
        %5816 = vmatprep.mubr.bf16.mxu0 0
        %5817 = vmatmul.mubr.bf16.gmra.mrb[0].mxu0 %v5750
        %v5818 = vpop.f32.mrb[0].mxu0
        %v5819 = vadd.f32 0.0, %v5818
        %v5820 = vpop.f32.mrb[0].mxu0
        %v5821 = vpop.f32.mrb[0].mxu0
        %v5822 = vadd.f32 0.0, %v5821
        %v5823 = vpop.f32.mrb[0].mxu0
        %5824 = vdwg.mxu0
        %v5825 = vadd.f32 %v5703, %v5787
        %v5826 = vadd.f32 %v5704, %v5790
        %v5827 = vadd.f32 %v5705, %v5795
        %v5828 = vadd.f32 %v5706, %v5798
        %v5829 = vadd.f32 %v5707, %v5803
        %v5830 = vadd.f32 %v5708, %v5806
        %v5831 = vadd.f32 %v5709, %v5811
        %v5832 = vadd.f32 %v5710, %v5814
        %v5833 = vadd.f32 %v5711, %v5819
        %v5834 = vadd.f32 %v5712, %v5822
        %v5835 = vld [vmem:[#allocation2 + $0x16] sm:$0xff]
        %v5836 = vld [vmem:[#allocation2 + $0x1e] sm:$0xff]
        %v5837 = vld [vmem:[#allocation2 + $0x26] sm:$0xff]
        %v5838 = vld [vmem:[#allocation2 + $0x2e] sm:$0xff]
        %v5839 = vld [vmem:[#allocation2 + $0x36] sm:$0xff]
        %v5840 = vld [vmem:[#allocation2 + $0x3e] sm:$0xff]
        %v5841 = vld [vmem:[#allocation2 + $0x46] sm:$0xff]
        %v5842 = vld [vmem:[#allocation2 + $0x4e] sm:$0xff]
        %v5843 = vld [vmem:[#allocation2 + $0x56] sm:$0xff]
        %v5844 = vld [vmem:[#allocation2 + $0x5e] sm:$0xff]
        %v5845 = vpack.c.bf16 %v5836, %v5835
        %v5846 = vpack.c.bf16 %v5838, %v5837
        %v5847 = vpack.c.bf16 %v5840, %v5839
        %v5848 = vpack.c.bf16 %v5842, %v5841
        %v5849 = vpack.c.bf16 %v5844, %v5843
        %s5850 = scalar_lea.vmem %s4, 64
        %v5851 = vld [vmem:[%s5850] sm:$0xf]
        %v5852 = vld [vmem:[%s5850 + $0x4] sm:$0xf]
        %v5855 = vunpack.c.l.b16 %v5851
        %v5856 = vunpack.c.l.b16 %v5852
        %v5857 = vpack.c.b16 %v5856, %v5855
        %v5860 = vsel %vm4839, %v5845, 0
        %v5863 = vsel %vm4839, %v5846, 0
        %v5866 = vsel %vm4839, %v5847, 0
        %v5869 = vsel %vm4839, %v5848, 0
        %v5872 = vsel %vm4839, %v5849, 0
        %5874 = vmatprep.subr.bf16.mxu0 0
        %5875 = vmatpush1.bf16.msra.mxu0 %v5857
        %5876 = vmatprep.subr.bf16.mxu0 0
        %5877 = vmatpush1.bf16.msra.mxu0 0
        %5878 = vmatprep.subr.bf16.mxu0 0
        %5879 = vmatpush1.bf16.msra.mxu0 0
        %5880 = vmatprep.subr.bf16.mxu0 0
        %5881 = vmatpush1.bf16.msra.mxu0 0
        %5882 = vmatprep.subr.bf16.mxu0 0
        %5883 = vmatpush1.bf16.msra.mxu0 0
        %5884 = vmatprep.subr.bf16.mxu0 0
        %5885 = vmatpush1.bf16.msra.mxu0 0
        %5886 = vmatprep.subr.bf16.mxu0 0
        %5887 = vmatpush1.bf16.msra.mxu0 0
        %5888 = vmatprep.subr.bf16.mxu0 0
        %5889 = vmatpush1.bf16.msra.mxu0 0
        %5890 = vmatprep.subr.bf16.mxu0 0
        %5891 = vmatpush1.bf16.msra.mxu0 0
        %5892 = vmatprep.subr.bf16.mxu0 0
        %5893 = vmatpush1.bf16.msra.mxu0 0
        %5894 = vmatprep.subr.bf16.mxu0 0
        %5895 = vmatpush1.bf16.msra.mxu0 0
        %5896 = vmatprep.subr.bf16.mxu0 0
        %5897 = vmatpush1.bf16.msra.mxu0 0
        %5898 = vmatprep.subr.bf16.mxu0 0
        %5899 = vmatpush1.bf16.msra.mxu0 0
        %5900 = vmatprep.subr.bf16.mxu0 0
        %5901 = vmatpush1.bf16.msra.mxu0 0
        %5902 = vmatprep.subr.bf16.mxu0 0
        %5903 = vmatpush1.bf16.msra.mxu0 0
        %5904 = vmatprep.subr.bf16.mxu0 0
        %5905 = vmatpush1.bf16.msra.mxu0 0
        %5906 = vmatprep.mubr.bf16.mxu0 0
        %5907 = vmatmul.mubr.bf16.gmra.mrb[0].mxu0 %v5860
        %v5908 = vpop.f32.mrb[0].mxu0
        %v5909 = vadd.f32 0.0, %v5908
        %v5910 = vpop.f32.mrb[0].mxu0
        %v5911 = vpop.f32.mrb[0].mxu0
        %v5912 = vadd.f32 0.0, %v5911
        %v5913 = vpop.f32.mrb[0].mxu0
        %5914 = vmatprep.mubr.bf16.mxu0 0
        %5915 = vmatmul.mubr.bf16.gmra.mrb[0].mxu0 %v5863
        %v5916 = vpop.f32.mrb[0].mxu0
        %v5917 = vadd.f32 0.0, %v5916
        %v5918 = vpop.f32.mrb[0].mxu0
        %v5919 = vpop.f32.mrb[0].mxu0
        %v5920 = vadd.f32 0.0, %v5919
        %v5921 = vpop.f32.mrb[0].mxu0
        %5922 = vmatprep.mubr.bf16.mxu0 0
        %5923 = vmatmul.mubr.bf16.gmra.mrb[0].mxu0 %v5866
        %v5924 = vpop.f32.mrb[0].mxu0
        %v5925 = vadd.f32 0.0, %v5924
        %v5926 = vpop.f32.mrb[0].mxu0
        %v5927 = vpop.f32.mrb[0].mxu0
        %v5928 = vadd.f32 0.0, %v5927
        %v5929 = vpop.f32.mrb[0].mxu0
        %5930 = vmatprep.mubr.bf16.mxu0 0
        %5931 = vmatmul.mubr.bf16.gmra.mrb[0].mxu0 %v5869
        %v5932 = vpop.f32.mrb[0].mxu0
        %v5933 = vadd.f32 0.0, %v5932
        %v5934 = vpop.f32.mrb[0].mxu0
        %v5935 = vpop.f32.mrb[0].mxu0
        %v5936 = vadd.f32 0.0, %v5935
        %v5937 = vpop.f32.mrb[0].mxu0
        %5938 = vmatprep.mubr.bf16.mxu0 0
        %5939 = vmatmul.mubr.bf16.gmra.mrb[0].mxu0 %v5872
        %v5940 = vpop.f32.mrb[0].mxu0
        %v5941 = vadd.f32 0.0, %v5940
        %v5942 = vpop.f32.mrb[0].mxu0
        %v5943 = vpop.f32.mrb[0].mxu0
        %v5944 = vadd.f32 0.0, %v5943
        %v5945 = vpop.f32.mrb[0].mxu0
        %5946 = vdwg.mxu0
        %v5947 = vadd.f32 %v5825, %v5909
        %v5948 = vadd.f32 %v5826, %v5912
        %v5949 = vadd.f32 %v5827, %v5917
        %v5950 = vadd.f32 %v5828, %v5920
        %v5951 = vadd.f32 %v5829, %v5925
        %v5952 = vadd.f32 %v5830, %v5928
        %v5953 = vadd.f32 %v5831, %v5933
        %v5954 = vadd.f32 %v5832, %v5936
        %v5955 = vadd.f32 %v5833, %v5941
        %v5956 = vadd.f32 %v5834, %v5944
        %v5957 = vmax.f32 %v5947, 0.0
        %v5958 = vmax.f32 %v5948, 0.0
        %v5959 = vmax.f32 %v5949, 0.0
        %v5960 = vmax.f32 %v5950, 0.0
        %v5961 = vmax.f32 %v5951, 0.0
        %v5962 = vmax.f32 %v5952, 0.0
        %v5963 = vmax.f32 %v5953, 0.0
        %v5964 = vmax.f32 %v5954, 0.0
        %v5965 = vmax.f32 %v5955, 0.0
        %v5966 = vmax.f32 %v5956, 0.0
        %v5967 = vld [vmem:[%s6] sm:$0xff]
        %v5968 = vld [vmem:[%s6 + $0x8] sm:$0xff]
        %v5969 = vld [vmem:[%s6 + $0x10] sm:$0xff]
        %v5970 = vld [vmem:[%s6 + $0x18] sm:$0xff]
        %v5971 = vld [vmem:[%s6 + $0x20] sm:$0xff]
        %vm5972 = vcmask 654336
        %v5974 = vsel %vm5972, %v5967, 0
        %v5977 = vsel %vm5972, %v5968, 0
        %v5980 = vsel %vm5972, %v5969, 0
        %v5983 = vsel %vm5972, %v5970, 0
        %v5986 = vsel %vm5972, %v5971, 0
        %5988 = vmatprep.subr.mxu0 0.0
        %5989 = vmatpush1.msra.mxu0 %v5957
        %5990 = vmatprep.subr.mxu0 0.0
        %5991 = vmatpush1.msra.mxu0 %v5958
        %5992 = vmatprep.subr.mxu0 0.0
        %5993 = vmatpush1.msra.mxu0 %v5959
        %5994 = vmatprep.subr.mxu0 0.0
        %5995 = vmatpush1.msra.mxu0 %v5960
        %5996 = vmatprep.subr.mxu0 0.0
        %5997 = vmatpush1.msra.mxu0 %v5961
        %5998 = vmatprep.subr.mxu0 0.0
        %5999 = vmatpush1.msra.mxu0 %v5962
        %6000 = vmatprep.subr.mxu0 0.0
        %6001 = vmatpush1.msra.mxu0 %v5963
        %6002 = vmatprep.subr.mxu0 0.0
        %6003 = vmatpush1.msra.mxu0 %v5964
        %6004 = vmatprep.subr.mxu0 0.0
        %6005 = vmatpush1.msra.mxu0 %v5965
        %6006 = vmatprep.subr.mxu0 0.0
        %6007 = vmatpush1.msra.mxu0 %v5966
        %6008 = vmatprep.subr.mxu0 0.0
        %6009 = vmatpush1.msra.mxu0 0.0
        %6010 = vmatprep.subr.mxu0 0.0
        %6011 = vmatpush1.msra.mxu0 0.0
        %6012 = vmatprep.subr.mxu0 0.0
        %6013 = vmatpush1.msra.mxu0 0.0
        %6014 = vmatprep.subr.mxu0 0.0
        %6015 = vmatpush1.msra.mxu0 0.0
        %6016 = vmatprep.subr.mxu0 0.0
        %6017 = vmatpush1.msra.mxu0 0.0
        %6018 = vmatprep.subr.mxu0 0.0
        %6019 = vmatpush1.msra.mxu0 0.0
        %6020 = vmatprep.subr.mxu0 0.0
        %6021 = vmatpush1.msra.mxu0 0.0
        %6022 = vmatprep.subr.mxu0 0.0
        %6023 = vmatpush1.msra.mxu0 0.0
        %6024 = vmatprep.subr.mxu0 0.0
        %6025 = vmatpush1.msra.mxu0 0.0
        %6026 = vmatprep.subr.mxu0 0.0
        %6027 = vmatpush1.msra.mxu0 0.0
        %6028 = vmatprep.subr.mxu0 0.0
        %6029 = vmatpush1.msra.mxu0 0.0
        %6030 = vmatprep.subr.mxu0 0.0
        %6031 = vmatpush1.msra.mxu0 0.0
        %6032 = vmatprep.subr.mxu0 0.0
        %6033 = vmatpush1.msra.mxu0 0.0
        %6034 = vmatprep.subr.mxu0 0.0
        %6035 = vmatpush1.msra.mxu0 0.0
        %6036 = vmatprep.subr.mxu0 0.0
        %6037 = vmatpush1.msra.mxu0 0.0
        %6038 = vmatprep.subr.mxu0 0.0
        %6039 = vmatpush1.msra.mxu0 0.0
        %6040 = vmatprep.subr.mxu0 0.0
        %6041 = vmatpush1.msra.mxu0 0.0
        %6042 = vmatprep.subr.mxu0 0.0
        %6043 = vmatpush1.msra.mxu0 0.0
        %6044 = vmatprep.subr.mxu0 0.0
        %6045 = vmatpush1.msra.mxu0 0.0
        %6046 = vmatprep.subr.mxu0 0.0
        %6047 = vmatpush1.msra.mxu0 0.0
        %6048 = vmatprep.subr.mxu0 0.0
        %6049 = vmatpush1.msra.mxu0 0.0
        %6050 = vmatprep.subr.mxu0 0.0
        %6051 = vmatpush1.msra.mxu0 0.0
        %6052 = vmatprep.mubr.f32.mxu0 0.0
        %6053 = vmatmul.mubr.f32.gmra.mrb[0].mxu0 %v5974
        %v6054 = vpop.f32.mrb[0].mxu0
        %v6055 = vadd.f32 0.0, %v6054
        %v6056 = vpop.f32.mrb[0].mxu0
        %6057 = vmatprep.mubr.f32.mxu0 0.0
        %6058 = vmatmul.mubr.f32.gmra.mrb[0].mxu0 %v5977
        %v6059 = vpop.f32.mrb[0].mxu0
        %v6060 = vadd.f32 0.0, %v6059
        %v6061 = vpop.f32.mrb[0].mxu0
        %6062 = vmatprep.mubr.f32.mxu0 0.0
        %6063 = vmatmul.mubr.f32.gmra.mrb[0].mxu0 %v5980
        %v6064 = vpop.f32.mrb[0].mxu0
        %v6065 = vadd.f32 0.0, %v6064
        %v6066 = vpop.f32.mrb[0].mxu0
        %6067 = vmatprep.mubr.f32.mxu0 0.0
        %6068 = vmatmul.mubr.f32.gmra.mrb[0].mxu0 %v5983
        %v6069 = vpop.f32.mrb[0].mxu0
        %v6070 = vadd.f32 0.0, %v6069
        %v6071 = vpop.f32.mrb[0].mxu0
        %6072 = vmatprep.mubr.f32.mxu0 0.0
        %6073 = vmatmul.mubr.f32.gmra.mrb[0].mxu0 %v5986
        %v6074 = vpop.f32.mrb[0].mxu0
        %v6075 = vadd.f32 0.0, %v6074
        %v6076 = vpop.f32.mrb[0].mxu0
        %6077 = vdwg.mxu0
        %s6078 = scalar_lea.vmem %s6, 40
        %v6079 = vld [vmem:[%s6078] sm:$0xff]
        %v6080 = vld [vmem:[%s6078 + $0x8] sm:$0xff]
        %v6081 = vld [vmem:[%s6078 + $0x10] sm:$0xff]
        %v6082 = vld [vmem:[%s6078 + $0x18] sm:$0xff]
        %v6083 = vld [vmem:[%s6078 + $0x20] sm:$0xff]
        %v6085 = vsel %vm5972, %v6079, 0
        %v6088 = vsel %vm5972, %v6080, 0
        %v6091 = vsel %vm5972, %v6081, 0
        %v6094 = vsel %vm5972, %v6082, 0
        %v6097 = vsel %vm5972, %v6083, 0
        %6099 = vmatprep.subr.mxu0 0.0
        %6100 = vmatpush1.msra.mxu0 %v5957
        %6101 = vmatprep.subr.mxu0 0.0
        %6102 = vmatpush1.msra.mxu0 %v5958
        %6103 = vmatprep.subr.mxu0 0.0
        %6104 = vmatpush1.msra.mxu0 %v5959
        %6105 = vmatprep.subr.mxu0 0.0
        %6106 = vmatpush1.msra.mxu0 %v5960
        %6107 = vmatprep.subr.mxu0 0.0
        %6108 = vmatpush1.msra.mxu0 %v5961
        %6109 = vmatprep.subr.mxu0 0.0
        %6110 = vmatpush1.msra.mxu0 %v5962
        %6111 = vmatprep.subr.mxu0 0.0
        %6112 = vmatpush1.msra.mxu0 %v5963
        %6113 = vmatprep.subr.mxu0 0.0
        %6114 = vmatpush1.msra.mxu0 %v5964
        %6115 = vmatprep.subr.mxu0 0.0
        %6116 = vmatpush1.msra.mxu0 %v5965
        %6117 = vmatprep.subr.mxu0 0.0
        %6118 = vmatpush1.msra.mxu0 %v5966
        %6119 = vmatprep.subr.mxu0 0.0
        %6120 = vmatpush1.msra.mxu0 0.0
        %6121 = vmatprep.subr.mxu0 0.0
        %6122 = vmatpush1.msra.mxu0 0.0
        %6123 = vmatprep.subr.mxu0 0.0
        %6124 = vmatpush1.msra.mxu0 0.0
        %6125 = vmatprep.subr.mxu0 0.0
        %6126 = vmatpush1.msra.mxu0 0.0
        %6127 = vmatprep.subr.mxu0 0.0
        %6128 = vmatpush1.msra.mxu0 0.0
        %6129 = vmatprep.subr.mxu0 0.0
        %6130 = vmatpush1.msra.mxu0 0.0
        %6131 = vmatprep.subr.mxu0 0.0
        %6132 = vmatpush1.msra.mxu0 0.0
        %6133 = vmatprep.subr.mxu0 0.0
        %6134 = vmatpush1.msra.mxu0 0.0
        %6135 = vmatprep.subr.mxu0 0.0
        %6136 = vmatpush1.msra.mxu0 0.0
        %6137 = vmatprep.subr.mxu0 0.0
        %6138 = vmatpush1.msra.mxu0 0.0
        %6139 = vmatprep.subr.mxu0 0.0
        %6140 = vmatpush1.msra.mxu0 0.0
        %6141 = vmatprep.subr.mxu0 0.0
        %6142 = vmatpush1.msra.mxu0 0.0
        %6143 = vmatprep.subr.mxu0 0.0
        %6144 = vmatpush1.msra.mxu0 0.0
        %6145 = vmatprep.subr.mxu0 0.0
        %6146 = vmatpush1.msra.mxu0 0.0
        %6147 = vmatprep.subr.mxu0 0.0
        %6148 = vmatpush1.msra.mxu0 0.0
        %6149 = vmatprep.subr.mxu0 0.0
        %6150 = vmatpush1.msra.mxu0 0.0
        %6151 = vmatprep.subr.mxu0 0.0
        %6152 = vmatpush1.msra.mxu0 0.0
        %6153 = vmatprep.subr.mxu0 0.0
        %6154 = vmatpush1.msra.mxu0 0.0
        %6155 = vmatprep.subr.mxu0 0.0
        %6156 = vmatpush1.msra.mxu0 0.0
        %6157 = vmatprep.subr.mxu0 0.0
        %6158 = vmatpush1.msra.mxu0 0.0
        %6159 = vmatprep.subr.mxu0 0.0
        %6160 = vmatpush1.msra.mxu0 0.0
        %6161 = vmatprep.subr.mxu0 0.0
        %6162 = vmatpush1.msra.mxu0 0.0
        %6163 = vmatprep.mubr.f32.mxu0 0.0
        %6164 = vmatmul.mubr.f32.gmra.mrb[0].mxu0 %v6085
        %v6165 = vpop.f32.mrb[0].mxu0
        %v6166 = vadd.f32 0.0, %v6165
        %v6167 = vpop.f32.mrb[0].mxu0
        %6168 = vmatprep.mubr.f32.mxu0 0.0
        %6169 = vmatmul.mubr.f32.gmra.mrb[0].mxu0 %v6088
        %v6170 = vpop.f32.mrb[0].mxu0
        %v6171 = vadd.f32 0.0, %v6170
        %v6172 = vpop.f32.mrb[0].mxu0
        %6173 = vmatprep.mubr.f32.mxu0 0.0
        %6174 = vmatmul.mubr.f32.gmra.mrb[0].mxu0 %v6091
        %v6175 = vpop.f32.mrb[0].mxu0
        %v6176 = vadd.f32 0.0, %v6175
        %v6177 = vpop.f32.mrb[0].mxu0
        %6178 = vmatprep.mubr.f32.mxu0 0.0
        %6179 = vmatmul.mubr.f32.gmra.mrb[0].mxu0 %v6094
        %v6180 = vpop.f32.mrb[0].mxu0
        %v6181 = vadd.f32 0.0, %v6180
        %v6182 = vpop.f32.mrb[0].mxu0
        %6183 = vmatprep.mubr.f32.mxu0 0.0
        %6184 = vmatmul.mubr.f32.gmra.mrb[0].mxu0 %v6097
        %v6185 = vpop.f32.mrb[0].mxu0
        %v6186 = vadd.f32 0.0, %v6185
        %v6187 = vpop.f32.mrb[0].mxu0
        %6188 = vdwg.mxu0
        %v6189 = vmax.f32 %v6055, %v6166
        %v6190 = vmax.f32 %v6060, %v6171
        %v6191 = vmax.f32 %v6065, %v6176
        %v6192 = vmax.f32 %v6070, %v6181
        %v6193 = vmax.f32 %v6075, %v6186
        %s6194 = scalar_lea.vmem %s6, 80
        %v6195 = vld [vmem:[%s6194] sm:$0xff]
        %v6196 = vld [vmem:[%s6194 + $0x8] sm:$0xff]
        %v6197 = vld [vmem:[%s6194 + $0x10] sm:$0xff]
        %v6198 = vld [vmem:[%s6194 + $0x18] sm:$0xff]
        %v6199 = vld [vmem:[%s6194 + $0x20] sm:$0xff]
        %v6201 = vsel %vm5972, %v6195, 0
        %v6204 = vsel %vm5972, %v6196, 0
        %v6207 = vsel %vm5972, %v6197, 0
        %v6210 = vsel %vm5972, %v6198, 0
        %v6213 = vsel %vm5972, %v6199, 0
        %6215 = vmatprep.subr.mxu0 0.0
        %6216 = vmatpush1.msra.mxu0 %v5957
        %6217 = vmatprep.subr.mxu0 0.0
        %6218 = vmatpush1.msra.mxu0 %v5958
        %6219 = vmatprep.subr.mxu0 0.0
        %6220 = vmatpush1.msra.mxu0 %v5959
        %6221 = vmatprep.subr.mxu0 0.0
        %6222 = vmatpush1.msra.mxu0 %v5960
        %6223 = vmatprep.subr.mxu0 0.0
        %6224 = vmatpush1.msra.mxu0 %v5961
        %6225 = vmatprep.subr.mxu0 0.0
        %6226 = vmatpush1.msra.mxu0 %v5962
        %6227 = vmatprep.subr.mxu0 0.0
        %6228 = vmatpush1.msra.mxu0 %v5963
        %6229 = vmatprep.subr.mxu0 0.0
        %6230 = vmatpush1.msra.mxu0 %v5964
        %6231 = vmatprep.subr.mxu0 0.0
        %6232 = vmatpush1.msra.mxu0 %v5965
        %6233 = vmatprep.subr.mxu0 0.0
        %6234 = vmatpush1.msra.mxu0 %v5966
        %6235 = vmatprep.subr.mxu0 0.0
        %6236 = vmatpush1.msra.mxu0 0.0
        %6237 = vmatprep.subr.mxu0 0.0
        %6238 = vmatpush1.msra.mxu0 0.0
        %6239 = vmatprep.subr.mxu0 0.0
        %6240 = vmatpush1.msra.mxu0 0.0
        %6241 = vmatprep.subr.mxu0 0.0
        %6242 = vmatpush1.msra.mxu0 0.0
        %6243 = vmatprep.subr.mxu0 0.0
        %6244 = vmatpush1.msra.mxu0 0.0
        %6245 = vmatprep.subr.mxu0 0.0
        %6246 = vmatpush1.msra.mxu0 0.0
        %6247 = vmatprep.subr.mxu0 0.0
        %6248 = vmatpush1.msra.mxu0 0.0
        %6249 = vmatprep.subr.mxu0 0.0
        %6250 = vmatpush1.msra.mxu0 0.0
        %6251 = vmatprep.subr.mxu0 0.0
        %6252 = vmatpush1.msra.mxu0 0.0
        %6253 = vmatprep.subr.mxu0 0.0
        %6254 = vmatpush1.msra.mxu0 0.0
        %6255 = vmatprep.subr.mxu0 0.0
        %6256 = vmatpush1.msra.mxu0 0.0
        %6257 = vmatprep.subr.mxu0 0.0
        %6258 = vmatpush1.msra.mxu0 0.0
        %6259 = vmatprep.subr.mxu0 0.0
        %6260 = vmatpush1.msra.mxu0 0.0
        %6261 = vmatprep.subr.mxu0 0.0
        %6262 = vmatpush1.msra.mxu0 0.0
        %6263 = vmatprep.subr.mxu0 0.0
        %6264 = vmatpush1.msra.mxu0 0.0
        %6265 = vmatprep.subr.mxu0 0.0
        %6266 = vmatpush1.msra.mxu0 0.0
        %6267 = vmatprep.subr.mxu0 0.0
        %6268 = vmatpush1.msra.mxu0 0.0
        %6269 = vmatprep.subr.mxu0 0.0
        %6270 = vmatpush1.msra.mxu0 0.0
        %6271 = vmatprep.subr.mxu0 0.0
        %6272 = vmatpush1.msra.mxu0 0.0
        %6273 = vmatprep.subr.mxu0 0.0
        %6274 = vmatpush1.msra.mxu0 0.0
        %6275 = vmatprep.subr.mxu0 0.0
        %6276 = vmatpush1.msra.mxu0 0.0
        %6277 = vmatprep.subr.mxu0 0.0
        %6278 = vmatpush1.msra.mxu0 0.0
        %6279 = vmatprep.mubr.f32.mxu0 0.0
        %6280 = vmatmul.mubr.f32.gmra.mrb[0].mxu0 %v6201
        %v6281 = vpop.f32.mrb[0].mxu0
        %v6282 = vadd.f32 0.0, %v6281
        %v6283 = vpop.f32.mrb[0].mxu0
        %6284 = vmatprep.mubr.f32.mxu0 0.0
        %6285 = vmatmul.mubr.f32.gmra.mrb[0].mxu0 %v6204
        %v6286 = vpop.f32.mrb[0].mxu0
        %v6287 = vadd.f32 0.0, %v6286
        %v6288 = vpop.f32.mrb[0].mxu0
        %6289 = vmatprep.mubr.f32.mxu0 0.0
        %6290 = vmatmul.mubr.f32.gmra.mrb[0].mxu0 %v6207
        %v6291 = vpop.f32.mrb[0].mxu0
        %v6292 = vadd.f32 0.0, %v6291
        %v6293 = vpop.f32.mrb[0].mxu0
        %6294 = vmatprep.mubr.f32.mxu0 0.0
        %6295 = vmatmul.mubr.f32.gmra.mrb[0].mxu0 %v6210
        %v6296 = vpop.f32.mrb[0].mxu0
        %v6297 = vadd.f32 0.0, %v6296
        %v6298 = vpop.f32.mrb[0].mxu0
        %6299 = vmatprep.mubr.f32.mxu0 0.0
        %6300 = vmatmul.mubr.f32.gmra.mrb[0].mxu0 %v6213
        %v6301 = vpop.f32.mrb[0].mxu0
        %v6302 = vadd.f32 0.0, %v6301
        %v6303 = vpop.f32.mrb[0].mxu0
        %6304 = vdwg.mxu0
        %v6305 = vmax.f32 %v6189, %v6282
        %v6306 = vmax.f32 %v6190, %v6287
        %v6307 = vmax.f32 %v6191, %v6292
        %v6308 = vmax.f32 %v6192, %v6297
        %v6309 = vmax.f32 %v6193, %v6302
        %s6310 = scalar_lea.vmem %s6, 120
        %v6311 = vld [vmem:[%s6310] sm:$0xff]
        %v6312 = vld [vmem:[%s6310 + $0x8] sm:$0xff]
        %v6313 = vld [vmem:[%s6310 + $0x10] sm:$0xff]
        %v6314 = vld [vmem:[%s6310 + $0x18] sm:$0xff]
        %v6315 = vld [vmem:[%s6310 + $0x20] sm:$0xff]
        %v6317 = vsel %vm5972, %v6311, 0
        %v6320 = vsel %vm5972, %v6312, 0
        %v6323 = vsel %vm5972, %v6313, 0
        %v6326 = vsel %vm5972, %v6314, 0
        %v6329 = vsel %vm5972, %v6315, 0
        %6331 = vmatprep.subr.mxu0 0.0
        %6332 = vmatpush1.msra.mxu0 %v5957
        %6333 = vmatprep.subr.mxu0 0.0
        %6334 = vmatpush1.msra.mxu0 %v5958
        %6335 = vmatprep.subr.mxu0 0.0
        %6336 = vmatpush1.msra.mxu0 %v5959
        %6337 = vmatprep.subr.mxu0 0.0
        %6338 = vmatpush1.msra.mxu0 %v5960
        %6339 = vmatprep.subr.mxu0 0.0
        %6340 = vmatpush1.msra.mxu0 %v5961
        %6341 = vmatprep.subr.mxu0 0.0
        %6342 = vmatpush1.msra.mxu0 %v5962
        %6343 = vmatprep.subr.mxu0 0.0
        %6344 = vmatpush1.msra.mxu0 %v5963
        %6345 = vmatprep.subr.mxu0 0.0
        %6346 = vmatpush1.msra.mxu0 %v5964
        %6347 = vmatprep.subr.mxu0 0.0
        %6348 = vmatpush1.msra.mxu0 %v5965
        %6349 = vmatprep.subr.mxu0 0.0
        %6350 = vmatpush1.msra.mxu0 %v5966
        %6351 = vmatprep.subr.mxu0 0.0
        %6352 = vmatpush1.msra.mxu0 0.0
        %6353 = vmatprep.subr.mxu0 0.0
        %6354 = vmatpush1.msra.mxu0 0.0
        %6355 = vmatprep.subr.mxu0 0.0
        %6356 = vmatpush1.msra.mxu0 0.0
        %6357 = vmatprep.subr.mxu0 0.0
        %6358 = vmatpush1.msra.mxu0 0.0
        %6359 = vmatprep.subr.mxu0 0.0
        %6360 = vmatpush1.msra.mxu0 0.0
        %6361 = vmatprep.subr.mxu0 0.0
        %6362 = vmatpush1.msra.mxu0 0.0
        %6363 = vmatprep.subr.mxu0 0.0
        %6364 = vmatpush1.msra.mxu0 0.0
        %6365 = vmatprep.subr.mxu0 0.0
        %6366 = vmatpush1.msra.mxu0 0.0
        %6367 = vmatprep.subr.mxu0 0.0
        %6368 = vmatpush1.msra.mxu0 0.0
        %6369 = vmatprep.subr.mxu0 0.0
        %6370 = vmatpush1.msra.mxu0 0.0
        %6371 = vmatprep.subr.mxu0 0.0
        %6372 = vmatpush1.msra.mxu0 0.0
        %6373 = vmatprep.subr.mxu0 0.0
        %6374 = vmatpush1.msra.mxu0 0.0
        %6375 = vmatprep.subr.mxu0 0.0
        %6376 = vmatpush1.msra.mxu0 0.0
        %6377 = vmatprep.subr.mxu0 0.0
        %6378 = vmatpush1.msra.mxu0 0.0
        %6379 = vmatprep.subr.mxu0 0.0
        %6380 = vmatpush1.msra.mxu0 0.0
        %6381 = vmatprep.subr.mxu0 0.0
        %6382 = vmatpush1.msra.mxu0 0.0
        %6383 = vmatprep.subr.mxu0 0.0
        %6384 = vmatpush1.msra.mxu0 0.0
        %6385 = vmatprep.subr.mxu0 0.0
        %6386 = vmatpush1.msra.mxu0 0.0
        %6387 = vmatprep.subr.mxu0 0.0
        %6388 = vmatpush1.msra.mxu0 0.0
        %6389 = vmatprep.subr.mxu0 0.0
        %6390 = vmatpush1.msra.mxu0 0.0
        %6391 = vmatprep.subr.mxu0 0.0
        %6392 = vmatpush1.msra.mxu0 0.0
        %6393 = vmatprep.subr.mxu0 0.0
        %6394 = vmatpush1.msra.mxu0 0.0
        %6395 = vmatprep.mubr.f32.mxu0 0.0
        %6396 = vmatmul.mubr.f32.gmra.mrb[0].mxu0 %v6317
        %v6397 = vpop.f32.mrb[0].mxu0
        %v6398 = vadd.f32 0.0, %v6397
        %v6399 = vpop.f32.mrb[0].mxu0
        %6400 = vmatprep.mubr.f32.mxu0 0.0
        %6401 = vmatmul.mubr.f32.gmra.mrb[0].mxu0 %v6320
        %v6402 = vpop.f32.mrb[0].mxu0
        %v6403 = vadd.f32 0.0, %v6402
        %v6404 = vpop.f32.mrb[0].mxu0
        %6405 = vmatprep.mubr.f32.mxu0 0.0
        %6406 = vmatmul.mubr.f32.gmra.mrb[0].mxu0 %v6323
        %v6407 = vpop.f32.mrb[0].mxu0
        %v6408 = vadd.f32 0.0, %v6407
        %v6409 = vpop.f32.mrb[0].mxu0
        %6410 = vmatprep.mubr.f32.mxu0 0.0
        %6411 = vmatmul.mubr.f32.gmra.mrb[0].mxu0 %v6326
        %v6412 = vpop.f32.mrb[0].mxu0
        %v6413 = vadd.f32 0.0, %v6412
        %v6414 = vpop.f32.mrb[0].mxu0
        %6415 = vmatprep.mubr.f32.mxu0 0.0
        %6416 = vmatmul.mubr.f32.gmra.mrb[0].mxu0 %v6329
        %v6417 = vpop.f32.mrb[0].mxu0
        %v6418 = vadd.f32 0.0, %v6417
        %v6419 = vpop.f32.mrb[0].mxu0
        %6420 = vdwg.mxu0
        %v6421 = vmax.f32 %v6305, %v6398
        %v6422 = vmax.f32 %v6306, %v6403
        %v6423 = vmax.f32 %v6307, %v6408
        %v6424 = vmax.f32 %v6308, %v6413
        %v6425 = vmax.f32 %v6309, %v6418
        %6426 = vst.msk [vmem:[#allocation3] sm:$0xff] %vm3483, %v6421
        %6427 = vst.msk [vmem:[#allocation3 + $0x8] sm:$0xff] %vm3483, %v6422
        %6428 = vst.msk [vmem:[#allocation3 + $0x10] sm:$0xff] %vm3483, %v6423
        %6429 = vst.msk [vmem:[#allocation3 + $0x18] sm:$0xff] %vm3483, %v6424
        %6430 = vst.msk [vmem:[#allocation3 + $0x20] sm:$0xff] %vm3483, %v6425
        %v6431 = vld [vmem:[%s8] sm:$0x1]
        %v6432 = vld [vmem:[#allocation3] sm:$0xff]
        %v6433 = vld [vmem:[#allocation3 + $0x8] sm:$0xff]
        %v6434 = vld [vmem:[#allocation3 + $0x10] sm:$0xff]
        %v6435 = vpack.c.bf16 %v6433, %v6432
        %v6436 = vpack.c.bf16 %v6434, %v6434
        %v6437 = vld [vmem:[%s7] sm:$0xf]
        %v6438 = vld [vmem:[%s7 + $0x4] sm:$0xf]
        %v6439 = vld [vmem:[%s7 + $0x8] sm:$0xf]
        %v6440 = vld [vmem:[%s7 + $0xc] sm:$0xf]
        %v6445 = vunpack.c.l.b16 %v6437
        %v6446 = vunpack.c.l.b16 %v6438
        %v6447 = vunpack.c.l.b16 %v6439
        %v6448 = vunpack.c.l.b16 %v6440
        %v6449 = vpack.c.b16 %v6446, %v6445
        %v6450 = vpack.c.b16 %v6448, %v6447
        %v6454 = vsel %vm3483, %v6435, 0
        %v6457 = vsel %vm3483, %v6436, 0
        %6459 = vmatprep.subr.bf16.mxu0 0
        %6460 = vmatpush1.bf16.msra.mxu0 %v6449
        %6461 = vmatprep.subr.bf16.mxu0 0
        %6462 = vmatpush1.bf16.msra.mxu0 %v6450
        %6463 = vmatprep.subr.bf16.mxu0 0
        %6464 = vmatpush1.bf16.msra.mxu0 0
        %6465 = vmatprep.subr.bf16.mxu0 0
        %6466 = vmatpush1.bf16.msra.mxu0 0
        %6467 = vmatprep.subr.bf16.mxu0 0
        %6468 = vmatpush1.bf16.msra.mxu0 0
        %6469 = vmatprep.subr.bf16.mxu0 0
        %6470 = vmatpush1.bf16.msra.mxu0 0
        %6471 = vmatprep.subr.bf16.mxu0 0
        %6472 = vmatpush1.bf16.msra.mxu0 0
        %6473 = vmatprep.subr.bf16.mxu0 0
        %6474 = vmatpush1.bf16.msra.mxu0 0
        %6475 = vmatprep.subr.bf16.mxu0 0
        %6476 = vmatpush1.bf16.msra.mxu0 0
        %6477 = vmatprep.subr.bf16.mxu0 0
        %6478 = vmatpush1.bf16.msra.mxu0 0
        %6479 = vmatprep.subr.bf16.mxu0 0
        %6480 = vmatpush1.bf16.msra.mxu0 0
        %6481 = vmatprep.subr.bf16.mxu0 0
        %6482 = vmatpush1.bf16.msra.mxu0 0
        %6483 = vmatprep.subr.bf16.mxu0 0
        %6484 = vmatpush1.bf16.msra.mxu0 0
        %6485 = vmatprep.subr.bf16.mxu0 0
        %6486 = vmatpush1.bf16.msra.mxu0 0
        %6487 = vmatprep.subr.bf16.mxu0 0
        %6488 = vmatpush1.bf16.msra.mxu0 0
        %6489 = vmatprep.subr.bf16.mxu0 0
        %6490 = vmatpush1.bf16.msra.mxu0 0
        %6491 = vmatprep.mubr.bf16.mxu0 0
        %6492 = vmatmul.mubr.bf16.gmra.mrb[0].mxu0 %v6454
        %v6493 = vpop.f32.mrb[0].mxu0
        %v6494 = vadd.f32 0.0, %v6493
        %v6495 = vpop.f32.mrb[0].mxu0
        %v6496 = vpop.f32.mrb[0].mxu0
        %v6497 = vadd.f32 0.0, %v6496
        %v6498 = vpop.f32.mrb[0].mxu0
        %6499 = vmatprep.mubr.bf16.mxu0 0
        %6500 = vmatmul.mubr.bf16.gmra.mrb[0].mxu0 %v6457
        %v6501 = vpop.f32.mrb[0].mxu0
        %v6502 = vadd.f32 0.0, %v6501
        %v6503 = vpop.f32.mrb[0].mxu0
        %v6504 = vpop.f32.mrb[0].mxu0
        %v6505 = vpop.f32.mrb[0].mxu0
        %6506 = vdwg.mxu0
        %v6508 = vlaneseq
        %v6509 = vshrl.u32 %v6508, 7
        %v6510 = vsub.s32 0, %v6509
        %v6511 = vrot.slane %v6431, %v6510
        %v6513 = vadd.f32 %v6511, %v6494
        %v6514 = vadd.f32 %v6511, %v6497
        %v6515 = vadd.f32 %v6511, %v6502
        %v6516 = vld [vmem:[#allocation3 + $0x1] sm:$0xff]
        %v6517 = vld [vmem:[#allocation3 + $0x9] sm:$0xff]
        %v6518 = vld [vmem:[#allocation3 + $0x11] sm:$0xff]
        %v6519 = vpack.c.bf16 %v6517, %v6516
        %v6520 = vpack.c.bf16 %v6518, %v6518
        %s6521 = scalar_lea.vmem %s7, 16
        %v6522 = vld [vmem:[%s6521] sm:$0xf]
        %v6523 = vld [vmem:[%s6521 + $0x4] sm:$0xf]
        %v6524 = vld [vmem:[%s6521 + $0x8] sm:$0xf]
        %v6525 = vld [vmem:[%s6521 + $0xc] sm:$0xf]
        %v6530 = vunpack.c.l.b16 %v6522
        %v6531 = vunpack.c.l.b16 %v6523
        %v6532 = vunpack.c.l.b16 %v6524
        %v6533 = vunpack.c.l.b16 %v6525
        %v6534 = vpack.c.b16 %v6531, %v6530
        %v6535 = vpack.c.b16 %v6533, %v6532
        %v6539 = vsel %vm3483, %v6519, 0
        %v6542 = vsel %vm3483, %v6520, 0
        %6544 = vmatprep.subr.bf16.mxu0 0
        %6545 = vmatpush1.bf16.msra.mxu0 %v6534
        %6546 = vmatprep.subr.bf16.mxu0 0
        %6547 = vmatpush1.bf16.msra.mxu0 %v6535
        %6548 = vmatprep.subr.bf16.mxu0 0
        %6549 = vmatpush1.bf16.msra.mxu0 0
        %6550 = vmatprep.subr.bf16.mxu0 0
        %6551 = vmatpush1.bf16.msra.mxu0 0
        %6552 = vmatprep.subr.bf16.mxu0 0
        %6553 = vmatpush1.bf16.msra.mxu0 0
        %6554 = vmatprep.subr.bf16.mxu0 0
        %6555 = vmatpush1.bf16.msra.mxu0 0
        %6556 = vmatprep.subr.bf16.mxu0 0
        %6557 = vmatpush1.bf16.msra.mxu0 0
        %6558 = vmatprep.subr.bf16.mxu0 0
        %6559 = vmatpush1.bf16.msra.mxu0 0
        %6560 = vmatprep.subr.bf16.mxu0 0
        %6561 = vmatpush1.bf16.msra.mxu0 0
        %6562 = vmatprep.subr.bf16.mxu0 0
        %6563 = vmatpush1.bf16.msra.mxu0 0
        %6564 = vmatprep.subr.bf16.mxu0 0
        %6565 = vmatpush1.bf16.msra.mxu0 0
        %6566 = vmatprep.subr.bf16.mxu0 0
        %6567 = vmatpush1.bf16.msra.mxu0 0
        %6568 = vmatprep.subr.bf16.mxu0 0
        %6569 = vmatpush1.bf16.msra.mxu0 0
        %6570 = vmatprep.subr.bf16.mxu0 0
        %6571 = vmatpush1.bf16.msra.mxu0 0
        %6572 = vmatprep.subr.bf16.mxu0 0
        %6573 = vmatpush1.bf16.msra.mxu0 0
        %6574 = vmatprep.subr.bf16.mxu0 0
        %6575 = vmatpush1.bf16.msra.mxu0 0
        %6576 = vmatprep.mubr.bf16.mxu0 0
        %6577 = vmatmul.mubr.bf16.gmra.mrb[0].mxu0 %v6539
        %v6578 = vpop.f32.mrb[0].mxu0
        %v6579 = vadd.f32 0.0, %v6578
        %v6580 = vpop.f32.mrb[0].mxu0
        %v6581 = vpop.f32.mrb[0].mxu0
        %v6582 = vadd.f32 0.0, %v6581
        %v6583 = vpop.f32.mrb[0].mxu0
        %6584 = vmatprep.mubr.bf16.mxu0 0
        %6585 = vmatmul.mubr.bf16.gmra.mrb[0].mxu0 %v6542
        %v6586 = vpop.f32.mrb[0].mxu0
        %v6587 = vadd.f32 0.0, %v6586
        %v6588 = vpop.f32.mrb[0].mxu0
        %v6589 = vpop.f32.mrb[0].mxu0
        %v6590 = vpop.f32.mrb[0].mxu0
        %6591 = vdwg.mxu0
        %v6592 = vadd.f32 %v6513, %v6579
        %v6593 = vadd.f32 %v6514, %v6582
        %v6594 = vadd.f32 %v6515, %v6587
        %v6595 = vld [vmem:[#allocation3 + $0x2] sm:$0xff]
        %v6596 = vld [vmem:[#allocation3 + $0xa] sm:$0xff]
        %v6597 = vld [vmem:[#allocation3 + $0x12] sm:$0xff]
        %v6598 = vpack.c.bf16 %v6596, %v6595
        %v6599 = vpack.c.bf16 %v6597, %v6597
        %s6600 = scalar_lea.vmem %s7, 32
        %v6601 = vld [vmem:[%s6600] sm:$0xf]
        %v6602 = vld [vmem:[%s6600 + $0x4] sm:$0xf]
        %v6603 = vld [vmem:[%s6600 + $0x8] sm:$0xf]
        %v6604 = vld [vmem:[%s6600 + $0xc] sm:$0xf]
        %v6609 = vunpack.c.l.b16 %v6601
        %v6610 = vunpack.c.l.b16 %v6602
        %v6611 = vunpack.c.l.b16 %v6603
        %v6612 = vunpack.c.l.b16 %v6604
        %v6613 = vpack.c.b16 %v6610, %v6609
        %v6614 = vpack.c.b16 %v6612, %v6611
        %v6618 = vsel %vm3483, %v6598, 0
        %v6621 = vsel %vm3483, %v6599, 0
        %6623 = vmatprep.subr.bf16.mxu0 0
        %6624 = vmatpush1.bf16.msra.mxu0 %v6613
        %6625 = vmatprep.subr.bf16.mxu0 0
        %6626 = vmatpush1.bf16.msra.mxu0 %v6614
        %6627 = vmatprep.subr.bf16.mxu0 0
        %6628 = vmatpush1.bf16.msra.mxu0 0
        %6629 = vmatprep.subr.bf16.mxu0 0
        %6630 = vmatpush1.bf16.msra.mxu0 0
        %6631 = vmatprep.subr.bf16.mxu0 0
        %6632 = vmatpush1.bf16.msra.mxu0 0
        %6633 = vmatprep.subr.bf16.mxu0 0
        %6634 = vmatpush1.bf16.msra.mxu0 0
        %6635 = vmatprep.subr.bf16.mxu0 0
        %6636 = vmatpush1.bf16.msra.mxu0 0
        %6637 = vmatprep.subr.bf16.mxu0 0
        %6638 = vmatpush1.bf16.msra.mxu0 0
        %6639 = vmatprep.subr.bf16.mxu0 0
        %6640 = vmatpush1.bf16.msra.mxu0 0
        %6641 = vmatprep.subr.bf16.mxu0 0
        %6642 = vmatpush1.bf16.msra.mxu0 0
        %6643 = vmatprep.subr.bf16.mxu0 0
        %6644 = vmatpush1.bf16.msra.mxu0 0
        %6645 = vmatprep.subr.bf16.mxu0 0
        %6646 = vmatpush1.bf16.msra.mxu0 0
        %6647 = vmatprep.subr.bf16.mxu0 0
        %6648 = vmatpush1.bf16.msra.mxu0 0
        %6649 = vmatprep.subr.bf16.mxu0 0
        %6650 = vmatpush1.bf16.msra.mxu0 0
        %6651 = vmatprep.subr.bf16.mxu0 0
        %6652 = vmatpush1.bf16.msra.mxu0 0
        %6653 = vmatprep.subr.bf16.mxu0 0
        %6654 = vmatpush1.bf16.msra.mxu0 0
        %6655 = vmatprep.mubr.bf16.mxu0 0
        %6656 = vmatmul.mubr.bf16.gmra.mrb[0].mxu0 %v6618
        %v6657 = vpop.f32.mrb[0].mxu0
        %v6658 = vadd.f32 0.0, %v6657
        %v6659 = vpop.f32.mrb[0].mxu0
        %v6660 = vpop.f32.mrb[0].mxu0
        %v6661 = vadd.f32 0.0, %v6660
        %v6662 = vpop.f32.mrb[0].mxu0
        %6663 = vmatprep.mubr.bf16.mxu0 0
        %6664 = vmatmul.mubr.bf16.gmra.mrb[0].mxu0 %v6621
        %v6665 = vpop.f32.mrb[0].mxu0
        %v6666 = vadd.f32 0.0, %v6665
        %v6667 = vpop.f32.mrb[0].mxu0
        %v6668 = vpop.f32.mrb[0].mxu0
        %v6669 = vpop.f32.mrb[0].mxu0
        %6670 = vdwg.mxu0
        %v6671 = vadd.f32 %v6592, %v6658
        %v6672 = vadd.f32 %v6593, %v6661
        %v6673 = vadd.f32 %v6594, %v6666
        %v6674 = vld [vmem:[#allocation3 + $0x6] sm:$0xff]
        %v6675 = vld [vmem:[#allocation3 + $0xe] sm:$0xff]
        %v6676 = vld [vmem:[#allocation3 + $0x16] sm:$0xff]
        %v6677 = vpack.c.bf16 %v6675, %v6674
        %v6678 = vpack.c.bf16 %v6676, %v6676
        %s6679 = scalar_lea.vmem %s7, 48
        %v6680 = vld [vmem:[%s6679] sm:$0xf]
        %v6681 = vld [vmem:[%s6679 + $0x4] sm:$0xf]
        %v6682 = vld [vmem:[%s6679 + $0x8] sm:$0xf]
        %v6683 = vld [vmem:[%s6679 + $0xc] sm:$0xf]
        %v6688 = vunpack.c.l.b16 %v6680
        %v6689 = vunpack.c.l.b16 %v6681
        %v6690 = vunpack.c.l.b16 %v6682
        %v6691 = vunpack.c.l.b16 %v6683
        %v6692 = vpack.c.b16 %v6689, %v6688
        %v6693 = vpack.c.b16 %v6691, %v6690
        %v6697 = vsel %vm3483, %v6677, 0
        %v6700 = vsel %vm3483, %v6678, 0
        %6702 = vmatprep.subr.bf16.mxu0 0
        %6703 = vmatpush1.bf16.msra.mxu0 %v6692
        %6704 = vmatprep.subr.bf16.mxu0 0
        %6705 = vmatpush1.bf16.msra.mxu0 %v6693
        %6706 = vmatprep.subr.bf16.mxu0 0
        %6707 = vmatpush1.bf16.msra.mxu0 0
        %6708 = vmatprep.subr.bf16.mxu0 0
        %6709 = vmatpush1.bf16.msra.mxu0 0
        %6710 = vmatprep.subr.bf16.mxu0 0
        %6711 = vmatpush1.bf16.msra.mxu0 0
        %6712 = vmatprep.subr.bf16.mxu0 0
        %6713 = vmatpush1.bf16.msra.mxu0 0
        %6714 = vmatprep.subr.bf16.mxu0 0
        %6715 = vmatpush1.bf16.msra.mxu0 0
        %6716 = vmatprep.subr.bf16.mxu0 0
        %6717 = vmatpush1.bf16.msra.mxu0 0
        %6718 = vmatprep.subr.bf16.mxu0 0
        %6719 = vmatpush1.bf16.msra.mxu0 0
        %6720 = vmatprep.subr.bf16.mxu0 0
        %6721 = vmatpush1.bf16.msra.mxu0 0
        %6722 = vmatprep.subr.bf16.mxu0 0
        %6723 = vmatpush1.bf16.msra.mxu0 0
        %6724 = vmatprep.subr.bf16.mxu0 0
        %6725 = vmatpush1.bf16.msra.mxu0 0
        %6726 = vmatprep.subr.bf16.mxu0 0
        %6727 = vmatpush1.bf16.msra.mxu0 0
        %6728 = vmatprep.subr.bf16.mxu0 0
        %6729 = vmatpush1.bf16.msra.mxu0 0
        %6730 = vmatprep.subr.bf16.mxu0 0
        %6731 = vmatpush1.bf16.msra.mxu0 0
        %6732 = vmatprep.subr.bf16.mxu0 0
        %6733 = vmatpush1.bf16.msra.mxu0 0
        %6734 = vmatprep.mubr.bf16.mxu0 0
        %6735 = vmatmul.mubr.bf16.gmra.mrb[0].mxu0 %v6697
        %v6736 = vpop.f32.mrb[0].mxu0
        %v6737 = vadd.f32 0.0, %v6736
        %v6738 = vpop.f32.mrb[0].mxu0
        %v6739 = vpop.f32.mrb[0].mxu0
        %v6740 = vadd.f32 0.0, %v6739
        %v6741 = vpop.f32.mrb[0].mxu0
        %6742 = vmatprep.mubr.bf16.mxu0 0
        %6743 = vmatmul.mubr.bf16.gmra.mrb[0].mxu0 %v6700
        %v6744 = vpop.f32.mrb[0].mxu0
        %v6745 = vadd.f32 0.0, %v6744
        %v6746 = vpop.f32.mrb[0].mxu0
        %v6747 = vpop.f32.mrb[0].mxu0
        %v6748 = vpop.f32.mrb[0].mxu0
        %6749 = vdwg.mxu0
        %v6750 = vadd.f32 %v6671, %v6737
        %v6751 = vadd.f32 %v6672, %v6740
        %v6752 = vadd.f32 %v6673, %v6745
        %v6753 = vld [vmem:[#allocation3 + $0x7] sm:$0xff]
        %v6754 = vld [vmem:[#allocation3 + $0xf] sm:$0xff]
        %v6755 = vld [vmem:[#allocation3 + $0x17] sm:$0xff]
        %v6756 = vpack.c.bf16 %v6754, %v6753
        %v6757 = vpack.c.bf16 %v6755, %v6755
        %s6758 = scalar_lea.vmem %s7, 64
        %v6759 = vld [vmem:[%s6758] sm:$0xf]
        %v6760 = vld [vmem:[%s6758 + $0x4] sm:$0xf]
        %v6761 = vld [vmem:[%s6758 + $0x8] sm:$0xf]
        %v6762 = vld [vmem:[%s6758 + $0xc] sm:$0xf]
        %v6767 = vunpack.c.l.b16 %v6759
        %v6768 = vunpack.c.l.b16 %v6760
        %v6769 = vunpack.c.l.b16 %v6761
        %v6770 = vunpack.c.l.b16 %v6762
        %v6771 = vpack.c.b16 %v6768, %v6767
        %v6772 = vpack.c.b16 %v6770, %v6769
        %v6776 = vsel %vm3483, %v6756, 0
        %v6779 = vsel %vm3483, %v6757, 0
        %6781 = vmatprep.subr.bf16.mxu0 0
        %6782 = vmatpush1.bf16.msra.mxu0 %v6771
        %6783 = vmatprep.subr.bf16.mxu0 0
        %6784 = vmatpush1.bf16.msra.mxu0 %v6772
        %6785 = vmatprep.subr.bf16.mxu0 0
        %6786 = vmatpush1.bf16.msra.mxu0 0
        %6787 = vmatprep.subr.bf16.mxu0 0
        %6788 = vmatpush1.bf16.msra.mxu0 0
        %6789 = vmatprep.subr.bf16.mxu0 0
        %6790 = vmatpush1.bf16.msra.mxu0 0
        %6791 = vmatprep.subr.bf16.mxu0 0
        %6792 = vmatpush1.bf16.msra.mxu0 0
        %6793 = vmatprep.subr.bf16.mxu0 0
        %6794 = vmatpush1.bf16.msra.mxu0 0
        %6795 = vmatprep.subr.bf16.mxu0 0
        %6796 = vmatpush1.bf16.msra.mxu0 0
        %6797 = vmatprep.subr.bf16.mxu0 0
        %6798 = vmatpush1.bf16.msra.mxu0 0
        %6799 = vmatprep.subr.bf16.mxu0 0
        %6800 = vmatpush1.bf16.msra.mxu0 0
        %6801 = vmatprep.subr.bf16.mxu0 0
        %6802 = vmatpush1.bf16.msra.mxu0 0
        %6803 = vmatprep.subr.bf16.mxu0 0
        %6804 = vmatpush1.bf16.msra.mxu0 0
        %6805 = vmatprep.subr.bf16.mxu0 0
        %6806 = vmatpush1.bf16.msra.mxu0 0
        %6807 = vmatprep.subr.bf16.mxu0 0
        %6808 = vmatpush1.bf16.msra.mxu0 0
        %6809 = vmatprep.subr.bf16.mxu0 0
        %6810 = vmatpush1.bf16.msra.mxu0 0
        %6811 = vmatprep.subr.bf16.mxu0 0
        %6812 = vmatpush1.bf16.msra.mxu0 0
        %6813 = vmatprep.mubr.bf16.mxu0 0
        %6814 = vmatmul.mubr.bf16.gmra.mrb[0].mxu0 %v6776
        %v6815 = vpop.f32.mrb[0].mxu0
        %v6816 = vadd.f32 0.0, %v6815
        %v6817 = vpop.f32.mrb[0].mxu0
        %v6818 = vpop.f32.mrb[0].mxu0
        %v6819 = vadd.f32 0.0, %v6818
        %v6820 = vpop.f32.mrb[0].mxu0
        %6821 = vmatprep.mubr.bf16.mxu0 0
        %6822 = vmatmul.mubr.bf16.gmra.mrb[0].mxu0 %v6779
        %v6823 = vpop.f32.mrb[0].mxu0
        %v6824 = vadd.f32 0.0, %v6823
        %v6825 = vpop.f32.mrb[0].mxu0
        %v6826 = vpop.f32.mrb[0].mxu0
        %v6827 = vpop.f32.mrb[0].mxu0
        %6828 = vdwg.mxu0
        %v6829 = vadd.f32 %v6750, %v6816
        %v6830 = vadd.f32 %v6751, %v6819
        %v6831 = vadd.f32 %v6752, %v6824
        %v6832 = vld [vmem:[#allocation3 + $0x8] sm:$0xff]
        %v6833 = vld [vmem:[#allocation3 + $0x10] sm:$0xff]
        %v6834 = vld [vmem:[#allocation3 + $0x18] sm:$0xff]
        %v6835 = vpack.c.bf16 %v6833, %v6832
        %v6836 = vpack.c.bf16 %v6834, %v6834
        %s6837 = scalar_lea.vmem %s7, 80
        %v6838 = vld [vmem:[%s6837] sm:$0xf]
        %v6839 = vld [vmem:[%s6837 + $0x4] sm:$0xf]
        %v6840 = vld [vmem:[%s6837 + $0x8] sm:$0xf]
        %v6841 = vld [vmem:[%s6837 + $0xc] sm:$0xf]
        %v6846 = vunpack.c.l.b16 %v6838
        %v6847 = vunpack.c.l.b16 %v6839
        %v6848 = vunpack.c.l.b16 %v6840
        %v6849 = vunpack.c.l.b16 %v6841
        %v6850 = vpack.c.b16 %v6847, %v6846
        %v6851 = vpack.c.b16 %v6849, %v6848
        %v6855 = vsel %vm3483, %v6835, 0
        %v6858 = vsel %vm3483, %v6836, 0
        %6860 = vmatprep.subr.bf16.mxu0 0
        %6861 = vmatpush1.bf16.msra.mxu0 %v6850
        %6862 = vmatprep.subr.bf16.mxu0 0
        %6863 = vmatpush1.bf16.msra.mxu0 %v6851
        %6864 = vmatprep.subr.bf16.mxu0 0
        %6865 = vmatpush1.bf16.msra.mxu0 0
        %6866 = vmatprep.subr.bf16.mxu0 0
        %6867 = vmatpush1.bf16.msra.mxu0 0
        %6868 = vmatprep.subr.bf16.mxu0 0
        %6869 = vmatpush1.bf16.msra.mxu0 0
        %6870 = vmatprep.subr.bf16.mxu0 0
        %6871 = vmatpush1.bf16.msra.mxu0 0
        %6872 = vmatprep.subr.bf16.mxu0 0
        %6873 = vmatpush1.bf16.msra.mxu0 0
        %6874 = vmatprep.subr.bf16.mxu0 0
        %6875 = vmatpush1.bf16.msra.mxu0 0
        %6876 = vmatprep.subr.bf16.mxu0 0
        %6877 = vmatpush1.bf16.msra.mxu0 0
        %6878 = vmatprep.subr.bf16.mxu0 0
        %6879 = vmatpush1.bf16.msra.mxu0 0
        %6880 = vmatprep.subr.bf16.mxu0 0
        %6881 = vmatpush1.bf16.msra.mxu0 0
        %6882 = vmatprep.subr.bf16.mxu0 0
        %6883 = vmatpush1.bf16.msra.mxu0 0
        %6884 = vmatprep.subr.bf16.mxu0 0
        %6885 = vmatpush1.bf16.msra.mxu0 0
        %6886 = vmatprep.subr.bf16.mxu0 0
        %6887 = vmatpush1.bf16.msra.mxu0 0
        %6888 = vmatprep.subr.bf16.mxu0 0
        %6889 = vmatpush1.bf16.msra.mxu0 0
        %6890 = vmatprep.subr.bf16.mxu0 0
        %6891 = vmatpush1.bf16.msra.mxu0 0
        %6892 = vmatprep.mubr.bf16.mxu0 0
        %6893 = vmatmul.mubr.bf16.gmra.mrb[0].mxu0 %v6855
        %v6894 = vpop.f32.mrb[0].mxu0
        %v6895 = vadd.f32 0.0, %v6894
        %v6896 = vpop.f32.mrb[0].mxu0
        %v6897 = vpop.f32.mrb[0].mxu0
        %v6898 = vadd.f32 0.0, %v6897
        %v6899 = vpop.f32.mrb[0].mxu0
        %6900 = vmatprep.mubr.bf16.mxu0 0
        %6901 = vmatmul.mubr.bf16.gmra.mrb[0].mxu0 %v6858
        %v6902 = vpop.f32.mrb[0].mxu0
        %v6903 = vadd.f32 0.0, %v6902
        %v6904 = vpop.f32.mrb[0].mxu0
        %v6905 = vpop.f32.mrb[0].mxu0
        %v6906 = vpop.f32.mrb[0].mxu0
        %6907 = vdwg.mxu0
        %v6908 = vadd.f32 %v6829, %v6895
        %v6909 = vadd.f32 %v6830, %v6898
        %v6910 = vadd.f32 %v6831, %v6903
        %v6911 = vld [vmem:[#allocation3 + $0xc] sm:$0xff]
        %v6912 = vld [vmem:[#allocation3 + $0x14] sm:$0xff]
        %v6913 = vld [vmem:[#allocation3 + $0x1c] sm:$0xff]
        %v6914 = vpack.c.bf16 %v6912, %v6911
        %v6915 = vpack.c.bf16 %v6913, %v6913
        %s6916 = scalar_lea.vmem %s7, 96
        %v6917 = vld [vmem:[%s6916] sm:$0xf]
        %v6918 = vld [vmem:[%s6916 + $0x4] sm:$0xf]
        %v6919 = vld [vmem:[%s6916 + $0x8] sm:$0xf]
        %v6920 = vld [vmem:[%s6916 + $0xc] sm:$0xf]
        %v6925 = vunpack.c.l.b16 %v6917
        %v6926 = vunpack.c.l.b16 %v6918
        %v6927 = vunpack.c.l.b16 %v6919
        %v6928 = vunpack.c.l.b16 %v6920
        %v6929 = vpack.c.b16 %v6926, %v6925
        %v6930 = vpack.c.b16 %v6928, %v6927
        %v6934 = vsel %vm3483, %v6914, 0
        %v6937 = vsel %vm3483, %v6915, 0
        %6939 = vmatprep.subr.bf16.mxu0 0
        %6940 = vmatpush1.bf16.msra.mxu0 %v6929
        %6941 = vmatprep.subr.bf16.mxu0 0
        %6942 = vmatpush1.bf16.msra.mxu0 %v6930
        %6943 = vmatprep.subr.bf16.mxu0 0
        %6944 = vmatpush1.bf16.msra.mxu0 0
        %6945 = vmatprep.subr.bf16.mxu0 0
        %6946 = vmatpush1.bf16.msra.mxu0 0
        %6947 = vmatprep.subr.bf16.mxu0 0
        %6948 = vmatpush1.bf16.msra.mxu0 0
        %6949 = vmatprep.subr.bf16.mxu0 0
        %6950 = vmatpush1.bf16.msra.mxu0 0
        %6951 = vmatprep.subr.bf16.mxu0 0
        %6952 = vmatpush1.bf16.msra.mxu0 0
        %6953 = vmatprep.subr.bf16.mxu0 0
        %6954 = vmatpush1.bf16.msra.mxu0 0
        %6955 = vmatprep.subr.bf16.mxu0 0
        %6956 = vmatpush1.bf16.msra.mxu0 0
        %6957 = vmatprep.subr.bf16.mxu0 0
        %6958 = vmatpush1.bf16.msra.mxu0 0
        %6959 = vmatprep.subr.bf16.mxu0 0
        %6960 = vmatpush1.bf16.msra.mxu0 0
        %6961 = vmatprep.subr.bf16.mxu0 0
        %6962 = vmatpush1.bf16.msra.mxu0 0
        %6963 = vmatprep.subr.bf16.mxu0 0
        %6964 = vmatpush1.bf16.msra.mxu0 0
        %6965 = vmatprep.subr.bf16.mxu0 0
        %6966 = vmatpush1.bf16.msra.mxu0 0
        %6967 = vmatprep.subr.bf16.mxu0 0
        %6968 = vmatpush1.bf16.msra.mxu0 0
        %6969 = vmatprep.subr.bf16.mxu0 0
        %6970 = vmatpush1.bf16.msra.mxu0 0
        %6971 = vmatprep.mubr.bf16.mxu0 0
        %6972 = vmatmul.mubr.bf16.gmra.mrb[0].mxu0 %v6934
        %v6973 = vpop.f32.mrb[0].mxu0
        %v6974 = vadd.f32 0.0, %v6973
        %v6975 = vpop.f32.mrb[0].mxu0
        %v6976 = vpop.f32.mrb[0].mxu0
        %v6977 = vadd.f32 0.0, %v6976
        %v6978 = vpop.f32.mrb[0].mxu0
        %6979 = vmatprep.mubr.bf16.mxu0 0
        %6980 = vmatmul.mubr.bf16.gmra.mrb[0].mxu0 %v6937
        %v6981 = vpop.f32.mrb[0].mxu0
        %v6982 = vadd.f32 0.0, %v6981
        %v6983 = vpop.f32.mrb[0].mxu0
        %v6984 = vpop.f32.mrb[0].mxu0
        %v6985 = vpop.f32.mrb[0].mxu0
        %6986 = vdwg.mxu0
        %v6987 = vadd.f32 %v6908, %v6974
        %v6988 = vadd.f32 %v6909, %v6977
        %v6989 = vadd.f32 %v6910, %v6982
        %v6990 = vld [vmem:[#allocation3 + $0xd] sm:$0xff]
        %v6991 = vld [vmem:[#allocation3 + $0x15] sm:$0xff]
        %v6992 = vld [vmem:[#allocation3 + $0x1d] sm:$0xff]
        %v6993 = vpack.c.bf16 %v6991, %v6990
        %v6994 = vpack.c.bf16 %v6992, %v6992
        %s6995 = scalar_lea.vmem %s7, 112
        %v6996 = vld [vmem:[%s6995] sm:$0xf]
        %v6997 = vld [vmem:[%s6995 + $0x4] sm:$0xf]
        %v6998 = vld [vmem:[%s6995 + $0x8] sm:$0xf]
        %v6999 = vld [vmem:[%s6995 + $0xc] sm:$0xf]
        %v7004 = vunpack.c.l.b16 %v6996
        %v7005 = vunpack.c.l.b16 %v6997
        %v7006 = vunpack.c.l.b16 %v6998
        %v7007 = vunpack.c.l.b16 %v6999
        %v7008 = vpack.c.b16 %v7005, %v7004
        %v7009 = vpack.c.b16 %v7007, %v7006
        %v7013 = vsel %vm3483, %v6993, 0
        %v7016 = vsel %vm3483, %v6994, 0
        %7018 = vmatprep.subr.bf16.mxu0 0
        %7019 = vmatpush1.bf16.msra.mxu0 %v7008
        %7020 = vmatprep.subr.bf16.mxu0 0
        %7021 = vmatpush1.bf16.msra.mxu0 %v7009
        %7022 = vmatprep.subr.bf16.mxu0 0
        %7023 = vmatpush1.bf16.msra.mxu0 0
        %7024 = vmatprep.subr.bf16.mxu0 0
        %7025 = vmatpush1.bf16.msra.mxu0 0
        %7026 = vmatprep.subr.bf16.mxu0 0
        %7027 = vmatpush1.bf16.msra.mxu0 0
        %7028 = vmatprep.subr.bf16.mxu0 0
        %7029 = vmatpush1.bf16.msra.mxu0 0
        %7030 = vmatprep.subr.bf16.mxu0 0
        %7031 = vmatpush1.bf16.msra.mxu0 0
        %7032 = vmatprep.subr.bf16.mxu0 0
        %7033 = vmatpush1.bf16.msra.mxu0 0
        %7034 = vmatprep.subr.bf16.mxu0 0
        %7035 = vmatpush1.bf16.msra.mxu0 0
        %7036 = vmatprep.subr.bf16.mxu0 0
        %7037 = vmatpush1.bf16.msra.mxu0 0
        %7038 = vmatprep.subr.bf16.mxu0 0
        %7039 = vmatpush1.bf16.msra.mxu0 0
        %7040 = vmatprep.subr.bf16.mxu0 0
        %7041 = vmatpush1.bf16.msra.mxu0 0
        %7042 = vmatprep.subr.bf16.mxu0 0
        %7043 = vmatpush1.bf16.msra.mxu0 0
        %7044 = vmatprep.subr.bf16.mxu0 0
        %7045 = vmatpush1.bf16.msra.mxu0 0
        %7046 = vmatprep.subr.bf16.mxu0 0
        %7047 = vmatpush1.bf16.msra.mxu0 0
        %7048 = vmatprep.subr.bf16.mxu0 0
        %7049 = vmatpush1.bf16.msra.mxu0 0
        %7050 = vmatprep.mubr.bf16.mxu0 0
        %7051 = vmatmul.mubr.bf16.gmra.mrb[0].mxu0 %v7013
        %v7052 = vpop.f32.mrb[0].mxu0
        %v7053 = vadd.f32 0.0, %v7052
        %v7054 = vpop.f32.mrb[0].mxu0
        %v7055 = vpop.f32.mrb[0].mxu0
        %v7056 = vadd.f32 0.0, %v7055
        %v7057 = vpop.f32.mrb[0].mxu0
        %7058 = vmatprep.mubr.bf16.mxu0 0
        %7059 = vmatmul.mubr.bf16.gmra.mrb[0].mxu0 %v7016
        %v7060 = vpop.f32.mrb[0].mxu0
        %v7061 = vadd.f32 0.0, %v7060
        %v7062 = vpop.f32.mrb[0].mxu0
        %v7063 = vpop.f32.mrb[0].mxu0
        %v7064 = vpop.f32.mrb[0].mxu0
        %7065 = vdwg.mxu0
        %v7066 = vadd.f32 %v6987, %v7053
        %v7067 = vadd.f32 %v6988, %v7056
        %v7068 = vadd.f32 %v6989, %v7061
        %v7069 = vld [vmem:[#allocation3 + $0xe] sm:$0xff]
        %v7070 = vld [vmem:[#allocation3 + $0x16] sm:$0xff]
        %v7071 = vld [vmem:[#allocation3 + $0x1e] sm:$0xff]
        %v7072 = vpack.c.bf16 %v7070, %v7069
        %v7073 = vpack.c.bf16 %v7071, %v7071
        %s7074 = scalar_lea.vmem %s7, 128
        %v7075 = vld [vmem:[%s7074] sm:$0xf]
        %v7076 = vld [vmem:[%s7074 + $0x4] sm:$0xf]
        %v7077 = vld [vmem:[%s7074 + $0x8] sm:$0xf]
        %v7078 = vld [vmem:[%s7074 + $0xc] sm:$0xf]
        %v7083 = vunpack.c.l.b16 %v7075
        %v7084 = vunpack.c.l.b16 %v7076
        %v7085 = vunpack.c.l.b16 %v7077
        %v7086 = vunpack.c.l.b16 %v7078
        %v7087 = vpack.c.b16 %v7084, %v7083
        %v7088 = vpack.c.b16 %v7086, %v7085
        %v7092 = vsel %vm3483, %v7072, 0
        %v7095 = vsel %vm3483, %v7073, 0
        %7097 = vmatprep.subr.bf16.mxu0 0
        %7098 = vmatpush1.bf16.msra.mxu0 %v7087
        %7099 = vmatprep.subr.bf16.mxu0 0
        %7100 = vmatpush1.bf16.msra.mxu0 %v7088
        %7101 = vmatprep.subr.bf16.mxu0 0
        %7102 = vmatpush1.bf16.msra.mxu0 0
        %7103 = vmatprep.subr.bf16.mxu0 0
        %7104 = vmatpush1.bf16.msra.mxu0 0
        %7105 = vmatprep.subr.bf16.mxu0 0
        %7106 = vmatpush1.bf16.msra.mxu0 0
        %7107 = vmatprep.subr.bf16.mxu0 0
        %7108 = vmatpush1.bf16.msra.mxu0 0
        %7109 = vmatprep.subr.bf16.mxu0 0
        %7110 = vmatpush1.bf16.msra.mxu0 0
        %7111 = vmatprep.subr.bf16.mxu0 0
        %7112 = vmatpush1.bf16.msra.mxu0 0
        %7113 = vmatprep.subr.bf16.mxu0 0
        %7114 = vmatpush1.bf16.msra.mxu0 0
        %7115 = vmatprep.subr.bf16.mxu0 0
        %7116 = vmatpush1.bf16.msra.mxu0 0
        %7117 = vmatprep.subr.bf16.mxu0 0
        %7118 = vmatpush1.bf16.msra.mxu0 0
        %7119 = vmatprep.subr.bf16.mxu0 0
        %7120 = vmatpush1.bf16.msra.mxu0 0
        %7121 = vmatprep.subr.bf16.mxu0 0
        %7122 = vmatpush1.bf16.msra.mxu0 0
        %7123 = vmatprep.subr.bf16.mxu0 0
        %7124 = vmatpush1.bf16.msra.mxu0 0
        %7125 = vmatprep.subr.bf16.mxu0 0
        %7126 = vmatpush1.bf16.msra.mxu0 0
        %7127 = vmatprep.subr.bf16.mxu0 0
        %7128 = vmatpush1.bf16.msra.mxu0 0
        %7129 = vmatprep.mubr.bf16.mxu0 0
        %7130 = vmatmul.mubr.bf16.gmra.mrb[0].mxu0 %v7092
        %v7131 = vpop.f32.mrb[0].mxu0
        %v7132 = vadd.f32 0.0, %v7131
        %v7133 = vpop.f32.mrb[0].mxu0
        %v7134 = vpop.f32.mrb[0].mxu0
        %v7135 = vadd.f32 0.0, %v7134
        %v7136 = vpop.f32.mrb[0].mxu0
        %7137 = vmatprep.mubr.bf16.mxu0 0
        %7138 = vmatmul.mubr.bf16.gmra.mrb[0].mxu0 %v7095
        %v7139 = vpop.f32.mrb[0].mxu0
        %v7140 = vadd.f32 0.0, %v7139
        %v7141 = vpop.f32.mrb[0].mxu0
        %v7142 = vpop.f32.mrb[0].mxu0
        %v7143 = vpop.f32.mrb[0].mxu0
        %7144 = vdwg.mxu0
        %v7145 = vadd.f32 %v7066, %v7132
        %v7146 = vadd.f32 %v7067, %v7135
        %v7147 = vadd.f32 %v7068, %v7140
        %v7148 = vmax.f32 %v7145, 0.0
        %v7149 = vmax.f32 %v7146, 0.0
        %v7150 = vmax.f32 %v7147, 0.0
        %v7151 = vld [vmem:[%s11] sm:$0x1]
        %v7152 = vld [vmem:[%s9] sm:$0x1]
        %vm7153 = vcmask 195584
        %v7155 = vsel %vm7153, %v7152, 0
        %7157 = vmatprep.subr.mxu0 0.0
        %7158 = vmatpush1.msra.mxu0 %v7148
        %7159 = vmatprep.subr.mxu0 0.0
        %7160 = vmatpush1.msra.mxu0 %v7149
        %7161 = vmatprep.subr.mxu0 0.0
        %7162 = vmatpush1.msra.mxu0 %v7150
        %7163 = vmatprep.subr.mxu0 0.0
        %7164 = vmatpush1.msra.mxu0 0.0
        %7165 = vmatprep.subr.mxu0 0.0
        %7166 = vmatpush1.msra.mxu0 0.0
        %7167 = vmatprep.subr.mxu0 0.0
        %7168 = vmatpush1.msra.mxu0 0.0
        %7169 = vmatprep.subr.mxu0 0.0
        %7170 = vmatpush1.msra.mxu0 0.0
        %7171 = vmatprep.subr.mxu0 0.0
        %7172 = vmatpush1.msra.mxu0 0.0
        %7173 = vmatprep.subr.mxu0 0.0
        %7174 = vmatpush1.msra.mxu0 0.0
        %7175 = vmatprep.subr.mxu0 0.0
        %7176 = vmatpush1.msra.mxu0 0.0
        %7177 = vmatprep.subr.mxu0 0.0
        %7178 = vmatpush1.msra.mxu0 0.0
        %7179 = vmatprep.subr.mxu0 0.0
        %7180 = vmatpush1.msra.mxu0 0.0
        %7181 = vmatprep.subr.mxu0 0.0
        %7182 = vmatpush1.msra.mxu0 0.0
        %7183 = vmatprep.subr.mxu0 0.0
        %7184 = vmatpush1.msra.mxu0 0.0
        %7185 = vmatprep.subr.mxu0 0.0
        %7186 = vmatpush1.msra.mxu0 0.0
        %7187 = vmatprep.subr.mxu0 0.0
        %7188 = vmatpush1.msra.mxu0 0.0
        %7189 = vmatprep.subr.mxu0 0.0
        %7190 = vmatpush1.msra.mxu0 0.0
        %7191 = vmatprep.subr.mxu0 0.0
        %7192 = vmatpush1.msra.mxu0 0.0
        %7193 = vmatprep.subr.mxu0 0.0
        %7194 = vmatpush1.msra.mxu0 0.0
        %7195 = vmatprep.subr.mxu0 0.0
        %7196 = vmatpush1.msra.mxu0 0.0
        %7197 = vmatprep.subr.mxu0 0.0
        %7198 = vmatpush1.msra.mxu0 0.0
        %7199 = vmatprep.subr.mxu0 0.0
        %7200 = vmatpush1.msra.mxu0 0.0
        %7201 = vmatprep.subr.mxu0 0.0
        %7202 = vmatpush1.msra.mxu0 0.0
        %7203 = vmatprep.subr.mxu0 0.0
        %7204 = vmatpush1.msra.mxu0 0.0
        %7205 = vmatprep.subr.mxu0 0.0
        %7206 = vmatpush1.msra.mxu0 0.0
        %7207 = vmatprep.subr.mxu0 0.0
        %7208 = vmatpush1.msra.mxu0 0.0
        %7209 = vmatprep.subr.mxu0 0.0
        %7210 = vmatpush1.msra.mxu0 0.0
        %7211 = vmatprep.subr.mxu0 0.0
        %7212 = vmatpush1.msra.mxu0 0.0
        %7213 = vmatprep.subr.mxu0 0.0
        %7214 = vmatpush1.msra.mxu0 0.0
        %7215 = vmatprep.subr.mxu0 0.0
        %7216 = vmatpush1.msra.mxu0 0.0
        %7217 = vmatprep.subr.mxu0 0.0
        %7218 = vmatpush1.msra.mxu0 0.0
        %7219 = vmatprep.subr.mxu0 0.0
        %7220 = vmatpush1.msra.mxu0 0.0
        %7221 = vmatprep.mubr.f32.mxu0 0.0
        %7222 = vmatmul.mubr.f32.gmra.mrb[0].mxu0 %v7155
        %v7223 = vpop.f32.mrb[0].mxu0
        %v7224 = vadd.f32 0.0, %v7223
        %v7225 = vpop.f32.mrb[0].mxu0
        %7226 = vdwg.mxu0
        %s7227 = scalar_lea.vmem %s9, 1
        %v7228 = vld [vmem:[%s7227] sm:$0x1]
        %v7230 = vsel %vm7153, %v7228, 0
        %7232 = vmatprep.subr.mxu0 0.0
        %7233 = vmatpush1.msra.mxu0 %v7148
        %7234 = vmatprep.subr.mxu0 0.0
        %7235 = vmatpush1.msra.mxu0 %v7149
        %7236 = vmatprep.subr.mxu0 0.0
        %7237 = vmatpush1.msra.mxu0 %v7150
        %7238 = vmatprep.subr.mxu0 0.0
        %7239 = vmatpush1.msra.mxu0 0.0
        %7240 = vmatprep.subr.mxu0 0.0
        %7241 = vmatpush1.msra.mxu0 0.0
        %7242 = vmatprep.subr.mxu0 0.0
        %7243 = vmatpush1.msra.mxu0 0.0
        %7244 = vmatprep.subr.mxu0 0.0
        %7245 = vmatpush1.msra.mxu0 0.0
        %7246 = vmatprep.subr.mxu0 0.0
        %7247 = vmatpush1.msra.mxu0 0.0
        %7248 = vmatprep.subr.mxu0 0.0
        %7249 = vmatpush1.msra.mxu0 0.0
        %7250 = vmatprep.subr.mxu0 0.0
        %7251 = vmatpush1.msra.mxu0 0.0
        %7252 = vmatprep.subr.mxu0 0.0
        %7253 = vmatpush1.msra.mxu0 0.0
        %7254 = vmatprep.subr.mxu0 0.0
        %7255 = vmatpush1.msra.mxu0 0.0
        %7256 = vmatprep.subr.mxu0 0.0
        %7257 = vmatpush1.msra.mxu0 0.0
        %7258 = vmatprep.subr.mxu0 0.0
        %7259 = vmatpush1.msra.mxu0 0.0
        %7260 = vmatprep.subr.mxu0 0.0
        %7261 = vmatpush1.msra.mxu0 0.0
        %7262 = vmatprep.subr.mxu0 0.0
        %7263 = vmatpush1.msra.mxu0 0.0
        %7264 = vmatprep.subr.mxu0 0.0
        %7265 = vmatpush1.msra.mxu0 0.0
        %7266 = vmatprep.subr.mxu0 0.0
        %7267 = vmatpush1.msra.mxu0 0.0
        %7268 = vmatprep.subr.mxu0 0.0
        %7269 = vmatpush1.msra.mxu0 0.0
        %7270 = vmatprep.subr.mxu0 0.0
        %7271 = vmatpush1.msra.mxu0 0.0
        %7272 = vmatprep.subr.mxu0 0.0
        %7273 = vmatpush1.msra.mxu0 0.0
        %7274 = vmatprep.subr.mxu0 0.0
        %7275 = vmatpush1.msra.mxu0 0.0
        %7276 = vmatprep.subr.mxu0 0.0
        %7277 = vmatpush1.msra.mxu0 0.0
        %7278 = vmatprep.subr.mxu0 0.0
        %7279 = vmatpush1.msra.mxu0 0.0
        %7280 = vmatprep.subr.mxu0 0.0
        %7281 = vmatpush1.msra.mxu0 0.0
        %7282 = vmatprep.subr.mxu0 0.0
        %7283 = vmatpush1.msra.mxu0 0.0
        %7284 = vmatprep.subr.mxu0 0.0
        %7285 = vmatpush1.msra.mxu0 0.0
        %7286 = vmatprep.subr.mxu0 0.0
        %7287 = vmatpush1.msra.mxu0 0.0
        %7288 = vmatprep.subr.mxu0 0.0
        %7289 = vmatpush1.msra.mxu0 0.0
        %7290 = vmatprep.subr.mxu0 0.0
        %7291 = vmatpush1.msra.mxu0 0.0
        %7292 = vmatprep.subr.mxu0 0.0
        %7293 = vmatpush1.msra.mxu0 0.0
        %7294 = vmatprep.subr.mxu0 0.0
        %7295 = vmatpush1.msra.mxu0 0.0
        %7296 = vmatprep.mubr.f32.mxu0 0.0
        %7297 = vmatmul.mubr.f32.gmra.mrb[0].mxu0 %v7230
        %v7298 = vpop.f32.mrb[0].mxu0
        %v7299 = vadd.f32 0.0, %v7298
        %v7300 = vpop.f32.mrb[0].mxu0
        %7301 = vdwg.mxu0
        %v7302 = vmax.f32 %v7224, %v7299
        %s7303 = scalar_lea.vmem %s9, 2
        %v7304 = vld [vmem:[%s7303] sm:$0x1]
        %v7306 = vsel %vm7153, %v7304, 0
        %7308 = vmatprep.subr.mxu0 0.0
        %7309 = vmatpush1.msra.mxu0 %v7148
        %7310 = vmatprep.subr.mxu0 0.0
        %7311 = vmatpush1.msra.mxu0 %v7149
        %7312 = vmatprep.subr.mxu0 0.0
        %7313 = vmatpush1.msra.mxu0 %v7150
        %7314 = vmatprep.subr.mxu0 0.0
        %7315 = vmatpush1.msra.mxu0 0.0
        %7316 = vmatprep.subr.mxu0 0.0
        %7317 = vmatpush1.msra.mxu0 0.0
        %7318 = vmatprep.subr.mxu0 0.0
        %7319 = vmatpush1.msra.mxu0 0.0
        %7320 = vmatprep.subr.mxu0 0.0
        %7321 = vmatpush1.msra.mxu0 0.0
        %7322 = vmatprep.subr.mxu0 0.0
        %7323 = vmatpush1.msra.mxu0 0.0
        %7324 = vmatprep.subr.mxu0 0.0
        %7325 = vmatpush1.msra.mxu0 0.0
        %7326 = vmatprep.subr.mxu0 0.0
        %7327 = vmatpush1.msra.mxu0 0.0
        %7328 = vmatprep.subr.mxu0 0.0
        %7329 = vmatpush1.msra.mxu0 0.0
        %7330 = vmatprep.subr.mxu0 0.0
        %7331 = vmatpush1.msra.mxu0 0.0
        %7332 = vmatprep.subr.mxu0 0.0
        %7333 = vmatpush1.msra.mxu0 0.0
        %7334 = vmatprep.subr.mxu0 0.0
        %7335 = vmatpush1.msra.mxu0 0.0
        %7336 = vmatprep.subr.mxu0 0.0
        %7337 = vmatpush1.msra.mxu0 0.0
        %7338 = vmatprep.subr.mxu0 0.0
        %7339 = vmatpush1.msra.mxu0 0.0
        %7340 = vmatprep.subr.mxu0 0.0
        %7341 = vmatpush1.msra.mxu0 0.0
        %7342 = vmatprep.subr.mxu0 0.0
        %7343 = vmatpush1.msra.mxu0 0.0
        %7344 = vmatprep.subr.mxu0 0.0
        %7345 = vmatpush1.msra.mxu0 0.0
        %7346 = vmatprep.subr.mxu0 0.0
        %7347 = vmatpush1.msra.mxu0 0.0
        %7348 = vmatprep.subr.mxu0 0.0
        %7349 = vmatpush1.msra.mxu0 0.0
        %7350 = vmatprep.subr.mxu0 0.0
        %7351 = vmatpush1.msra.mxu0 0.0
        %7352 = vmatprep.subr.mxu0 0.0
        %7353 = vmatpush1.msra.mxu0 0.0
        %7354 = vmatprep.subr.mxu0 0.0
        %7355 = vmatpush1.msra.mxu0 0.0
        %7356 = vmatprep.subr.mxu0 0.0
        %7357 = vmatpush1.msra.mxu0 0.0
        %7358 = vmatprep.subr.mxu0 0.0
        %7359 = vmatpush1.msra.mxu0 0.0
        %7360 = vmatprep.subr.mxu0 0.0
        %7361 = vmatpush1.msra.mxu0 0.0
        %7362 = vmatprep.subr.mxu0 0.0
        %7363 = vmatpush1.msra.mxu0 0.0
        %7364 = vmatprep.subr.mxu0 0.0
        %7365 = vmatpush1.msra.mxu0 0.0
        %7366 = vmatprep.subr.mxu0 0.0
        %7367 = vmatpush1.msra.mxu0 0.0
        %7368 = vmatprep.subr.mxu0 0.0
        %7369 = vmatpush1.msra.mxu0 0.0
        %7370 = vmatprep.subr.mxu0 0.0
        %7371 = vmatpush1.msra.mxu0 0.0
        %7372 = vmatprep.mubr.f32.mxu0 0.0
        %7373 = vmatmul.mubr.f32.gmra.mrb[0].mxu0 %v7306
        %v7374 = vpop.f32.mrb[0].mxu0
        %v7375 = vadd.f32 0.0, %v7374
        %v7376 = vpop.f32.mrb[0].mxu0
        %7377 = vdwg.mxu0
        %v7378 = vmax.f32 %v7302, %v7375
        %s7379 = scalar_lea.vmem %s9, 3
        %v7380 = vld [vmem:[%s7379] sm:$0x1]
        %v7382 = vsel %vm7153, %v7380, 0
        %7384 = vmatprep.subr.mxu0 0.0
        %7385 = vmatpush1.msra.mxu0 %v7148
        %7386 = vmatprep.subr.mxu0 0.0
        %7387 = vmatpush1.msra.mxu0 %v7149
        %7388 = vmatprep.subr.mxu0 0.0
        %7389 = vmatpush1.msra.mxu0 %v7150
        %7390 = vmatprep.subr.mxu0 0.0
        %7391 = vmatpush1.msra.mxu0 0.0
        %7392 = vmatprep.subr.mxu0 0.0
        %7393 = vmatpush1.msra.mxu0 0.0
        %7394 = vmatprep.subr.mxu0 0.0
        %7395 = vmatpush1.msra.mxu0 0.0
        %7396 = vmatprep.subr.mxu0 0.0
        %7397 = vmatpush1.msra.mxu0 0.0
        %7398 = vmatprep.subr.mxu0 0.0
        %7399 = vmatpush1.msra.mxu0 0.0
        %7400 = vmatprep.subr.mxu0 0.0
        %7401 = vmatpush1.msra.mxu0 0.0
        %7402 = vmatprep.subr.mxu0 0.0
        %7403 = vmatpush1.msra.mxu0 0.0
        %7404 = vmatprep.subr.mxu0 0.0
        %7405 = vmatpush1.msra.mxu0 0.0
        %7406 = vmatprep.subr.mxu0 0.0
        %7407 = vmatpush1.msra.mxu0 0.0
        %7408 = vmatprep.subr.mxu0 0.0
        %7409 = vmatpush1.msra.mxu0 0.0
        %7410 = vmatprep.subr.mxu0 0.0
        %7411 = vmatpush1.msra.mxu0 0.0
        %7412 = vmatprep.subr.mxu0 0.0
        %7413 = vmatpush1.msra.mxu0 0.0
        %7414 = vmatprep.subr.mxu0 0.0
        %7415 = vmatpush1.msra.mxu0 0.0
        %7416 = vmatprep.subr.mxu0 0.0
        %7417 = vmatpush1.msra.mxu0 0.0
        %7418 = vmatprep.subr.mxu0 0.0
        %7419 = vmatpush1.msra.mxu0 0.0
        %7420 = vmatprep.subr.mxu0 0.0
        %7421 = vmatpush1.msra.mxu0 0.0
        %7422 = vmatprep.subr.mxu0 0.0
        %7423 = vmatpush1.msra.mxu0 0.0
        %7424 = vmatprep.subr.mxu0 0.0
        %7425 = vmatpush1.msra.mxu0 0.0
        %7426 = vmatprep.subr.mxu0 0.0
        %7427 = vmatpush1.msra.mxu0 0.0
        %7428 = vmatprep.subr.mxu0 0.0
        %7429 = vmatpush1.msra.mxu0 0.0
        %7430 = vmatprep.subr.mxu0 0.0
        %7431 = vmatpush1.msra.mxu0 0.0
        %7432 = vmatprep.subr.mxu0 0.0
        %7433 = vmatpush1.msra.mxu0 0.0
        %7434 = vmatprep.subr.mxu0 0.0
        %7435 = vmatpush1.msra.mxu0 0.0
        %7436 = vmatprep.subr.mxu0 0.0
        %7437 = vmatpush1.msra.mxu0 0.0
        %7438 = vmatprep.subr.mxu0 0.0
        %7439 = vmatpush1.msra.mxu0 0.0
        %7440 = vmatprep.subr.mxu0 0.0
        %7441 = vmatpush1.msra.mxu0 0.0
        %7442 = vmatprep.subr.mxu0 0.0
        %7443 = vmatpush1.msra.mxu0 0.0
        %7444 = vmatprep.subr.mxu0 0.0
        %7445 = vmatpush1.msra.mxu0 0.0
        %7446 = vmatprep.subr.mxu0 0.0
        %7447 = vmatpush1.msra.mxu0 0.0
        %7448 = vmatprep.mubr.f32.mxu0 0.0
        %7449 = vmatmul.mubr.f32.gmra.mrb[0].mxu0 %v7382
        %v7450 = vpop.f32.mrb[0].mxu0
        %v7451 = vadd.f32 0.0, %v7450
        %v7452 = vpop.f32.mrb[0].mxu0
        %7453 = vdwg.mxu0
        %v7454 = vmax.f32 %v7378, %v7451
        %v7455 = vpack.c.bf16 %v7454, %v7454
        %v7456 = vld [vmem:[%s10] sm:$0xf]
        %v7457 = vld [vmem:[%s10 + $0x4] sm:$0xf]
        %v7458 = vld [vmem:[%s10 + $0x8] sm:$0xf]
        %v7459 = vld [vmem:[%s10 + $0xc] sm:$0xf]
        %v7464 = vunpack.c.l.b16 %v7456
        %v7465 = vunpack.c.l.b16 %v7457
        %v7466 = vunpack.c.l.b16 %v7458
        %v7467 = vunpack.c.l.b16 %v7459
        %v7468 = vpack.c.b16 %v7465, %v7464
        %v7469 = vpack.c.b16 %v7467, %v7466
        %v7473 = vsel %vm3483, %v7455, 0
        %7475 = vmatprep.subr.bf16.mxu0 0
        %7476 = vmatpush1.bf16.msra.mxu0 %v7468
        %7477 = vmatprep.subr.bf16.mxu0 0
        %7478 = vmatpush1.bf16.msra.mxu0 %v7469
        %7479 = vmatprep.subr.bf16.mxu0 0
        %7480 = vmatpush1.bf16.msra.mxu0 0
        %7481 = vmatprep.subr.bf16.mxu0 0
        %7482 = vmatpush1.bf16.msra.mxu0 0
        %7483 = vmatprep.subr.bf16.mxu0 0
        %7484 = vmatpush1.bf16.msra.mxu0 0
        %7485 = vmatprep.subr.bf16.mxu0 0
        %7486 = vmatpush1.bf16.msra.mxu0 0
        %7487 = vmatprep.subr.bf16.mxu0 0
        %7488 = vmatpush1.bf16.msra.mxu0 0
        %7489 = vmatprep.subr.bf16.mxu0 0
        %7490 = vmatpush1.bf16.msra.mxu0 0
        %7491 = vmatprep.subr.bf16.mxu0 0
        %7492 = vmatpush1.bf16.msra.mxu0 0
        %7493 = vmatprep.subr.bf16.mxu0 0
        %7494 = vmatpush1.bf16.msra.mxu0 0
        %7495 = vmatprep.subr.bf16.mxu0 0
        %7496 = vmatpush1.bf16.msra.mxu0 0
        %7497 = vmatprep.subr.bf16.mxu0 0
        %7498 = vmatpush1.bf16.msra.mxu0 0
        %7499 = vmatprep.subr.bf16.mxu0 0
        %7500 = vmatpush1.bf16.msra.mxu0 0
        %7501 = vmatprep.subr.bf16.mxu0 0
        %7502 = vmatpush1.bf16.msra.mxu0 0
        %7503 = vmatprep.subr.bf16.mxu0 0
        %7504 = vmatpush1.bf16.msra.mxu0 0
        %7505 = vmatprep.subr.bf16.mxu0 0
        %7506 = vmatpush1.bf16.msra.mxu0 0
        %7507 = vmatprep.mubr.bf16.mxu0 0
        %7508 = vmatmul.mubr.bf16.gmra.mrb[0].mxu0 %v7473
        %v7509 = vpop.f32.mrb[0].mxu0
        %v7510 = vadd.f32 0.0, %v7509
        %v7511 = vpop.f32.mrb[0].mxu0
        %v7512 = vpop.f32.mrb[0].mxu0
        %v7513 = vpop.f32.mrb[0].mxu0
        %7514 = vdwg.mxu0
        %v7515 = vadd.f32 %v7151, %v7510
        %s7516 = scalar_lea.vmem %s9, 4
        %v7517 = vld [vmem:[%s7516] sm:$0x1]
        %v7519 = vsel %vm7153, %v7517, 0
        %7521 = vmatprep.subr.mxu0 0.0
        %7522 = vmatpush1.msra.mxu0 %v7148
        %7523 = vmatprep.subr.mxu0 0.0
        %7524 = vmatpush1.msra.mxu0 %v7149
        %7525 = vmatprep.subr.mxu0 0.0
        %7526 = vmatpush1.msra.mxu0 %v7150
        %7527 = vmatprep.subr.mxu0 0.0
        %7528 = vmatpush1.msra.mxu0 0.0
        %7529 = vmatprep.subr.mxu0 0.0
        %7530 = vmatpush1.msra.mxu0 0.0
        %7531 = vmatprep.subr.mxu0 0.0
        %7532 = vmatpush1.msra.mxu0 0.0
        %7533 = vmatprep.subr.mxu0 0.0
        %7534 = vmatpush1.msra.mxu0 0.0
        %7535 = vmatprep.subr.mxu0 0.0
        %7536 = vmatpush1.msra.mxu0 0.0
        %7537 = vmatprep.subr.mxu0 0.0
        %7538 = vmatpush1.msra.mxu0 0.0
        %7539 = vmatprep.subr.mxu0 0.0
        %7540 = vmatpush1.msra.mxu0 0.0
        %7541 = vmatprep.subr.mxu0 0.0
        %7542 = vmatpush1.msra.mxu0 0.0
        %7543 = vmatprep.subr.mxu0 0.0
        %7544 = vmatpush1.msra.mxu0 0.0
        %7545 = vmatprep.subr.mxu0 0.0
        %7546 = vmatpush1.msra.mxu0 0.0
        %7547 = vmatprep.subr.mxu0 0.0
        %7548 = vmatpush1.msra.mxu0 0.0
        %7549 = vmatprep.subr.mxu0 0.0
        %7550 = vmatpush1.msra.mxu0 0.0
        %7551 = vmatprep.subr.mxu0 0.0
        %7552 = vmatpush1.msra.mxu0 0.0
        %7553 = vmatprep.subr.mxu0 0.0
        %7554 = vmatpush1.msra.mxu0 0.0
        %7555 = vmatprep.subr.mxu0 0.0
        %7556 = vmatpush1.msra.mxu0 0.0
        %7557 = vmatprep.subr.mxu0 0.0
        %7558 = vmatpush1.msra.mxu0 0.0
        %7559 = vmatprep.subr.mxu0 0.0
        %7560 = vmatpush1.msra.mxu0 0.0
        %7561 = vmatprep.subr.mxu0 0.0
        %7562 = vmatpush1.msra.mxu0 0.0
        %7563 = vmatprep.subr.mxu0 0.0
        %7564 = vmatpush1.msra.mxu0 0.0
        %7565 = vmatprep.subr.mxu0 0.0
        %7566 = vmatpush1.msra.mxu0 0.0
        %7567 = vmatprep.subr.mxu0 0.0
        %7568 = vmatpush1.msra.mxu0 0.0
        %7569 = vmatprep.subr.mxu0 0.0
        %7570 = vmatpush1.msra.mxu0 0.0
        %7571 = vmatprep.subr.mxu0 0.0
        %7572 = vmatpush1.msra.mxu0 0.0
        %7573 = vmatprep.subr.mxu0 0.0
        %7574 = vmatpush1.msra.mxu0 0.0
        %7575 = vmatprep.subr.mxu0 0.0
        %7576 = vmatpush1.msra.mxu0 0.0
        %7577 = vmatprep.subr.mxu0 0.0
        %7578 = vmatpush1.msra.mxu0 0.0
        %7579 = vmatprep.subr.mxu0 0.0
        %7580 = vmatpush1.msra.mxu0 0.0
        %7581 = vmatprep.subr.mxu0 0.0
        %7582 = vmatpush1.msra.mxu0 0.0
        %7583 = vmatprep.subr.mxu0 0.0
        %7584 = vmatpush1.msra.mxu0 0.0
        %7585 = vmatprep.mubr.f32.mxu0 0.0
        %7586 = vmatmul.mubr.f32.gmra.mrb[0].mxu0 %v7519
        %v7587 = vpop.f32.mrb[0].mxu0
        %v7588 = vadd.f32 0.0, %v7587
        %v7589 = vpop.f32.mrb[0].mxu0
        %7590 = vdwg.mxu0
        %s7591 = scalar_lea.vmem %s9, 5
        %v7592 = vld [vmem:[%s7591] sm:$0x1]
        %v7594 = vsel %vm7153, %v7592, 0
        %7596 = vmatprep.subr.mxu0 0.0
        %7597 = vmatpush1.msra.mxu0 %v7148
        %7598 = vmatprep.subr.mxu0 0.0
        %7599 = vmatpush1.msra.mxu0 %v7149
        %7600 = vmatprep.subr.mxu0 0.0
        %7601 = vmatpush1.msra.mxu0 %v7150
        %7602 = vmatprep.subr.mxu0 0.0
        %7603 = vmatpush1.msra.mxu0 0.0
        %7604 = vmatprep.subr.mxu0 0.0
        %7605 = vmatpush1.msra.mxu0 0.0
        %7606 = vmatprep.subr.mxu0 0.0
        %7607 = vmatpush1.msra.mxu0 0.0
        %7608 = vmatprep.subr.mxu0 0.0
        %7609 = vmatpush1.msra.mxu0 0.0
        %7610 = vmatprep.subr.mxu0 0.0
        %7611 = vmatpush1.msra.mxu0 0.0
        %7612 = vmatprep.subr.mxu0 0.0
        %7613 = vmatpush1.msra.mxu0 0.0
        %7614 = vmatprep.subr.mxu0 0.0
        %7615 = vmatpush1.msra.mxu0 0.0
        %7616 = vmatprep.subr.mxu0 0.0
        %7617 = vmatpush1.msra.mxu0 0.0
        %7618 = vmatprep.subr.mxu0 0.0
        %7619 = vmatpush1.msra.mxu0 0.0
        %7620 = vmatprep.subr.mxu0 0.0
        %7621 = vmatpush1.msra.mxu0 0.0
        %7622 = vmatprep.subr.mxu0 0.0
        %7623 = vmatpush1.msra.mxu0 0.0
        %7624 = vmatprep.subr.mxu0 0.0
        %7625 = vmatpush1.msra.mxu0 0.0
        %7626 = vmatprep.subr.mxu0 0.0
        %7627 = vmatpush1.msra.mxu0 0.0
        %7628 = vmatprep.subr.mxu0 0.0
        %7629 = vmatpush1.msra.mxu0 0.0
        %7630 = vmatprep.subr.mxu0 0.0
        %7631 = vmatpush1.msra.mxu0 0.0
        %7632 = vmatprep.subr.mxu0 0.0
        %7633 = vmatpush1.msra.mxu0 0.0
        %7634 = vmatprep.subr.mxu0 0.0
        %7635 = vmatpush1.msra.mxu0 0.0
        %7636 = vmatprep.subr.mxu0 0.0
        %7637 = vmatpush1.msra.mxu0 0.0
        %7638 = vmatprep.subr.mxu0 0.0
        %7639 = vmatpush1.msra.mxu0 0.0
        %7640 = vmatprep.subr.mxu0 0.0
        %7641 = vmatpush1.msra.mxu0 0.0
        %7642 = vmatprep.subr.mxu0 0.0
        %7643 = vmatpush1.msra.mxu0 0.0
        %7644 = vmatprep.subr.mxu0 0.0
        %7645 = vmatpush1.msra.mxu0 0.0
        %7646 = vmatprep.subr.mxu0 0.0
        %7647 = vmatpush1.msra.mxu0 0.0
        %7648 = vmatprep.subr.mxu0 0.0
        %7649 = vmatpush1.msra.mxu0 0.0
        %7650 = vmatprep.subr.mxu0 0.0
        %7651 = vmatpush1.msra.mxu0 0.0
        %7652 = vmatprep.subr.mxu0 0.0
        %7653 = vmatpush1.msra.mxu0 0.0
        %7654 = vmatprep.subr.mxu0 0.0
        %7655 = vmatpush1.msra.mxu0 0.0
        %7656 = vmatprep.subr.mxu0 0.0
        %7657 = vmatpush1.msra.mxu0 0.0
        %7658 = vmatprep.subr.mxu0 0.0
        %7659 = vmatpush1.msra.mxu0 0.0
        %7660 = vmatprep.mubr.f32.mxu0 0.0
        %7661 = vmatmul.mubr.f32.gmra.mrb[0].mxu0 %v7594
        %v7662 = vpop.f32.mrb[0].mxu0
        %v7663 = vadd.f32 0.0, %v7662
        %v7664 = vpop.f32.mrb[0].mxu0
        %7665 = vdwg.mxu0
        %v7666 = vmax.f32 %v7588, %v7663
        %s7667 = scalar_lea.vmem %s9, 6
        %v7668 = vld [vmem:[%s7667] sm:$0x1]
        %v7670 = vsel %vm7153, %v7668, 0
        %7672 = vmatprep.subr.mxu0 0.0
        %7673 = vmatpush1.msra.mxu0 %v7148
        %7674 = vmatprep.subr.mxu0 0.0
        %7675 = vmatpush1.msra.mxu0 %v7149
        %7676 = vmatprep.subr.mxu0 0.0
        %7677 = vmatpush1.msra.mxu0 %v7150
        %7678 = vmatprep.subr.mxu0 0.0
        %7679 = vmatpush1.msra.mxu0 0.0
        %7680 = vmatprep.subr.mxu0 0.0
        %7681 = vmatpush1.msra.mxu0 0.0
        %7682 = vmatprep.subr.mxu0 0.0
        %7683 = vmatpush1.msra.mxu0 0.0
        %7684 = vmatprep.subr.mxu0 0.0
        %7685 = vmatpush1.msra.mxu0 0.0
        %7686 = vmatprep.subr.mxu0 0.0
        %7687 = vmatpush1.msra.mxu0 0.0
        %7688 = vmatprep.subr.mxu0 0.0
        %7689 = vmatpush1.msra.mxu0 0.0
        %7690 = vmatprep.subr.mxu0 0.0
        %7691 = vmatpush1.msra.mxu0 0.0
        %7692 = vmatprep.subr.mxu0 0.0
        %7693 = vmatpush1.msra.mxu0 0.0
        %7694 = vmatprep.subr.mxu0 0.0
        %7695 = vmatpush1.msra.mxu0 0.0
        %7696 = vmatprep.subr.mxu0 0.0
        %7697 = vmatpush1.msra.mxu0 0.0
        %7698 = vmatprep.subr.mxu0 0.0
        %7699 = vmatpush1.msra.mxu0 0.0
        %7700 = vmatprep.subr.mxu0 0.0
        %7701 = vmatpush1.msra.mxu0 0.0
        %7702 = vmatprep.subr.mxu0 0.0
        %7703 = vmatpush1.msra.mxu0 0.0
        %7704 = vmatprep.subr.mxu0 0.0
        %7705 = vmatpush1.msra.mxu0 0.0
        %7706 = vmatprep.subr.mxu0 0.0
        %7707 = vmatpush1.msra.mxu0 0.0
        %7708 = vmatprep.subr.mxu0 0.0
        %7709 = vmatpush1.msra.mxu0 0.0
        %7710 = vmatprep.subr.mxu0 0.0
        %7711 = vmatpush1.msra.mxu0 0.0
        %7712 = vmatprep.subr.mxu0 0.0
        %7713 = vmatpush1.msra.mxu0 0.0
        %7714 = vmatprep.subr.mxu0 0.0
        %7715 = vmatpush1.msra.mxu0 0.0
        %7716 = vmatprep.subr.mxu0 0.0
        %7717 = vmatpush1.msra.mxu0 0.0
        %7718 = vmatprep.subr.mxu0 0.0
        %7719 = vmatpush1.msra.mxu0 0.0
        %7720 = vmatprep.subr.mxu0 0.0
        %7721 = vmatpush1.msra.mxu0 0.0
        %7722 = vmatprep.subr.mxu0 0.0
        %7723 = vmatpush1.msra.mxu0 0.0
        %7724 = vmatprep.subr.mxu0 0.0
        %7725 = vmatpush1.msra.mxu0 0.0
        %7726 = vmatprep.subr.mxu0 0.0
        %7727 = vmatpush1.msra.mxu0 0.0
        %7728 = vmatprep.subr.mxu0 0.0
        %7729 = vmatpush1.msra.mxu0 0.0
        %7730 = vmatprep.subr.mxu0 0.0
        %7731 = vmatpush1.msra.mxu0 0.0
        %7732 = vmatprep.subr.mxu0 0.0
        %7733 = vmatpush1.msra.mxu0 0.0
        %7734 = vmatprep.subr.mxu0 0.0
        %7735 = vmatpush1.msra.mxu0 0.0
        %7736 = vmatprep.mubr.f32.mxu0 0.0
        %7737 = vmatmul.mubr.f32.gmra.mrb[0].mxu0 %v7670
        %v7738 = vpop.f32.mrb[0].mxu0
        %v7739 = vadd.f32 0.0, %v7738
        %v7740 = vpop.f32.mrb[0].mxu0
        %7741 = vdwg.mxu0
        %v7742 = vmax.f32 %v7666, %v7739
        %s7743 = scalar_lea.vmem %s9, 7
        %v7744 = vld [vmem:[%s7743] sm:$0x1]
        %v7746 = vsel %vm7153, %v7744, 0
        %7748 = vmatprep.subr.mxu0 0.0
        %7749 = vmatpush1.msra.mxu0 %v7148
        %7750 = vmatprep.subr.mxu0 0.0
        %7751 = vmatpush1.msra.mxu0 %v7149
        %7752 = vmatprep.subr.mxu0 0.0
        %7753 = vmatpush1.msra.mxu0 %v7150
        %7754 = vmatprep.subr.mxu0 0.0
        %7755 = vmatpush1.msra.mxu0 0.0
        %7756 = vmatprep.subr.mxu0 0.0
        %7757 = vmatpush1.msra.mxu0 0.0
        %7758 = vmatprep.subr.mxu0 0.0
        %7759 = vmatpush1.msra.mxu0 0.0
        %7760 = vmatprep.subr.mxu0 0.0
        %7761 = vmatpush1.msra.mxu0 0.0
        %7762 = vmatprep.subr.mxu0 0.0
        %7763 = vmatpush1.msra.mxu0 0.0
        %7764 = vmatprep.subr.mxu0 0.0
        %7765 = vmatpush1.msra.mxu0 0.0
        %7766 = vmatprep.subr.mxu0 0.0
        %7767 = vmatpush1.msra.mxu0 0.0
        %7768 = vmatprep.subr.mxu0 0.0
        %7769 = vmatpush1.msra.mxu0 0.0
        %7770 = vmatprep.subr.mxu0 0.0
        %7771 = vmatpush1.msra.mxu0 0.0
        %7772 = vmatprep.subr.mxu0 0.0
        %7773 = vmatpush1.msra.mxu0 0.0
        %7774 = vmatprep.subr.mxu0 0.0
        %7775 = vmatpush1.msra.mxu0 0.0
        %7776 = vmatprep.subr.mxu0 0.0
        %7777 = vmatpush1.msra.mxu0 0.0
        %7778 = vmatprep.subr.mxu0 0.0
        %7779 = vmatpush1.msra.mxu0 0.0
        %7780 = vmatprep.subr.mxu0 0.0
        %7781 = vmatpush1.msra.mxu0 0.0
        %7782 = vmatprep.subr.mxu0 0.0
        %7783 = vmatpush1.msra.mxu0 0.0
        %7784 = vmatprep.subr.mxu0 0.0
        %7785 = vmatpush1.msra.mxu0 0.0
        %7786 = vmatprep.subr.mxu0 0.0
        %7787 = vmatpush1.msra.mxu0 0.0
        %7788 = vmatprep.subr.mxu0 0.0
        %7789 = vmatpush1.msra.mxu0 0.0
        %7790 = vmatprep.subr.mxu0 0.0
        %7791 = vmatpush1.msra.mxu0 0.0
        %7792 = vmatprep.subr.mxu0 0.0
        %7793 = vmatpush1.msra.mxu0 0.0
        %7794 = vmatprep.subr.mxu0 0.0
        %7795 = vmatpush1.msra.mxu0 0.0
        %7796 = vmatprep.subr.mxu0 0.0
        %7797 = vmatpush1.msra.mxu0 0.0
        %7798 = vmatprep.subr.mxu0 0.0
        %7799 = vmatpush1.msra.mxu0 0.0
        %7800 = vmatprep.subr.mxu0 0.0
        %7801 = vmatpush1.msra.mxu0 0.0
        %7802 = vmatprep.subr.mxu0 0.0
        %7803 = vmatpush1.msra.mxu0 0.0
        %7804 = vmatprep.subr.mxu0 0.0
        %7805 = vmatpush1.msra.mxu0 0.0
        %7806 = vmatprep.subr.mxu0 0.0
        %7807 = vmatpush1.msra.mxu0 0.0
        %7808 = vmatprep.subr.mxu0 0.0
        %7809 = vmatpush1.msra.mxu0 0.0
        %7810 = vmatprep.subr.mxu0 0.0
        %7811 = vmatpush1.msra.mxu0 0.0
        %7812 = vmatprep.mubr.f32.mxu0 0.0
        %7813 = vmatmul.mubr.f32.gmra.mrb[0].mxu0 %v7746
        %v7814 = vpop.f32.mrb[0].mxu0
        %v7815 = vadd.f32 0.0, %v7814
        %v7816 = vpop.f32.mrb[0].mxu0
        %7817 = vdwg.mxu0
        %v7818 = vmax.f32 %v7742, %v7815
        %v7819 = vpack.c.bf16 %v7818, %v7818
        %s7820 = scalar_lea.vmem %s10, 16
        %v7821 = vld [vmem:[%s7820] sm:$0xf]
        %v7822 = vld [vmem:[%s7820 + $0x4] sm:$0xf]
        %v7823 = vld [vmem:[%s7820 + $0x8] sm:$0xf]
        %v7824 = vld [vmem:[%s7820 + $0xc] sm:$0xf]
        %v7829 = vunpack.c.l.b16 %v7821
        %v7830 = vunpack.c.l.b16 %v7822
        %v7831 = vunpack.c.l.b16 %v7823
        %v7832 = vunpack.c.l.b16 %v7824
        %v7833 = vpack.c.b16 %v7830, %v7829
        %v7834 = vpack.c.b16 %v7832, %v7831
        %v7838 = vsel %vm3483, %v7819, 0
        %7840 = vmatprep.subr.bf16.mxu0 0
        %7841 = vmatpush1.bf16.msra.mxu0 %v7833
        %7842 = vmatprep.subr.bf16.mxu0 0
        %7843 = vmatpush1.bf16.msra.mxu0 %v7834
        %7844 = vmatprep.subr.bf16.mxu0 0
        %7845 = vmatpush1.bf16.msra.mxu0 0
        %7846 = vmatprep.subr.bf16.mxu0 0
        %7847 = vmatpush1.bf16.msra.mxu0 0
        %7848 = vmatprep.subr.bf16.mxu0 0
        %7849 = vmatpush1.bf16.msra.mxu0 0
        %7850 = vmatprep.subr.bf16.mxu0 0
        %7851 = vmatpush1.bf16.msra.mxu0 0
        %7852 = vmatprep.subr.bf16.mxu0 0
        %7853 = vmatpush1.bf16.msra.mxu0 0
        %7854 = vmatprep.subr.bf16.mxu0 0
        %7855 = vmatpush1.bf16.msra.mxu0 0
        %7856 = vmatprep.subr.bf16.mxu0 0
        %7857 = vmatpush1.bf16.msra.mxu0 0
        %7858 = vmatprep.subr.bf16.mxu0 0
        %7859 = vmatpush1.bf16.msra.mxu0 0
        %7860 = vmatprep.subr.bf16.mxu0 0
        %7861 = vmatpush1.bf16.msra.mxu0 0
        %7862 = vmatprep.subr.bf16.mxu0 0
        %7863 = vmatpush1.bf16.msra.mxu0 0
        %7864 = vmatprep.subr.bf16.mxu0 0
        %7865 = vmatpush1.bf16.msra.mxu0 0
        %7866 = vmatprep.subr.bf16.mxu0 0
        %7867 = vmatpush1.bf16.msra.mxu0 0
        %7868 = vmatprep.subr.bf16.mxu0 0
        %7869 = vmatpush1.bf16.msra.mxu0 0
        %7870 = vmatprep.subr.bf16.mxu0 0
        %7871 = vmatpush1.bf16.msra.mxu0 0
        %7872 = vmatprep.mubr.bf16.mxu0 0
        %7873 = vmatmul.mubr.bf16.gmra.mrb[0].mxu0 %v7838
        %v7874 = vpop.f32.mrb[0].mxu0
        %v7875 = vadd.f32 0.0, %v7874
        %v7876 = vpop.f32.mrb[0].mxu0
        %v7877 = vpop.f32.mrb[0].mxu0
        %v7878 = vpop.f32.mrb[0].mxu0
        %7879 = vdwg.mxu0
        %v7880 = vadd.f32 %v7515, %v7875
        %s7881 = scalar_lea.vmem %s9, 8
        %v7882 = vld [vmem:[%s7881] sm:$0x1]
        %v7884 = vsel %vm7153, %v7882, 0
        %7886 = vmatprep.subr.mxu0 0.0
        %7887 = vmatpush1.msra.mxu0 %v7148
        %7888 = vmatprep.subr.mxu0 0.0
        %7889 = vmatpush1.msra.mxu0 %v7149
        %7890 = vmatprep.subr.mxu0 0.0
        %7891 = vmatpush1.msra.mxu0 %v7150
        %7892 = vmatprep.subr.mxu0 0.0
        %7893 = vmatpush1.msra.mxu0 0.0
        %7894 = vmatprep.subr.mxu0 0.0
        %7895 = vmatpush1.msra.mxu0 0.0
        %7896 = vmatprep.subr.mxu0 0.0
        %7897 = vmatpush1.msra.mxu0 0.0
        %7898 = vmatprep.subr.mxu0 0.0
        %7899 = vmatpush1.msra.mxu0 0.0
        %7900 = vmatprep.subr.mxu0 0.0
        %7901 = vmatpush1.msra.mxu0 0.0
        %7902 = vmatprep.subr.mxu0 0.0
        %7903 = vmatpush1.msra.mxu0 0.0
        %7904 = vmatprep.subr.mxu0 0.0
        %7905 = vmatpush1.msra.mxu0 0.0
        %7906 = vmatprep.subr.mxu0 0.0
        %7907 = vmatpush1.msra.mxu0 0.0
        %7908 = vmatprep.subr.mxu0 0.0
        %7909 = vmatpush1.msra.mxu0 0.0
        %7910 = vmatprep.subr.mxu0 0.0
        %7911 = vmatpush1.msra.mxu0 0.0
        %7912 = vmatprep.subr.mxu0 0.0
        %7913 = vmatpush1.msra.mxu0 0.0
        %7914 = vmatprep.subr.mxu0 0.0
        %7915 = vmatpush1.msra.mxu0 0.0
        %7916 = vmatprep.subr.mxu0 0.0
        %7917 = vmatpush1.msra.mxu0 0.0
        %7918 = vmatprep.subr.mxu0 0.0
        %7919 = vmatpush1.msra.mxu0 0.0
        %7920 = vmatprep.subr.mxu0 0.0
        %7921 = vmatpush1.msra.mxu0 0.0
        %7922 = vmatprep.subr.mxu0 0.0
        %7923 = vmatpush1.msra.mxu0 0.0
        %7924 = vmatprep.subr.mxu0 0.0
        %7925 = vmatpush1.msra.mxu0 0.0
        %7926 = vmatprep.subr.mxu0 0.0
        %7927 = vmatpush1.msra.mxu0 0.0
        %7928 = vmatprep.subr.mxu0 0.0
        %7929 = vmatpush1.msra.mxu0 0.0
        %7930 = vmatprep.subr.mxu0 0.0
        %7931 = vmatpush1.msra.mxu0 0.0
        %7932 = vmatprep.subr.mxu0 0.0
        %7933 = vmatpush1.msra.mxu0 0.0
        %7934 = vmatprep.subr.mxu0 0.0
        %7935 = vmatpush1.msra.mxu0 0.0
        %7936 = vmatprep.subr.mxu0 0.0
        %7937 = vmatpush1.msra.mxu0 0.0
        %7938 = vmatprep.subr.mxu0 0.0
        %7939 = vmatpush1.msra.mxu0 0.0
        %7940 = vmatprep.subr.mxu0 0.0
        %7941 = vmatpush1.msra.mxu0 0.0
        %7942 = vmatprep.subr.mxu0 0.0
        %7943 = vmatpush1.msra.mxu0 0.0
        %7944 = vmatprep.subr.mxu0 0.0
        %7945 = vmatpush1.msra.mxu0 0.0
        %7946 = vmatprep.subr.mxu0 0.0
        %7947 = vmatpush1.msra.mxu0 0.0
        %7948 = vmatprep.subr.mxu0 0.0
        %7949 = vmatpush1.msra.mxu0 0.0
        %7950 = vmatprep.mubr.f32.mxu0 0.0
        %7951 = vmatmul.mubr.f32.gmra.mrb[0].mxu0 %v7884
        %v7952 = vpop.f32.mrb[0].mxu0
        %v7953 = vadd.f32 0.0, %v7952
        %v7954 = vpop.f32.mrb[0].mxu0
        %7955 = vdwg.mxu0
        %s7956 = scalar_lea.vmem %s9, 9
        %v7957 = vld [vmem:[%s7956] sm:$0x1]
        %v7959 = vsel %vm7153, %v7957, 0
        %7961 = vmatprep.subr.mxu0 0.0
        %7962 = vmatpush1.msra.mxu0 %v7148
        %7963 = vmatprep.subr.mxu0 0.0
        %7964 = vmatpush1.msra.mxu0 %v7149
        %7965 = vmatprep.subr.mxu0 0.0
        %7966 = vmatpush1.msra.mxu0 %v7150
        %7967 = vmatprep.subr.mxu0 0.0
        %7968 = vmatpush1.msra.mxu0 0.0
        %7969 = vmatprep.subr.mxu0 0.0
        %7970 = vmatpush1.msra.mxu0 0.0
        %7971 = vmatprep.subr.mxu0 0.0
        %7972 = vmatpush1.msra.mxu0 0.0
        %7973 = vmatprep.subr.mxu0 0.0
        %7974 = vmatpush1.msra.mxu0 0.0
        %7975 = vmatprep.subr.mxu0 0.0
        %7976 = vmatpush1.msra.mxu0 0.0
        %7977 = vmatprep.subr.mxu0 0.0
        %7978 = vmatpush1.msra.mxu0 0.0
        %7979 = vmatprep.subr.mxu0 0.0
        %7980 = vmatpush1.msra.mxu0 0.0
        %7981 = vmatprep.subr.mxu0 0.0
        %7982 = vmatpush1.msra.mxu0 0.0
        %7983 = vmatprep.subr.mxu0 0.0
        %7984 = vmatpush1.msra.mxu0 0.0
        %7985 = vmatprep.subr.mxu0 0.0
        %7986 = vmatpush1.msra.mxu0 0.0
        %7987 = vmatprep.subr.mxu0 0.0
        %7988 = vmatpush1.msra.mxu0 0.0
        %7989 = vmatprep.subr.mxu0 0.0
        %7990 = vmatpush1.msra.mxu0 0.0
        %7991 = vmatprep.subr.mxu0 0.0
        %7992 = vmatpush1.msra.mxu0 0.0
        %7993 = vmatprep.subr.mxu0 0.0
        %7994 = vmatpush1.msra.mxu0 0.0
        %7995 = vmatprep.subr.mxu0 0.0
        %7996 = vmatpush1.msra.mxu0 0.0
        %7997 = vmatprep.subr.mxu0 0.0
        %7998 = vmatpush1.msra.mxu0 0.0
        %7999 = vmatprep.subr.mxu0 0.0
        %8000 = vmatpush1.msra.mxu0 0.0
        %8001 = vmatprep.subr.mxu0 0.0
        %8002 = vmatpush1.msra.mxu0 0.0
        %8003 = vmatprep.subr.mxu0 0.0
        %8004 = vmatpush1.msra.mxu0 0.0
        %8005 = vmatprep.subr.mxu0 0.0
        %8006 = vmatpush1.msra.mxu0 0.0
        %8007 = vmatprep.subr.mxu0 0.0
        %8008 = vmatpush1.msra.mxu0 0.0
        %8009 = vmatprep.subr.mxu0 0.0
        %8010 = vmatpush1.msra.mxu0 0.0
        %8011 = vmatprep.subr.mxu0 0.0
        %8012 = vmatpush1.msra.mxu0 0.0
        %8013 = vmatprep.subr.mxu0 0.0
        %8014 = vmatpush1.msra.mxu0 0.0
        %8015 = vmatprep.subr.mxu0 0.0
        %8016 = vmatpush1.msra.mxu0 0.0
        %8017 = vmatprep.subr.mxu0 0.0
        %8018 = vmatpush1.msra.mxu0 0.0
        %8019 = vmatprep.subr.mxu0 0.0
        %8020 = vmatpush1.msra.mxu0 0.0
        %8021 = vmatprep.subr.mxu0 0.0
        %8022 = vmatpush1.msra.mxu0 0.0
        %8023 = vmatprep.subr.mxu0 0.0
        %8024 = vmatpush1.msra.mxu0 0.0
        %8025 = vmatprep.mubr.f32.mxu0 0.0
        %8026 = vmatmul.mubr.f32.gmra.mrb[0].mxu0 %v7959
        %v8027 = vpop.f32.mrb[0].mxu0
        %v8028 = vadd.f32 0.0, %v8027
        %v8029 = vpop.f32.mrb[0].mxu0
        %8030 = vdwg.mxu0
        %v8031 = vmax.f32 %v7953, %v8028
        %s8032 = scalar_lea.vmem %s9, 10
        %v8033 = vld [vmem:[%s8032] sm:$0x1]
        %v8035 = vsel %vm7153, %v8033, 0
        %8037 = vmatprep.subr.mxu0 0.0
        %8038 = vmatpush1.msra.mxu0 %v7148
        %8039 = vmatprep.subr.mxu0 0.0
        %8040 = vmatpush1.msra.mxu0 %v7149
        %8041 = vmatprep.subr.mxu0 0.0
        %8042 = vmatpush1.msra.mxu0 %v7150
        %8043 = vmatprep.subr.mxu0 0.0
        %8044 = vmatpush1.msra.mxu0 0.0
        %8045 = vmatprep.subr.mxu0 0.0
        %8046 = vmatpush1.msra.mxu0 0.0
        %8047 = vmatprep.subr.mxu0 0.0
        %8048 = vmatpush1.msra.mxu0 0.0
        %8049 = vmatprep.subr.mxu0 0.0
        %8050 = vmatpush1.msra.mxu0 0.0
        %8051 = vmatprep.subr.mxu0 0.0
        %8052 = vmatpush1.msra.mxu0 0.0
        %8053 = vmatprep.subr.mxu0 0.0
        %8054 = vmatpush1.msra.mxu0 0.0
        %8055 = vmatprep.subr.mxu0 0.0
        %8056 = vmatpush1.msra.mxu0 0.0
        %8057 = vmatprep.subr.mxu0 0.0
        %8058 = vmatpush1.msra.mxu0 0.0
        %8059 = vmatprep.subr.mxu0 0.0
        %8060 = vmatpush1.msra.mxu0 0.0
        %8061 = vmatprep.subr.mxu0 0.0
        %8062 = vmatpush1.msra.mxu0 0.0
        %8063 = vmatprep.subr.mxu0 0.0
        %8064 = vmatpush1.msra.mxu0 0.0
        %8065 = vmatprep.subr.mxu0 0.0
        %8066 = vmatpush1.msra.mxu0 0.0
        %8067 = vmatprep.subr.mxu0 0.0
        %8068 = vmatpush1.msra.mxu0 0.0
        %8069 = vmatprep.subr.mxu0 0.0
        %8070 = vmatpush1.msra.mxu0 0.0
        %8071 = vmatprep.subr.mxu0 0.0
        %8072 = vmatpush1.msra.mxu0 0.0
        %8073 = vmatprep.subr.mxu0 0.0
        %8074 = vmatpush1.msra.mxu0 0.0
        %8075 = vmatprep.subr.mxu0 0.0
        %8076 = vmatpush1.msra.mxu0 0.0
        %8077 = vmatprep.subr.mxu0 0.0
        %8078 = vmatpush1.msra.mxu0 0.0
        %8079 = vmatprep.subr.mxu0 0.0
        %8080 = vmatpush1.msra.mxu0 0.0
        %8081 = vmatprep.subr.mxu0 0.0
        %8082 = vmatpush1.msra.mxu0 0.0
        %8083 = vmatprep.subr.mxu0 0.0
        %8084 = vmatpush1.msra.mxu0 0.0
        %8085 = vmatprep.subr.mxu0 0.0
        %8086 = vmatpush1.msra.mxu0 0.0
        %8087 = vmatprep.subr.mxu0 0.0
        %8088 = vmatpush1.msra.mxu0 0.0
        %8089 = vmatprep.subr.mxu0 0.0
        %8090 = vmatpush1.msra.mxu0 0.0
        %8091 = vmatprep.subr.mxu0 0.0
        %8092 = vmatpush1.msra.mxu0 0.0
        %8093 = vmatprep.subr.mxu0 0.0
        %8094 = vmatpush1.msra.mxu0 0.0
        %8095 = vmatprep.subr.mxu0 0.0
        %8096 = vmatpush1.msra.mxu0 0.0
        %8097 = vmatprep.subr.mxu0 0.0
        %8098 = vmatpush1.msra.mxu0 0.0
        %8099 = vmatprep.subr.mxu0 0.0
        %8100 = vmatpush1.msra.mxu0 0.0
        %8101 = vmatprep.mubr.f32.mxu0 0.0
        %8102 = vmatmul.mubr.f32.gmra.mrb[0].mxu0 %v8035
        %v8103 = vpop.f32.mrb[0].mxu0
        %v8104 = vadd.f32 0.0, %v8103
        %v8105 = vpop.f32.mrb[0].mxu0
        %8106 = vdwg.mxu0
        %v8107 = vmax.f32 %v8031, %v8104
        %s8108 = scalar_lea.vmem %s9, 11
        %v8109 = vld [vmem:[%s8108] sm:$0x1]
        %v8111 = vsel %vm7153, %v8109, 0
        %8113 = vmatprep.subr.mxu0 0.0
        %8114 = vmatpush1.msra.mxu0 %v7148
        %8115 = vmatprep.subr.mxu0 0.0
        %8116 = vmatpush1.msra.mxu0 %v7149
        %8117 = vmatprep.subr.mxu0 0.0
        %8118 = vmatpush1.msra.mxu0 %v7150
        %8119 = vmatprep.subr.mxu0 0.0
        %8120 = vmatpush1.msra.mxu0 0.0
        %8121 = vmatprep.subr.mxu0 0.0
        %8122 = vmatpush1.msra.mxu0 0.0
        %8123 = vmatprep.subr.mxu0 0.0
        %8124 = vmatpush1.msra.mxu0 0.0
        %8125 = vmatprep.subr.mxu0 0.0
        %8126 = vmatpush1.msra.mxu0 0.0
        %8127 = vmatprep.subr.mxu0 0.0
        %8128 = vmatpush1.msra.mxu0 0.0
        %8129 = vmatprep.subr.mxu0 0.0
        %8130 = vmatpush1.msra.mxu0 0.0
        %8131 = vmatprep.subr.mxu0 0.0
        %8132 = vmatpush1.msra.mxu0 0.0
        %8133 = vmatprep.subr.mxu0 0.0
        %8134 = vmatpush1.msra.mxu0 0.0
        %8135 = vmatprep.subr.mxu0 0.0
        %8136 = vmatpush1.msra.mxu0 0.0
        %8137 = vmatprep.subr.mxu0 0.0
        %8138 = vmatpush1.msra.mxu0 0.0
        %8139 = vmatprep.subr.mxu0 0.0
        %8140 = vmatpush1.msra.mxu0 0.0
        %8141 = vmatprep.subr.mxu0 0.0
        %8142 = vmatpush1.msra.mxu0 0.0
        %8143 = vmatprep.subr.mxu0 0.0
        %8144 = vmatpush1.msra.mxu0 0.0
        %8145 = vmatprep.subr.mxu0 0.0
        %8146 = vmatpush1.msra.mxu0 0.0
        %8147 = vmatprep.subr.mxu0 0.0
        %8148 = vmatpush1.msra.mxu0 0.0
        %8149 = vmatprep.subr.mxu0 0.0
        %8150 = vmatpush1.msra.mxu0 0.0
        %8151 = vmatprep.subr.mxu0 0.0
        %8152 = vmatpush1.msra.mxu0 0.0
        %8153 = vmatprep.subr.mxu0 0.0
        %8154 = vmatpush1.msra.mxu0 0.0
        %8155 = vmatprep.subr.mxu0 0.0
        %8156 = vmatpush1.msra.mxu0 0.0
        %8157 = vmatprep.subr.mxu0 0.0
        %8158 = vmatpush1.msra.mxu0 0.0
        %8159 = vmatprep.subr.mxu0 0.0
        %8160 = vmatpush1.msra.mxu0 0.0
        %8161 = vmatprep.subr.mxu0 0.0
        %8162 = vmatpush1.msra.mxu0 0.0
        %8163 = vmatprep.subr.mxu0 0.0
        %8164 = vmatpush1.msra.mxu0 0.0
        %8165 = vmatprep.subr.mxu0 0.0
        %8166 = vmatpush1.msra.mxu0 0.0
        %8167 = vmatprep.subr.mxu0 0.0
        %8168 = vmatpush1.msra.mxu0 0.0
        %8169 = vmatprep.subr.mxu0 0.0
        %8170 = vmatpush1.msra.mxu0 0.0
        %8171 = vmatprep.subr.mxu0 0.0
        %8172 = vmatpush1.msra.mxu0 0.0
        %8173 = vmatprep.subr.mxu0 0.0
        %8174 = vmatpush1.msra.mxu0 0.0
        %8175 = vmatprep.subr.mxu0 0.0
        %8176 = vmatpush1.msra.mxu0 0.0
        %8177 = vmatprep.mubr.f32.mxu0 0.0
        %8178 = vmatmul.mubr.f32.gmra.mrb[0].mxu0 %v8111
        %v8179 = vpop.f32.mrb[0].mxu0
        %v8180 = vadd.f32 0.0, %v8179
        %v8181 = vpop.f32.mrb[0].mxu0
        %8182 = vdwg.mxu0
        %v8183 = vmax.f32 %v8107, %v8180
        %v8184 = vpack.c.bf16 %v8183, %v8183
        %s8185 = scalar_lea.vmem %s10, 32
        %v8186 = vld [vmem:[%s8185] sm:$0xf]
        %v8187 = vld [vmem:[%s8185 + $0x4] sm:$0xf]
        %v8188 = vld [vmem:[%s8185 + $0x8] sm:$0xf]
        %v8189 = vld [vmem:[%s8185 + $0xc] sm:$0xf]
        %v8194 = vunpack.c.l.b16 %v8186
        %v8195 = vunpack.c.l.b16 %v8187
        %v8196 = vunpack.c.l.b16 %v8188
        %v8197 = vunpack.c.l.b16 %v8189
        %v8198 = vpack.c.b16 %v8195, %v8194
        %v8199 = vpack.c.b16 %v8197, %v8196
        %v8203 = vsel %vm3483, %v8184, 0
        %8205 = vmatprep.subr.bf16.mxu0 0
        %8206 = vmatpush1.bf16.msra.mxu0 %v8198
        %8207 = vmatprep.subr.bf16.mxu0 0
        %8208 = vmatpush1.bf16.msra.mxu0 %v8199
        %8209 = vmatprep.subr.bf16.mxu0 0
        %8210 = vmatpush1.bf16.msra.mxu0 0
        %8211 = vmatprep.subr.bf16.mxu0 0
        %8212 = vmatpush1.bf16.msra.mxu0 0
        %8213 = vmatprep.subr.bf16.mxu0 0
        %8214 = vmatpush1.bf16.msra.mxu0 0
        %8215 = vmatprep.subr.bf16.mxu0 0
        %8216 = vmatpush1.bf16.msra.mxu0 0
        %8217 = vmatprep.subr.bf16.mxu0 0
        %8218 = vmatpush1.bf16.msra.mxu0 0
        %8219 = vmatprep.subr.bf16.mxu0 0
        %8220 = vmatpush1.bf16.msra.mxu0 0
        %8221 = vmatprep.subr.bf16.mxu0 0
        %8222 = vmatpush1.bf16.msra.mxu0 0
        %8223 = vmatprep.subr.bf16.mxu0 0
        %8224 = vmatpush1.bf16.msra.mxu0 0
        %8225 = vmatprep.subr.bf16.mxu0 0
        %8226 = vmatpush1.bf16.msra.mxu0 0
        %8227 = vmatprep.subr.bf16.mxu0 0
        %8228 = vmatpush1.bf16.msra.mxu0 0
        %8229 = vmatprep.subr.bf16.mxu0 0
        %8230 = vmatpush1.bf16.msra.mxu0 0
        %8231 = vmatprep.subr.bf16.mxu0 0
        %8232 = vmatpush1.bf16.msra.mxu0 0
        %8233 = vmatprep.subr.bf16.mxu0 0
        %8234 = vmatpush1.bf16.msra.mxu0 0
        %8235 = vmatprep.subr.bf16.mxu0 0
        %8236 = vmatpush1.bf16.msra.mxu0 0
        %8237 = vmatprep.mubr.bf16.mxu0 0
        %8238 = vmatmul.mubr.bf16.gmra.mrb[0].mxu0 %v8203
        %v8239 = vpop.f32.mrb[0].mxu0
        %v8240 = vadd.f32 0.0, %v8239
        %v8241 = vpop.f32.mrb[0].mxu0
        %v8242 = vpop.f32.mrb[0].mxu0
        %v8243 = vpop.f32.mrb[0].mxu0
        %8244 = vdwg.mxu0
        %v8245 = vadd.f32 %v7880, %v8240
        %s8246 = scalar_lea.vmem %s9, 12
        %v8247 = vld [vmem:[%s8246] sm:$0x1]
        %v8249 = vsel %vm7153, %v8247, 0
        %8251 = vmatprep.subr.mxu0 0.0
        %8252 = vmatpush1.msra.mxu0 %v7148
        %8253 = vmatprep.subr.mxu0 0.0
        %8254 = vmatpush1.msra.mxu0 %v7149
        %8255 = vmatprep.subr.mxu0 0.0
        %8256 = vmatpush1.msra.mxu0 %v7150
        %8257 = vmatprep.subr.mxu0 0.0
        %8258 = vmatpush1.msra.mxu0 0.0
        %8259 = vmatprep.subr.mxu0 0.0
        %8260 = vmatpush1.msra.mxu0 0.0
        %8261 = vmatprep.subr.mxu0 0.0
        %8262 = vmatpush1.msra.mxu0 0.0
        %8263 = vmatprep.subr.mxu0 0.0
        %8264 = vmatpush1.msra.mxu0 0.0
        %8265 = vmatprep.subr.mxu0 0.0
        %8266 = vmatpush1.msra.mxu0 0.0
        %8267 = vmatprep.subr.mxu0 0.0
        %8268 = vmatpush1.msra.mxu0 0.0
        %8269 = vmatprep.subr.mxu0 0.0
        %8270 = vmatpush1.msra.mxu0 0.0
        %8271 = vmatprep.subr.mxu0 0.0
        %8272 = vmatpush1.msra.mxu0 0.0
        %8273 = vmatprep.subr.mxu0 0.0
        %8274 = vmatpush1.msra.mxu0 0.0
        %8275 = vmatprep.subr.mxu0 0.0
        %8276 = vmatpush1.msra.mxu0 0.0
        %8277 = vmatprep.subr.mxu0 0.0
        %8278 = vmatpush1.msra.mxu0 0.0
        %8279 = vmatprep.subr.mxu0 0.0
        %8280 = vmatpush1.msra.mxu0 0.0
        %8281 = vmatprep.subr.mxu0 0.0
        %8282 = vmatpush1.msra.mxu0 0.0
        %8283 = vmatprep.subr.mxu0 0.0
        %8284 = vmatpush1.msra.mxu0 0.0
        %8285 = vmatprep.subr.mxu0 0.0
        %8286 = vmatpush1.msra.mxu0 0.0
        %8287 = vmatprep.subr.mxu0 0.0
        %8288 = vmatpush1.msra.mxu0 0.0
        %8289 = vmatprep.subr.mxu0 0.0
        %8290 = vmatpush1.msra.mxu0 0.0
        %8291 = vmatprep.subr.mxu0 0.0
        %8292 = vmatpush1.msra.mxu0 0.0
        %8293 = vmatprep.subr.mxu0 0.0
        %8294 = vmatpush1.msra.mxu0 0.0
        %8295 = vmatprep.subr.mxu0 0.0
        %8296 = vmatpush1.msra.mxu0 0.0
        %8297 = vmatprep.subr.mxu0 0.0
        %8298 = vmatpush1.msra.mxu0 0.0
        %8299 = vmatprep.subr.mxu0 0.0
        %8300 = vmatpush1.msra.mxu0 0.0
        %8301 = vmatprep.subr.mxu0 0.0
        %8302 = vmatpush1.msra.mxu0 0.0
        %8303 = vmatprep.subr.mxu0 0.0
        %8304 = vmatpush1.msra.mxu0 0.0
        %8305 = vmatprep.subr.mxu0 0.0
        %8306 = vmatpush1.msra.mxu0 0.0
        %8307 = vmatprep.subr.mxu0 0.0
        %8308 = vmatpush1.msra.mxu0 0.0
        %8309 = vmatprep.subr.mxu0 0.0
        %8310 = vmatpush1.msra.mxu0 0.0
        %8311 = vmatprep.subr.mxu0 0.0
        %8312 = vmatpush1.msra.mxu0 0.0
        %8313 = vmatprep.subr.mxu0 0.0
        %8314 = vmatpush1.msra.mxu0 0.0
        %8315 = vmatprep.mubr.f32.mxu0 0.0
        %8316 = vmatmul.mubr.f32.gmra.mrb[0].mxu0 %v8249
        %v8317 = vpop.f32.mrb[0].mxu0
        %v8318 = vadd.f32 0.0, %v8317
        %v8319 = vpop.f32.mrb[0].mxu0
        %8320 = vdwg.mxu0
        %s8321 = scalar_lea.vmem %s9, 13
        %v8322 = vld [vmem:[%s8321] sm:$0x1]
        %v8324 = vsel %vm7153, %v8322, 0
        %8326 = vmatprep.subr.mxu0 0.0
        %8327 = vmatpush1.msra.mxu0 %v7148
        %8328 = vmatprep.subr.mxu0 0.0
        %8329 = vmatpush1.msra.mxu0 %v7149
        %8330 = vmatprep.subr.mxu0 0.0
        %8331 = vmatpush1.msra.mxu0 %v7150
        %8332 = vmatprep.subr.mxu0 0.0
        %8333 = vmatpush1.msra.mxu0 0.0
        %8334 = vmatprep.subr.mxu0 0.0
        %8335 = vmatpush1.msra.mxu0 0.0
        %8336 = vmatprep.subr.mxu0 0.0
        %8337 = vmatpush1.msra.mxu0 0.0
        %8338 = vmatprep.subr.mxu0 0.0
        %8339 = vmatpush1.msra.mxu0 0.0
        %8340 = vmatprep.subr.mxu0 0.0
        %8341 = vmatpush1.msra.mxu0 0.0
        %8342 = vmatprep.subr.mxu0 0.0
        %8343 = vmatpush1.msra.mxu0 0.0
        %8344 = vmatprep.subr.mxu0 0.0
        %8345 = vmatpush1.msra.mxu0 0.0
        %8346 = vmatprep.subr.mxu0 0.0
        %8347 = vmatpush1.msra.mxu0 0.0
        %8348 = vmatprep.subr.mxu0 0.0
        %8349 = vmatpush1.msra.mxu0 0.0
        %8350 = vmatprep.subr.mxu0 0.0
        %8351 = vmatpush1.msra.mxu0 0.0
        %8352 = vmatprep.subr.mxu0 0.0
        %8353 = vmatpush1.msra.mxu0 0.0
        %8354 = vmatprep.subr.mxu0 0.0
        %8355 = vmatpush1.msra.mxu0 0.0
        %8356 = vmatprep.subr.mxu0 0.0
        %8357 = vmatpush1.msra.mxu0 0.0
        %8358 = vmatprep.subr.mxu0 0.0
        %8359 = vmatpush1.msra.mxu0 0.0
        %8360 = vmatprep.subr.mxu0 0.0
        %8361 = vmatpush1.msra.mxu0 0.0
        %8362 = vmatprep.subr.mxu0 0.0
        %8363 = vmatpush1.msra.mxu0 0.0
        %8364 = vmatprep.subr.mxu0 0.0
        %8365 = vmatpush1.msra.mxu0 0.0
        %8366 = vmatprep.subr.mxu0 0.0
        %8367 = vmatpush1.msra.mxu0 0.0
        %8368 = vmatprep.subr.mxu0 0.0
        %8369 = vmatpush1.msra.mxu0 0.0
        %8370 = vmatprep.subr.mxu0 0.0
        %8371 = vmatpush1.msra.mxu0 0.0
        %8372 = vmatprep.subr.mxu0 0.0
        %8373 = vmatpush1.msra.mxu0 0.0
        %8374 = vmatprep.subr.mxu0 0.0
        %8375 = vmatpush1.msra.mxu0 0.0
        %8376 = vmatprep.subr.mxu0 0.0
        %8377 = vmatpush1.msra.mxu0 0.0
        %8378 = vmatprep.subr.mxu0 0.0
        %8379 = vmatpush1.msra.mxu0 0.0
        %8380 = vmatprep.subr.mxu0 0.0
        %8381 = vmatpush1.msra.mxu0 0.0
        %8382 = vmatprep.subr.mxu0 0.0
        %8383 = vmatpush1.msra.mxu0 0.0
        %8384 = vmatprep.subr.mxu0 0.0
        %8385 = vmatpush1.msra.mxu0 0.0
        %8386 = vmatprep.subr.mxu0 0.0
        %8387 = vmatpush1.msra.mxu0 0.0
        %8388 = vmatprep.subr.mxu0 0.0
        %8389 = vmatpush1.msra.mxu0 0.0
        %8390 = vmatprep.mubr.f32.mxu0 0.0
        %8391 = vmatmul.mubr.f32.gmra.mrb[0].mxu0 %v8324
        %v8392 = vpop.f32.mrb[0].mxu0
        %v8393 = vadd.f32 0.0, %v8392
        %v8394 = vpop.f32.mrb[0].mxu0
        %8395 = vdwg.mxu0
        %v8396 = vmax.f32 %v8318, %v8393
        %s8397 = scalar_lea.vmem %s9, 14
        %v8398 = vld [vmem:[%s8397] sm:$0x1]
        %v8400 = vsel %vm7153, %v8398, 0
        %8402 = vmatprep.subr.mxu0 0.0
        %8403 = vmatpush1.msra.mxu0 %v7148
        %8404 = vmatprep.subr.mxu0 0.0
        %8405 = vmatpush1.msra.mxu0 %v7149
        %8406 = vmatprep.subr.mxu0 0.0
        %8407 = vmatpush1.msra.mxu0 %v7150
        %8408 = vmatprep.subr.mxu0 0.0
        %8409 = vmatpush1.msra.mxu0 0.0
        %8410 = vmatprep.subr.mxu0 0.0
        %8411 = vmatpush1.msra.mxu0 0.0
        %8412 = vmatprep.subr.mxu0 0.0
        %8413 = vmatpush1.msra.mxu0 0.0
        %8414 = vmatprep.subr.mxu0 0.0
        %8415 = vmatpush1.msra.mxu0 0.0
        %8416 = vmatprep.subr.mxu0 0.0
        %8417 = vmatpush1.msra.mxu0 0.0
        %8418 = vmatprep.subr.mxu0 0.0
        %8419 = vmatpush1.msra.mxu0 0.0
        %8420 = vmatprep.subr.mxu0 0.0
        %8421 = vmatpush1.msra.mxu0 0.0
        %8422 = vmatprep.subr.mxu0 0.0
        %8423 = vmatpush1.msra.mxu0 0.0
        %8424 = vmatprep.subr.mxu0 0.0
        %8425 = vmatpush1.msra.mxu0 0.0
        %8426 = vmatprep.subr.mxu0 0.0
        %8427 = vmatpush1.msra.mxu0 0.0
        %8428 = vmatprep.subr.mxu0 0.0
        %8429 = vmatpush1.msra.mxu0 0.0
        %8430 = vmatprep.subr.mxu0 0.0
        %8431 = vmatpush1.msra.mxu0 0.0
        %8432 = vmatprep.subr.mxu0 0.0
        %8433 = vmatpush1.msra.mxu0 0.0
        %8434 = vmatprep.subr.mxu0 0.0
        %8435 = vmatpush1.msra.mxu0 0.0
        %8436 = vmatprep.subr.mxu0 0.0
        %8437 = vmatpush1.msra.mxu0 0.0
        %8438 = vmatprep.subr.mxu0 0.0
        %8439 = vmatpush1.msra.mxu0 0.0
        %8440 = vmatprep.subr.mxu0 0.0
        %8441 = vmatpush1.msra.mxu0 0.0
        %8442 = vmatprep.subr.mxu0 0.0
        %8443 = vmatpush1.msra.mxu0 0.0
        %8444 = vmatprep.subr.mxu0 0.0
        %8445 = vmatpush1.msra.mxu0 0.0
        %8446 = vmatprep.subr.mxu0 0.0
        %8447 = vmatpush1.msra.mxu0 0.0
        %8448 = vmatprep.subr.mxu0 0.0
        %8449 = vmatpush1.msra.mxu0 0.0
        %8450 = vmatprep.subr.mxu0 0.0
        %8451 = vmatpush1.msra.mxu0 0.0
        %8452 = vmatprep.subr.mxu0 0.0
        %8453 = vmatpush1.msra.mxu0 0.0
        %8454 = vmatprep.subr.mxu0 0.0
        %8455 = vmatpush1.msra.mxu0 0.0
        %8456 = vmatprep.subr.mxu0 0.0
        %8457 = vmatpush1.msra.mxu0 0.0
        %8458 = vmatprep.subr.mxu0 0.0
        %8459 = vmatpush1.msra.mxu0 0.0
        %8460 = vmatprep.subr.mxu0 0.0
        %8461 = vmatpush1.msra.mxu0 0.0
        %8462 = vmatprep.subr.mxu0 0.0
        %8463 = vmatpush1.msra.mxu0 0.0
        %8464 = vmatprep.subr.mxu0 0.0
        %8465 = vmatpush1.msra.mxu0 0.0
        %8466 = vmatprep.mubr.f32.mxu0 0.0
        %8467 = vmatmul.mubr.f32.gmra.mrb[0].mxu0 %v8400
        %v8468 = vpop.f32.mrb[0].mxu0
        %v8469 = vadd.f32 0.0, %v8468
        %v8470 = vpop.f32.mrb[0].mxu0
        %8471 = vdwg.mxu0
        %v8472 = vmax.f32 %v8396, %v8469
        %s8473 = scalar_lea.vmem %s9, 15
        %v8474 = vld [vmem:[%s8473] sm:$0x1]
        %v8476 = vsel %vm7153, %v8474, 0
        %8478 = vmatprep.subr.mxu0 0.0
        %8479 = vmatpush1.msra.mxu0 %v7148
        %8480 = vmatprep.subr.mxu0 0.0
        %8481 = vmatpush1.msra.mxu0 %v7149
        %8482 = vmatprep.subr.mxu0 0.0
        %8483 = vmatpush1.msra.mxu0 %v7150
        %8484 = vmatprep.subr.mxu0 0.0
        %8485 = vmatpush1.msra.mxu0 0.0
        %8486 = vmatprep.subr.mxu0 0.0
        %8487 = vmatpush1.msra.mxu0 0.0
        %8488 = vmatprep.subr.mxu0 0.0
        %8489 = vmatpush1.msra.mxu0 0.0
        %8490 = vmatprep.subr.mxu0 0.0
        %8491 = vmatpush1.msra.mxu0 0.0
        %8492 = vmatprep.subr.mxu0 0.0
        %8493 = vmatpush1.msra.mxu0 0.0
        %8494 = vmatprep.subr.mxu0 0.0
        %8495 = vmatpush1.msra.mxu0 0.0
        %8496 = vmatprep.subr.mxu0 0.0
        %8497 = vmatpush1.msra.mxu0 0.0
        %8498 = vmatprep.subr.mxu0 0.0
        %8499 = vmatpush1.msra.mxu0 0.0
        %8500 = vmatprep.subr.mxu0 0.0
        %8501 = vmatpush1.msra.mxu0 0.0
        %8502 = vmatprep.subr.mxu0 0.0
        %8503 = vmatpush1.msra.mxu0 0.0
        %8504 = vmatprep.subr.mxu0 0.0
        %8505 = vmatpush1.msra.mxu0 0.0
        %8506 = vmatprep.subr.mxu0 0.0
        %8507 = vmatpush1.msra.mxu0 0.0
        %8508 = vmatprep.subr.mxu0 0.0
        %8509 = vmatpush1.msra.mxu0 0.0
        %8510 = vmatprep.subr.mxu0 0.0
        %8511 = vmatpush1.msra.mxu0 0.0
        %8512 = vmatprep.subr.mxu0 0.0
        %8513 = vmatpush1.msra.mxu0 0.0
        %8514 = vmatprep.subr.mxu0 0.0
        %8515 = vmatpush1.msra.mxu0 0.0
        %8516 = vmatprep.subr.mxu0 0.0
        %8517 = vmatpush1.msra.mxu0 0.0
        %8518 = vmatprep.subr.mxu0 0.0
        %8519 = vmatpush1.msra.mxu0 0.0
        %8520 = vmatprep.subr.mxu0 0.0
        %8521 = vmatpush1.msra.mxu0 0.0
        %8522 = vmatprep.subr.mxu0 0.0
        %8523 = vmatpush1.msra.mxu0 0.0
        %8524 = vmatprep.subr.mxu0 0.0
        %8525 = vmatpush1.msra.mxu0 0.0
        %8526 = vmatprep.subr.mxu0 0.0
        %8527 = vmatpush1.msra.mxu0 0.0
        %8528 = vmatprep.subr.mxu0 0.0
        %8529 = vmatpush1.msra.mxu0 0.0
        %8530 = vmatprep.subr.mxu0 0.0
        %8531 = vmatpush1.msra.mxu0 0.0
        %8532 = vmatprep.subr.mxu0 0.0
        %8533 = vmatpush1.msra.mxu0 0.0
        %8534 = vmatprep.subr.mxu0 0.0
        %8535 = vmatpush1.msra.mxu0 0.0
        %8536 = vmatprep.subr.mxu0 0.0
        %8537 = vmatpush1.msra.mxu0 0.0
        %8538 = vmatprep.subr.mxu0 0.0
        %8539 = vmatpush1.msra.mxu0 0.0
        %8540 = vmatprep.subr.mxu0 0.0
        %8541 = vmatpush1.msra.mxu0 0.0
        %8542 = vmatprep.mubr.f32.mxu0 0.0
        %8543 = vmatmul.mubr.f32.gmra.mrb[0].mxu0 %v8476
        %v8544 = vpop.f32.mrb[0].mxu0
        %v8545 = vadd.f32 0.0, %v8544
        %v8546 = vpop.f32.mrb[0].mxu0
        %8547 = vdwg.mxu0
        %v8548 = vmax.f32 %v8472, %v8545
        %v8549 = vpack.c.bf16 %v8548, %v8548
        %s8550 = scalar_lea.vmem %s10, 48
        %v8551 = vld [vmem:[%s8550] sm:$0xf]
        %v8552 = vld [vmem:[%s8550 + $0x4] sm:$0xf]
        %v8553 = vld [vmem:[%s8550 + $0x8] sm:$0xf]
        %v8554 = vld [vmem:[%s8550 + $0xc] sm:$0xf]
        %v8559 = vunpack.c.l.b16 %v8551
        %v8560 = vunpack.c.l.b16 %v8552
        %v8561 = vunpack.c.l.b16 %v8553
        %v8562 = vunpack.c.l.b16 %v8554
        %v8563 = vpack.c.b16 %v8560, %v8559
        %v8564 = vpack.c.b16 %v8562, %v8561
        %v8568 = vsel %vm3483, %v8549, 0
        %8570 = vmatprep.subr.bf16.mxu0 0
        %8571 = vmatpush1.bf16.msra.mxu0 %v8563
        %8572 = vmatprep.subr.bf16.mxu0 0
        %8573 = vmatpush1.bf16.msra.mxu0 %v8564
        %8574 = vmatprep.subr.bf16.mxu0 0
        %8575 = vmatpush1.bf16.msra.mxu0 0
        %8576 = vmatprep.subr.bf16.mxu0 0
        %8577 = vmatpush1.bf16.msra.mxu0 0
        %8578 = vmatprep.subr.bf16.mxu0 0
        %8579 = vmatpush1.bf16.msra.mxu0 0
        %8580 = vmatprep.subr.bf16.mxu0 0
        %8581 = vmatpush1.bf16.msra.mxu0 0
        %8582 = vmatprep.subr.bf16.mxu0 0
        %8583 = vmatpush1.bf16.msra.mxu0 0
        %8584 = vmatprep.subr.bf16.mxu0 0
        %8585 = vmatpush1.bf16.msra.mxu0 0
        %8586 = vmatprep.subr.bf16.mxu0 0
        %8587 = vmatpush1.bf16.msra.mxu0 0
        %8588 = vmatprep.subr.bf16.mxu0 0
        %8589 = vmatpush1.bf16.msra.mxu0 0
        %8590 = vmatprep.subr.bf16.mxu0 0
        %8591 = vmatpush1.bf16.msra.mxu0 0
        %8592 = vmatprep.subr.bf16.mxu0 0
        %8593 = vmatpush1.bf16.msra.mxu0 0
        %8594 = vmatprep.subr.bf16.mxu0 0
        %8595 = vmatpush1.bf16.msra.mxu0 0
        %8596 = vmatprep.subr.bf16.mxu0 0
        %8597 = vmatpush1.bf16.msra.mxu0 0
        %8598 = vmatprep.subr.bf16.mxu0 0
        %8599 = vmatpush1.bf16.msra.mxu0 0
        %8600 = vmatprep.subr.bf16.mxu0 0
        %8601 = vmatpush1.bf16.msra.mxu0 0
        %8602 = vmatprep.mubr.bf16.mxu0 0
        %8603 = vmatmul.mubr.bf16.gmra.mrb[0].mxu0 %v8568
        %v8604 = vpop.f32.mrb[0].mxu0
        %v8605 = vadd.f32 0.0, %v8604
        %v8606 = vpop.f32.mrb[0].mxu0
        %v8607 = vpop.f32.mrb[0].mxu0
        %v8608 = vpop.f32.mrb[0].mxu0
        %8609 = vdwg.mxu0
        %v8610 = vadd.f32 %v8245, %v8605
        %v8611 = vmax.f32 %v8610, 0.0
        %v8612 = vpack.c.bf16 %v8611, %v8611
        %v8613 = vld [vmem:[%s12] sm:$0xf]
        %v8614 = vld [vmem:[%s12 + $0x4] sm:$0xf]
        %v8615 = vld [vmem:[%s12 + $0x8] sm:$0xf]
        %v8616 = vld [vmem:[%s12 + $0xc] sm:$0xf]
        %v8617 = vld [vmem:[%s12 + $0x10] sm:$0xf]
        %v8618 = vld [vmem:[%s12 + $0x14] sm:$0xf]
        %v8619 = vld [vmem:[%s12 + $0x18] sm:$0xf]
        %v8620 = vld [vmem:[%s12 + $0x1c] sm:$0xf]
        %v8621 = vld [vmem:[%s13] sm:$0x1]
        %v8630 = vunpack.c.l.b16 %v8613
        %v8631 = vunpack.c.l.b16 %v8614
        %v8632 = vunpack.c.l.b16 %v8615
        %v8633 = vunpack.c.l.b16 %v8616
        %v8634 = vunpack.c.l.b16 %v8617
        %v8635 = vunpack.c.l.b16 %v8618
        %v8636 = vunpack.c.l.b16 %v8619
        %v8637 = vunpack.c.l.b16 %v8620
        %v8638 = vpack.c.b16 %v8631, %v8630
        %v8639 = vpack.c.b16 %v8633, %v8632
        %v8640 = vpack.c.b16 %v8635, %v8634
        %v8641 = vpack.c.b16 %v8637, %v8636
        %vm8646 = vcmask 523264
        %v8648 = vsel %vm8646, %v8612, 0
        %8650 = vmatprep.subr.bf16.mxu0 0
        %8651 = vmatpush1.bf16.msra.mxu0 %v8638
        %8652 = vmatprep.subr.bf16.mxu0 0
        %8653 = vmatpush1.bf16.msra.mxu0 %v8639
        %8654 = vmatprep.subr.bf16.mxu0 0
        %8655 = vmatpush1.bf16.msra.mxu0 %v8640
        %8656 = vmatprep.subr.bf16.mxu0 0
        %8657 = vmatpush1.bf16.msra.mxu0 %v8641
        %8658 = vmatprep.subr.bf16.mxu0 0
        %8659 = vmatpush1.bf16.msra.mxu0 0
        %8660 = vmatprep.subr.bf16.mxu0 0
        %8661 = vmatpush1.bf16.msra.mxu0 0
        %8662 = vmatprep.subr.bf16.mxu0 0
        %8663 = vmatpush1.bf16.msra.mxu0 0
        %8664 = vmatprep.subr.bf16.mxu0 0
        %8665 = vmatpush1.bf16.msra.mxu0 0
        %8666 = vmatprep.subr.bf16.mxu0 0
        %8667 = vmatpush1.bf16.msra.mxu0 0
        %8668 = vmatprep.subr.bf16.mxu0 0
        %8669 = vmatpush1.bf16.msra.mxu0 0
        %8670 = vmatprep.subr.bf16.mxu0 0
        %8671 = vmatpush1.bf16.msra.mxu0 0
        %8672 = vmatprep.subr.bf16.mxu0 0
        %8673 = vmatpush1.bf16.msra.mxu0 0
        %8674 = vmatprep.subr.bf16.mxu0 0
        %8675 = vmatpush1.bf16.msra.mxu0 0
        %8676 = vmatprep.subr.bf16.mxu0 0
        %8677 = vmatpush1.bf16.msra.mxu0 0
        %8678 = vmatprep.subr.bf16.mxu0 0
        %8679 = vmatpush1.bf16.msra.mxu0 0
        %8680 = vmatprep.subr.bf16.mxu0 0
        %8681 = vmatpush1.bf16.msra.mxu0 0
        %8682 = vmatprep.mubr.bf16.mxu0 0
        %8683 = vmatmul.mubr.bf16.gmra.mrb[0].mxu0 %v8648
        %v8684 = vpop.f32.mrb[0].mxu0
        %v8685 = vadd.f32 %v8621, %v8684
        %v8686 = vpop.f32.mrb[0].mxu0
        %v8687 = vpop.f32.mrb[0].mxu0
        %v8688 = vpop.f32.mrb[0].mxu0
        %8689 = vdwg.mxu0
        %vm8690 = vcmask 73728
        %8691 = vst.msk [vmem:[%s459] sm:$0x1] %vm8690, %v8685
        %s8692 = sand.u32 %s335, 1
        %s8693 = scalar_lea.sflag [#allocation5], %s8692
        %s8694 = sand.u32 %s335, 1
        %s8695 = scalar_lea.vmem [#allocation4], %s8694
        // Predicated region
        $region77: #{convnet_forward.1} parent=75 // pred_check
          %p8696 = pneg %p345
        $region78: #{convnet_forward.1} parent=75 // pred_check_branch
          %8698 = sbr.rel (%p8696) target = $region80
        $region79: #{convnet_forward.1} parent=75 // pred_region
          %s8700 = ssub.s32 16, 16
          %8701 = vsyncadd %s8693, %s8700
          %s8702 = smul.addr %s28, 16
          %s8703 = scalar_lea.hbm %s14, %s8702
          %s8705 = sshll.u32 %s8695, 4
          %s8706 = int_to_ptr.vmem [resolvable:$true] %s8705
          %8708 = dma.vmem_to_hbm [thread:$0]  %s8706, 16, %s8703, %s8693
        $region80: #{convnet_forward.1} parent=75 // pred_fallthru
          _
      $region76: #{convnet_forward.1} parent=5 // pred_fallthru
        _
      %p8709 = scmp.le.s32.totalorder 2, %s23
      // Predicated region
      $region81: #{convnet_forward.1} parent=5 // pred_check
        %p8710 = pneg %p8709
      $region82: #{convnet_forward.1} parent=5 // pred_check_branch
        %8712 = sbr.rel (%p8710) target = $region84
      $region83: #{convnet_forward.1} parent=5 // pred_region
        %s8713 = ssub.s32 %s23, 2
        // Predicated region
        $region85: #{convnet_forward.1} parent=83 // pred_check
          %p8714 = pneg %p351
        $region86: #{convnet_forward.1} parent=83 // pred_check_branch
          %8716 = sbr.rel (%p8714) target = $region88
        $region87: #{convnet_forward.1} parent=83 // pred_region
          %s8717 = sand.u32 %s336, 1
          %s8718 = scalar_lea.sflag [#allocation5], %s8717
          %s8719 = sand.u32 %s336, 1
          %s8720 = scalar_lea.vmem [#allocation4], %s8719
          %8721 = dma.done %s8718, 16
        $region88: #{convnet_forward.1} parent=83 // pred_fallthru
          _
      $region84: #{convnet_forward.1} parent=5 // pred_fallthru
        _
    $region6: #{convnet_forward.1} parent=1 // loop_footer
      %s27 = sadd.s32 1, %s23
    $region7: #{convnet_forward.1} parent=1 // loop_footer_branch
      %22 = sbr.rel target = $region3
    $region8: #{convnet_forward.1} parent=1 // loop_exit
      _
    %8722 = vsyncpa [#allocation5], 1
    %s8723 = scalar_lea.sflag [#allocation5], 1
    %8724 = vsyncpa %s8723, 1

</llo_original>
